<compile_context>
chip_gen: v7x
topology: tpu7x:2x2x1
jax: 0.10.0
libtpu: 0.0.40
codegen_flags: <defaults>
</compile_context>

<pallas_src>
import functools

import jax
import jax.numpy as jnp
from jax.experimental import pallas as pl
from jax.experimental.pallas import tpu as pltpu

LANE = 128
SUB = 8


def _round_up(n, m):
    return ((n + m - 1) // m) * m


# ----------------------------------------------------------------------------
# Kernel 1: y = relu(x @ w + b).  bf16 in / bf16 out, f32 MXU accumulation.
# grid = (M tiles,) ["parallel"]; K is a single step (all convs have K <= 640).
# ----------------------------------------------------------------------------
def _matmul_relu_kernel(x_ref, w_ref, b_ref, o_ref):
    y = jnp.dot(x_ref[...], w_ref[...], preferred_element_type=jnp.float32)
    o_ref[...] = jnp.maximum(y + b_ref[...], 0.0).astype(o_ref.dtype)


def matmul_bias_relu(x, w, b, *, tm=512):
    """relu(x @ w + b).  x: (M, K) bf16; w: (Kp, Np) bf16 (rows K..Kp are zero);
    b: (1, Np) f32.  Returns (Mp, Np) bf16, Mp >= M (caller trims rows)."""
    M, K = x.shape
    Kp, Np = w.shape
    assert Kp % LANE == 0 and Np % LANE == 0 and K <= Kp

    tm_eff = min(tm, _round_up(M, SUB))
    Mp = _round_up(M, tm_eff)
    if (Mp, Kp) != (M, K):
        x = jnp.pad(x, ((0, Mp - M), (0, Kp - K)))

    return pl.pallas_call(
        _matmul_relu_kernel,
        out_shape=jax.ShapeDtypeStruct((Mp, Np), jnp.bfloat16),
        grid=(Mp // tm_eff,),
        in_specs=[
            pl.BlockSpec((tm_eff, Kp), lambda i: (i, 0)),
            pl.BlockSpec((Kp, Np), lambda i: (0, 0)),
            pl.BlockSpec((1, Np), lambda i: (0, 0)),
        ],
        out_specs=pl.BlockSpec((tm_eff, Np), lambda i: (i, 0)),
        compiler_params=pltpu.CompilerParams(
            dimension_semantics=("parallel",),
            vmem_limit_bytes=32 << 20),
    )(x, w, b)


# ----------------------------------------------------------------------------
# Kernel 2: fused fully-connected head.
#   hid = relu(x @ w1 + b1)                       (adv|val hidden, 1024 wide)
#   y   = hid @ w2 + b2                           (cols [0,A)=adv, col A=val)
#   q   = val + adv - mean(adv)                   (dueling combine, in-kernel)
# ----------------------------------------------------------------------------
def _fc_dueling_kernel(x_ref, w1_ref, b1_ref, w2_ref, b2_ref, o_ref, *,
                       num_actions):
    hid = jnp.dot(x_ref[...], w1_ref[...], preferred_element_type=jnp.float32)
    hid = jnp.maximum(hid + b1_ref[...], 0.0).astype(jnp.bfloat16)
    y = jnp.dot(hid, w2_ref[...], preferred_element_type=jnp.float32)
    y = y + b2_ref[...]
    col = jax.lax.broadcasted_iota(jnp.int32, y.shape, 1)
    adv_mask = col < num_actions
    adv_mean = jnp.sum(jnp.where(adv_mask, y, 0.0), axis=1,
                       keepdims=True) * (1.0 / num_actions)
    val = jnp.sum(jnp.where(col == num_actions, y, 0.0), axis=1, keepdims=True)
    o_ref[...] = jnp.where(adv_mask, y + val - adv_mean, 0.0)


def fc_dueling(feats, w1, b1, w2, b2, *, num_actions, tm=256):
    M, K = feats.shape
    K1, N1 = w1.shape
    _, N2 = w2.shape
    tm_eff = min(tm, _round_up(M, SUB))
    Mp = _round_up(M, tm_eff)
    if (Mp, K1) != (M, K):
        feats = jnp.pad(feats, ((0, Mp - M), (0, K1 - K)))

    return pl.pallas_call(
        functools.partial(_fc_dueling_kernel, num_actions=num_actions),
        out_shape=jax.ShapeDtypeStruct((Mp, N2), jnp.float32),
        grid=(Mp // tm_eff,),
        in_specs=[
            pl.BlockSpec((tm_eff, K1), lambda i: (i, 0)),
            pl.BlockSpec((K1, N1), lambda i: (0, 0)),
            pl.BlockSpec((1, N1), lambda i: (0, 0)),
            pl.BlockSpec((N1, N2), lambda i: (0, 0)),
            pl.BlockSpec((1, N2), lambda i: (0, 0)),
        ],
        out_specs=pl.BlockSpec((tm_eff, N2), lambda i: (i, 0)),
        compiler_params=pltpu.CompilerParams(
            dimension_semantics=("parallel",),
            vmem_limit_bytes=32 << 20),
    )(feats, w1, b1, w2, b2)


# ----------------------------------------------------------------------------
# Conv-as-matmul glue (NHWC im2col, patch order (kh, kw, c)) — plain-JAX.
# TODO(synk): move im2col inside the Pallas kernel (window BlockSpec over the
# NHWC input) to avoid materializing the replicated patch matrix in HBM at
# training-sized batches.
# ----------------------------------------------------------------------------
def _im2col_nhwc(x, k, s):
    B, H, W, C = x.shape
    Ho = (H - k) // s + 1
    Wo = (W - k) // s + 1
    slabs = []
    for di in range(k):
        for dj in range(k):
            slabs.append(x[:, di:di + s * Ho:s, dj:dj + s * Wo:s, :])
    p = jnp.stack(slabs, axis=3)                        # (B, Ho, Wo, k*k, C)
    return p.reshape(B * Ho * Wo, k * k * C), Ho, Wo


def conv2d_relu(x, wmat, b, *, ksize, stride, tm=512):
    """x: (B, H, W, C) NHWC bf16 (C = real channels); wmat: (Kp, Op) bf16 with
    Kp >= k*k*C (zero K-tail); -> (B, Ho, Wo, Op) NHWC bf16."""
    B = x.shape[0]
    patches, Ho, Wo = _im2col_nhwc(x, ksize, stride)
    y = matmul_bias_relu(patches, wmat, b, tm=tm)
    return y[:B * Ho * Wo].reshape(B, Ho, Wo, wmat.shape[1])


# ----------------------------------------------------------------------------
# Parameters: PyTorch-layout init, then one-time conversion to kernel layout.
# ----------------------------------------------------------------------------
def init_torch_params(key, action_dim):
    ks = jax.random.split(key, 10)

    def kaiming(k, shape, fan_in):
        return jax.random.normal(k, shape, jnp.float32) * jnp.sqrt(2.0 / fan_in)

    return {
        "conv1_w": kaiming(ks[0], (32, 4, 8, 8), 4 * 8 * 8),
        "conv1_b": 0.01 * jax.random.normal(ks[1], (32,), jnp.float32),
        "conv2_w": kaiming(ks[2], (64, 32, 4, 4), 32 * 4 * 4),
        "conv2_b": 0.01 * jax.random.normal(ks[3], (64,), jnp.float32),
        "conv3_w": kaiming(ks[4], (64, 64, 3, 3), 64 * 3 * 3),
        "conv3_b": 0.01 * jax.random.normal(ks[5], (64,), jnp.float32),
        "fc1_adv_w": kaiming(ks[6], (512, 3136), 3136),
        "fc1_adv_b": jnp.zeros((512,), jnp.float32),
        "fc1_val_w": kaiming(ks[7], (512, 3136), 3136),
        "fc1_val_b": jnp.zeros((512,), jnp.float32),
        "fc2_adv_w": kaiming(ks[8], (action_dim, 512), 512),
        "fc2_adv_b": jnp.zeros((action_dim,), jnp.float32),
        "fc2_val_w": kaiming(ks[9], (1, 512), 512),
        "fc2_val_b": jnp.zeros((1,), jnp.float32),
    }


def _conv_weight_matrix(w, b, *, o_pad=LANE, scale=1.0):
    # (O, Cin, kh, kw) -> (Kp, o_pad): row index = (di*k + dj)*Cin + c, matching
    # the NHWC im2col patch order with REAL channels; only the K tail (to the
    # next lane multiple) and the output columns beyond O are zero-padded.
    O, Cin, k, _ = w.shape
    wt = jnp.transpose(w, (2, 3, 1, 0)).astype(jnp.float32) * scale  # (k,k,Cin,O)
    wmat = wt.reshape(k * k * Cin, O)
    Kp = _round_up(k * k * Cin, LANE)
    wmat = jnp.pad(wmat, ((0, Kp - k * k * Cin), (0, o_pad - O)))
    bmat = jnp.pad(b, (0, o_pad - O)).reshape(1, o_pad).astype(jnp.float32)
    return wmat.astype(jnp.bfloat16), bmat


def prepare_params(p, action_dim):
    assert action_dim < LANE
    q = {}
    # 1/255 input scaling folded into conv1's weights (bias unchanged).
    q["w1"], q["b1"] = _conv_weight_matrix(p["conv1_w"], p["conv1_b"],
                                           scale=1.0 / 255.0)       # K = 256
    q["w2"], q["b2"] = _conv_weight_matrix(p["conv2_w"], p["conv2_b"])  # K = 512
    q["w3"], q["b3"] = _conv_weight_matrix(p["conv3_w"], p["conv3_b"])  # 576->640

    # fc1: fuse adv/val heads -> (3200, 1024). Rows permuted so our NHWC flatten
    # (h*7*64 + w*64 + c) hits the same weight as PyTorch's NCHW flatten
    # (c*49 + h*7 + w); rows 3136..3199 are zero (K lane padding).
    hh, ww, cc = jnp.meshgrid(jnp.arange(7), jnp.arange(7), jnp.arange(64),
                              indexing="ij")
    perm = (cc * 49 + hh * 7 + ww).reshape(-1)                        # (3136,)
    w_fc1 = jnp.concatenate([p["fc1_adv_w"], p["fc1_val_w"]], axis=0).T
    w_fc1 = jnp.pad(w_fc1[perm, :], ((0, 3200 - 3136), (0, 0)))
    q["w_fc1"] = w_fc1.astype(jnp.bfloat16)
    q["b_fc1"] = jnp.concatenate(
        [p["fc1_adv_b"], p["fc1_val_b"]]).reshape(1, 1024).astype(jnp.float32)

    # fc2: block fusion -> (1024, 128). Cols [0, A) advantage, col A value, rest 0.
    A = action_dim
    w_fc2 = jnp.zeros((1024, LANE), jnp.float32)
    w_fc2 = w_fc2.at[:512, :A].set(p["fc2_adv_w"].T)
    w_fc2 = w_fc2.at[512:, A].set(p["fc2_val_w"][0])
    q["w_fc2"] = w_fc2.astype(jnp.bfloat16)
    b_fc2 = jnp.zeros((LANE,), jnp.float32)
    b_fc2 = b_fc2.at[:A].set(p["fc2_adv_b"]).at[A].set(p["fc2_val_b"][0])
    q["b_fc2"] = b_fc2.reshape(1, LANE)
    return q


# ----------------------------------------------------------------------------
# Forward pass (matches DQN.forward semantics; bf16 weights/activations,
# f32 MXU accumulation).
# ----------------------------------------------------------------------------
def dqn_forward(x, params, action_dim):
    B = x.shape[0]
    # NCHW -> NHWC once; bf16 activations end-to-end (1/255 folded into w1).
    x = jnp.transpose(x, (0, 2, 3, 1)).astype(jnp.bfloat16)
    x = conv2d_relu(x, params["w1"], params["b1"], ksize=8, stride=4, tm=400)
    x = conv2d_relu(x[..., :32], params["w2"], params["b2"], ksize=4, stride=2)
    x = conv2d_relu(x[..., :64], params["w3"], params["b3"], ksize=3, stride=1)
    feats = x[..., :64].reshape(B, 7 * 7 * 64)            # (B, 3136) bf16

    # One fused pallas_call: fc1(adv|val) -> relu -> fc2(adv|val) -> dueling.
    q = fc_dueling(feats, params["w_fc1"], params["b_fc1"],
                   params["w_fc2"], params["b_fc2"], num_actions=action_dim)
    return q[:B, :action_dim]


# ----------------------------------------------------------------------------
# Pure-JAX f32 reference (mirrors the PyTorch module) for a tolerance check.
# ----------------------------------------------------------------------------
def dqn_reference(x, p):
    x = x.astype(jnp.float32) / 255.0

    def conv(x, w, b, s):
        y = jax.lax.conv_general_dilated(
            x, w, window_strides=(s, s), padding="VALID",
            dimension_numbers=("NCHW", "OIHW", "NCHW"))
        return jax.nn.relu(y + b[None, :, None, None])

    x = conv(x, p["conv1_w"], p["conv1_b"], 4)
    x = conv(x, p["conv2_w"], p["conv2_b"], 2)
    x = conv(x, p["conv3_w"], p["conv3_b"], 1)
    f = x.reshape(x.shape[0], -1)
    adv = jax.nn.relu(f @ p["fc1_adv_w"].T + p["fc1_adv_b"])
    val = jax.nn.relu(f @ p["fc1_val_w"].T + p["fc1_val_b"])
    adv = adv @ p["fc2_adv_w"].T + p["fc2_adv_b"]
    val = val @ p["fc2_val_w"].T + p["fc2_val_b"]
    return val + adv - adv.mean(axis=1, keepdims=True)


if __name__ == "__main__":
    ACTION_DIM = 6
    B = 2  # spatial must be 84x84: the module hard-codes the 7*7*64 flatten

    key = jax.random.PRNGKey(0)
    k_x, k_p = jax.random.split(key)
    x = jnp.round(jax.random.uniform(k_x, (B, 4, 84, 84), jnp.float32, 0.0, 255.0))
    torch_params = init_torch_params(k_p, ACTION_DIM)
    params = prepare_params(torch_params, ACTION_DIM)   # one-time layout/pad/bf16

    fwd = jax.jit(functools.partial(dqn_forward, action_dim=ACTION_DIM))
    q = fwd(x, params)
    jax.block_until_ready(q)

    assert q.shape == (B, ACTION_DIM) and q.dtype == jnp.float32
    q_ref = dqn_reference(x, torch_params)
    err = float(jnp.max(jnp.abs(q - q_ref)))
    tol = 5e-2 * (1.0 + float(jnp.max(jnp.abs(q_ref))))  # bf16 weights/activations
    assert err < tol, f"mismatch vs f32 reference: max abs err {err} (tol {tol})"
    print("KERNEL_OK")
</pallas_src>

<mosaic_0001>
module attributes {stable_mosaic.version = 11 : i64} {
  func.func @_matmul_relu_kernel(%arg0: i32, %arg1: memref<400x256xbf16, #tpu.memory_space<vmem>>, %arg2: memref<256x128xbf16, #tpu.memory_space<vmem>>, %arg3: memref<1x128xf32, #tpu.memory_space<vmem>>, %arg4: memref<400x128xbf16, #tpu.memory_space<vmem>>) attributes {dimension_semantics = [#tpu.dimension_semantics<parallel>], iteration_bounds = array<i64: 2>, scalar_prefetch = 0 : i64, scratch_operands = 0 : i64, tpu.core_type = #tpu.core_type<tc>, window_params = [{transform_indices = @transform_0, window_bounds = array<i64: 400, 256>}, {pipeline_mode = #tpu.pipeline_mode<synchronous>, transform_indices = @transform_1, window_bounds = array<i64: 256, 128>}, {pipeline_mode = #tpu.pipeline_mode<synchronous>, transform_indices = @transform_2, window_bounds = array<i64: 1, 128>}, {transform_indices = @transform_3, window_bounds = array<i64: 400, 128>}]} {
    %c0 = arith.constant 0 : index
    %c0_0 = arith.constant 0 : index
    %0 = vector.load %arg1[%c0, %c0_0] : memref<400x256xbf16, #tpu.memory_space<vmem>>, vector<400x256xbf16>
    %c0_1 = arith.constant 0 : index
    %c0_2 = arith.constant 0 : index
    %1 = vector.load %arg2[%c0_1, %c0_2] : memref<256x128xbf16, #tpu.memory_space<vmem>>, vector<256x128xbf16>
    %cst = arith.constant dense<0.000000e+00> : vector<400x128xf32>
    %2 = tpu.matmul %0, %1, %cst {dimension_numbers = #tpu.dot_dimension_numbers<[1], [0], [0], [1], [0, 0, 1, 1], [], []>} : vector<400x256xbf16>, vector<256x128xbf16>, vector<400x128xf32> -> vector<400x128xf32>
    %c0_3 = arith.constant 0 : index
    %c0_4 = arith.constant 0 : index
    %3 = vector.load %arg3[%c0_3, %c0_4] : memref<1x128xf32, #tpu.memory_space<vmem>>, vector<1x128xf32>
    %4 = vector.broadcast %3 : vector<1x128xf32> to vector<400x128xf32>
    %5 = arith.addf %2, %4 : vector<400x128xf32>
    %cst_5 = arith.constant 0.000000e+00 : f32
    %6 = vector.broadcast %cst_5 : f32 to vector<400x128xf32>
    %7 = arith.maximumf %5, %6 : vector<400x128xf32>
    %8 = arith.truncf %7 : vector<400x128xf32> to vector<400x128xbf16>
    %c0_6 = arith.constant 0 : index
    %c0_7 = arith.constant 0 : index
    %9 = vector.load %arg4[%c0_6, %c0_7] : memref<400x128xbf16, #tpu.memory_space<vmem>>, vector<400x128xbf16>
    tpu.vector_store %arg4[%c0_6, %c0_7], %8 {strides = array<i32>} : memref<400x128xbf16, #tpu.memory_space<vmem>>, vector<400x128xbf16>,
    return
  }
  func.func @transform_0(%arg0: i32) -> (i32, i32) {
    %c0_i32 = arith.constant 0 : i32
    %c0_i32_0 = arith.constant 0 : i32
    return %arg0, %c0_i32 : i32, i32
  }
  func.func @transform_1(%arg0: i32) -> (i32, i32) {
    %c0_i32 = arith.constant 0 : i32
    %c0_i32_0 = arith.constant 0 : i32
    %c0_i32_1 = arith.constant 0 : i32
    return %c0_i32, %c0_i32_0 : i32, i32
  }
  func.func @transform_2(%arg0: i32) -> (i32, i32) {
    %c0_i32 = arith.constant 0 : i32
    %c0_i32_0 = arith.constant 0 : i32
    %c0_i32_1 = arith.constant 0 : i32
    return %c0_i32, %c0_i32_0 : i32, i32
  }
  func.func @transform_3(%arg0: i32) -> (i32, i32) {
    %c0_i32 = arith.constant 0 : i32
    %c0_i32_0 = arith.constant 0 : i32
    return %arg0, %c0_i32 : i32, i32
  }
}

module attributes {stable_mosaic.version = 11 : i64} {
  func.func @_matmul_relu_kernel(%arg0: i32, %arg1: memref<168x512xbf16, #tpu.memory_space<vmem>>, %arg2: memref<512x128xbf16, #tpu.memory_space<vmem>>, %arg3: memref<1x128xf32, #tpu.memory_space<vmem>>, %arg4: memref<168x128xbf16, #tpu.memory_space<vmem>>) attributes {dimension_semantics = [#tpu.dimension_semantics<parallel>], iteration_bounds = array<i64: 1>, scalar_prefetch = 0 : i64, scratch_operands = 0 : i64, tpu.core_type = #tpu.core_type<tc>, window_params = [{transform_indices = @transform_0, window_bounds = array<i64: 168, 512>}, {pipeline_mode = #tpu.pipeline_mode<synchronous>, transform_indices = @transform_1, window_bounds = array<i64: 512, 128>}, {pipeline_mode = #tpu.pipeline_mode<synchronous>, transform_indices = @transform_2, window_bounds = array<i64: 1, 128>}, {transform_indices = @transform_3, window_bounds = array<i64: 168, 128>}]} {
    %c0 = arith.constant 0 : index
    %c0_0 = arith.constant 0 : index
    %0 = vector.load %arg1[%c0, %c0_0] : memref<168x512xbf16, #tpu.memory_space<vmem>>, vector<168x512xbf16>
    %c0_1 = arith.constant 0 : index
    %c0_2 = arith.constant 0 : index
    %1 = vector.load %arg2[%c0_1, %c0_2] : memref<512x128xbf16, #tpu.memory_space<vmem>>, vector<512x128xbf16>
    %cst = arith.constant dense<0.000000e+00> : vector<168x128xf32>
    %2 = tpu.matmul %0, %1, %cst {dimension_numbers = #tpu.dot_dimension_numbers<[1], [0], [0], [1], [0, 0, 1, 1], [], []>} : vector<168x512xbf16>, vector<512x128xbf16>, vector<168x128xf32> -> vector<168x128xf32>
    %c0_3 = arith.constant 0 : index
    %c0_4 = arith.constant 0 : index
    %3 = vector.load %arg3[%c0_3, %c0_4] : memref<1x128xf32, #tpu.memory_space<vmem>>, vector<1x128xf32>
    %4 = vector.broadcast %3 : vector<1x128xf32> to vector<168x128xf32>
    %5 = arith.addf %2, %4 : vector<168x128xf32>
    %cst_5 = arith.constant 0.000000e+00 : f32
    %6 = vector.broadcast %cst_5 : f32 to vector<168x128xf32>
    %7 = arith.maximumf %5, %6 : vector<168x128xf32>
    %8 = arith.truncf %7 : vector<168x128xf32> to vector<168x128xbf16>
    %c0_6 = arith.constant 0 : index
    %c0_7 = arith.constant 0 : index
    %9 = vector.load %arg4[%c0_6, %c0_7] : memref<168x128xbf16, #tpu.memory_space<vmem>>, vector<168x128xbf16>
    tpu.vector_store %arg4[%c0_6, %c0_7], %8 {strides = array<i32>} : memref<168x128xbf16, #tpu.memory_space<vmem>>, vector<168x128xbf16>,
    return
  }
  func.func @transform_0(%arg0: i32) -> (i32, i32) {
    %c0_i32 = arith.constant 0 : i32
    %c0_i32_0 = arith.constant 0 : i32
    return %arg0, %c0_i32 : i32, i32
  }
  func.func @transform_1(%arg0: i32) -> (i32, i32) {
    %c0_i32 = arith.constant 0 : i32
    %c0_i32_0 = arith.constant 0 : i32
    %c0_i32_1 = arith.constant 0 : i32
    return %c0_i32, %c0_i32_0 : i32, i32
  }
  func.func @transform_2(%arg0: i32) -> (i32, i32) {
    %c0_i32 = arith.constant 0 : i32
    %c0_i32_0 = arith.constant 0 : i32
    %c0_i32_1 = arith.constant 0 : i32
    return %c0_i32, %c0_i32_0 : i32, i32
  }
  func.func @transform_3(%arg0: i32) -> (i32, i32) {
    %c0_i32 = arith.constant 0 : i32
    %c0_i32_0 = arith.constant 0 : i32
    return %arg0, %c0_i32 : i32, i32
  }
}

module attributes {stable_mosaic.version = 11 : i64} {
  func.func @_matmul_relu_kernel(%arg0: i32, %arg1: memref<104x640xbf16, #tpu.memory_space<vmem>>, %arg2: memref<640x128xbf16, #tpu.memory_space<vmem>>, %arg3: memref<1x128xf32, #tpu.memory_space<vmem>>, %arg4: memref<104x128xbf16, #tpu.memory_space<vmem>>) attributes {dimension_semantics = [#tpu.dimension_semantics<parallel>], iteration_bounds = array<i64: 1>, scalar_prefetch = 0 : i64, scratch_operands = 0 : i64, tpu.core_type = #tpu.core_type<tc>, window_params = [{transform_indices = @transform_0, window_bounds = array<i64: 104, 640>}, {pipeline_mode = #tpu.pipeline_mode<synchronous>, transform_indices = @transform_1, window_bounds = array<i64: 640, 128>}, {pipeline_mode = #tpu.pipeline_mode<synchronous>, transform_indices = @transform_2, window_bounds = array<i64: 1, 128>}, {transform_indices = @transform_3, window_bounds = array<i64: 104, 128>}]} {
    %c0 = arith.constant 0 : index
    %c0_0 = arith.constant 0 : index
    %0 = vector.load %arg1[%c0, %c0_0] : memref<104x640xbf16, #tpu.memory_space<vmem>>, vector<104x640xbf16>
    %c0_1 = arith.constant 0 : index
    %c0_2 = arith.constant 0 : index
    %1 = vector.load %arg2[%c0_1, %c0_2] : memref<640x128xbf16, #tpu.memory_space<vmem>>, vector<640x128xbf16>
    %cst = arith.constant dense<0.000000e+00> : vector<104x128xf32>
    %2 = tpu.matmul %0, %1, %cst {dimension_numbers = #tpu.dot_dimension_numbers<[1], [0], [0], [1], [0, 0, 1, 1], [], []>} : vector<104x640xbf16>, vector<640x128xbf16>, vector<104x128xf32> -> vector<104x128xf32>
    %c0_3 = arith.constant 0 : index
    %c0_4 = arith.constant 0 : index
    %3 = vector.load %arg3[%c0_3, %c0_4] : memref<1x128xf32, #tpu.memory_space<vmem>>, vector<1x128xf32>
    %4 = vector.broadcast %3 : vector<1x128xf32> to vector<104x128xf32>
    %5 = arith.addf %2, %4 : vector<104x128xf32>
    %cst_5 = arith.constant 0.000000e+00 : f32
    %6 = vector.broadcast %cst_5 : f32 to vector<104x128xf32>
    %7 = arith.maximumf %5, %6 : vector<104x128xf32>
    %8 = arith.truncf %7 : vector<104x128xf32> to vector<104x128xbf16>
    %c0_6 = arith.constant 0 : index
    %c0_7 = arith.constant 0 : index
    %9 = vector.load %arg4[%c0_6, %c0_7] : memref<104x128xbf16, #tpu.memory_space<vmem>>, vector<104x128xbf16>
    tpu.vector_store %arg4[%c0_6, %c0_7], %8 {strides = array<i32>} : memref<104x128xbf16, #tpu.memory_space<vmem>>, vector<104x128xbf16>,
    return
  }
  func.func @transform_0(%arg0: i32) -> (i32, i32) {
    %c0_i32 = arith.constant 0 : i32
    %c0_i32_0 = arith.constant 0 : i32
    return %arg0, %c0_i32 : i32, i32
  }
  func.func @transform_1(%arg0: i32) -> (i32, i32) {
    %c0_i32 = arith.constant 0 : i32
    %c0_i32_0 = arith.constant 0 : i32
    %c0_i32_1 = arith.constant 0 : i32
    return %c0_i32, %c0_i32_0 : i32, i32
  }
  func.func @transform_2(%arg0: i32) -> (i32, i32) {
    %c0_i32 = arith.constant 0 : i32
    %c0_i32_0 = arith.constant 0 : i32
    %c0_i32_1 = arith.constant 0 : i32
    return %c0_i32, %c0_i32_0 : i32, i32
  }
  func.func @transform_3(%arg0: i32) -> (i32, i32) {
    %c0_i32 = arith.constant 0 : i32
    %c0_i32_0 = arith.constant 0 : i32
    return %arg0, %c0_i32 : i32, i32
  }
}

module attributes {stable_mosaic.version = 11 : i64} {
  func.func @_fc_dueling_kernel(%arg0: i32, %arg1: memref<8x3200xbf16, #tpu.memory_space<vmem>>, %arg2: memref<3200x1024xbf16, #tpu.memory_space<vmem>>, %arg3: memref<1x1024xf32, #tpu.memory_space<vmem>>, %arg4: memref<1024x128xbf16, #tpu.memory_space<vmem>>, %arg5: memref<1x128xf32, #tpu.memory_space<vmem>>, %arg6: memref<8x128xf32, #tpu.memory_space<vmem>>) attributes {dimension_semantics = [#tpu.dimension_semantics<parallel>], iteration_bounds = array<i64: 1>, scalar_prefetch = 0 : i64, scratch_operands = 0 : i64, tpu.core_type = #tpu.core_type<tc>, window_params = [{transform_indices = @transform_0, window_bounds = array<i64: 8, 3200>}, {pipeline_mode = #tpu.pipeline_mode<synchronous>, transform_indices = @transform_1, window_bounds = array<i64: 3200, 1024>}, {pipeline_mode = #tpu.pipeline_mode<synchronous>, transform_indices = @transform_2, window_bounds = array<i64: 1, 1024>}, {pipeline_mode = #tpu.pipeline_mode<synchronous>, transform_indices = @transform_3, window_bounds = array<i64: 1024, 128>}, {pipeline_mode = #tpu.pipeline_mode<synchronous>, transform_indices = @transform_4, window_bounds = array<i64: 1, 128>}, {transform_indices = @transform_5, window_bounds = array<i64: 8, 128>}]} {
    %c0 = arith.constant 0 : index
    %c0_0 = arith.constant 0 : index
    %0 = vector.load %arg1[%c0, %c0_0] : memref<8x3200xbf16, #tpu.memory_space<vmem>>, vector<8x3200xbf16>
    %c0_1 = arith.constant 0 : index
    %c0_2 = arith.constant 0 : index
    %1 = vector.load %arg2[%c0_1, %c0_2] : memref<3200x1024xbf16, #tpu.memory_space<vmem>>, vector<3200x1024xbf16>
    %cst = arith.constant dense<0.000000e+00> : vector<8x1024xf32>
    %2 = tpu.matmul %0, %1, %cst {dimension_numbers = #tpu.dot_dimension_numbers<[1], [0], [0], [1], [0, 0, 1, 1], [], []>} : vector<8x3200xbf16>, vector<3200x1024xbf16>, vector<8x1024xf32> -> vector<8x1024xf32>
    %c0_3 = arith.constant 0 : index
    %c0_4 = arith.constant 0 : index
    %3 = vector.load %arg3[%c0_3, %c0_4] : memref<1x1024xf32, #tpu.memory_space<vmem>>, vector<1x1024xf32>
    %4 = vector.broadcast %3 : vector<1x1024xf32> to vector<8x1024xf32>
    %5 = arith.addf %2, %4 : vector<8x1024xf32>
    %cst_5 = arith.constant 0.000000e+00 : f32
    %6 = vector.broadcast %cst_5 : f32 to vector<8x1024xf32>
    %7 = arith.maximumf %5, %6 : vector<8x1024xf32>
    %8 = arith.truncf %7 : vector<8x1024xf32> to vector<8x1024xbf16>
    %c0_6 = arith.constant 0 : index
    %c0_7 = arith.constant 0 : index
    %9 = vector.load %arg4[%c0_6, %c0_7] : memref<1024x128xbf16, #tpu.memory_space<vmem>>, vector<1024x128xbf16>
    %cst_8 = arith.constant dense<0.000000e+00> : vector<8x128xf32>
    %10 = tpu.matmul %8, %9, %cst_8 {dimension_numbers = #tpu.dot_dimension_numbers<[1], [0], [0], [1], [0, 0, 1, 1], [], []>} : vector<8x1024xbf16>, vector<1024x128xbf16>, vector<8x128xf32> -> vector<8x128xf32>
    %c0_9 = arith.constant 0 : index
    %c0_10 = arith.constant 0 : index
    %11 = vector.load %arg5[%c0_9, %c0_10] : memref<1x128xf32, #tpu.memory_space<vmem>>, vector<1x128xf32>
    %12 = vector.broadcast %11 : vector<1x128xf32> to vector<8x128xf32>
    %13 = arith.addf %10, %12 : vector<8x128xf32>
    %14 = tpu.iota {dimensions = array<i32: 1>} : vector<8x128xi32>
    %c6_i32 = arith.constant 6 : i32
    %15 = vector.broadcast %c6_i32 : i32 to vector<8x128xi32>
    %16 = arith.cmpi slt, %14, %15 : vector<8x128xi32>
    %cst_11 = arith.constant 0.000000e+00 : f32
    %17 = vector.broadcast %cst_11 : f32 to vector<8x128xf32>
    %18 = arith.select %16, %13, %17 : vector<8x128xi1>, vector<8x128xf32>
    %cst_12 = arith.constant dense<0.000000e+00> : vector<8xf32>
    %19 = vector.multi_reduction <add>, %18, %cst_12 [1] : vector<8x128xf32> to vector<8xf32>
    %20 = vector.shape_cast %19 : vector<8xf32> to vector<8x1xf32>
    %cst_13 = arith.constant 0.166666672 : f32
    %21 = vector.broadcast %cst_13 : f32 to vector<8x1xf32>
    %22 = arith.mulf %20, %21 : vector<8x1xf32>
    %c6_i32_14 = arith.constant 6 : i32
    %23 = vector.broadcast %c6_i32_14 : i32 to vector<8x128xi32>
    %24 = arith.cmpi eq, %14, %23 : vector<8x128xi32>
    %cst_15 = arith.constant 0.000000e+00 : f32
    %25 = vector.broadcast %cst_15 : f32 to vector<8x128xf32>
    %26 = arith.select %24, %13, %25 : vector<8x128xi1>, vector<8x128xf32>
    %cst_16 = arith.constant dense<0.000000e+00> : vector<8xf32>
    %27 = vector.multi_reduction <add>, %26, %cst_16 [1] : vector<8x128xf32> to vector<8xf32>
    %28 = vector.shape_cast %27 : vector<8xf32> to vector<8x1xf32>
    %29 = vector.broadcast %28 : vector<8x1xf32> to vector<8x128xf32>
    %30 = arith.addf %13, %29 : vector<8x128xf32>
    %31 = vector.broadcast %22 : vector<8x1xf32> to vector<8x128xf32>
    %32 = arith.subf %30, %31 : vector<8x128xf32>
    %cst_17 = arith.constant 0.000000e+00 : f32
    %33 = vector.broadcast %cst_17 : f32 to vector<8x128xf32>
    %34 = arith.select %16, %32, %33 : vector<8x128xi1>, vector<8x128xf32>
    %c0_18 = arith.constant 0 : index
    %c0_19 = arith.constant 0 : index
    %35 = vector.load %arg6[%c0_18, %c0_19] : memref<8x128xf32, #tpu.memory_space<vmem>>, vector<8x128xf32>
    tpu.vector_store %arg6[%c0_18, %c0_19], %34 {strides = array<i32>} : memref<8x128xf32, #tpu.memory_space<vmem>>, vector<8x128xf32>,
    return
  }
  func.func @transform_0(%arg0: i32) -> (i32, i32) {
    %c0_i32 = arith.constant 0 : i32
    %c0_i32_0 = arith.constant 0 : i32
    return %arg0, %c0_i32 : i32, i32
  }
  func.func @transform_1(%arg0: i32) -> (i32, i32) {
    %c0_i32 = arith.constant 0 : i32
    %c0_i32_0 = arith.constant 0 : i32
    %c0_i32_1 = arith.constant 0 : i32
    return %c0_i32, %c0_i32_0 : i32, i32
  }
  func.func @transform_2(%arg0: i32) -> (i32, i32) {
    %c0_i32 = arith.constant 0 : i32
    %c0_i32_0 = arith.constant 0 : i32
    %c0_i32_1 = arith.constant 0 : i32
    return %c0_i32, %c0_i32_0 : i32, i32
  }
  func.func @transform_3(%arg0: i32) -> (i32, i32) {
    %c0_i32 = arith.constant 0 : i32
    %c0_i32_0 = arith.constant 0 : i32
    %c0_i32_1 = arith.constant 0 : i32
    return %c0_i32, %c0_i32_0 : i32, i32
  }
  func.func @transform_4(%arg0: i32) -> (i32, i32) {
    %c0_i32 = arith.constant 0 : i32
    %c0_i32_0 = arith.constant 0 : i32
    %c0_i32_1 = arith.constant 0 : i32
    return %c0_i32, %c0_i32_0 : i32, i32
  }
  func.func @transform_5(%arg0: i32) -> (i32, i32) {
    %c0_i32 = arith.constant 0 : i32
    %c0_i32_0 = arith.constant 0 : i32
    return %arg0, %c0_i32 : i32, i32
  }
}

</mosaic_0001>

<llo_original>
// kernel: dqn_forward.4
$region0: #{dqn_forward.4}
  #allocation0 [shape = 'u32[]', space=smem, size = 0x4, offset = 0x4, fixed_abs, tag = 'smem constant byte address 0x4 - core index']
  #allocation1 [shape = 'u32[144,128]{1,0:T(1,128)}', space=vmem, size = 0x12000, scoped, tag = 'internal scratch']
  %s0 = inlined_call_operand.vmem [shape: bf16[800,256], index: 0, kind: input, shape index: {}]
  %s1 = inlined_call_operand.vmem [shape: bf16[256,128], index: 1, kind: input, shape index: {}]
  %s2 = inlined_call_operand.vmem [shape: f32[1,128], index: 2, kind: input, shape index: {}]
  %s3 = inlined_call_operand.vmem [shape: bf16[800,128], index: 3, kind: output, shape index: {}]
  %s4 = sld [smem:[#allocation0]]
  $region45: #{dqn_forward.4} parent=0
    _
  %s6 = ssub.s32 1, %s4
  %s7 = scalar_select 0, %s6, %s4
  loop: start=0, step=1, limit=4
  $region2: #{dqn_forward.4} parent=0 // loop_pre_header
    _
  $region3: #{dqn_forward.4} parent=0 // loop_header
    %s9 = sphi 0, %s13
    %p10 = scmp.ge.s32.totalorder %s9, 4
    %s19 = sphi 0, %s21
    %s22 = sphi 0, %s19
    %s23 = sphi 0, %s22
    %s39 = sphi 0, %s23
    %s43 = sphi 0, %s43
    %s45 = sphi 0, %s43
    %s46 = sphi 0, %s45
    %s60 = sphi 0, %s46
    %s64 = sphi 0, %s64
    %s66 = sphi 0, %s64
    %s67 = sphi 0, %s66
    %s81 = sphi 0, %s67
    %s87 = sphi 0, %s89
    %s90 = sphi 0, %s87
    %s91 = sphi 0, %s90
    %s107 = sphi 0, %s91
  $region4: #{dqn_forward.4} parent=0 // loop_header_branch
    %12 = sbr.rel (%p10) target = $region8
  $region5: #{dqn_forward.4} parent=0 // loop_body
    %s14 = ssub.s32 %s9, 1
    %s15 = ssub.s32 %s9, 2
    %s16 = sadd.s32 %s9, 1
    %s17 = ssub.s32 %s9, %s16
    %p18 = scmp.eq.s32.totalorder %s17, 0
    %s20 = sadd.s32 %s19, 1
    %s21 = scalar_select %p18, %s19, %s20
    %p24 = pneg %p18
    %p25 = scmp.eq.s32.totalorder %s9, 1
    %p26 = por %p24, %p25
    %p27 = scmp.ne.s32.totalorder %s19, %s22
    %p28 = scmp.eq.s32.totalorder %s9, 0
    %p29 = por %p27, %p28
    %p30 = scmp.ne.s32.totalorder %s19, %s22
    %p31 = scmp.eq.s32.totalorder %s14, 1
    %p32 = por %p30, %p31
    %p33 = scmp.ne.s32.totalorder %s22, %s23
    %p34 = scmp.eq.s32.totalorder %s14, 0
    %p35 = por %p33, %p34
    %p36 = scmp.ne.s32.totalorder %s22, %s23
    %p37 = scmp.eq.s32.totalorder %s15, 1
    %p38 = por %p36, %p37
    %p40 = scmp.ne.s32.totalorder %s23, %s39
    %p41 = scmp.eq.s32.totalorder %s15, 0
    %p42 = por %p40, %p41
    %s44 = sadd.s32 %s43, 1
    %p47 = scmp.eq.s32.totalorder %s9, 1
    %p48 = scmp.ne.s32.totalorder %s43, %s45
    %p49 = scmp.eq.s32.totalorder %s9, 0
    %p50 = por %p48, %p49
    %p51 = scmp.ne.s32.totalorder %s43, %s45
    %p52 = scmp.eq.s32.totalorder %s14, 1
    %p53 = por %p51, %p52
    %p54 = scmp.ne.s32.totalorder %s45, %s46
    %p55 = scmp.eq.s32.totalorder %s14, 0
    %p56 = por %p54, %p55
    %p57 = scmp.ne.s32.totalorder %s45, %s46
    %p58 = scmp.eq.s32.totalorder %s15, 1
    %p59 = por %p57, %p58
    %p61 = scmp.ne.s32.totalorder %s46, %s60
    %p62 = scmp.eq.s32.totalorder %s15, 0
    %p63 = por %p61, %p62
    %s65 = sadd.s32 %s64, 1
    %p68 = scmp.eq.s32.totalorder %s9, 1
    %p69 = scmp.ne.s32.totalorder %s64, %s66
    %p70 = scmp.eq.s32.totalorder %s9, 0
    %p71 = por %p69, %p70
    %p72 = scmp.ne.s32.totalorder %s64, %s66
    %p73 = scmp.eq.s32.totalorder %s14, 1
    %p74 = por %p72, %p73
    %p75 = scmp.ne.s32.totalorder %s66, %s67
    %p76 = scmp.eq.s32.totalorder %s14, 0
    %p77 = por %p75, %p76
    %p78 = scmp.ne.s32.totalorder %s66, %s67
    %p79 = scmp.eq.s32.totalorder %s15, 1
    %p80 = por %p78, %p79
    %p82 = scmp.ne.s32.totalorder %s67, %s81
    %p83 = scmp.eq.s32.totalorder %s15, 0
    %p84 = por %p82, %p83
    %s85 = ssub.s32 %s9, %s16
    %p86 = scmp.eq.s32.totalorder %s85, 0
    %s88 = sadd.s32 %s87, 1
    %s89 = scalar_select %p86, %s87, %s88
    %p92 = pneg %p86
    %p93 = scmp.eq.s32.totalorder %s9, 1
    %p94 = por %p92, %p93
    %p95 = scmp.ne.s32.totalorder %s87, %s90
    %p96 = scmp.eq.s32.totalorder %s9, 0
    %p97 = por %p95, %p96
    %p98 = scmp.ne.s32.totalorder %s87, %s90
    %p99 = scmp.eq.s32.totalorder %s14, 1
    %p100 = por %p98, %p99
    %p101 = scmp.ne.s32.totalorder %s90, %s91
    %p102 = scmp.eq.s32.totalorder %s14, 0
    %p103 = por %p101, %p102
    %p104 = scmp.ne.s32.totalorder %s90, %s91
    %p105 = scmp.eq.s32.totalorder %s15, 1
    %p106 = por %p104, %p105
    %p108 = scmp.ne.s32.totalorder %s91, %s107
    %p109 = scmp.eq.s32.totalorder %s15, 0
    %p110 = por %p108, %p109
    %p111 = scmp.le.s32.totalorder 1, %s9
    %p112 = scmp.lt.s32.totalorder %s9, 3
    %p113 = pnand %p111, %p112
    %p114 = pneg %p113
    // Predicated region
    $region9: #{dqn_forward.4} parent=5 // pred_check
      _
    $region10: #{dqn_forward.4} parent=5 // pred_check_branch
      %116 = sbr.rel (%p113) target = $region12
    $region11: #{dqn_forward.4} parent=5 // pred_region
      %s117 = ssub.s32 %s9, 1
      // Predicated region
      $region13: #{dqn_forward.4} parent=11 // pred_check
        %p118 = pneg %p56
      $region14: #{dqn_forward.4} parent=11 // pred_check_branch
        %120 = sbr.rel (%p118) target = $region16
      $region15: #{dqn_forward.4} parent=11 // pred_region
        _
      $region16: #{dqn_forward.4} parent=11 // pred_fallthru
        _
      // Predicated region
      $region17: #{dqn_forward.4} parent=11 // pred_check
        %p121 = pneg %p77
      $region18: #{dqn_forward.4} parent=11 // pred_check_branch
        %123 = sbr.rel (%p121) target = $region20
      $region19: #{dqn_forward.4} parent=11 // pred_region
        _
      $region20: #{dqn_forward.4} parent=11 // pred_fallthru
        _
    $region12: #{dqn_forward.4} parent=5 // pred_fallthru
      _
    %p124 = scmp.lt.s32.totalorder %s9, 2
    // Predicated region
    $region21: #{dqn_forward.4} parent=5 // pred_check
      %p125 = pneg %p124
    $region22: #{dqn_forward.4} parent=5 // pred_check_branch
      %127 = sbr.rel (%p125) target = $region24
    $region23: #{dqn_forward.4} parent=5 // pred_region
      // Predicated region
      $region25: #{dqn_forward.4} parent=23 // pred_check
        %p128 = pneg %p29
      $region26: #{dqn_forward.4} parent=23 // pred_check_branch
        %130 = sbr.rel (%p128) target = $region28
      $region27: #{dqn_forward.4} parent=23 // pred_region
        %s131 = smul.u32 50, %s9
        %p132 = scmp.lt.s32.totalorder %s131, 99
        %s133 = scalar_select %p132, %s131, 99
        %s134 = smul.addr %s133, 2
        %s135 = smul.addr %s134, 4
        %s136 = scalar_lea.vmem %s0, %s135
        %s137 = smul.u32 50, %s9
      $region28: #{dqn_forward.4} parent=23 // pred_fallthru
        _
    $region24: #{dqn_forward.4} parent=5 // pred_fallthru
      _
    %p138 = scmp.le.s32.totalorder 1, %s9
    %p139 = scmp.lt.s32.totalorder %s9, 3
    %p140 = pnand %p138, %p139
    %p141 = pneg %p140
    // Predicated region
    $region29: #{dqn_forward.4} parent=5 // pred_check
      _
    $region30: #{dqn_forward.4} parent=5 // pred_check_branch
      %143 = sbr.rel (%p140) target = $region32
    $region31: #{dqn_forward.4} parent=5 // pred_region
      %s144 = ssub.s32 %s9, 1
      %s145 = smul.u32 50, %s14
      %p146 = scmp.lt.s32.totalorder %s145, 99
      %s147 = scalar_select %p146, %s145, 99
      %s148 = smul.addr %s147, 2
      %s149 = smul.addr %s148, 4
      %s150 = scalar_lea.vmem %s0, %s149
      %p151 = pneg %p35
      %p152 = pneg %p32
      %p153 = pneg %p56
      %p154 = pneg %p53
      %p155 = pneg %p77
      %p156 = pneg %p74
      %p157 = pneg %p103
      %p158 = pneg %p100
      %s159 = smul.u32 50, %s14
      %p160 = scmp.lt.s32.totalorder %s159, 99
      %s161 = scalar_select %p160, %s159, 99
      %s162 = smul.addr %s161, 4
      %s163 = scalar_lea.vmem %s3, %s162
      %s164 = smul.u32 50, %s14
      %p165 = scmp.lt.s32.totalorder %s164, 99
      %s166 = scalar_select %p165, %s164, 99
      %s167 = smul.addr %s166, 2
      %s168 = smul.addr %s167, 4
      %s169 = scalar_lea.vmem %s0, %s168
      %s170 = smul.u32 50, %s14
      %s171 = smul.u32 50, %s14
      %p172 = scmp.lt.s32.totalorder %s171, 99
      %s173 = scalar_select %p172, %s171, 99
      %s174 = smul.addr %s173, 4
      %s175 = scalar_lea.vmem %s3, %s174
      %s176 = smul.u32 50, %s14
      %v178 = vld [vmem:[%s169] sm:$0xff]
      %v179 = vld [vmem:[%s169 + $0x8] sm:$0xff]
      %v180 = vld [vmem:[%s169 + $0x10] sm:$0xff]
      %v181 = vld [vmem:[%s169 + $0x18] sm:$0xff]
      %v182 = vld [vmem:[%s169 + $0x20] sm:$0xff]
      %v183 = vld [vmem:[%s169 + $0x28] sm:$0xff]
      %v184 = vld [vmem:[%s169 + $0x30] sm:$0xff]
      %v185 = vld [vmem:[%s169 + $0x38] sm:$0xff]
      %v186 = vld [vmem:[%s169 + $0x40] sm:$0xff]
      %v187 = vld [vmem:[%s169 + $0x48] sm:$0xff]
      %v188 = vld [vmem:[%s169 + $0x50] sm:$0xff]
      %v189 = vld [vmem:[%s169 + $0x58] sm:$0xff]
      %v190 = vld [vmem:[%s169 + $0x60] sm:$0xff]
      %v191 = vld [vmem:[%s169 + $0x68] sm:$0xff]
      %v192 = vld [vmem:[%s169 + $0x70] sm:$0xff]
      %v193 = vld [vmem:[%s169 + $0x78] sm:$0xff]
      %v194 = vld [vmem:[%s169 + $0x80] sm:$0xff]
      %v195 = vld [vmem:[%s169 + $0x88] sm:$0xff]
      %v196 = vld [vmem:[%s169 + $0x90] sm:$0xff]
      %v197 = vld [vmem:[%s169 + $0x98] sm:$0xff]
      %v198 = vld [vmem:[%s169 + $0xa0] sm:$0xff]
      %v199 = vld [vmem:[%s169 + $0xa8] sm:$0xff]
      %v200 = vld [vmem:[%s169 + $0xb0] sm:$0xff]
      %v201 = vld [vmem:[%s169 + $0xb8] sm:$0xff]
      %v202 = vld [vmem:[%s169 + $0xc0] sm:$0xff]
      %v203 = vld [vmem:[%s169 + $0xc8] sm:$0xff]
      %v204 = vld [vmem:[%s169 + $0xd0] sm:$0xff]
      %v205 = vld [vmem:[%s169 + $0xd8] sm:$0xff]
      %v206 = vld [vmem:[%s169 + $0xe0] sm:$0xff]
      %v207 = vld [vmem:[%s169 + $0xe8] sm:$0xff]
      %v208 = vld [vmem:[%s169 + $0xf0] sm:$0xff]
      %v209 = vld [vmem:[%s169 + $0xf8] sm:$0xff]
      %v210 = vld [vmem:[%s169 + $0x100] sm:$0xff]
      %v211 = vld [vmem:[%s169 + $0x108] sm:$0xff]
      %v212 = vld [vmem:[%s169 + $0x110] sm:$0xff]
      %v213 = vld [vmem:[%s169 + $0x118] sm:$0xff]
      %v214 = vld [vmem:[%s169 + $0x120] sm:$0xff]
      %v215 = vld [vmem:[%s169 + $0x128] sm:$0xff]
      %v216 = vld [vmem:[%s169 + $0x130] sm:$0xff]
      %v217 = vld [vmem:[%s169 + $0x138] sm:$0xff]
      %v218 = vld [vmem:[%s169 + $0x140] sm:$0xff]
      %v219 = vld [vmem:[%s169 + $0x148] sm:$0xff]
      %v220 = vld [vmem:[%s169 + $0x150] sm:$0xff]
      %v221 = vld [vmem:[%s169 + $0x158] sm:$0xff]
      %v222 = vld [vmem:[%s169 + $0x160] sm:$0xff]
      %v223 = vld [vmem:[%s169 + $0x168] sm:$0xff]
      %v224 = vld [vmem:[%s169 + $0x170] sm:$0xff]
      %v225 = vld [vmem:[%s169 + $0x178] sm:$0xff]
      %v226 = vld [vmem:[%s169 + $0x180] sm:$0xff]
      %v227 = vld [vmem:[%s169 + $0x188] sm:$0xff]
      %v228 = vld [vmem:[%s1] sm:$0xf]
      %v229 = vld [vmem:[%s1 + $0x4] sm:$0xf]
      %v230 = vld [vmem:[%s1 + $0x8] sm:$0xf]
      %v231 = vld [vmem:[%s1 + $0xc] sm:$0xf]
      %v232 = vld [vmem:[%s1 + $0x10] sm:$0xf]
      %v233 = vld [vmem:[%s1 + $0x14] sm:$0xf]
      %v234 = vld [vmem:[%s1 + $0x18] sm:$0xf]
      %v235 = vld [vmem:[%s1 + $0x1c] sm:$0xf]
      %v236 = vld [vmem:[%s1 + $0x20] sm:$0xf]
      %v237 = vld [vmem:[%s1 + $0x24] sm:$0xf]
      %v238 = vld [vmem:[%s1 + $0x28] sm:$0xf]
      %v239 = vld [vmem:[%s1 + $0x2c] sm:$0xf]
      %v240 = vld [vmem:[%s1 + $0x30] sm:$0xf]
      %v241 = vld [vmem:[%s1 + $0x34] sm:$0xf]
      %v242 = vld [vmem:[%s1 + $0x38] sm:$0xf]
      %v243 = vld [vmem:[%s1 + $0x3c] sm:$0xf]
      %v244 = vld [vmem:[%s1 + $0x40] sm:$0xf]
      %v245 = vld [vmem:[%s1 + $0x44] sm:$0xf]
      %v246 = vld [vmem:[%s1 + $0x48] sm:$0xf]
      %v247 = vld [vmem:[%s1 + $0x4c] sm:$0xf]
      %v248 = vld [vmem:[%s1 + $0x50] sm:$0xf]
      %v249 = vld [vmem:[%s1 + $0x54] sm:$0xf]
      %v250 = vld [vmem:[%s1 + $0x58] sm:$0xf]
      %v251 = vld [vmem:[%s1 + $0x5c] sm:$0xf]
      %v252 = vld [vmem:[%s1 + $0x60] sm:$0xf]
      %v253 = vld [vmem:[%s1 + $0x64] sm:$0xf]
      %v254 = vld [vmem:[%s1 + $0x68] sm:$0xf]
      %v255 = vld [vmem:[%s1 + $0x6c] sm:$0xf]
      %v256 = vld [vmem:[%s1 + $0x70] sm:$0xf]
      %v257 = vld [vmem:[%s1 + $0x74] sm:$0xf]
      %v258 = vld [vmem:[%s1 + $0x78] sm:$0xf]
      %v259 = vld [vmem:[%s1 + $0x7c] sm:$0xf]
      %v260 = vld [vmem:[%s2] sm:$0x1]
      %v262 = vlaneseq
      %v263 = vshrl.u32 %v262, 7
      %v264 = vsub.s32 0, %v263
      %v265 = vrot.slane %v260, %v264
      %v317 = vunpack.c.l.b16 %v178
      %v318 = vunpack.c.h.b16 %v178
      %v319 = vunpack.c.l.b16 %v179
      %v320 = vunpack.c.h.b16 %v179
      %v321 = vunpack.c.l.b16 %v180
      %v322 = vunpack.c.h.b16 %v180
      %v323 = vunpack.c.l.b16 %v181
      %v324 = vunpack.c.h.b16 %v181
      %v325 = vunpack.c.l.b16 %v182
      %v326 = vunpack.c.h.b16 %v182
      %v327 = vunpack.c.l.b16 %v183
      %v328 = vunpack.c.h.b16 %v183
      %v329 = vunpack.c.l.b16 %v184
      %v330 = vunpack.c.h.b16 %v184
      %v331 = vunpack.c.l.b16 %v185
      %v332 = vunpack.c.h.b16 %v185
      %v333 = vunpack.c.l.b16 %v186
      %v334 = vunpack.c.h.b16 %v186
      %v335 = vunpack.c.l.b16 %v187
      %v336 = vunpack.c.h.b16 %v187
      %v337 = vunpack.c.l.b16 %v188
      %v338 = vunpack.c.h.b16 %v188
      %v339 = vunpack.c.l.b16 %v189
      %v340 = vunpack.c.h.b16 %v189
      %v341 = vunpack.c.l.b16 %v190
      %v342 = vunpack.c.h.b16 %v190
      %v343 = vunpack.c.l.b16 %v191
      %v344 = vunpack.c.h.b16 %v191
      %v345 = vunpack.c.l.b16 %v192
      %v346 = vunpack.c.h.b16 %v192
      %v347 = vunpack.c.l.b16 %v193
      %v348 = vunpack.c.h.b16 %v193
      %v349 = vunpack.c.l.b16 %v194
      %v350 = vunpack.c.h.b16 %v194
      %v351 = vunpack.c.l.b16 %v195
      %v352 = vunpack.c.h.b16 %v195
      %v353 = vunpack.c.l.b16 %v196
      %v354 = vunpack.c.h.b16 %v196
      %v355 = vunpack.c.l.b16 %v197
      %v356 = vunpack.c.h.b16 %v197
      %v357 = vunpack.c.l.b16 %v198
      %v358 = vunpack.c.h.b16 %v198
      %v359 = vunpack.c.l.b16 %v199
      %v360 = vunpack.c.h.b16 %v199
      %v361 = vunpack.c.l.b16 %v200
      %v362 = vunpack.c.h.b16 %v200
      %v363 = vunpack.c.l.b16 %v201
      %v364 = vunpack.c.h.b16 %v201
      %v365 = vunpack.c.l.b16 %v202
      %v366 = vunpack.c.h.b16 %v202
      %v367 = vunpack.c.l.b16 %v203
      %v368 = vunpack.c.h.b16 %v203
      %v369 = vunpack.c.l.b16 %v204
      %v370 = vunpack.c.h.b16 %v204
      %v371 = vunpack.c.l.b16 %v205
      %v372 = vunpack.c.h.b16 %v205
      %v373 = vunpack.c.l.b16 %v206
      %v374 = vunpack.c.h.b16 %v206
      %v375 = vunpack.c.l.b16 %v207
      %v376 = vunpack.c.h.b16 %v207
      %v377 = vunpack.c.l.b16 %v208
      %v378 = vunpack.c.h.b16 %v208
      %v379 = vunpack.c.l.b16 %v209
      %v380 = vunpack.c.h.b16 %v209
      %v381 = vunpack.c.l.b16 %v210
      %v382 = vunpack.c.h.b16 %v210
      %v383 = vunpack.c.l.b16 %v211
      %v384 = vunpack.c.h.b16 %v211
      %v385 = vunpack.c.l.b16 %v212
      %v386 = vunpack.c.h.b16 %v212
      %v387 = vunpack.c.l.b16 %v213
      %v388 = vunpack.c.h.b16 %v213
      %v389 = vunpack.c.l.b16 %v214
      %v390 = vunpack.c.h.b16 %v214
      %v391 = vunpack.c.l.b16 %v215
      %v392 = vunpack.c.h.b16 %v215
      %v393 = vunpack.c.l.b16 %v216
      %v394 = vunpack.c.h.b16 %v216
      %v395 = vunpack.c.l.b16 %v217
      %v396 = vunpack.c.h.b16 %v217
      %v397 = vunpack.c.l.b16 %v218
      %v398 = vunpack.c.h.b16 %v218
      %v399 = vunpack.c.l.b16 %v219
      %v400 = vunpack.c.h.b16 %v219
      %v401 = vunpack.c.l.b16 %v220
      %v402 = vunpack.c.h.b16 %v220
      %v403 = vunpack.c.l.b16 %v221
      %v404 = vunpack.c.h.b16 %v221
      %v405 = vunpack.c.l.b16 %v222
      %v406 = vunpack.c.h.b16 %v222
      %v407 = vunpack.c.l.b16 %v223
      %v408 = vunpack.c.h.b16 %v223
      %v409 = vunpack.c.l.b16 %v224
      %v410 = vunpack.c.h.b16 %v224
      %v411 = vunpack.c.l.b16 %v225
      %v412 = vunpack.c.h.b16 %v225
      %v413 = vunpack.c.l.b16 %v226
      %v414 = vunpack.c.h.b16 %v226
      %v415 = vunpack.c.l.b16 %v227
      %v416 = vunpack.c.h.b16 %v227
      %v417 = vpack.c.b16 %v319, %v317
      %v418 = vpack.c.b16 %v320, %v318
      %v419 = vpack.c.b16 %v323, %v321
      %v420 = vpack.c.b16 %v324, %v322
      %v421 = vpack.c.b16 %v327, %v325
      %v422 = vpack.c.b16 %v328, %v326
      %v423 = vpack.c.b16 %v331, %v329
      %v424 = vpack.c.b16 %v332, %v330
      %v425 = vpack.c.b16 %v335, %v333
      %v426 = vpack.c.b16 %v336, %v334
      %v427 = vpack.c.b16 %v339, %v337
      %v428 = vpack.c.b16 %v340, %v338
      %v429 = vpack.c.b16 %v343, %v341
      %v430 = vpack.c.b16 %v344, %v342
      %v431 = vpack.c.b16 %v347, %v345
      %v432 = vpack.c.b16 %v348, %v346
      %v433 = vpack.c.b16 %v351, %v349
      %v434 = vpack.c.b16 %v352, %v350
      %v435 = vpack.c.b16 %v355, %v353
      %v436 = vpack.c.b16 %v356, %v354
      %v437 = vpack.c.b16 %v359, %v357
      %v438 = vpack.c.b16 %v360, %v358
      %v439 = vpack.c.b16 %v363, %v361
      %v440 = vpack.c.b16 %v364, %v362
      %v441 = vpack.c.b16 %v367, %v365
      %v442 = vpack.c.b16 %v368, %v366
      %v443 = vpack.c.b16 %v371, %v369
      %v444 = vpack.c.b16 %v372, %v370
      %v445 = vpack.c.b16 %v375, %v373
      %v446 = vpack.c.b16 %v376, %v374
      %v447 = vpack.c.b16 %v379, %v377
      %v448 = vpack.c.b16 %v380, %v378
      %v449 = vpack.c.b16 %v383, %v381
      %v450 = vpack.c.b16 %v384, %v382
      %v451 = vpack.c.b16 %v387, %v385
      %v452 = vpack.c.b16 %v388, %v386
      %v453 = vpack.c.b16 %v391, %v389
      %v454 = vpack.c.b16 %v392, %v390
      %v455 = vpack.c.b16 %v395, %v393
      %v456 = vpack.c.b16 %v396, %v394
      %v457 = vpack.c.b16 %v399, %v397
      %v458 = vpack.c.b16 %v400, %v398
      %v459 = vpack.c.b16 %v403, %v401
      %v460 = vpack.c.b16 %v404, %v402
      %v461 = vpack.c.b16 %v407, %v405
      %v462 = vpack.c.b16 %v408, %v406
      %v463 = vpack.c.b16 %v411, %v409
      %v464 = vpack.c.b16 %v412, %v410
      %v465 = vpack.c.b16 %v415, %v413
      %v466 = vpack.c.b16 %v416, %v414
      %v549 = vunpack.c.l.b16 %v228
      %v550 = vunpack.c.l.b16 %v229
      %v551 = vunpack.c.l.b16 %v230
      %v552 = vunpack.c.l.b16 %v231
      %v553 = vunpack.c.l.b16 %v232
      %v554 = vunpack.c.l.b16 %v233
      %v555 = vunpack.c.l.b16 %v234
      %v556 = vunpack.c.l.b16 %v235
      %v557 = vunpack.c.l.b16 %v236
      %v558 = vunpack.c.l.b16 %v237
      %v559 = vunpack.c.l.b16 %v238
      %v560 = vunpack.c.l.b16 %v239
      %v561 = vunpack.c.l.b16 %v240
      %v562 = vunpack.c.l.b16 %v241
      %v563 = vunpack.c.l.b16 %v242
      %v564 = vunpack.c.l.b16 %v243
      %v565 = vunpack.c.l.b16 %v244
      %v566 = vunpack.c.l.b16 %v245
      %v567 = vunpack.c.l.b16 %v246
      %v568 = vunpack.c.l.b16 %v247
      %v569 = vunpack.c.l.b16 %v248
      %v570 = vunpack.c.l.b16 %v249
      %v571 = vunpack.c.l.b16 %v250
      %v572 = vunpack.c.l.b16 %v251
      %v573 = vunpack.c.l.b16 %v252
      %v574 = vunpack.c.l.b16 %v253
      %v575 = vunpack.c.l.b16 %v254
      %v576 = vunpack.c.l.b16 %v255
      %v577 = vunpack.c.l.b16 %v256
      %v578 = vunpack.c.l.b16 %v257
      %v579 = vunpack.c.l.b16 %v258
      %v580 = vunpack.c.l.b16 %v259
      %v581 = vpack.c.b16 %v550, %v549
      %v582 = vpack.c.b16 %v552, %v551
      %v583 = vpack.c.b16 %v554, %v553
      %v584 = vpack.c.b16 %v556, %v555
      %v585 = vpack.c.b16 %v558, %v557
      %v586 = vpack.c.b16 %v560, %v559
      %v587 = vpack.c.b16 %v562, %v561
      %v588 = vpack.c.b16 %v564, %v563
      %v589 = vpack.c.b16 %v566, %v565
      %v590 = vpack.c.b16 %v568, %v567
      %v591 = vpack.c.b16 %v570, %v569
      %v592 = vpack.c.b16 %v572, %v571
      %v593 = vpack.c.b16 %v574, %v573
      %v594 = vpack.c.b16 %v576, %v575
      %v595 = vpack.c.b16 %v578, %v577
      %v596 = vpack.c.b16 %v580, %v579
      %613 = vmatprep.subr.bf16.mxu0 0
      %614 = vmatpush1.bf16.msra.mxu0 %v581
      %615 = vmatprep.subr.bf16.mxu0 0
      %616 = vmatpush1.bf16.msra.mxu0 %v582
      %617 = vmatprep.subr.bf16.mxu0 0
      %618 = vmatpush1.bf16.msra.mxu0 %v583
      %619 = vmatprep.subr.bf16.mxu0 0
      %620 = vmatpush1.bf16.msra.mxu0 %v584
      %621 = vmatprep.subr.bf16.mxu0 0
      %622 = vmatpush1.bf16.msra.mxu0 %v585
      %623 = vmatprep.subr.bf16.mxu0 0
      %624 = vmatpush1.bf16.msra.mxu0 %v586
      %625 = vmatprep.subr.bf16.mxu0 0
      %626 = vmatpush1.bf16.msra.mxu0 %v587
      %627 = vmatprep.subr.bf16.mxu0 0
      %628 = vmatpush1.bf16.msra.mxu0 %v588
      %629 = vmatprep.subr.bf16.mxu0 0
      %630 = vmatpush1.bf16.msra.mxu0 %v589
      %631 = vmatprep.subr.bf16.mxu0 0
      %632 = vmatpush1.bf16.msra.mxu0 %v590
      %633 = vmatprep.subr.bf16.mxu0 0
      %634 = vmatpush1.bf16.msra.mxu0 %v591
      %635 = vmatprep.subr.bf16.mxu0 0
      %636 = vmatpush1.bf16.msra.mxu0 %v592
      %637 = vmatprep.subr.bf16.mxu0 0
      %638 = vmatpush1.bf16.msra.mxu0 %v593
      %639 = vmatprep.subr.bf16.mxu0 0
      %640 = vmatpush1.bf16.msra.mxu0 %v594
      %641 = vmatprep.subr.bf16.mxu0 0
      %642 = vmatpush1.bf16.msra.mxu0 %v595
      %643 = vmatprep.subr.bf16.mxu0 0
      %644 = vmatpush1.bf16.msra.mxu0 %v596
      %645 = vmatprep.mubr.bf16.mxu0 %v418
      %646 = vmatmul.mubr.bf16.gmra.mrb[0].mxu0 %v417
      %v647 = vpop.f32.mrb[0].mxu0
      %v648 = vadd.f32 %v265, %v647
      %v649 = vpop.f32.mrb[0].mxu0
      %v650 = vpop.f32.mrb[0].mxu0
      %v651 = vadd.f32 %v265, %v650
      %v652 = vpop.f32.mrb[0].mxu0
      %653 = vmatprep.mubr.bf16.mxu0 %v420
      %654 = vmatmul.mubr.bf16.gmra.mrb[0].mxu0 %v419
      %v655 = vpop.f32.mrb[0].mxu0
      %v656 = vadd.f32 %v265, %v655
      %v657 = vpop.f32.mrb[0].mxu0
      %v658 = vpop.f32.mrb[0].mxu0
      %v659 = vadd.f32 %v265, %v658
      %v660 = vpop.f32.mrb[0].mxu0
      %661 = vmatprep.mubr.bf16.mxu0 %v422
      %662 = vmatmul.mubr.bf16.gmra.mrb[0].mxu0 %v421
      %v663 = vpop.f32.mrb[0].mxu0
      %v664 = vadd.f32 %v265, %v663
      %v665 = vpop.f32.mrb[0].mxu0
      %v666 = vpop.f32.mrb[0].mxu0
      %v667 = vadd.f32 %v265, %v666
      %v668 = vpop.f32.mrb[0].mxu0
      %669 = vmatprep.mubr.bf16.mxu0 %v424
      %670 = vmatmul.mubr.bf16.gmra.mrb[0].mxu0 %v423
      %v671 = vpop.f32.mrb[0].mxu0
      %v672 = vadd.f32 %v265, %v671
      %v673 = vpop.f32.mrb[0].mxu0
      %v674 = vpop.f32.mrb[0].mxu0
      %v675 = vadd.f32 %v265, %v674
      %v676 = vpop.f32.mrb[0].mxu0
      %677 = vmatprep.mubr.bf16.mxu0 %v426
      %678 = vmatmul.mubr.bf16.gmra.mrb[0].mxu0 %v425
      %v679 = vpop.f32.mrb[0].mxu0
      %v680 = vadd.f32 %v265, %v679
      %v681 = vpop.f32.mrb[0].mxu0
      %v682 = vpop.f32.mrb[0].mxu0
      %v683 = vadd.f32 %v265, %v682
      %v684 = vpop.f32.mrb[0].mxu0
      %685 = vmatprep.mubr.bf16.mxu0 %v428
      %686 = vmatmul.mubr.bf16.gmra.mrb[0].mxu0 %v427
      %v687 = vpop.f32.mrb[0].mxu0
      %v688 = vadd.f32 %v265, %v687
      %v689 = vpop.f32.mrb[0].mxu0
      %v690 = vpop.f32.mrb[0].mxu0
      %v691 = vadd.f32 %v265, %v690
      %v692 = vpop.f32.mrb[0].mxu0
      %693 = vmatprep.mubr.bf16.mxu0 %v430
      %694 = vmatmul.mubr.bf16.gmra.mrb[0].mxu0 %v429
      %v695 = vpop.f32.mrb[0].mxu0
      %v696 = vadd.f32 %v265, %v695
      %v697 = vpop.f32.mrb[0].mxu0
      %v698 = vpop.f32.mrb[0].mxu0
      %v699 = vadd.f32 %v265, %v698
      %v700 = vpop.f32.mrb[0].mxu0
      %701 = vmatprep.mubr.bf16.mxu0 %v432
      %702 = vmatmul.mubr.bf16.gmra.mrb[0].mxu0 %v431
      %v703 = vpop.f32.mrb[0].mxu0
      %v704 = vadd.f32 %v265, %v703
      %v705 = vpop.f32.mrb[0].mxu0
      %v706 = vpop.f32.mrb[0].mxu0
      %v707 = vadd.f32 %v265, %v706
      %v708 = vpop.f32.mrb[0].mxu0
      %709 = vmatprep.mubr.bf16.mxu0 %v434
      %710 = vmatmul.mubr.bf16.gmra.mrb[0].mxu0 %v433
      %v711 = vpop.f32.mrb[0].mxu0
      %v712 = vadd.f32 %v265, %v711
      %v713 = vpop.f32.mrb[0].mxu0
      %v714 = vpop.f32.mrb[0].mxu0
      %v715 = vadd.f32 %v265, %v714
      %v716 = vpop.f32.mrb[0].mxu0
      %717 = vmatprep.mubr.bf16.mxu0 %v436
      %718 = vmatmul.mubr.bf16.gmra.mrb[0].mxu0 %v435
      %v719 = vpop.f32.mrb[0].mxu0
      %v720 = vadd.f32 %v265, %v719
      %v721 = vpop.f32.mrb[0].mxu0
      %v722 = vpop.f32.mrb[0].mxu0
      %v723 = vadd.f32 %v265, %v722
      %v724 = vpop.f32.mrb[0].mxu0
      %725 = vmatprep.mubr.bf16.mxu0 %v438
      %726 = vmatmul.mubr.bf16.gmra.mrb[0].mxu0 %v437
      %v727 = vpop.f32.mrb[0].mxu0
      %v728 = vadd.f32 %v265, %v727
      %v729 = vpop.f32.mrb[0].mxu0
      %v730 = vpop.f32.mrb[0].mxu0
      %v731 = vadd.f32 %v265, %v730
      %v732 = vpop.f32.mrb[0].mxu0
      %733 = vmatprep.mubr.bf16.mxu0 %v440
      %734 = vmatmul.mubr.bf16.gmra.mrb[0].mxu0 %v439
      %v735 = vpop.f32.mrb[0].mxu0
      %v736 = vadd.f32 %v265, %v735
      %v737 = vpop.f32.mrb[0].mxu0
      %v738 = vpop.f32.mrb[0].mxu0
      %v739 = vadd.f32 %v265, %v738
      %v740 = vpop.f32.mrb[0].mxu0
      %741 = vmatprep.mubr.bf16.mxu0 %v442
      %742 = vmatmul.mubr.bf16.gmra.mrb[0].mxu0 %v441
      %v743 = vpop.f32.mrb[0].mxu0
      %v744 = vadd.f32 %v265, %v743
      %v745 = vpop.f32.mrb[0].mxu0
      %v746 = vpop.f32.mrb[0].mxu0
      %v747 = vadd.f32 %v265, %v746
      %v748 = vpop.f32.mrb[0].mxu0
      %749 = vmatprep.mubr.bf16.mxu0 %v444
      %750 = vmatmul.mubr.bf16.gmra.mrb[0].mxu0 %v443
      %v751 = vpop.f32.mrb[0].mxu0
      %v752 = vadd.f32 %v265, %v751
      %v753 = vpop.f32.mrb[0].mxu0
      %v754 = vpop.f32.mrb[0].mxu0
      %v755 = vadd.f32 %v265, %v754
      %v756 = vpop.f32.mrb[0].mxu0
      %757 = vmatprep.mubr.bf16.mxu0 %v446
      %758 = vmatmul.mubr.bf16.gmra.mrb[0].mxu0 %v445
      %v759 = vpop.f32.mrb[0].mxu0
      %v760 = vadd.f32 %v265, %v759
      %v761 = vpop.f32.mrb[0].mxu0
      %v762 = vpop.f32.mrb[0].mxu0
      %v763 = vadd.f32 %v265, %v762
      %v764 = vpop.f32.mrb[0].mxu0
      %765 = vmatprep.mubr.bf16.mxu0 %v448
      %766 = vmatmul.mubr.bf16.gmra.mrb[0].mxu0 %v447
      %v767 = vpop.f32.mrb[0].mxu0
      %v768 = vadd.f32 %v265, %v767
      %v769 = vpop.f32.mrb[0].mxu0
      %v770 = vpop.f32.mrb[0].mxu0
      %v771 = vadd.f32 %v265, %v770
      %v772 = vpop.f32.mrb[0].mxu0
      %773 = vmatprep.mubr.bf16.mxu0 %v450
      %774 = vmatmul.mubr.bf16.gmra.mrb[0].mxu0 %v449
      %v775 = vpop.f32.mrb[0].mxu0
      %v776 = vadd.f32 %v265, %v775
      %v777 = vpop.f32.mrb[0].mxu0
      %v778 = vpop.f32.mrb[0].mxu0
      %v779 = vadd.f32 %v265, %v778
      %v780 = vpop.f32.mrb[0].mxu0
      %781 = vmatprep.mubr.bf16.mxu0 %v452
      %782 = vmatmul.mubr.bf16.gmra.mrb[0].mxu0 %v451
      %v783 = vpop.f32.mrb[0].mxu0
      %v784 = vadd.f32 %v265, %v783
      %v785 = vpop.f32.mrb[0].mxu0
      %v786 = vpop.f32.mrb[0].mxu0
      %v787 = vadd.f32 %v265, %v786
      %v788 = vpop.f32.mrb[0].mxu0
      %789 = vmatprep.mubr.bf16.mxu0 %v454
      %790 = vmatmul.mubr.bf16.gmra.mrb[0].mxu0 %v453
      %v791 = vpop.f32.mrb[0].mxu0
      %v792 = vadd.f32 %v265, %v791
      %v793 = vpop.f32.mrb[0].mxu0
      %v794 = vpop.f32.mrb[0].mxu0
      %v795 = vadd.f32 %v265, %v794
      %v796 = vpop.f32.mrb[0].mxu0
      %797 = vmatprep.mubr.bf16.mxu0 %v456
      %798 = vmatmul.mubr.bf16.gmra.mrb[0].mxu0 %v455
      %v799 = vpop.f32.mrb[0].mxu0
      %v800 = vadd.f32 %v265, %v799
      %v801 = vpop.f32.mrb[0].mxu0
      %v802 = vpop.f32.mrb[0].mxu0
      %v803 = vadd.f32 %v265, %v802
      %v804 = vpop.f32.mrb[0].mxu0
      %805 = vmatprep.mubr.bf16.mxu0 %v458
      %806 = vmatmul.mubr.bf16.gmra.mrb[0].mxu0 %v457
      %v807 = vpop.f32.mrb[0].mxu0
      %v808 = vadd.f32 %v265, %v807
      %v809 = vpop.f32.mrb[0].mxu0
      %v810 = vpop.f32.mrb[0].mxu0
      %v811 = vadd.f32 %v265, %v810
      %v812 = vpop.f32.mrb[0].mxu0
      %813 = vmatprep.mubr.bf16.mxu0 %v460
      %814 = vmatmul.mubr.bf16.gmra.mrb[0].mxu0 %v459
      %v815 = vpop.f32.mrb[0].mxu0
      %v816 = vadd.f32 %v265, %v815
      %v817 = vpop.f32.mrb[0].mxu0
      %v818 = vpop.f32.mrb[0].mxu0
      %v819 = vadd.f32 %v265, %v818
      %v820 = vpop.f32.mrb[0].mxu0
      %821 = vmatprep.mubr.bf16.mxu0 %v462
      %822 = vmatmul.mubr.bf16.gmra.mrb[0].mxu0 %v461
      %v823 = vpop.f32.mrb[0].mxu0
      %v824 = vadd.f32 %v265, %v823
      %v825 = vpop.f32.mrb[0].mxu0
      %v826 = vpop.f32.mrb[0].mxu0
      %v827 = vadd.f32 %v265, %v826
      %v828 = vpop.f32.mrb[0].mxu0
      %829 = vmatprep.mubr.bf16.mxu0 %v464
      %830 = vmatmul.mubr.bf16.gmra.mrb[0].mxu0 %v463
      %v831 = vpop.f32.mrb[0].mxu0
      %v832 = vadd.f32 %v265, %v831
      %v833 = vpop.f32.mrb[0].mxu0
      %v834 = vpop.f32.mrb[0].mxu0
      %v835 = vadd.f32 %v265, %v834
      %v836 = vpop.f32.mrb[0].mxu0
      %837 = vmatprep.mubr.bf16.mxu0 %v466
      %838 = vmatmul.mubr.bf16.gmra.mrb[0].mxu0 %v465
      %v839 = vpop.f32.mrb[0].mxu0
      %v840 = vadd.f32 %v265, %v839
      %v841 = vpop.f32.mrb[0].mxu0
      %v842 = vpop.f32.mrb[0].mxu0
      %v843 = vadd.f32 %v265, %v842
      %v844 = vpop.f32.mrb[0].mxu0
      %845 = vdwg.mxu0
      %v846 = vmax.f32 %v648, 0.0
      %v847 = vmax.f32 %v651, 0.0
      %v848 = vmax.f32 %v656, 0.0
      %v849 = vmax.f32 %v659, 0.0
      %v850 = vmax.f32 %v664, 0.0
      %v851 = vmax.f32 %v667, 0.0
      %v852 = vmax.f32 %v672, 0.0
      %v853 = vmax.f32 %v675, 0.0
      %v854 = vmax.f32 %v680, 0.0
      %v855 = vmax.f32 %v683, 0.0
      %v856 = vmax.f32 %v688, 0.0
      %v857 = vmax.f32 %v691, 0.0
      %v858 = vmax.f32 %v696, 0.0
      %v859 = vmax.f32 %v699, 0.0
      %v860 = vmax.f32 %v704, 0.0
      %v861 = vmax.f32 %v707, 0.0
      %v862 = vmax.f32 %v712, 0.0
      %v863 = vmax.f32 %v715, 0.0
      %v864 = vmax.f32 %v720, 0.0
      %v865 = vmax.f32 %v723, 0.0
      %v866 = vmax.f32 %v728, 0.0
      %v867 = vmax.f32 %v731, 0.0
      %v868 = vmax.f32 %v736, 0.0
      %v869 = vmax.f32 %v739, 0.0
      %v870 = vmax.f32 %v744, 0.0
      %v871 = vmax.f32 %v747, 0.0
      %v872 = vmax.f32 %v752, 0.0
      %v873 = vmax.f32 %v755, 0.0
      %v874 = vmax.f32 %v760, 0.0
      %v875 = vmax.f32 %v763, 0.0
      %v876 = vmax.f32 %v768, 0.0
      %v877 = vmax.f32 %v771, 0.0
      %v878 = vmax.f32 %v776, 0.0
      %v879 = vmax.f32 %v779, 0.0
      %v880 = vmax.f32 %v784, 0.0
      %v881 = vmax.f32 %v787, 0.0
      %v882 = vmax.f32 %v792, 0.0
      %v883 = vmax.f32 %v795, 0.0
      %v884 = vmax.f32 %v800, 0.0
      %v885 = vmax.f32 %v803, 0.0
      %v886 = vmax.f32 %v808, 0.0
      %v887 = vmax.f32 %v811, 0.0
      %v888 = vmax.f32 %v816, 0.0
      %v889 = vmax.f32 %v819, 0.0
      %v890 = vmax.f32 %v824, 0.0
      %v891 = vmax.f32 %v827, 0.0
      %v892 = vmax.f32 %v832, 0.0
      %v893 = vmax.f32 %v835, 0.0
      %v894 = vmax.f32 %v840, 0.0
      %v895 = vmax.f32 %v843, 0.0
      %v896 = vpack.c.bf16 %v847, %v846
      %v897 = vpack.c.bf16 %v849, %v848
      %v898 = vpack.c.bf16 %v851, %v850
      %v899 = vpack.c.bf16 %v853, %v852
      %v900 = vpack.c.bf16 %v855, %v854
      %v901 = vpack.c.bf16 %v857, %v856
      %v902 = vpack.c.bf16 %v859, %v858
      %v903 = vpack.c.bf16 %v861, %v860
      %v904 = vpack.c.bf16 %v863, %v862
      %v905 = vpack.c.bf16 %v865, %v864
      %v906 = vpack.c.bf16 %v867, %v866
      %v907 = vpack.c.bf16 %v869, %v868
      %v908 = vpack.c.bf16 %v871, %v870
      %v909 = vpack.c.bf16 %v873, %v872
      %v910 = vpack.c.bf16 %v875, %v874
      %v911 = vpack.c.bf16 %v877, %v876
      %v912 = vpack.c.bf16 %v879, %v878
      %v913 = vpack.c.bf16 %v881, %v880
      %v914 = vpack.c.bf16 %v883, %v882
      %v915 = vpack.c.bf16 %v885, %v884
      %v916 = vpack.c.bf16 %v887, %v886
      %v917 = vpack.c.bf16 %v889, %v888
      %v918 = vpack.c.bf16 %v891, %v890
      %v919 = vpack.c.bf16 %v893, %v892
      %v920 = vpack.c.bf16 %v895, %v894
      %v946 = vunpack.c.l.b16 %v896
      %v947 = vunpack.c.h.b16 %v896
      %v948 = vunpack.c.l.b16 %v897
      %v949 = vunpack.c.h.b16 %v897
      %v950 = vunpack.c.l.b16 %v898
      %v951 = vunpack.c.h.b16 %v898
      %v952 = vunpack.c.l.b16 %v899
      %v953 = vunpack.c.h.b16 %v899
      %v954 = vunpack.c.l.b16 %v900
      %v955 = vunpack.c.h.b16 %v900
      %v956 = vunpack.c.l.b16 %v901
      %v957 = vunpack.c.h.b16 %v901
      %v958 = vunpack.c.l.b16 %v902
      %v959 = vunpack.c.h.b16 %v902
      %v960 = vunpack.c.l.b16 %v903
      %v961 = vunpack.c.h.b16 %v903
      %v962 = vunpack.c.l.b16 %v904
      %v963 = vunpack.c.h.b16 %v904
      %v964 = vunpack.c.l.b16 %v905
      %v965 = vunpack.c.h.b16 %v905
      %v966 = vunpack.c.l.b16 %v906
      %v967 = vunpack.c.h.b16 %v906
      %v968 = vunpack.c.l.b16 %v907
      %v969 = vunpack.c.h.b16 %v907
      %v970 = vunpack.c.l.b16 %v908
      %v971 = vunpack.c.h.b16 %v908
      %v972 = vunpack.c.l.b16 %v909
      %v973 = vunpack.c.h.b16 %v909
      %v974 = vunpack.c.l.b16 %v910
      %v975 = vunpack.c.h.b16 %v910
      %v976 = vunpack.c.l.b16 %v911
      %v977 = vunpack.c.h.b16 %v911
      %v978 = vunpack.c.l.b16 %v912
      %v979 = vunpack.c.h.b16 %v912
      %v980 = vunpack.c.l.b16 %v913
      %v981 = vunpack.c.h.b16 %v913
      %v982 = vunpack.c.l.b16 %v914
      %v983 = vunpack.c.h.b16 %v914
      %v984 = vunpack.c.l.b16 %v915
      %v985 = vunpack.c.h.b16 %v915
      %v986 = vunpack.c.l.b16 %v916
      %v987 = vunpack.c.h.b16 %v916
      %v988 = vunpack.c.l.b16 %v917
      %v989 = vunpack.c.h.b16 %v917
      %v990 = vunpack.c.l.b16 %v918
      %v991 = vunpack.c.h.b16 %v918
      %v992 = vunpack.c.l.b16 %v919
      %v993 = vunpack.c.h.b16 %v919
      %v994 = vunpack.c.l.b16 %v920
      %v995 = vunpack.c.h.b16 %v920
      %v996 = vpack.c.b16 %v946, %v946
      %v997 = vpack.c.b16 %v947, %v947
      %v998 = vpack.c.b16 %v948, %v948
      %v999 = vpack.c.b16 %v949, %v949
      %v1000 = vpack.c.b16 %v950, %v950
      %v1001 = vpack.c.b16 %v951, %v951
      %v1002 = vpack.c.b16 %v952, %v952
      %v1003 = vpack.c.b16 %v953, %v953
      %v1004 = vpack.c.b16 %v954, %v954
      %v1005 = vpack.c.b16 %v955, %v955
      %v1006 = vpack.c.b16 %v956, %v956
      %v1007 = vpack.c.b16 %v957, %v957
      %v1008 = vpack.c.b16 %v958, %v958
      %v1009 = vpack.c.b16 %v959, %v959
      %v1010 = vpack.c.b16 %v960, %v960
      %v1011 = vpack.c.b16 %v961, %v961
      %v1012 = vpack.c.b16 %v962, %v962
      %v1013 = vpack.c.b16 %v963, %v963
      %v1014 = vpack.c.b16 %v964, %v964
      %v1015 = vpack.c.b16 %v965, %v965
      %v1016 = vpack.c.b16 %v966, %v966
      %v1017 = vpack.c.b16 %v967, %v967
      %v1018 = vpack.c.b16 %v968, %v968
      %v1019 = vpack.c.b16 %v969, %v969
      %v1020 = vpack.c.b16 %v970, %v970
      %v1021 = vpack.c.b16 %v971, %v971
      %v1022 = vpack.c.b16 %v972, %v972
      %v1023 = vpack.c.b16 %v973, %v973
      %v1024 = vpack.c.b16 %v974, %v974
      %v1025 = vpack.c.b16 %v975, %v975
      %v1026 = vpack.c.b16 %v976, %v976
      %v1027 = vpack.c.b16 %v977, %v977
      %v1028 = vpack.c.b16 %v978, %v978
      %v1029 = vpack.c.b16 %v979, %v979
      %v1030 = vpack.c.b16 %v980, %v980
      %v1031 = vpack.c.b16 %v981, %v981
      %v1032 = vpack.c.b16 %v982, %v982
      %v1033 = vpack.c.b16 %v983, %v983
      %v1034 = vpack.c.b16 %v984, %v984
      %v1035 = vpack.c.b16 %v985, %v985
      %v1036 = vpack.c.b16 %v986, %v986
      %v1037 = vpack.c.b16 %v987, %v987
      %v1038 = vpack.c.b16 %v988, %v988
      %v1039 = vpack.c.b16 %v989, %v989
      %v1040 = vpack.c.b16 %v990, %v990
      %v1041 = vpack.c.b16 %v991, %v991
      %v1042 = vpack.c.b16 %v992, %v992
      %v1043 = vpack.c.b16 %v993, %v993
      %v1044 = vpack.c.b16 %v994, %v994
      %v1045 = vpack.c.b16 %v995, %v995
      %1096 = vst [vmem:[%s175] sm:$0xf] %v996
      %1097 = vst [vmem:[%s175 + $0x4] sm:$0xf] %v997
      %1098 = vst [vmem:[%s175 + $0x8] sm:$0xf] %v998
      %1099 = vst [vmem:[%s175 + $0xc] sm:$0xf] %v999
      %1100 = vst [vmem:[%s175 + $0x10] sm:$0xf] %v1000
      %1101 = vst [vmem:[%s175 + $0x14] sm:$0xf] %v1001
      %1102 = vst [vmem:[%s175 + $0x18] sm:$0xf] %v1002
      %1103 = vst [vmem:[%s175 + $0x1c] sm:$0xf] %v1003
      %1104 = vst [vmem:[%s175 + $0x20] sm:$0xf] %v1004
      %1105 = vst [vmem:[%s175 + $0x24] sm:$0xf] %v1005
      %1106 = vst [vmem:[%s175 + $0x28] sm:$0xf] %v1006
      %1107 = vst [vmem:[%s175 + $0x2c] sm:$0xf] %v1007
      %1108 = vst [vmem:[%s175 + $0x30] sm:$0xf] %v1008
      %1109 = vst [vmem:[%s175 + $0x34] sm:$0xf] %v1009
      %1110 = vst [vmem:[%s175 + $0x38] sm:$0xf] %v1010
      %1111 = vst [vmem:[%s175 + $0x3c] sm:$0xf] %v1011
      %1112 = vst [vmem:[%s175 + $0x40] sm:$0xf] %v1012
      %1113 = vst [vmem:[%s175 + $0x44] sm:$0xf] %v1013
      %1114 = vst [vmem:[%s175 + $0x48] sm:$0xf] %v1014
      %1115 = vst [vmem:[%s175 + $0x4c] sm:$0xf] %v1015
      %1116 = vst [vmem:[%s175 + $0x50] sm:$0xf] %v1016
      %1117 = vst [vmem:[%s175 + $0x54] sm:$0xf] %v1017
      %1118 = vst [vmem:[%s175 + $0x58] sm:$0xf] %v1018
      %1119 = vst [vmem:[%s175 + $0x5c] sm:$0xf] %v1019
      %1120 = vst [vmem:[%s175 + $0x60] sm:$0xf] %v1020
      %1121 = vst [vmem:[%s175 + $0x64] sm:$0xf] %v1021
      %1122 = vst [vmem:[%s175 + $0x68] sm:$0xf] %v1022
      %1123 = vst [vmem:[%s175 + $0x6c] sm:$0xf] %v1023
      %1124 = vst [vmem:[%s175 + $0x70] sm:$0xf] %v1024
      %1125 = vst [vmem:[%s175 + $0x74] sm:$0xf] %v1025
      %1126 = vst [vmem:[%s175 + $0x78] sm:$0xf] %v1026
      %1127 = vst [vmem:[%s175 + $0x7c] sm:$0xf] %v1027
      %1128 = vst [vmem:[%s175 + $0x80] sm:$0xf] %v1028
      %1129 = vst [vmem:[%s175 + $0x84] sm:$0xf] %v1029
      %1130 = vst [vmem:[%s175 + $0x88] sm:$0xf] %v1030
      %1131 = vst [vmem:[%s175 + $0x8c] sm:$0xf] %v1031
      %1132 = vst [vmem:[%s175 + $0x90] sm:$0xf] %v1032
      %1133 = vst [vmem:[%s175 + $0x94] sm:$0xf] %v1033
      %1134 = vst [vmem:[%s175 + $0x98] sm:$0xf] %v1034
      %1135 = vst [vmem:[%s175 + $0x9c] sm:$0xf] %v1035
      %1136 = vst [vmem:[%s175 + $0xa0] sm:$0xf] %v1036
      %1137 = vst [vmem:[%s175 + $0xa4] sm:$0xf] %v1037
      %1138 = vst [vmem:[%s175 + $0xa8] sm:$0xf] %v1038
      %1139 = vst [vmem:[%s175 + $0xac] sm:$0xf] %v1039
      %1140 = vst [vmem:[%s175 + $0xb0] sm:$0xf] %v1040
      %1141 = vst [vmem:[%s175 + $0xb4] sm:$0xf] %v1041
      %1142 = vst [vmem:[%s175 + $0xb8] sm:$0xf] %v1042
      %1143 = vst [vmem:[%s175 + $0xbc] sm:$0xf] %v1043
      %1144 = vst [vmem:[%s175 + $0xc0] sm:$0xf] %v1044
      %1145 = vst [vmem:[%s175 + $0xc4] sm:$0xf] %v1045
      %s1146 = smul.u32 50, %s14
      %p1147 = scmp.lt.s32.totalorder %s1146, 99
      %s1148 = scalar_select %p1147, %s1146, 99
      %s1149 = smul.addr %s1148, 4
      %s1150 = scalar_lea.vmem %s3, %s1149
      // Predicated region
      $region33: #{dqn_forward.4} parent=31 // pred_check
        %p1151 = pneg %p100
      $region34: #{dqn_forward.4} parent=31 // pred_check_branch
        %1153 = sbr.rel (%p1151) target = $region36
      $region35: #{dqn_forward.4} parent=31 // pred_region
        %s1154 = smul.u32 50, %s14
      $region36: #{dqn_forward.4} parent=31 // pred_fallthru
        _
    $region32: #{dqn_forward.4} parent=5 // pred_fallthru
      _
    %p1155 = scmp.le.s32.totalorder 2, %s9
    // Predicated region
    $region37: #{dqn_forward.4} parent=5 // pred_check
      %p1156 = pneg %p1155
    $region38: #{dqn_forward.4} parent=5 // pred_check_branch
      %1158 = sbr.rel (%p1156) target = $region40
    $region39: #{dqn_forward.4} parent=5 // pred_region
      %s1159 = ssub.s32 %s9, 2
      // Predicated region
      $region41: #{dqn_forward.4} parent=39 // pred_check
        %p1160 = pneg %p106
      $region42: #{dqn_forward.4} parent=39 // pred_check_branch
        %1162 = sbr.rel (%p1160) target = $region44
      $region43: #{dqn_forward.4} parent=39 // pred_region
        %s1163 = smul.u32 50, %s15
        %p1164 = scmp.lt.s32.totalorder %s1163, 99
        %s1165 = scalar_select %p1164, %s1163, 99
        %s1166 = smul.addr %s1165, 4
        %s1167 = scalar_lea.vmem %s3, %s1166
      $region44: #{dqn_forward.4} parent=39 // pred_fallthru
        _
    $region40: #{dqn_forward.4} parent=5 // pred_fallthru
      _
  $region6: #{dqn_forward.4} parent=0 // loop_footer
    %s13 = sadd.s32 1, %s9
  $region7: #{dqn_forward.4} parent=0 // loop_footer_branch
    %8 = sbr.rel target = $region3
  $region8: #{dqn_forward.4} parent=0 // loop_exit
    _

// kernel: dqn_forward.5
$region0: #{dqn_forward.5}
  #allocation0 [shape = 'u32[]', space=smem, size = 0x4, offset = 0x4, fixed_abs, tag = 'smem constant byte address 0x4 - core index']
  #allocation1 [shape = 'u32[144,128]{1,0:T(1,128)}', space=vmem, size = 0x12000, scoped, tag = 'internal scratch']
  %s0 = inlined_call_operand.vmem [shape: bf16[168,512], index: 0, kind: input, shape index: {}]
  %s1 = inlined_call_operand.vmem [shape: bf16[512,128], index: 1, kind: input, shape index: {}]
  %s2 = inlined_call_operand.vmem [shape: f32[1,128], index: 2, kind: input, shape index: {}]
  %s3 = inlined_call_operand.vmem [shape: bf16[168,128], index: 3, kind: output, shape index: {}]
  %s4 = sld [smem:[#allocation0]]
  $region22: #{dqn_forward.5} parent=0
    _
  %s6 = ssub.s32 1, %s4
  %s7 = scalar_select 0, %s6, %s4
  // Predicated region
  $region2: #{dqn_forward.5} parent=0 // pred_check
    _
  $region3: #{dqn_forward.5} parent=0 // pred_check_branch
    %9 = sbr.rel (0) target = $region5
  $region4: #{dqn_forward.5} parent=0 // pred_region
    _
  $region5: #{dqn_forward.5} parent=0 // pred_fallthru
    _
  // Predicated region
  $region6: #{dqn_forward.5} parent=0 // pred_check
    _
  $region7: #{dqn_forward.5} parent=0 // pred_check_branch
    %11 = sbr.rel (0) target = $region9
  $region8: #{dqn_forward.5} parent=0 // pred_region
    _
  $region9: #{dqn_forward.5} parent=0 // pred_fallthru
    _
  // Predicated region
  $region10: #{dqn_forward.5} parent=0 // pred_check
    _
  $region11: #{dqn_forward.5} parent=0 // pred_check_branch
    %13 = sbr.rel (0) target = $region13
  $region12: #{dqn_forward.5} parent=0 // pred_region
    _
  $region13: #{dqn_forward.5} parent=0 // pred_fallthru
    _
  %v15 = vld [vmem:[%s0] sm:$0xff]
  %v16 = vld [vmem:[%s0 + $0x8] sm:$0xff]
  %v17 = vld [vmem:[%s0 + $0x10] sm:$0xff]
  %v18 = vld [vmem:[%s0 + $0x18] sm:$0xff]
  %v19 = vld [vmem:[%s0 + $0x20] sm:$0xff]
  %v20 = vld [vmem:[%s0 + $0x28] sm:$0xff]
  %v21 = vld [vmem:[%s0 + $0x30] sm:$0xff]
  %v22 = vld [vmem:[%s0 + $0x38] sm:$0xff]
  %v23 = vld [vmem:[%s0 + $0x40] sm:$0xff]
  %v24 = vld [vmem:[%s0 + $0x48] sm:$0xff]
  %v25 = vld [vmem:[%s0 + $0x50] sm:$0xff]
  %v26 = vld [vmem:[%s0 + $0x58] sm:$0xff]
  %v27 = vld [vmem:[%s0 + $0x60] sm:$0xff]
  %v28 = vld [vmem:[%s0 + $0x68] sm:$0xff]
  %v29 = vld [vmem:[%s0 + $0x70] sm:$0xff]
  %v30 = vld [vmem:[%s0 + $0x78] sm:$0xff]
  %v31 = vld [vmem:[%s0 + $0x80] sm:$0xff]
  %v32 = vld [vmem:[%s0 + $0x88] sm:$0xff]
  %v33 = vld [vmem:[%s0 + $0x90] sm:$0xff]
  %v34 = vld [vmem:[%s0 + $0x98] sm:$0xff]
  %v35 = vld [vmem:[%s0 + $0xa0] sm:$0xff]
  %v36 = vld [vmem:[%s0 + $0xa8] sm:$0xff]
  %v37 = vld [vmem:[%s0 + $0xb0] sm:$0xff]
  %v38 = vld [vmem:[%s0 + $0xb8] sm:$0xff]
  %v39 = vld [vmem:[%s0 + $0xc0] sm:$0xff]
  %v40 = vld [vmem:[%s0 + $0xc8] sm:$0xff]
  %v41 = vld [vmem:[%s0 + $0xd0] sm:$0xff]
  %v42 = vld [vmem:[%s0 + $0xd8] sm:$0xff]
  %v43 = vld [vmem:[%s0 + $0xe0] sm:$0xff]
  %v44 = vld [vmem:[%s0 + $0xe8] sm:$0xff]
  %v45 = vld [vmem:[%s0 + $0xf0] sm:$0xff]
  %v46 = vld [vmem:[%s0 + $0xf8] sm:$0xff]
  %v47 = vld [vmem:[%s0 + $0x100] sm:$0xff]
  %v48 = vld [vmem:[%s0 + $0x108] sm:$0xff]
  %v49 = vld [vmem:[%s0 + $0x110] sm:$0xff]
  %v50 = vld [vmem:[%s0 + $0x118] sm:$0xff]
  %v51 = vld [vmem:[%s0 + $0x120] sm:$0xff]
  %v52 = vld [vmem:[%s0 + $0x128] sm:$0xff]
  %v53 = vld [vmem:[%s0 + $0x130] sm:$0xff]
  %v54 = vld [vmem:[%s0 + $0x138] sm:$0xff]
  %v55 = vld [vmem:[%s0 + $0x140] sm:$0xff]
  %v56 = vld [vmem:[%s0 + $0x148] sm:$0xff]
  %v57 = vld [vmem:[%s1] sm:$0xf]
  %v58 = vld [vmem:[%s1 + $0x4] sm:$0xf]
  %v59 = vld [vmem:[%s1 + $0x8] sm:$0xf]
  %v60 = vld [vmem:[%s1 + $0xc] sm:$0xf]
  %v61 = vld [vmem:[%s1 + $0x10] sm:$0xf]
  %v62 = vld [vmem:[%s1 + $0x14] sm:$0xf]
  %v63 = vld [vmem:[%s1 + $0x18] sm:$0xf]
  %v64 = vld [vmem:[%s1 + $0x1c] sm:$0xf]
  %v65 = vld [vmem:[%s1 + $0x20] sm:$0xf]
  %v66 = vld [vmem:[%s1 + $0x24] sm:$0xf]
  %v67 = vld [vmem:[%s1 + $0x28] sm:$0xf]
  %v68 = vld [vmem:[%s1 + $0x2c] sm:$0xf]
  %v69 = vld [vmem:[%s1 + $0x30] sm:$0xf]
  %v70 = vld [vmem:[%s1 + $0x34] sm:$0xf]
  %v71 = vld [vmem:[%s1 + $0x38] sm:$0xf]
  %v72 = vld [vmem:[%s1 + $0x3c] sm:$0xf]
  %v73 = vld [vmem:[%s1 + $0x40] sm:$0xf]
  %v74 = vld [vmem:[%s1 + $0x44] sm:$0xf]
  %v75 = vld [vmem:[%s1 + $0x48] sm:$0xf]
  %v76 = vld [vmem:[%s1 + $0x4c] sm:$0xf]
  %v77 = vld [vmem:[%s1 + $0x50] sm:$0xf]
  %v78 = vld [vmem:[%s1 + $0x54] sm:$0xf]
  %v79 = vld [vmem:[%s1 + $0x58] sm:$0xf]
  %v80 = vld [vmem:[%s1 + $0x5c] sm:$0xf]
  %v81 = vld [vmem:[%s1 + $0x60] sm:$0xf]
  %v82 = vld [vmem:[%s1 + $0x64] sm:$0xf]
  %v83 = vld [vmem:[%s1 + $0x68] sm:$0xf]
  %v84 = vld [vmem:[%s1 + $0x6c] sm:$0xf]
  %v85 = vld [vmem:[%s1 + $0x70] sm:$0xf]
  %v86 = vld [vmem:[%s1 + $0x74] sm:$0xf]
  %v87 = vld [vmem:[%s1 + $0x78] sm:$0xf]
  %v88 = vld [vmem:[%s1 + $0x7c] sm:$0xf]
  %v89 = vld [vmem:[%s1 + $0x80] sm:$0xf]
  %v90 = vld [vmem:[%s1 + $0x84] sm:$0xf]
  %v91 = vld [vmem:[%s1 + $0x88] sm:$0xf]
  %v92 = vld [vmem:[%s1 + $0x8c] sm:$0xf]
  %v93 = vld [vmem:[%s1 + $0x90] sm:$0xf]
  %v94 = vld [vmem:[%s1 + $0x94] sm:$0xf]
  %v95 = vld [vmem:[%s1 + $0x98] sm:$0xf]
  %v96 = vld [vmem:[%s1 + $0x9c] sm:$0xf]
  %v97 = vld [vmem:[%s1 + $0xa0] sm:$0xf]
  %v98 = vld [vmem:[%s1 + $0xa4] sm:$0xf]
  %v99 = vld [vmem:[%s1 + $0xa8] sm:$0xf]
  %v100 = vld [vmem:[%s1 + $0xac] sm:$0xf]
  %v101 = vld [vmem:[%s1 + $0xb0] sm:$0xf]
  %v102 = vld [vmem:[%s1 + $0xb4] sm:$0xf]
  %v103 = vld [vmem:[%s1 + $0xb8] sm:$0xf]
  %v104 = vld [vmem:[%s1 + $0xbc] sm:$0xf]
  %v105 = vld [vmem:[%s1 + $0xc0] sm:$0xf]
  %v106 = vld [vmem:[%s1 + $0xc4] sm:$0xf]
  %v107 = vld [vmem:[%s1 + $0xc8] sm:$0xf]
  %v108 = vld [vmem:[%s1 + $0xcc] sm:$0xf]
  %v109 = vld [vmem:[%s1 + $0xd0] sm:$0xf]
  %v110 = vld [vmem:[%s1 + $0xd4] sm:$0xf]
  %v111 = vld [vmem:[%s1 + $0xd8] sm:$0xf]
  %v112 = vld [vmem:[%s1 + $0xdc] sm:$0xf]
  %v113 = vld [vmem:[%s1 + $0xe0] sm:$0xf]
  %v114 = vld [vmem:[%s1 + $0xe4] sm:$0xf]
  %v115 = vld [vmem:[%s1 + $0xe8] sm:$0xf]
  %v116 = vld [vmem:[%s1 + $0xec] sm:$0xf]
  %v117 = vld [vmem:[%s1 + $0xf0] sm:$0xf]
  %v118 = vld [vmem:[%s1 + $0xf4] sm:$0xf]
  %v119 = vld [vmem:[%s1 + $0xf8] sm:$0xf]
  %v120 = vld [vmem:[%s1 + $0xfc] sm:$0xf]
  %v121 = vld [vmem:[%s2] sm:$0x1]
  %v123 = vlaneseq
  %v124 = vshrl.u32 %v123, 7
  %v125 = vsub.s32 0, %v124
  %v126 = vrot.slane %v121, %v125
  %v170 = vunpack.c.l.b16 %v15
  %v171 = vunpack.c.h.b16 %v15
  %v172 = vunpack.c.l.b16 %v16
  %v173 = vunpack.c.h.b16 %v16
  %v174 = vunpack.c.l.b16 %v17
  %v175 = vunpack.c.h.b16 %v17
  %v176 = vunpack.c.l.b16 %v18
  %v177 = vunpack.c.h.b16 %v18
  %v178 = vunpack.c.l.b16 %v19
  %v179 = vunpack.c.h.b16 %v19
  %v180 = vunpack.c.l.b16 %v20
  %v181 = vunpack.c.h.b16 %v20
  %v182 = vunpack.c.l.b16 %v21
  %v183 = vunpack.c.h.b16 %v21
  %v184 = vunpack.c.l.b16 %v22
  %v185 = vunpack.c.h.b16 %v22
  %v186 = vunpack.c.l.b16 %v23
  %v187 = vunpack.c.h.b16 %v23
  %v188 = vunpack.c.l.b16 %v24
  %v189 = vunpack.c.h.b16 %v24
  %v190 = vunpack.c.l.b16 %v25
  %v191 = vunpack.c.h.b16 %v25
  %v192 = vunpack.c.l.b16 %v26
  %v193 = vunpack.c.h.b16 %v26
  %v194 = vunpack.c.l.b16 %v27
  %v195 = vunpack.c.h.b16 %v27
  %v196 = vunpack.c.l.b16 %v28
  %v197 = vunpack.c.h.b16 %v28
  %v198 = vunpack.c.l.b16 %v29
  %v199 = vunpack.c.h.b16 %v29
  %v200 = vunpack.c.l.b16 %v30
  %v201 = vunpack.c.h.b16 %v30
  %v202 = vunpack.c.l.b16 %v31
  %v203 = vunpack.c.h.b16 %v31
  %v204 = vunpack.c.l.b16 %v32
  %v205 = vunpack.c.h.b16 %v32
  %v206 = vunpack.c.l.b16 %v33
  %v207 = vunpack.c.h.b16 %v33
  %v208 = vunpack.c.l.b16 %v34
  %v209 = vunpack.c.h.b16 %v34
  %v210 = vunpack.c.l.b16 %v35
  %v211 = vunpack.c.h.b16 %v35
  %v212 = vunpack.c.l.b16 %v36
  %v213 = vunpack.c.h.b16 %v36
  %v214 = vunpack.c.l.b16 %v37
  %v215 = vunpack.c.h.b16 %v37
  %v216 = vunpack.c.l.b16 %v38
  %v217 = vunpack.c.h.b16 %v38
  %v218 = vunpack.c.l.b16 %v39
  %v219 = vunpack.c.h.b16 %v39
  %v220 = vunpack.c.l.b16 %v40
  %v221 = vunpack.c.h.b16 %v40
  %v222 = vunpack.c.l.b16 %v41
  %v223 = vunpack.c.h.b16 %v41
  %v224 = vunpack.c.l.b16 %v42
  %v225 = vunpack.c.h.b16 %v42
  %v226 = vunpack.c.l.b16 %v43
  %v227 = vunpack.c.h.b16 %v43
  %v228 = vunpack.c.l.b16 %v44
  %v229 = vunpack.c.h.b16 %v44
  %v230 = vunpack.c.l.b16 %v45
  %v231 = vunpack.c.h.b16 %v45
  %v232 = vunpack.c.l.b16 %v46
  %v233 = vunpack.c.h.b16 %v46
  %v234 = vunpack.c.l.b16 %v47
  %v235 = vunpack.c.h.b16 %v47
  %v236 = vunpack.c.l.b16 %v48
  %v237 = vunpack.c.h.b16 %v48
  %v238 = vunpack.c.l.b16 %v49
  %v239 = vunpack.c.h.b16 %v49
  %v240 = vunpack.c.l.b16 %v50
  %v241 = vunpack.c.h.b16 %v50
  %v242 = vunpack.c.l.b16 %v51
  %v243 = vunpack.c.h.b16 %v51
  %v244 = vunpack.c.l.b16 %v52
  %v245 = vunpack.c.h.b16 %v52
  %v246 = vunpack.c.l.b16 %v53
  %v247 = vunpack.c.h.b16 %v53
  %v248 = vunpack.c.l.b16 %v54
  %v249 = vunpack.c.h.b16 %v54
  %v250 = vunpack.c.l.b16 %v55
  %v251 = vunpack.c.h.b16 %v55
  %v252 = vunpack.c.l.b16 %v56
  %v253 = vunpack.c.h.b16 %v56
  %v254 = vpack.c.b16 %v174, %v170
  %v255 = vpack.c.b16 %v175, %v171
  %v256 = vpack.c.b16 %v176, %v172
  %v257 = vpack.c.b16 %v177, %v173
  %v258 = vpack.c.b16 %v182, %v178
  %v259 = vpack.c.b16 %v183, %v179
  %v260 = vpack.c.b16 %v184, %v180
  %v261 = vpack.c.b16 %v185, %v181
  %v262 = vpack.c.b16 %v190, %v186
  %v263 = vpack.c.b16 %v191, %v187
  %v264 = vpack.c.b16 %v192, %v188
  %v265 = vpack.c.b16 %v193, %v189
  %v266 = vpack.c.b16 %v198, %v194
  %v267 = vpack.c.b16 %v199, %v195
  %v268 = vpack.c.b16 %v200, %v196
  %v269 = vpack.c.b16 %v201, %v197
  %v270 = vpack.c.b16 %v206, %v202
  %v271 = vpack.c.b16 %v207, %v203
  %v272 = vpack.c.b16 %v208, %v204
  %v273 = vpack.c.b16 %v209, %v205
  %v274 = vpack.c.b16 %v214, %v210
  %v275 = vpack.c.b16 %v215, %v211
  %v276 = vpack.c.b16 %v216, %v212
  %v277 = vpack.c.b16 %v217, %v213
  %v278 = vpack.c.b16 %v222, %v218
  %v279 = vpack.c.b16 %v223, %v219
  %v280 = vpack.c.b16 %v224, %v220
  %v281 = vpack.c.b16 %v225, %v221
  %v282 = vpack.c.b16 %v230, %v226
  %v283 = vpack.c.b16 %v231, %v227
  %v284 = vpack.c.b16 %v232, %v228
  %v285 = vpack.c.b16 %v233, %v229
  %v286 = vpack.c.b16 %v238, %v234
  %v287 = vpack.c.b16 %v239, %v235
  %v288 = vpack.c.b16 %v240, %v236
  %v289 = vpack.c.b16 %v241, %v237
  %v290 = vpack.c.b16 %v246, %v242
  %v291 = vpack.c.b16 %v247, %v243
  %v292 = vpack.c.b16 %v248, %v244
  %v293 = vpack.c.b16 %v249, %v245
  %v294 = vpack.c.b16 %v250, %v250
  %v295 = vpack.c.b16 %v251, %v251
  %v296 = vpack.c.b16 %v252, %v252
  %v297 = vpack.c.b16 %v253, %v253
  %v406 = vunpack.c.l.b16 %v57
  %v407 = vunpack.c.l.b16 %v58
  %v408 = vunpack.c.l.b16 %v59
  %v409 = vunpack.c.l.b16 %v60
  %v410 = vunpack.c.l.b16 %v61
  %v411 = vunpack.c.l.b16 %v62
  %v412 = vunpack.c.l.b16 %v63
  %v413 = vunpack.c.l.b16 %v64
  %v414 = vunpack.c.l.b16 %v65
  %v415 = vunpack.c.l.b16 %v66
  %v416 = vunpack.c.l.b16 %v67
  %v417 = vunpack.c.l.b16 %v68
  %v418 = vunpack.c.l.b16 %v69
  %v419 = vunpack.c.l.b16 %v70
  %v420 = vunpack.c.l.b16 %v71
  %v421 = vunpack.c.l.b16 %v72
  %v422 = vunpack.c.l.b16 %v73
  %v423 = vunpack.c.l.b16 %v74
  %v424 = vunpack.c.l.b16 %v75
  %v425 = vunpack.c.l.b16 %v76
  %v426 = vunpack.c.l.b16 %v77
  %v427 = vunpack.c.l.b16 %v78
  %v428 = vunpack.c.l.b16 %v79
  %v429 = vunpack.c.l.b16 %v80
  %v430 = vunpack.c.l.b16 %v81
  %v431 = vunpack.c.l.b16 %v82
  %v432 = vunpack.c.l.b16 %v83
  %v433 = vunpack.c.l.b16 %v84
  %v434 = vunpack.c.l.b16 %v85
  %v435 = vunpack.c.l.b16 %v86
  %v436 = vunpack.c.l.b16 %v87
  %v437 = vunpack.c.l.b16 %v88
  %v438 = vunpack.c.l.b16 %v89
  %v439 = vunpack.c.l.b16 %v90
  %v440 = vunpack.c.l.b16 %v91
  %v441 = vunpack.c.l.b16 %v92
  %v442 = vunpack.c.l.b16 %v93
  %v443 = vunpack.c.l.b16 %v94
  %v444 = vunpack.c.l.b16 %v95
  %v445 = vunpack.c.l.b16 %v96
  %v446 = vunpack.c.l.b16 %v97
  %v447 = vunpack.c.l.b16 %v98
  %v448 = vunpack.c.l.b16 %v99
  %v449 = vunpack.c.l.b16 %v100
  %v450 = vunpack.c.l.b16 %v101
  %v451 = vunpack.c.l.b16 %v102
  %v452 = vunpack.c.l.b16 %v103
  %v453 = vunpack.c.l.b16 %v104
  %v454 = vunpack.c.l.b16 %v105
  %v455 = vunpack.c.l.b16 %v106
  %v456 = vunpack.c.l.b16 %v107
  %v457 = vunpack.c.l.b16 %v108
  %v458 = vunpack.c.l.b16 %v109
  %v459 = vunpack.c.l.b16 %v110
  %v460 = vunpack.c.l.b16 %v111
  %v461 = vunpack.c.l.b16 %v112
  %v462 = vunpack.c.l.b16 %v113
  %v463 = vunpack.c.l.b16 %v114
  %v464 = vunpack.c.l.b16 %v115
  %v465 = vunpack.c.l.b16 %v116
  %v466 = vunpack.c.l.b16 %v117
  %v467 = vunpack.c.l.b16 %v118
  %v468 = vunpack.c.l.b16 %v119
  %v469 = vunpack.c.l.b16 %v120
  %v470 = vpack.c.b16 %v407, %v406
  %v471 = vpack.c.b16 %v409, %v408
  %v472 = vpack.c.b16 %v411, %v410
  %v473 = vpack.c.b16 %v413, %v412
  %v474 = vpack.c.b16 %v415, %v414
  %v475 = vpack.c.b16 %v417, %v416
  %v476 = vpack.c.b16 %v419, %v418
  %v477 = vpack.c.b16 %v421, %v420
  %v478 = vpack.c.b16 %v423, %v422
  %v479 = vpack.c.b16 %v425, %v424
  %v480 = vpack.c.b16 %v427, %v426
  %v481 = vpack.c.b16 %v429, %v428
  %v482 = vpack.c.b16 %v431, %v430
  %v483 = vpack.c.b16 %v433, %v432
  %v484 = vpack.c.b16 %v435, %v434
  %v485 = vpack.c.b16 %v437, %v436
  %v486 = vpack.c.b16 %v439, %v438
  %v487 = vpack.c.b16 %v441, %v440
  %v488 = vpack.c.b16 %v443, %v442
  %v489 = vpack.c.b16 %v445, %v444
  %v490 = vpack.c.b16 %v447, %v446
  %v491 = vpack.c.b16 %v449, %v448
  %v492 = vpack.c.b16 %v451, %v450
  %v493 = vpack.c.b16 %v453, %v452
  %v494 = vpack.c.b16 %v455, %v454
  %v495 = vpack.c.b16 %v457, %v456
  %v496 = vpack.c.b16 %v459, %v458
  %v497 = vpack.c.b16 %v461, %v460
  %v498 = vpack.c.b16 %v463, %v462
  %v499 = vpack.c.b16 %v465, %v464
  %v500 = vpack.c.b16 %v467, %v466
  %v501 = vpack.c.b16 %v469, %v468
  %534 = vmatprep.subr.bf16.mxu0 0
  %535 = vmatpush1.bf16.msra.mxu0 %v470
  %536 = vmatprep.subr.bf16.mxu0 0
  %537 = vmatpush1.bf16.msra.mxu0 %v471
  %538 = vmatprep.subr.bf16.mxu0 0
  %539 = vmatpush1.bf16.msra.mxu0 %v472
  %540 = vmatprep.subr.bf16.mxu0 0
  %541 = vmatpush1.bf16.msra.mxu0 %v473
  %542 = vmatprep.subr.bf16.mxu0 0
  %543 = vmatpush1.bf16.msra.mxu0 %v474
  %544 = vmatprep.subr.bf16.mxu0 0
  %545 = vmatpush1.bf16.msra.mxu0 %v475
  %546 = vmatprep.subr.bf16.mxu0 0
  %547 = vmatpush1.bf16.msra.mxu0 %v476
  %548 = vmatprep.subr.bf16.mxu0 0
  %549 = vmatpush1.bf16.msra.mxu0 %v477
  %550 = vmatprep.subr.bf16.mxu0 0
  %551 = vmatpush1.bf16.msra.mxu0 %v478
  %552 = vmatprep.subr.bf16.mxu0 0
  %553 = vmatpush1.bf16.msra.mxu0 %v479
  %554 = vmatprep.subr.bf16.mxu0 0
  %555 = vmatpush1.bf16.msra.mxu0 %v480
  %556 = vmatprep.subr.bf16.mxu0 0
  %557 = vmatpush1.bf16.msra.mxu0 %v481
  %558 = vmatprep.subr.bf16.mxu0 0
  %559 = vmatpush1.bf16.msra.mxu0 %v482
  %560 = vmatprep.subr.bf16.mxu0 0
  %561 = vmatpush1.bf16.msra.mxu0 %v483
  %562 = vmatprep.subr.bf16.mxu0 0
  %563 = vmatpush1.bf16.msra.mxu0 %v484
  %564 = vmatprep.subr.bf16.mxu0 0
  %565 = vmatpush1.bf16.msra.mxu0 %v485
  %566 = vmatprep.mubr.bf16.mxu0 %v255
  %567 = vmatmul.mubr.bf16.gmra.mrb[0].mxu0 %v254
  %v568 = vpop.f32.mrb[0].mxu0
  %v569 = vadd.f32 %v126, %v568
  %v570 = vpop.f32.mrb[0].mxu0
  %v571 = vpop.f32.mrb[0].mxu0
  %v572 = vadd.f32 %v126, %v571
  %v573 = vpop.f32.mrb[0].mxu0
  %574 = vmatprep.mubr.bf16.mxu0 %v259
  %575 = vmatmul.mubr.bf16.gmra.mrb[0].mxu0 %v258
  %v576 = vpop.f32.mrb[0].mxu0
  %v577 = vadd.f32 %v126, %v576
  %v578 = vpop.f32.mrb[0].mxu0
  %v579 = vpop.f32.mrb[0].mxu0
  %v580 = vadd.f32 %v126, %v579
  %v581 = vpop.f32.mrb[0].mxu0
  %582 = vmatprep.mubr.bf16.mxu0 %v263
  %583 = vmatmul.mubr.bf16.gmra.mrb[0].mxu0 %v262
  %v584 = vpop.f32.mrb[0].mxu0
  %v585 = vadd.f32 %v126, %v584
  %v586 = vpop.f32.mrb[0].mxu0
  %v587 = vpop.f32.mrb[0].mxu0
  %v588 = vadd.f32 %v126, %v587
  %v589 = vpop.f32.mrb[0].mxu0
  %590 = vmatprep.mubr.bf16.mxu0 %v267
  %591 = vmatmul.mubr.bf16.gmra.mrb[0].mxu0 %v266
  %v592 = vpop.f32.mrb[0].mxu0
  %v593 = vadd.f32 %v126, %v592
  %v594 = vpop.f32.mrb[0].mxu0
  %v595 = vpop.f32.mrb[0].mxu0
  %v596 = vadd.f32 %v126, %v595
  %v597 = vpop.f32.mrb[0].mxu0
  %598 = vmatprep.mubr.bf16.mxu0 %v271
  %599 = vmatmul.mubr.bf16.gmra.mrb[0].mxu0 %v270
  %v600 = vpop.f32.mrb[0].mxu0
  %v601 = vadd.f32 %v126, %v600
  %v602 = vpop.f32.mrb[0].mxu0
  %v603 = vpop.f32.mrb[0].mxu0
  %v604 = vadd.f32 %v126, %v603
  %v605 = vpop.f32.mrb[0].mxu0
  %606 = vmatprep.mubr.bf16.mxu0 %v275
  %607 = vmatmul.mubr.bf16.gmra.mrb[0].mxu0 %v274
  %v608 = vpop.f32.mrb[0].mxu0
  %v609 = vadd.f32 %v126, %v608
  %v610 = vpop.f32.mrb[0].mxu0
  %v611 = vpop.f32.mrb[0].mxu0
  %v612 = vadd.f32 %v126, %v611
  %v613 = vpop.f32.mrb[0].mxu0
  %614 = vmatprep.mubr.bf16.mxu0 %v279
  %615 = vmatmul.mubr.bf16.gmra.mrb[0].mxu0 %v278
  %v616 = vpop.f32.mrb[0].mxu0
  %v617 = vadd.f32 %v126, %v616
  %v618 = vpop.f32.mrb[0].mxu0
  %v619 = vpop.f32.mrb[0].mxu0
  %v620 = vadd.f32 %v126, %v619
  %v621 = vpop.f32.mrb[0].mxu0
  %622 = vmatprep.mubr.bf16.mxu0 %v283
  %623 = vmatmul.mubr.bf16.gmra.mrb[0].mxu0 %v282
  %v624 = vpop.f32.mrb[0].mxu0
  %v625 = vadd.f32 %v126, %v624
  %v626 = vpop.f32.mrb[0].mxu0
  %v627 = vpop.f32.mrb[0].mxu0
  %v628 = vadd.f32 %v126, %v627
  %v629 = vpop.f32.mrb[0].mxu0
  %630 = vmatprep.mubr.bf16.mxu0 %v287
  %631 = vmatmul.mubr.bf16.gmra.mrb[0].mxu0 %v286
  %v632 = vpop.f32.mrb[0].mxu0
  %v633 = vadd.f32 %v126, %v632
  %v634 = vpop.f32.mrb[0].mxu0
  %v635 = vpop.f32.mrb[0].mxu0
  %v636 = vadd.f32 %v126, %v635
  %v637 = vpop.f32.mrb[0].mxu0
  %638 = vmatprep.mubr.bf16.mxu0 %v291
  %639 = vmatmul.mubr.bf16.gmra.mrb[0].mxu0 %v290
  %v640 = vpop.f32.mrb[0].mxu0
  %v641 = vadd.f32 %v126, %v640
  %v642 = vpop.f32.mrb[0].mxu0
  %v643 = vpop.f32.mrb[0].mxu0
  %v644 = vadd.f32 %v126, %v643
  %v645 = vpop.f32.mrb[0].mxu0
  %646 = vmatprep.mubr.bf16.mxu0 %v295
  %647 = vmatmul.mubr.bf16.gmra.mrb[0].mxu0 %v294
  %v648 = vpop.f32.mrb[0].mxu0
  %v649 = vadd.f32 %v126, %v648
  %v650 = vpop.f32.mrb[0].mxu0
  %v651 = vpop.f32.mrb[0].mxu0
  %v652 = vpop.f32.mrb[0].mxu0
  %653 = vdwg.mxu0
  %654 = vmatprep.subr.bf16.mxu0 0
  %655 = vmatpush1.bf16.msra.mxu0 %v486
  %656 = vmatprep.subr.bf16.mxu0 0
  %657 = vmatpush1.bf16.msra.mxu0 %v487
  %658 = vmatprep.subr.bf16.mxu0 0
  %659 = vmatpush1.bf16.msra.mxu0 %v488
  %660 = vmatprep.subr.bf16.mxu0 0
  %661 = vmatpush1.bf16.msra.mxu0 %v489
  %662 = vmatprep.subr.bf16.mxu0 0
  %663 = vmatpush1.bf16.msra.mxu0 %v490
  %664 = vmatprep.subr.bf16.mxu0 0
  %665 = vmatpush1.bf16.msra.mxu0 %v491
  %666 = vmatprep.subr.bf16.mxu0 0
  %667 = vmatpush1.bf16.msra.mxu0 %v492
  %668 = vmatprep.subr.bf16.mxu0 0
  %669 = vmatpush1.bf16.msra.mxu0 %v493
  %670 = vmatprep.subr.bf16.mxu0 0
  %671 = vmatpush1.bf16.msra.mxu0 %v494
  %672 = vmatprep.subr.bf16.mxu0 0
  %673 = vmatpush1.bf16.msra.mxu0 %v495
  %674 = vmatprep.subr.bf16.mxu0 0
  %675 = vmatpush1.bf16.msra.mxu0 %v496
  %676 = vmatprep.subr.bf16.mxu0 0
  %677 = vmatpush1.bf16.msra.mxu0 %v497
  %678 = vmatprep.subr.bf16.mxu0 0
  %679 = vmatpush1.bf16.msra.mxu0 %v498
  %680 = vmatprep.subr.bf16.mxu0 0
  %681 = vmatpush1.bf16.msra.mxu0 %v499
  %682 = vmatprep.subr.bf16.mxu0 0
  %683 = vmatpush1.bf16.msra.mxu0 %v500
  %684 = vmatprep.subr.bf16.mxu0 0
  %685 = vmatpush1.bf16.msra.mxu0 %v501
  %686 = vmatprep.mubr.bf16.mxu0 %v257
  %687 = vmatmul.mubr.bf16.gmra.mrb[0].mxu0 %v256
  %v688 = vpop.f32.mrb[0].mxu0
  %v689 = vadd.f32 %v569, %v688
  %v690 = vpop.f32.mrb[0].mxu0
  %v691 = vpop.f32.mrb[0].mxu0
  %v692 = vadd.f32 %v572, %v691
  %v693 = vpop.f32.mrb[0].mxu0
  %694 = vmatprep.mubr.bf16.mxu0 %v261
  %695 = vmatmul.mubr.bf16.gmra.mrb[0].mxu0 %v260
  %v696 = vpop.f32.mrb[0].mxu0
  %v697 = vadd.f32 %v577, %v696
  %v698 = vpop.f32.mrb[0].mxu0
  %v699 = vpop.f32.mrb[0].mxu0
  %v700 = vadd.f32 %v580, %v699
  %v701 = vpop.f32.mrb[0].mxu0
  %702 = vmatprep.mubr.bf16.mxu0 %v265
  %703 = vmatmul.mubr.bf16.gmra.mrb[0].mxu0 %v264
  %v704 = vpop.f32.mrb[0].mxu0
  %v705 = vadd.f32 %v585, %v704
  %v706 = vpop.f32.mrb[0].mxu0
  %v707 = vpop.f32.mrb[0].mxu0
  %v708 = vadd.f32 %v588, %v707
  %v709 = vpop.f32.mrb[0].mxu0
  %710 = vmatprep.mubr.bf16.mxu0 %v269
  %711 = vmatmul.mubr.bf16.gmra.mrb[0].mxu0 %v268
  %v712 = vpop.f32.mrb[0].mxu0
  %v713 = vadd.f32 %v593, %v712
  %v714 = vpop.f32.mrb[0].mxu0
  %v715 = vpop.f32.mrb[0].mxu0
  %v716 = vadd.f32 %v596, %v715
  %v717 = vpop.f32.mrb[0].mxu0
  %718 = vmatprep.mubr.bf16.mxu0 %v273
  %719 = vmatmul.mubr.bf16.gmra.mrb[0].mxu0 %v272
  %v720 = vpop.f32.mrb[0].mxu0
  %v721 = vadd.f32 %v601, %v720
  %v722 = vpop.f32.mrb[0].mxu0
  %v723 = vpop.f32.mrb[0].mxu0
  %v724 = vadd.f32 %v604, %v723
  %v725 = vpop.f32.mrb[0].mxu0
  %726 = vmatprep.mubr.bf16.mxu0 %v277
  %727 = vmatmul.mubr.bf16.gmra.mrb[0].mxu0 %v276
  %v728 = vpop.f32.mrb[0].mxu0
  %v729 = vadd.f32 %v609, %v728
  %v730 = vpop.f32.mrb[0].mxu0
  %v731 = vpop.f32.mrb[0].mxu0
  %v732 = vadd.f32 %v612, %v731
  %v733 = vpop.f32.mrb[0].mxu0
  %734 = vmatprep.mubr.bf16.mxu0 %v281
  %735 = vmatmul.mubr.bf16.gmra.mrb[0].mxu0 %v280
  %v736 = vpop.f32.mrb[0].mxu0
  %v737 = vadd.f32 %v617, %v736
  %v738 = vpop.f32.mrb[0].mxu0
  %v739 = vpop.f32.mrb[0].mxu0
  %v740 = vadd.f32 %v620, %v739
  %v741 = vpop.f32.mrb[0].mxu0
  %742 = vmatprep.mubr.bf16.mxu0 %v285
  %743 = vmatmul.mubr.bf16.gmra.mrb[0].mxu0 %v284
  %v744 = vpop.f32.mrb[0].mxu0
  %v745 = vadd.f32 %v625, %v744
  %v746 = vpop.f32.mrb[0].mxu0
  %v747 = vpop.f32.mrb[0].mxu0
  %v748 = vadd.f32 %v628, %v747
  %v749 = vpop.f32.mrb[0].mxu0
  %750 = vmatprep.mubr.bf16.mxu0 %v289
  %751 = vmatmul.mubr.bf16.gmra.mrb[0].mxu0 %v288
  %v752 = vpop.f32.mrb[0].mxu0
  %v753 = vadd.f32 %v633, %v752
  %v754 = vpop.f32.mrb[0].mxu0
  %v755 = vpop.f32.mrb[0].mxu0
  %v756 = vadd.f32 %v636, %v755
  %v757 = vpop.f32.mrb[0].mxu0
  %758 = vmatprep.mubr.bf16.mxu0 %v293
  %759 = vmatmul.mubr.bf16.gmra.mrb[0].mxu0 %v292
  %v760 = vpop.f32.mrb[0].mxu0
  %v761 = vadd.f32 %v641, %v760
  %v762 = vpop.f32.mrb[0].mxu0
  %v763 = vpop.f32.mrb[0].mxu0
  %v764 = vadd.f32 %v644, %v763
  %v765 = vpop.f32.mrb[0].mxu0
  %766 = vmatprep.mubr.bf16.mxu0 %v297
  %767 = vmatmul.mubr.bf16.gmra.mrb[0].mxu0 %v296
  %v768 = vpop.f32.mrb[0].mxu0
  %v769 = vadd.f32 %v649, %v768
  %v770 = vpop.f32.mrb[0].mxu0
  %v771 = vpop.f32.mrb[0].mxu0
  %v772 = vpop.f32.mrb[0].mxu0
  %773 = vdwg.mxu0
  %v774 = vmax.f32 %v689, 0.0
  %v775 = vmax.f32 %v692, 0.0
  %v776 = vmax.f32 %v697, 0.0
  %v777 = vmax.f32 %v700, 0.0
  %v778 = vmax.f32 %v705, 0.0
  %v779 = vmax.f32 %v708, 0.0
  %v780 = vmax.f32 %v713, 0.0
  %v781 = vmax.f32 %v716, 0.0
  %v782 = vmax.f32 %v721, 0.0
  %v783 = vmax.f32 %v724, 0.0
  %v784 = vmax.f32 %v729, 0.0
  %v785 = vmax.f32 %v732, 0.0
  %v786 = vmax.f32 %v737, 0.0
  %v787 = vmax.f32 %v740, 0.0
  %v788 = vmax.f32 %v745, 0.0
  %v789 = vmax.f32 %v748, 0.0
  %v790 = vmax.f32 %v753, 0.0
  %v791 = vmax.f32 %v756, 0.0
  %v792 = vmax.f32 %v761, 0.0
  %v793 = vmax.f32 %v764, 0.0
  %v794 = vmax.f32 %v769, 0.0
  %v795 = vpack.c.bf16 %v775, %v774
  %v796 = vpack.c.bf16 %v777, %v776
  %v797 = vpack.c.bf16 %v779, %v778
  %v798 = vpack.c.bf16 %v781, %v780
  %v799 = vpack.c.bf16 %v783, %v782
  %v800 = vpack.c.bf16 %v785, %v784
  %v801 = vpack.c.bf16 %v787, %v786
  %v802 = vpack.c.bf16 %v789, %v788
  %v803 = vpack.c.bf16 %v791, %v790
  %v804 = vpack.c.bf16 %v793, %v792
  %v805 = vpack.c.bf16 %v794, %v794
  %v817 = vunpack.c.l.b16 %v795
  %v818 = vunpack.c.h.b16 %v795
  %v819 = vunpack.c.l.b16 %v796
  %v820 = vunpack.c.h.b16 %v796
  %v821 = vunpack.c.l.b16 %v797
  %v822 = vunpack.c.h.b16 %v797
  %v823 = vunpack.c.l.b16 %v798
  %v824 = vunpack.c.h.b16 %v798
  %v825 = vunpack.c.l.b16 %v799
  %v826 = vunpack.c.h.b16 %v799
  %v827 = vunpack.c.l.b16 %v800
  %v828 = vunpack.c.h.b16 %v800
  %v829 = vunpack.c.l.b16 %v801
  %v830 = vunpack.c.h.b16 %v801
  %v831 = vunpack.c.l.b16 %v802
  %v832 = vunpack.c.h.b16 %v802
  %v833 = vunpack.c.l.b16 %v803
  %v834 = vunpack.c.h.b16 %v803
  %v835 = vunpack.c.l.b16 %v804
  %v836 = vunpack.c.h.b16 %v804
  %v837 = vunpack.c.l.b16 %v805
  %v838 = vpack.c.b16 %v817, %v817
  %v839 = vpack.c.b16 %v818, %v818
  %v840 = vpack.c.b16 %v819, %v819
  %v841 = vpack.c.b16 %v820, %v820
  %v842 = vpack.c.b16 %v821, %v821
  %v843 = vpack.c.b16 %v822, %v822
  %v844 = vpack.c.b16 %v823, %v823
  %v845 = vpack.c.b16 %v824, %v824
  %v846 = vpack.c.b16 %v825, %v825
  %v847 = vpack.c.b16 %v826, %v826
  %v848 = vpack.c.b16 %v827, %v827
  %v849 = vpack.c.b16 %v828, %v828
  %v850 = vpack.c.b16 %v829, %v829
  %v851 = vpack.c.b16 %v830, %v830
  %v852 = vpack.c.b16 %v831, %v831
  %v853 = vpack.c.b16 %v832, %v832
  %v854 = vpack.c.b16 %v833, %v833
  %v855 = vpack.c.b16 %v834, %v834
  %v856 = vpack.c.b16 %v835, %v835
  %v857 = vpack.c.b16 %v836, %v836
  %v858 = vpack.c.b16 %v837, %v837
  %880 = vst [vmem:[%s3] sm:$0xf] %v838
  %881 = vst [vmem:[%s3 + $0x4] sm:$0xf] %v839
  %882 = vst [vmem:[%s3 + $0x8] sm:$0xf] %v840
  %883 = vst [vmem:[%s3 + $0xc] sm:$0xf] %v841
  %884 = vst [vmem:[%s3 + $0x10] sm:$0xf] %v842
  %885 = vst [vmem:[%s3 + $0x14] sm:$0xf] %v843
  %886 = vst [vmem:[%s3 + $0x18] sm:$0xf] %v844
  %887 = vst [vmem:[%s3 + $0x1c] sm:$0xf] %v845
  %888 = vst [vmem:[%s3 + $0x20] sm:$0xf] %v846
  %889 = vst [vmem:[%s3 + $0x24] sm:$0xf] %v847
  %890 = vst [vmem:[%s3 + $0x28] sm:$0xf] %v848
  %891 = vst [vmem:[%s3 + $0x2c] sm:$0xf] %v849
  %892 = vst [vmem:[%s3 + $0x30] sm:$0xf] %v850
  %893 = vst [vmem:[%s3 + $0x34] sm:$0xf] %v851
  %894 = vst [vmem:[%s3 + $0x38] sm:$0xf] %v852
  %895 = vst [vmem:[%s3 + $0x3c] sm:$0xf] %v853
  %896 = vst [vmem:[%s3 + $0x40] sm:$0xf] %v854
  %897 = vst [vmem:[%s3 + $0x44] sm:$0xf] %v855
  %898 = vst [vmem:[%s3 + $0x48] sm:$0xf] %v856
  %899 = vst [vmem:[%s3 + $0x4c] sm:$0xf] %v857
  %900 = vst [vmem:[%s3 + $0x50] sm:$0xf] %v858
  // Predicated region
  $region14: #{dqn_forward.5} parent=0 // pred_check
    _
  $region15: #{dqn_forward.5} parent=0 // pred_check_branch
    %902 = sbr.rel (0) target = $region17
  $region16: #{dqn_forward.5} parent=0 // pred_region
    _
  $region17: #{dqn_forward.5} parent=0 // pred_fallthru
    _
  // Predicated region
  $region18: #{dqn_forward.5} parent=0 // pred_check
    _
  $region19: #{dqn_forward.5} parent=0 // pred_check_branch
    %904 = sbr.rel (0) target = $region21
  $region20: #{dqn_forward.5} parent=0 // pred_region
    _
  $region21: #{dqn_forward.5} parent=0 // pred_fallthru
    _

// kernel: dqn_forward.6
$region0: #{dqn_forward.6}
  #allocation0 [shape = 'u32[]', space=smem, size = 0x4, offset = 0x4, fixed_abs, tag = 'smem constant byte address 0x4 - core index']
  #allocation1 [shape = 'u32[144,128]{1,0:T(1,128)}', space=vmem, size = 0x12000, scoped, tag = 'internal scratch']
  %s0 = inlined_call_operand.vmem [shape: bf16[104,640], index: 0, kind: input, shape index: {}]
  %s1 = inlined_call_operand.vmem [shape: bf16[640,128], index: 1, kind: input, shape index: {}]
  %s2 = inlined_call_operand.vmem [shape: f32[1,128], index: 2, kind: input, shape index: {}]
  %s3 = inlined_call_operand.vmem [shape: bf16[104,128], index: 3, kind: output, shape index: {}]
  %s4 = sld [smem:[#allocation0]]
  $region22: #{dqn_forward.6} parent=0
    _
  %s6 = ssub.s32 1, %s4
  %s7 = scalar_select 0, %s6, %s4
  // Predicated region
  $region2: #{dqn_forward.6} parent=0 // pred_check
    _
  $region3: #{dqn_forward.6} parent=0 // pred_check_branch
    %9 = sbr.rel (0) target = $region5
  $region4: #{dqn_forward.6} parent=0 // pred_region
    _
  $region5: #{dqn_forward.6} parent=0 // pred_fallthru
    _
  // Predicated region
  $region6: #{dqn_forward.6} parent=0 // pred_check
    _
  $region7: #{dqn_forward.6} parent=0 // pred_check_branch
    %11 = sbr.rel (0) target = $region9
  $region8: #{dqn_forward.6} parent=0 // pred_region
    _
  $region9: #{dqn_forward.6} parent=0 // pred_fallthru
    _
  // Predicated region
  $region10: #{dqn_forward.6} parent=0 // pred_check
    _
  $region11: #{dqn_forward.6} parent=0 // pred_check_branch
    %13 = sbr.rel (0) target = $region13
  $region12: #{dqn_forward.6} parent=0 // pred_region
    _
  $region13: #{dqn_forward.6} parent=0 // pred_fallthru
    _
  %v15 = vld [vmem:[%s0] sm:$0xff]
  %v16 = vld [vmem:[%s0 + $0x8] sm:$0xff]
  %v17 = vld [vmem:[%s0 + $0x10] sm:$0xf]
  %v18 = vld [vmem:[%s0 + $0x14] sm:$0xff]
  %v19 = vld [vmem:[%s0 + $0x1c] sm:$0xff]
  %v20 = vld [vmem:[%s0 + $0x24] sm:$0xf]
  %v21 = vld [vmem:[%s0 + $0x28] sm:$0xff]
  %v22 = vld [vmem:[%s0 + $0x30] sm:$0xff]
  %v23 = vld [vmem:[%s0 + $0x38] sm:$0xf]
  %v24 = vld [vmem:[%s0 + $0x3c] sm:$0xff]
  %v25 = vld [vmem:[%s0 + $0x44] sm:$0xff]
  %v26 = vld [vmem:[%s0 + $0x4c] sm:$0xf]
  %v27 = vld [vmem:[%s0 + $0x50] sm:$0xff]
  %v28 = vld [vmem:[%s0 + $0x58] sm:$0xff]
  %v29 = vld [vmem:[%s0 + $0x60] sm:$0xf]
  %v30 = vld [vmem:[%s0 + $0x64] sm:$0xff]
  %v31 = vld [vmem:[%s0 + $0x6c] sm:$0xff]
  %v32 = vld [vmem:[%s0 + $0x74] sm:$0xf]
  %v33 = vld [vmem:[%s0 + $0x78] sm:$0xff]
  %v34 = vld [vmem:[%s0 + $0x80] sm:$0xff]
  %v35 = vld [vmem:[%s0 + $0x88] sm:$0xf]
  %v36 = vld [vmem:[%s0 + $0x8c] sm:$0xff]
  %v37 = vld [vmem:[%s0 + $0x94] sm:$0xff]
  %v38 = vld [vmem:[%s0 + $0x9c] sm:$0xf]
  %v39 = vld [vmem:[%s0 + $0xa0] sm:$0xff]
  %v40 = vld [vmem:[%s0 + $0xa8] sm:$0xff]
  %v41 = vld [vmem:[%s0 + $0xb0] sm:$0xf]
  %v42 = vld [vmem:[%s0 + $0xb4] sm:$0xff]
  %v43 = vld [vmem:[%s0 + $0xbc] sm:$0xff]
  %v44 = vld [vmem:[%s0 + $0xc4] sm:$0xf]
  %v45 = vld [vmem:[%s0 + $0xc8] sm:$0xff]
  %v46 = vld [vmem:[%s0 + $0xd0] sm:$0xff]
  %v47 = vld [vmem:[%s0 + $0xd8] sm:$0xf]
  %v48 = vld [vmem:[%s0 + $0xdc] sm:$0xff]
  %v49 = vld [vmem:[%s0 + $0xe4] sm:$0xff]
  %v50 = vld [vmem:[%s0 + $0xec] sm:$0xf]
  %v51 = vld [vmem:[%s0 + $0xf0] sm:$0xff]
  %v52 = vld [vmem:[%s0 + $0xf8] sm:$0xff]
  %v53 = vld [vmem:[%s0 + $0x100] sm:$0xf]
  %v54 = vld [vmem:[%s1] sm:$0xf]
  %v55 = vld [vmem:[%s1 + $0x4] sm:$0xf]
  %v56 = vld [vmem:[%s1 + $0x8] sm:$0xf]
  %v57 = vld [vmem:[%s1 + $0xc] sm:$0xf]
  %v58 = vld [vmem:[%s1 + $0x10] sm:$0xf]
  %v59 = vld [vmem:[%s1 + $0x14] sm:$0xf]
  %v60 = vld [vmem:[%s1 + $0x18] sm:$0xf]
  %v61 = vld [vmem:[%s1 + $0x1c] sm:$0xf]
  %v62 = vld [vmem:[%s1 + $0x20] sm:$0xf]
  %v63 = vld [vmem:[%s1 + $0x24] sm:$0xf]
  %v64 = vld [vmem:[%s1 + $0x28] sm:$0xf]
  %v65 = vld [vmem:[%s1 + $0x2c] sm:$0xf]
  %v66 = vld [vmem:[%s1 + $0x30] sm:$0xf]
  %v67 = vld [vmem:[%s1 + $0x34] sm:$0xf]
  %v68 = vld [vmem:[%s1 + $0x38] sm:$0xf]
  %v69 = vld [vmem:[%s1 + $0x3c] sm:$0xf]
  %v70 = vld [vmem:[%s1 + $0x40] sm:$0xf]
  %v71 = vld [vmem:[%s1 + $0x44] sm:$0xf]
  %v72 = vld [vmem:[%s1 + $0x48] sm:$0xf]
  %v73 = vld [vmem:[%s1 + $0x4c] sm:$0xf]
  %v74 = vld [vmem:[%s1 + $0x50] sm:$0xf]
  %v75 = vld [vmem:[%s1 + $0x54] sm:$0xf]
  %v76 = vld [vmem:[%s1 + $0x58] sm:$0xf]
  %v77 = vld [vmem:[%s1 + $0x5c] sm:$0xf]
  %v78 = vld [vmem:[%s1 + $0x60] sm:$0xf]
  %v79 = vld [vmem:[%s1 + $0x64] sm:$0xf]
  %v80 = vld [vmem:[%s1 + $0x68] sm:$0xf]
  %v81 = vld [vmem:[%s1 + $0x6c] sm:$0xf]
  %v82 = vld [vmem:[%s1 + $0x70] sm:$0xf]
  %v83 = vld [vmem:[%s1 + $0x74] sm:$0xf]
  %v84 = vld [vmem:[%s1 + $0x78] sm:$0xf]
  %v85 = vld [vmem:[%s1 + $0x7c] sm:$0xf]
  %v86 = vld [vmem:[%s1 + $0x80] sm:$0xf]
  %v87 = vld [vmem:[%s1 + $0x84] sm:$0xf]
  %v88 = vld [vmem:[%s1 + $0x88] sm:$0xf]
  %v89 = vld [vmem:[%s1 + $0x8c] sm:$0xf]
  %v90 = vld [vmem:[%s1 + $0x90] sm:$0xf]
  %v91 = vld [vmem:[%s1 + $0x94] sm:$0xf]
  %v92 = vld [vmem:[%s1 + $0x98] sm:$0xf]
  %v93 = vld [vmem:[%s1 + $0x9c] sm:$0xf]
  %v94 = vld [vmem:[%s1 + $0xa0] sm:$0xf]
  %v95 = vld [vmem:[%s1 + $0xa4] sm:$0xf]
  %v96 = vld [vmem:[%s1 + $0xa8] sm:$0xf]
  %v97 = vld [vmem:[%s1 + $0xac] sm:$0xf]
  %v98 = vld [vmem:[%s1 + $0xb0] sm:$0xf]
  %v99 = vld [vmem:[%s1 + $0xb4] sm:$0xf]
  %v100 = vld [vmem:[%s1 + $0xb8] sm:$0xf]
  %v101 = vld [vmem:[%s1 + $0xbc] sm:$0xf]
  %v102 = vld [vmem:[%s1 + $0xc0] sm:$0xf]
  %v103 = vld [vmem:[%s1 + $0xc4] sm:$0xf]
  %v104 = vld [vmem:[%s1 + $0xc8] sm:$0xf]
  %v105 = vld [vmem:[%s1 + $0xcc] sm:$0xf]
  %v106 = vld [vmem:[%s1 + $0xd0] sm:$0xf]
  %v107 = vld [vmem:[%s1 + $0xd4] sm:$0xf]
  %v108 = vld [vmem:[%s1 + $0xd8] sm:$0xf]
  %v109 = vld [vmem:[%s1 + $0xdc] sm:$0xf]
  %v110 = vld [vmem:[%s1 + $0xe0] sm:$0xf]
  %v111 = vld [vmem:[%s1 + $0xe4] sm:$0xf]
  %v112 = vld [vmem:[%s1 + $0xe8] sm:$0xf]
  %v113 = vld [vmem:[%s1 + $0xec] sm:$0xf]
  %v114 = vld [vmem:[%s1 + $0xf0] sm:$0xf]
  %v115 = vld [vmem:[%s1 + $0xf4] sm:$0xf]
  %v116 = vld [vmem:[%s1 + $0xf8] sm:$0xf]
  %v117 = vld [vmem:[%s1 + $0xfc] sm:$0xf]
  %v118 = vld [vmem:[%s1 + $0x100] sm:$0xf]
  %v119 = vld [vmem:[%s1 + $0x104] sm:$0xf]
  %v120 = vld [vmem:[%s1 + $0x108] sm:$0xf]
  %v121 = vld [vmem:[%s1 + $0x10c] sm:$0xf]
  %v122 = vld [vmem:[%s1 + $0x110] sm:$0xf]
  %v123 = vld [vmem:[%s1 + $0x114] sm:$0xf]
  %v124 = vld [vmem:[%s1 + $0x118] sm:$0xf]
  %v125 = vld [vmem:[%s1 + $0x11c] sm:$0xf]
  %v126 = vld [vmem:[%s1 + $0x120] sm:$0xf]
  %v127 = vld [vmem:[%s1 + $0x124] sm:$0xf]
  %v128 = vld [vmem:[%s1 + $0x128] sm:$0xf]
  %v129 = vld [vmem:[%s1 + $0x12c] sm:$0xf]
  %v130 = vld [vmem:[%s1 + $0x130] sm:$0xf]
  %v131 = vld [vmem:[%s1 + $0x134] sm:$0xf]
  %v132 = vld [vmem:[%s1 + $0x138] sm:$0xf]
  %v133 = vld [vmem:[%s1 + $0x13c] sm:$0xf]
  %v134 = vld [vmem:[%s2] sm:$0x1]
  %v136 = vlaneseq
  %v137 = vshrl.u32 %v136, 7
  %v138 = vsub.s32 0, %v137
  %v139 = vrot.slane %v134, %v138
  %v180 = vunpack.c.l.b16 %v15
  %v181 = vunpack.c.h.b16 %v15
  %v182 = vunpack.c.l.b16 %v16
  %v183 = vunpack.c.h.b16 %v16
  %v184 = vunpack.c.l.b16 %v17
  %v185 = vunpack.c.l.b16 %v18
  %v186 = vunpack.c.h.b16 %v18
  %v187 = vunpack.c.l.b16 %v19
  %v188 = vunpack.c.h.b16 %v19
  %v189 = vunpack.c.l.b16 %v20
  %v190 = vunpack.c.l.b16 %v21
  %v191 = vunpack.c.h.b16 %v21
  %v192 = vunpack.c.l.b16 %v22
  %v193 = vunpack.c.h.b16 %v22
  %v194 = vunpack.c.l.b16 %v23
  %v195 = vunpack.c.l.b16 %v24
  %v196 = vunpack.c.h.b16 %v24
  %v197 = vunpack.c.l.b16 %v25
  %v198 = vunpack.c.h.b16 %v25
  %v199 = vunpack.c.l.b16 %v26
  %v200 = vunpack.c.l.b16 %v27
  %v201 = vunpack.c.h.b16 %v27
  %v202 = vunpack.c.l.b16 %v28
  %v203 = vunpack.c.h.b16 %v28
  %v204 = vunpack.c.l.b16 %v29
  %v205 = vunpack.c.l.b16 %v30
  %v206 = vunpack.c.h.b16 %v30
  %v207 = vunpack.c.l.b16 %v31
  %v208 = vunpack.c.h.b16 %v31
  %v209 = vunpack.c.l.b16 %v32
  %v210 = vunpack.c.l.b16 %v33
  %v211 = vunpack.c.h.b16 %v33
  %v212 = vunpack.c.l.b16 %v34
  %v213 = vunpack.c.h.b16 %v34
  %v214 = vunpack.c.l.b16 %v35
  %v215 = vunpack.c.l.b16 %v36
  %v216 = vunpack.c.h.b16 %v36
  %v217 = vunpack.c.l.b16 %v37
  %v218 = vunpack.c.h.b16 %v37
  %v219 = vunpack.c.l.b16 %v38
  %v220 = vunpack.c.l.b16 %v39
  %v221 = vunpack.c.h.b16 %v39
  %v222 = vunpack.c.l.b16 %v40
  %v223 = vunpack.c.h.b16 %v40
  %v224 = vunpack.c.l.b16 %v41
  %v225 = vunpack.c.l.b16 %v42
  %v226 = vunpack.c.h.b16 %v42
  %v227 = vunpack.c.l.b16 %v43
  %v228 = vunpack.c.h.b16 %v43
  %v229 = vunpack.c.l.b16 %v44
  %v230 = vunpack.c.l.b16 %v45
  %v231 = vunpack.c.h.b16 %v45
  %v232 = vunpack.c.l.b16 %v46
  %v233 = vunpack.c.h.b16 %v46
  %v234 = vunpack.c.l.b16 %v47
  %v235 = vunpack.c.l.b16 %v48
  %v236 = vunpack.c.h.b16 %v48
  %v237 = vunpack.c.l.b16 %v49
  %v238 = vunpack.c.h.b16 %v49
  %v239 = vunpack.c.l.b16 %v50
  %v240 = vunpack.c.l.b16 %v51
  %v241 = vunpack.c.h.b16 %v51
  %v242 = vunpack.c.l.b16 %v52
  %v243 = vunpack.c.h.b16 %v52
  %v244 = vunpack.c.l.b16 %v53
  %v245 = vpack.c.b16 %v185, %v180
  %v246 = vpack.c.b16 %v186, %v181
  %v247 = vpack.c.b16 %v187, %v182
  %v248 = vpack.c.b16 %v188, %v183
  %v249 = vpack.c.b16 %v189, %v184
  %v250 = vpack.c.b16 %v195, %v190
  %v251 = vpack.c.b16 %v196, %v191
  %v252 = vpack.c.b16 %v197, %v192
  %v253 = vpack.c.b16 %v198, %v193
  %v254 = vpack.c.b16 %v199, %v194
  %v255 = vpack.c.b16 %v205, %v200
  %v256 = vpack.c.b16 %v206, %v201
  %v257 = vpack.c.b16 %v207, %v202
  %v258 = vpack.c.b16 %v208, %v203
  %v259 = vpack.c.b16 %v209, %v204
  %v260 = vpack.c.b16 %v215, %v210
  %v261 = vpack.c.b16 %v216, %v211
  %v262 = vpack.c.b16 %v217, %v212
  %v263 = vpack.c.b16 %v218, %v213
  %v264 = vpack.c.b16 %v219, %v214
  %v265 = vpack.c.b16 %v225, %v220
  %v266 = vpack.c.b16 %v226, %v221
  %v267 = vpack.c.b16 %v227, %v222
  %v268 = vpack.c.b16 %v228, %v223
  %v269 = vpack.c.b16 %v229, %v224
  %v270 = vpack.c.b16 %v235, %v230
  %v271 = vpack.c.b16 %v236, %v231
  %v272 = vpack.c.b16 %v237, %v232
  %v273 = vpack.c.b16 %v238, %v233
  %v274 = vpack.c.b16 %v239, %v234
  %v275 = vpack.c.b16 %v240, %v240
  %v276 = vpack.c.b16 %v241, %v241
  %v277 = vpack.c.b16 %v242, %v242
  %v278 = vpack.c.b16 %v243, %v243
  %v279 = vpack.c.b16 %v244, %v244
  %v395 = vunpack.c.l.b16 %v54
  %v396 = vunpack.c.l.b16 %v55
  %v397 = vunpack.c.l.b16 %v56
  %v398 = vunpack.c.l.b16 %v57
  %v399 = vunpack.c.l.b16 %v58
  %v400 = vunpack.c.l.b16 %v59
  %v401 = vunpack.c.l.b16 %v60
  %v402 = vunpack.c.l.b16 %v61
  %v403 = vunpack.c.l.b16 %v62
  %v404 = vunpack.c.l.b16 %v63
  %v405 = vunpack.c.l.b16 %v64
  %v406 = vunpack.c.l.b16 %v65
  %v407 = vunpack.c.l.b16 %v66
  %v408 = vunpack.c.l.b16 %v67
  %v409 = vunpack.c.l.b16 %v68
  %v410 = vunpack.c.l.b16 %v69
  %v411 = vunpack.c.l.b16 %v70
  %v412 = vunpack.c.l.b16 %v71
  %v413 = vunpack.c.l.b16 %v72
  %v414 = vunpack.c.l.b16 %v73
  %v415 = vunpack.c.l.b16 %v74
  %v416 = vunpack.c.l.b16 %v75
  %v417 = vunpack.c.l.b16 %v76
  %v418 = vunpack.c.l.b16 %v77
  %v419 = vunpack.c.l.b16 %v78
  %v420 = vunpack.c.l.b16 %v79
  %v421 = vunpack.c.l.b16 %v80
  %v422 = vunpack.c.l.b16 %v81
  %v423 = vunpack.c.l.b16 %v82
  %v424 = vunpack.c.l.b16 %v83
  %v425 = vunpack.c.l.b16 %v84
  %v426 = vunpack.c.l.b16 %v85
  %v427 = vunpack.c.l.b16 %v86
  %v428 = vunpack.c.l.b16 %v87
  %v429 = vunpack.c.l.b16 %v88
  %v430 = vunpack.c.l.b16 %v89
  %v431 = vunpack.c.l.b16 %v90
  %v432 = vunpack.c.l.b16 %v91
  %v433 = vunpack.c.l.b16 %v92
  %v434 = vunpack.c.l.b16 %v93
  %v435 = vunpack.c.l.b16 %v94
  %v436 = vunpack.c.l.b16 %v95
  %v437 = vunpack.c.l.b16 %v96
  %v438 = vunpack.c.l.b16 %v97
  %v439 = vunpack.c.l.b16 %v98
  %v440 = vunpack.c.l.b16 %v99
  %v441 = vunpack.c.l.b16 %v100
  %v442 = vunpack.c.l.b16 %v101
  %v443 = vunpack.c.l.b16 %v102
  %v444 = vunpack.c.l.b16 %v103
  %v445 = vunpack.c.l.b16 %v104
  %v446 = vunpack.c.l.b16 %v105
  %v447 = vunpack.c.l.b16 %v106
  %v448 = vunpack.c.l.b16 %v107
  %v449 = vunpack.c.l.b16 %v108
  %v450 = vunpack.c.l.b16 %v109
  %v451 = vunpack.c.l.b16 %v110
  %v452 = vunpack.c.l.b16 %v111
  %v453 = vunpack.c.l.b16 %v112
  %v454 = vunpack.c.l.b16 %v113
  %v455 = vunpack.c.l.b16 %v114
  %v456 = vunpack.c.l.b16 %v115
  %v457 = vunpack.c.l.b16 %v116
  %v458 = vunpack.c.l.b16 %v117
  %v459 = vunpack.c.l.b16 %v118
  %v460 = vunpack.c.l.b16 %v119
  %v461 = vunpack.c.l.b16 %v120
  %v462 = vunpack.c.l.b16 %v121
  %v463 = vunpack.c.l.b16 %v122
  %v464 = vunpack.c.l.b16 %v123
  %v465 = vunpack.c.l.b16 %v124
  %v466 = vunpack.c.l.b16 %v125
  %v467 = vunpack.c.l.b16 %v126
  %v468 = vunpack.c.l.b16 %v127
  %v469 = vunpack.c.l.b16 %v128
  %v470 = vunpack.c.l.b16 %v129
  %v471 = vunpack.c.l.b16 %v130
  %v472 = vunpack.c.l.b16 %v131
  %v473 = vunpack.c.l.b16 %v132
  %v474 = vunpack.c.l.b16 %v133
  %v475 = vpack.c.b16 %v396, %v395
  %v476 = vpack.c.b16 %v398, %v397
  %v477 = vpack.c.b16 %v400, %v399
  %v478 = vpack.c.b16 %v402, %v401
  %v479 = vpack.c.b16 %v404, %v403
  %v480 = vpack.c.b16 %v406, %v405
  %v481 = vpack.c.b16 %v408, %v407
  %v482 = vpack.c.b16 %v410, %v409
  %v483 = vpack.c.b16 %v412, %v411
  %v484 = vpack.c.b16 %v414, %v413
  %v485 = vpack.c.b16 %v416, %v415
  %v486 = vpack.c.b16 %v418, %v417
  %v487 = vpack.c.b16 %v420, %v419
  %v488 = vpack.c.b16 %v422, %v421
  %v489 = vpack.c.b16 %v424, %v423
  %v490 = vpack.c.b16 %v426, %v425
  %v491 = vpack.c.b16 %v428, %v427
  %v492 = vpack.c.b16 %v430, %v429
  %v493 = vpack.c.b16 %v432, %v431
  %v494 = vpack.c.b16 %v434, %v433
  %v495 = vpack.c.b16 %v436, %v435
  %v496 = vpack.c.b16 %v438, %v437
  %v497 = vpack.c.b16 %v440, %v439
  %v498 = vpack.c.b16 %v442, %v441
  %v499 = vpack.c.b16 %v444, %v443
  %v500 = vpack.c.b16 %v446, %v445
  %v501 = vpack.c.b16 %v448, %v447
  %v502 = vpack.c.b16 %v450, %v449
  %v503 = vpack.c.b16 %v452, %v451
  %v504 = vpack.c.b16 %v454, %v453
  %v505 = vpack.c.b16 %v456, %v455
  %v506 = vpack.c.b16 %v458, %v457
  %v507 = vpack.c.b16 %v460, %v459
  %v508 = vpack.c.b16 %v462, %v461
  %v509 = vpack.c.b16 %v464, %v463
  %v510 = vpack.c.b16 %v466, %v465
  %v511 = vpack.c.b16 %v468, %v467
  %v512 = vpack.c.b16 %v470, %v469
  %v513 = vpack.c.b16 %v472, %v471
  %v514 = vpack.c.b16 %v474, %v473
  %555 = vmatprep.subr.bf16.mxu0 0
  %556 = vmatpush1.bf16.msra.mxu0 %v475
  %557 = vmatprep.subr.bf16.mxu0 0
  %558 = vmatpush1.bf16.msra.mxu0 %v476
  %559 = vmatprep.subr.bf16.mxu0 0
  %560 = vmatpush1.bf16.msra.mxu0 %v477
  %561 = vmatprep.subr.bf16.mxu0 0
  %562 = vmatpush1.bf16.msra.mxu0 %v478
  %563 = vmatprep.subr.bf16.mxu0 0
  %564 = vmatpush1.bf16.msra.mxu0 %v479
  %565 = vmatprep.subr.bf16.mxu0 0
  %566 = vmatpush1.bf16.msra.mxu0 %v480
  %567 = vmatprep.subr.bf16.mxu0 0
  %568 = vmatpush1.bf16.msra.mxu0 %v481
  %569 = vmatprep.subr.bf16.mxu0 0
  %570 = vmatpush1.bf16.msra.mxu0 %v482
  %571 = vmatprep.subr.bf16.mxu0 0
  %572 = vmatpush1.bf16.msra.mxu0 %v483
  %573 = vmatprep.subr.bf16.mxu0 0
  %574 = vmatpush1.bf16.msra.mxu0 %v484
  %575 = vmatprep.subr.bf16.mxu0 0
  %576 = vmatpush1.bf16.msra.mxu0 %v485
  %577 = vmatprep.subr.bf16.mxu0 0
  %578 = vmatpush1.bf16.msra.mxu0 %v486
  %579 = vmatprep.subr.bf16.mxu0 0
  %580 = vmatpush1.bf16.msra.mxu0 %v487
  %581 = vmatprep.subr.bf16.mxu0 0
  %582 = vmatpush1.bf16.msra.mxu0 %v488
  %583 = vmatprep.subr.bf16.mxu0 0
  %584 = vmatpush1.bf16.msra.mxu0 %v489
  %585 = vmatprep.subr.bf16.mxu0 0
  %586 = vmatpush1.bf16.msra.mxu0 %v490
  %587 = vmatprep.mubr.bf16.mxu0 %v246
  %588 = vmatmul.mubr.bf16.gmra.mrb[0].mxu0 %v245
  %v589 = vpop.f32.mrb[0].mxu0
  %v590 = vadd.f32 %v139, %v589
  %v591 = vpop.f32.mrb[0].mxu0
  %v592 = vpop.f32.mrb[0].mxu0
  %v593 = vadd.f32 %v139, %v592
  %v594 = vpop.f32.mrb[0].mxu0
  %595 = vmatprep.mubr.bf16.mxu0 %v251
  %596 = vmatmul.mubr.bf16.gmra.mrb[0].mxu0 %v250
  %v597 = vpop.f32.mrb[0].mxu0
  %v598 = vadd.f32 %v139, %v597
  %v599 = vpop.f32.mrb[0].mxu0
  %v600 = vpop.f32.mrb[0].mxu0
  %v601 = vadd.f32 %v139, %v600
  %v602 = vpop.f32.mrb[0].mxu0
  %603 = vmatprep.mubr.bf16.mxu0 %v256
  %604 = vmatmul.mubr.bf16.gmra.mrb[0].mxu0 %v255
  %v605 = vpop.f32.mrb[0].mxu0
  %v606 = vadd.f32 %v139, %v605
  %v607 = vpop.f32.mrb[0].mxu0
  %v608 = vpop.f32.mrb[0].mxu0
  %v609 = vadd.f32 %v139, %v608
  %v610 = vpop.f32.mrb[0].mxu0
  %611 = vmatprep.mubr.bf16.mxu0 %v261
  %612 = vmatmul.mubr.bf16.gmra.mrb[0].mxu0 %v260
  %v613 = vpop.f32.mrb[0].mxu0
  %v614 = vadd.f32 %v139, %v613
  %v615 = vpop.f32.mrb[0].mxu0
  %v616 = vpop.f32.mrb[0].mxu0
  %v617 = vadd.f32 %v139, %v616
  %v618 = vpop.f32.mrb[0].mxu0
  %619 = vmatprep.mubr.bf16.mxu0 %v266
  %620 = vmatmul.mubr.bf16.gmra.mrb[0].mxu0 %v265
  %v621 = vpop.f32.mrb[0].mxu0
  %v622 = vadd.f32 %v139, %v621
  %v623 = vpop.f32.mrb[0].mxu0
  %v624 = vpop.f32.mrb[0].mxu0
  %v625 = vadd.f32 %v139, %v624
  %v626 = vpop.f32.mrb[0].mxu0
  %627 = vmatprep.mubr.bf16.mxu0 %v271
  %628 = vmatmul.mubr.bf16.gmra.mrb[0].mxu0 %v270
  %v629 = vpop.f32.mrb[0].mxu0
  %v630 = vadd.f32 %v139, %v629
  %v631 = vpop.f32.mrb[0].mxu0
  %v632 = vpop.f32.mrb[0].mxu0
  %v633 = vadd.f32 %v139, %v632
  %v634 = vpop.f32.mrb[0].mxu0
  %635 = vmatprep.mubr.bf16.mxu0 %v276
  %636 = vmatmul.mubr.bf16.gmra.mrb[0].mxu0 %v275
  %v637 = vpop.f32.mrb[0].mxu0
  %v638 = vadd.f32 %v139, %v637
  %v639 = vpop.f32.mrb[0].mxu0
  %v640 = vpop.f32.mrb[0].mxu0
  %v641 = vpop.f32.mrb[0].mxu0
  %642 = vdwg.mxu0
  %643 = vmatprep.subr.bf16.mxu0 0
  %644 = vmatpush1.bf16.msra.mxu0 %v491
  %645 = vmatprep.subr.bf16.mxu0 0
  %646 = vmatpush1.bf16.msra.mxu0 %v492
  %647 = vmatprep.subr.bf16.mxu0 0
  %648 = vmatpush1.bf16.msra.mxu0 %v493
  %649 = vmatprep.subr.bf16.mxu0 0
  %650 = vmatpush1.bf16.msra.mxu0 %v494
  %651 = vmatprep.subr.bf16.mxu0 0
  %652 = vmatpush1.bf16.msra.mxu0 %v495
  %653 = vmatprep.subr.bf16.mxu0 0
  %654 = vmatpush1.bf16.msra.mxu0 %v496
  %655 = vmatprep.subr.bf16.mxu0 0
  %656 = vmatpush1.bf16.msra.mxu0 %v497
  %657 = vmatprep.subr.bf16.mxu0 0
  %658 = vmatpush1.bf16.msra.mxu0 %v498
  %659 = vmatprep.subr.bf16.mxu0 0
  %660 = vmatpush1.bf16.msra.mxu0 %v499
  %661 = vmatprep.subr.bf16.mxu0 0
  %662 = vmatpush1.bf16.msra.mxu0 %v500
  %663 = vmatprep.subr.bf16.mxu0 0
  %664 = vmatpush1.bf16.msra.mxu0 %v501
  %665 = vmatprep.subr.bf16.mxu0 0
  %666 = vmatpush1.bf16.msra.mxu0 %v502
  %667 = vmatprep.subr.bf16.mxu0 0
  %668 = vmatpush1.bf16.msra.mxu0 %v503
  %669 = vmatprep.subr.bf16.mxu0 0
  %670 = vmatpush1.bf16.msra.mxu0 %v504
  %671 = vmatprep.subr.bf16.mxu0 0
  %672 = vmatpush1.bf16.msra.mxu0 %v505
  %673 = vmatprep.subr.bf16.mxu0 0
  %674 = vmatpush1.bf16.msra.mxu0 %v506
  %675 = vmatprep.mubr.bf16.mxu0 %v248
  %676 = vmatmul.mubr.bf16.gmra.mrb[0].mxu0 %v247
  %v677 = vpop.f32.mrb[0].mxu0
  %v678 = vadd.f32 %v590, %v677
  %v679 = vpop.f32.mrb[0].mxu0
  %v680 = vpop.f32.mrb[0].mxu0
  %v681 = vadd.f32 %v593, %v680
  %v682 = vpop.f32.mrb[0].mxu0
  %683 = vmatprep.mubr.bf16.mxu0 %v253
  %684 = vmatmul.mubr.bf16.gmra.mrb[0].mxu0 %v252
  %v685 = vpop.f32.mrb[0].mxu0
  %v686 = vadd.f32 %v598, %v685
  %v687 = vpop.f32.mrb[0].mxu0
  %v688 = vpop.f32.mrb[0].mxu0
  %v689 = vadd.f32 %v601, %v688
  %v690 = vpop.f32.mrb[0].mxu0
  %691 = vmatprep.mubr.bf16.mxu0 %v258
  %692 = vmatmul.mubr.bf16.gmra.mrb[0].mxu0 %v257
  %v693 = vpop.f32.mrb[0].mxu0
  %v694 = vadd.f32 %v606, %v693
  %v695 = vpop.f32.mrb[0].mxu0
  %v696 = vpop.f32.mrb[0].mxu0
  %v697 = vadd.f32 %v609, %v696
  %v698 = vpop.f32.mrb[0].mxu0
  %699 = vmatprep.mubr.bf16.mxu0 %v263
  %700 = vmatmul.mubr.bf16.gmra.mrb[0].mxu0 %v262
  %v701 = vpop.f32.mrb[0].mxu0
  %v702 = vadd.f32 %v614, %v701
  %v703 = vpop.f32.mrb[0].mxu0
  %v704 = vpop.f32.mrb[0].mxu0
  %v705 = vadd.f32 %v617, %v704
  %v706 = vpop.f32.mrb[0].mxu0
  %707 = vmatprep.mubr.bf16.mxu0 %v268
  %708 = vmatmul.mubr.bf16.gmra.mrb[0].mxu0 %v267
  %v709 = vpop.f32.mrb[0].mxu0
  %v710 = vadd.f32 %v622, %v709
  %v711 = vpop.f32.mrb[0].mxu0
  %v712 = vpop.f32.mrb[0].mxu0
  %v713 = vadd.f32 %v625, %v712
  %v714 = vpop.f32.mrb[0].mxu0
  %715 = vmatprep.mubr.bf16.mxu0 %v273
  %716 = vmatmul.mubr.bf16.gmra.mrb[0].mxu0 %v272
  %v717 = vpop.f32.mrb[0].mxu0
  %v718 = vadd.f32 %v630, %v717
  %v719 = vpop.f32.mrb[0].mxu0
  %v720 = vpop.f32.mrb[0].mxu0
  %v721 = vadd.f32 %v633, %v720
  %v722 = vpop.f32.mrb[0].mxu0
  %723 = vmatprep.mubr.bf16.mxu0 %v278
  %724 = vmatmul.mubr.bf16.gmra.mrb[0].mxu0 %v277
  %v725 = vpop.f32.mrb[0].mxu0
  %v726 = vadd.f32 %v638, %v725
  %v727 = vpop.f32.mrb[0].mxu0
  %v728 = vpop.f32.mrb[0].mxu0
  %v729 = vpop.f32.mrb[0].mxu0
  %730 = vdwg.mxu0
  %731 = vmatprep.subr.bf16.mxu0 0
  %732 = vmatpush1.bf16.msra.mxu0 %v507
  %733 = vmatprep.subr.bf16.mxu0 0
  %734 = vmatpush1.bf16.msra.mxu0 %v508
  %735 = vmatprep.subr.bf16.mxu0 0
  %736 = vmatpush1.bf16.msra.mxu0 %v509
  %737 = vmatprep.subr.bf16.mxu0 0
  %738 = vmatpush1.bf16.msra.mxu0 %v510
  %739 = vmatprep.subr.bf16.mxu0 0
  %740 = vmatpush1.bf16.msra.mxu0 %v511
  %741 = vmatprep.subr.bf16.mxu0 0
  %742 = vmatpush1.bf16.msra.mxu0 %v512
  %743 = vmatprep.subr.bf16.mxu0 0
  %744 = vmatpush1.bf16.msra.mxu0 %v513
  %745 = vmatprep.subr.bf16.mxu0 0
  %746 = vmatpush1.bf16.msra.mxu0 %v514
  %747 = vmatprep.subr.bf16.mxu0 0
  %748 = vmatpush1.bf16.msra.mxu0 0
  %749 = vmatprep.subr.bf16.mxu0 0
  %750 = vmatpush1.bf16.msra.mxu0 0
  %751 = vmatprep.subr.bf16.mxu0 0
  %752 = vmatpush1.bf16.msra.mxu0 0
  %753 = vmatprep.subr.bf16.mxu0 0
  %754 = vmatpush1.bf16.msra.mxu0 0
  %755 = vmatprep.subr.bf16.mxu0 0
  %756 = vmatpush1.bf16.msra.mxu0 0
  %757 = vmatprep.subr.bf16.mxu0 0
  %758 = vmatpush1.bf16.msra.mxu0 0
  %759 = vmatprep.subr.bf16.mxu0 0
  %760 = vmatpush1.bf16.msra.mxu0 0
  %761 = vmatprep.subr.bf16.mxu0 0
  %762 = vmatpush1.bf16.msra.mxu0 0
  %763 = vmatprep.mubr.bf16.mxu0 0
  %764 = vmatmul.mubr.bf16.gmra.mrb[0].mxu0 %v249
  %v765 = vpop.f32.mrb[0].mxu0
  %v766 = vadd.f32 %v678, %v765
  %v767 = vpop.f32.mrb[0].mxu0
  %v768 = vpop.f32.mrb[0].mxu0
  %v769 = vadd.f32 %v681, %v768
  %v770 = vpop.f32.mrb[0].mxu0
  %771 = vmatprep.mubr.bf16.mxu0 0
  %772 = vmatmul.mubr.bf16.gmra.mrb[0].mxu0 %v254
  %v773 = vpop.f32.mrb[0].mxu0
  %v774 = vadd.f32 %v686, %v773
  %v775 = vpop.f32.mrb[0].mxu0
  %v776 = vpop.f32.mrb[0].mxu0
  %v777 = vadd.f32 %v689, %v776
  %v778 = vpop.f32.mrb[0].mxu0
  %779 = vmatprep.mubr.bf16.mxu0 0
  %780 = vmatmul.mubr.bf16.gmra.mrb[0].mxu0 %v259
  %v781 = vpop.f32.mrb[0].mxu0
  %v782 = vadd.f32 %v694, %v781
  %v783 = vpop.f32.mrb[0].mxu0
  %v784 = vpop.f32.mrb[0].mxu0
  %v785 = vadd.f32 %v697, %v784
  %v786 = vpop.f32.mrb[0].mxu0
  %787 = vmatprep.mubr.bf16.mxu0 0
  %788 = vmatmul.mubr.bf16.gmra.mrb[0].mxu0 %v264
  %v789 = vpop.f32.mrb[0].mxu0
  %v790 = vadd.f32 %v702, %v789
  %v791 = vpop.f32.mrb[0].mxu0
  %v792 = vpop.f32.mrb[0].mxu0
  %v793 = vadd.f32 %v705, %v792
  %v794 = vpop.f32.mrb[0].mxu0
  %795 = vmatprep.mubr.bf16.mxu0 0
  %796 = vmatmul.mubr.bf16.gmra.mrb[0].mxu0 %v269
  %v797 = vpop.f32.mrb[0].mxu0
  %v798 = vadd.f32 %v710, %v797
  %v799 = vpop.f32.mrb[0].mxu0
  %v800 = vpop.f32.mrb[0].mxu0
  %v801 = vadd.f32 %v713, %v800
  %v802 = vpop.f32.mrb[0].mxu0
  %803 = vmatprep.mubr.bf16.mxu0 0
  %804 = vmatmul.mubr.bf16.gmra.mrb[0].mxu0 %v274
  %v805 = vpop.f32.mrb[0].mxu0
  %v806 = vadd.f32 %v718, %v805
  %v807 = vpop.f32.mrb[0].mxu0
  %v808 = vpop.f32.mrb[0].mxu0
  %v809 = vadd.f32 %v721, %v808
  %v810 = vpop.f32.mrb[0].mxu0
  %811 = vmatprep.mubr.bf16.mxu0 0
  %812 = vmatmul.mubr.bf16.gmra.mrb[0].mxu0 %v279
  %v813 = vpop.f32.mrb[0].mxu0
  %v814 = vadd.f32 %v726, %v813
  %v815 = vpop.f32.mrb[0].mxu0
  %v816 = vpop.f32.mrb[0].mxu0
  %v817 = vpop.f32.mrb[0].mxu0
  %818 = vdwg.mxu0
  %v819 = vmax.f32 %v766, 0.0
  %v820 = vmax.f32 %v769, 0.0
  %v821 = vmax.f32 %v774, 0.0
  %v822 = vmax.f32 %v777, 0.0
  %v823 = vmax.f32 %v782, 0.0
  %v824 = vmax.f32 %v785, 0.0
  %v825 = vmax.f32 %v790, 0.0
  %v826 = vmax.f32 %v793, 0.0
  %v827 = vmax.f32 %v798, 0.0
  %v828 = vmax.f32 %v801, 0.0
  %v829 = vmax.f32 %v806, 0.0
  %v830 = vmax.f32 %v809, 0.0
  %v831 = vmax.f32 %v814, 0.0
  %v832 = vpack.c.bf16 %v820, %v819
  %v833 = vpack.c.bf16 %v822, %v821
  %v834 = vpack.c.bf16 %v824, %v823
  %v835 = vpack.c.bf16 %v826, %v825
  %v836 = vpack.c.bf16 %v828, %v827
  %v837 = vpack.c.bf16 %v830, %v829
  %v838 = vpack.c.bf16 %v831, %v831
  %v846 = vunpack.c.l.b16 %v832
  %v847 = vunpack.c.h.b16 %v832
  %v848 = vunpack.c.l.b16 %v833
  %v849 = vunpack.c.h.b16 %v833
  %v850 = vunpack.c.l.b16 %v834
  %v851 = vunpack.c.h.b16 %v834
  %v852 = vunpack.c.l.b16 %v835
  %v853 = vunpack.c.h.b16 %v835
  %v854 = vunpack.c.l.b16 %v836
  %v855 = vunpack.c.h.b16 %v836
  %v856 = vunpack.c.l.b16 %v837
  %v857 = vunpack.c.h.b16 %v837
  %v858 = vunpack.c.l.b16 %v838
  %v859 = vpack.c.b16 %v846, %v846
  %v860 = vpack.c.b16 %v847, %v847
  %v861 = vpack.c.b16 %v848, %v848
  %v862 = vpack.c.b16 %v849, %v849
  %v863 = vpack.c.b16 %v850, %v850
  %v864 = vpack.c.b16 %v851, %v851
  %v865 = vpack.c.b16 %v852, %v852
  %v866 = vpack.c.b16 %v853, %v853
  %v867 = vpack.c.b16 %v854, %v854
  %v868 = vpack.c.b16 %v855, %v855
  %v869 = vpack.c.b16 %v856, %v856
  %v870 = vpack.c.b16 %v857, %v857
  %v871 = vpack.c.b16 %v858, %v858
  %885 = vst [vmem:[%s3] sm:$0xf] %v859
  %886 = vst [vmem:[%s3 + $0x4] sm:$0xf] %v860
  %887 = vst [vmem:[%s3 + $0x8] sm:$0xf] %v861
  %888 = vst [vmem:[%s3 + $0xc] sm:$0xf] %v862
  %889 = vst [vmem:[%s3 + $0x10] sm:$0xf] %v863
  %890 = vst [vmem:[%s3 + $0x14] sm:$0xf] %v864
  %891 = vst [vmem:[%s3 + $0x18] sm:$0xf] %v865
  %892 = vst [vmem:[%s3 + $0x1c] sm:$0xf] %v866
  %893 = vst [vmem:[%s3 + $0x20] sm:$0xf] %v867
  %894 = vst [vmem:[%s3 + $0x24] sm:$0xf] %v868
  %895 = vst [vmem:[%s3 + $0x28] sm:$0xf] %v869
  %896 = vst [vmem:[%s3 + $0x2c] sm:$0xf] %v870
  %897 = vst [vmem:[%s3 + $0x30] sm:$0xf] %v871
  // Predicated region
  $region14: #{dqn_forward.6} parent=0 // pred_check
    _
  $region15: #{dqn_forward.6} parent=0 // pred_check_branch
    %899 = sbr.rel (0) target = $region17
  $region16: #{dqn_forward.6} parent=0 // pred_region
    _
  $region17: #{dqn_forward.6} parent=0 // pred_fallthru
    _
  // Predicated region
  $region18: #{dqn_forward.6} parent=0 // pred_check
    _
  $region19: #{dqn_forward.6} parent=0 // pred_check_branch
    %901 = sbr.rel (0) target = $region21
  $region20: #{dqn_forward.6} parent=0 // pred_region
    _
  $region21: #{dqn_forward.6} parent=0 // pred_fallthru
    _

// kernel: dqn_forward.7
$region0: #{dqn_forward.7}
  #allocation0 [shape = 'u32[]', space=smem, size = 0x4, offset = 0x4, fixed_abs, tag = 'smem constant byte address 0x4 - core index']
  #allocation1 [shape = 'u32[144,128]{1,0:T(1,128)}', space=vmem, size = 0x12000, scoped, tag = 'internal scratch']
  %s0 = inlined_call_operand.vmem [shape: bf16[8,3200], index: 0, kind: input, shape index: {}]
  %s1 = inlined_call_operand.vmem [shape: bf16[3200,1024], index: 1, kind: input, shape index: {}]
  %s2 = inlined_call_operand.vmem [shape: f32[1,1024], index: 2, kind: input, shape index: {}]
  %s3 = inlined_call_operand.vmem [shape: bf16[1024,128], index: 3, kind: input, shape index: {}]
  %s4 = inlined_call_operand.vmem [shape: f32[1,128], index: 4, kind: input, shape index: {}]
  %s5 = inlined_call_operand.vmem [shape: f32[8,128], index: 5, kind: output, shape index: {}]
  %s6 = sld [smem:[#allocation0]]
  $region30: #{dqn_forward.7} parent=0
    _
  %s8 = ssub.s32 1, %s6
  %s9 = scalar_select 0, %s8, %s6
  // Predicated region
  $region2: #{dqn_forward.7} parent=0 // pred_check
    _
  $region3: #{dqn_forward.7} parent=0 // pred_check_branch
    %11 = sbr.rel (0) target = $region5
  $region4: #{dqn_forward.7} parent=0 // pred_region
    _
  $region5: #{dqn_forward.7} parent=0 // pred_fallthru
    _
  // Predicated region
  $region6: #{dqn_forward.7} parent=0 // pred_check
    _
  $region7: #{dqn_forward.7} parent=0 // pred_check_branch
    %13 = sbr.rel (0) target = $region9
  $region8: #{dqn_forward.7} parent=0 // pred_region
    _
  $region9: #{dqn_forward.7} parent=0 // pred_fallthru
    _
  // Predicated region
  $region10: #{dqn_forward.7} parent=0 // pred_check
    _
  $region11: #{dqn_forward.7} parent=0 // pred_check_branch
    %15 = sbr.rel (0) target = $region13
  $region12: #{dqn_forward.7} parent=0 // pred_region
    _
  $region13: #{dqn_forward.7} parent=0 // pred_fallthru
    _
  // Predicated region
  $region14: #{dqn_forward.7} parent=0 // pred_check
    _
  $region15: #{dqn_forward.7} parent=0 // pred_check_branch
    %17 = sbr.rel (0) target = $region17
  $region16: #{dqn_forward.7} parent=0 // pred_region
    _
  $region17: #{dqn_forward.7} parent=0 // pred_fallthru
    _
  // Predicated region
  $region18: #{dqn_forward.7} parent=0 // pred_check
    _
  $region19: #{dqn_forward.7} parent=0 // pred_check_branch
    %19 = sbr.rel (0) target = $region21
  $region20: #{dqn_forward.7} parent=0 // pred_region
    _
  $region21: #{dqn_forward.7} parent=0 // pred_fallthru
    _
  %v21 = vld [vmem:[%s0] sm:$0xff]
  %v22 = vld [vmem:[%s0 + $0x8] sm:$0xff]
  %v23 = vld [vmem:[%s0 + $0x10] sm:$0xff]
  %v24 = vld [vmem:[%s0 + $0x18] sm:$0xff]
  %v25 = vld [vmem:[%s0 + $0x20] sm:$0xff]
  %v26 = vld [vmem:[%s0 + $0x28] sm:$0xff]
  %v27 = vld [vmem:[%s0 + $0x30] sm:$0xff]
  %v28 = vld [vmem:[%s0 + $0x38] sm:$0xff]
  %v29 = vld [vmem:[%s0 + $0x40] sm:$0xff]
  %v30 = vld [vmem:[%s0 + $0x48] sm:$0xff]
  %v31 = vld [vmem:[%s0 + $0x50] sm:$0xff]
  %v32 = vld [vmem:[%s0 + $0x58] sm:$0xff]
  %v33 = vld [vmem:[%s0 + $0x60] sm:$0xf]
  %v34 = vld [vmem:[%s1] sm:$0xff]
  %v35 = vld [vmem:[%s1 + $0x8] sm:$0xff]
  %v36 = vld [vmem:[%s1 + $0x10] sm:$0xff]
  %v37 = vld [vmem:[%s1 + $0x18] sm:$0xff]
  %v38 = vld [vmem:[%s1 + $0x20] sm:$0xff]
  %v39 = vld [vmem:[%s1 + $0x28] sm:$0xff]
  %v40 = vld [vmem:[%s1 + $0x30] sm:$0xff]
  %v41 = vld [vmem:[%s1 + $0x38] sm:$0xff]
  %v42 = vld [vmem:[%s1 + $0x40] sm:$0xff]
  %v43 = vld [vmem:[%s1 + $0x48] sm:$0xff]
  %v44 = vld [vmem:[%s1 + $0x50] sm:$0xff]
  %v45 = vld [vmem:[%s1 + $0x58] sm:$0xff]
  %v46 = vld [vmem:[%s1 + $0x60] sm:$0xff]
  %v47 = vld [vmem:[%s1 + $0x68] sm:$0xff]
  %v48 = vld [vmem:[%s1 + $0x70] sm:$0xff]
  %v49 = vld [vmem:[%s1 + $0x78] sm:$0xff]
  %v50 = vld [vmem:[%s1 + $0x80] sm:$0xff]
  %v51 = vld [vmem:[%s1 + $0x88] sm:$0xff]
  %v52 = vld [vmem:[%s1 + $0x90] sm:$0xff]
  %v53 = vld [vmem:[%s1 + $0x98] sm:$0xff]
  %v54 = vld [vmem:[%s1 + $0xa0] sm:$0xff]
  %v55 = vld [vmem:[%s1 + $0xa8] sm:$0xff]
  %v56 = vld [vmem:[%s1 + $0xb0] sm:$0xff]
  %v57 = vld [vmem:[%s1 + $0xb8] sm:$0xff]
  %v58 = vld [vmem:[%s1 + $0xc0] sm:$0xff]
  %v59 = vld [vmem:[%s1 + $0xc8] sm:$0xff]
  %v60 = vld [vmem:[%s1 + $0xd0] sm:$0xff]
  %v61 = vld [vmem:[%s1 + $0xd8] sm:$0xff]
  %v62 = vld [vmem:[%s1 + $0xe0] sm:$0xff]
  %v63 = vld [vmem:[%s1 + $0xe8] sm:$0xff]
  %v64 = vld [vmem:[%s1 + $0xf0] sm:$0xff]
  %v65 = vld [vmem:[%s1 + $0xf8] sm:$0xff]
  %v66 = vld [vmem:[%s1 + $0x100] sm:$0xff]
  %v67 = vld [vmem:[%s1 + $0x108] sm:$0xff]
  %v68 = vld [vmem:[%s1 + $0x110] sm:$0xff]
  %v69 = vld [vmem:[%s1 + $0x118] sm:$0xff]
  %v70 = vld [vmem:[%s1 + $0x120] sm:$0xff]
  %v71 = vld [vmem:[%s1 + $0x128] sm:$0xff]
  %v72 = vld [vmem:[%s1 + $0x130] sm:$0xff]
  %v73 = vld [vmem:[%s1 + $0x138] sm:$0xff]
  %v74 = vld [vmem:[%s1 + $0x140] sm:$0xff]
  %v75 = vld [vmem:[%s1 + $0x148] sm:$0xff]
  %v76 = vld [vmem:[%s1 + $0x150] sm:$0xff]
  %v77 = vld [vmem:[%s1 + $0x158] sm:$0xff]
  %v78 = vld [vmem:[%s1 + $0x160] sm:$0xff]
  %v79 = vld [vmem:[%s1 + $0x168] sm:$0xff]
  %v80 = vld [vmem:[%s1 + $0x170] sm:$0xff]
  %v81 = vld [vmem:[%s1 + $0x178] sm:$0xff]
  %v82 = vld [vmem:[%s1 + $0x180] sm:$0xff]
  %v83 = vld [vmem:[%s1 + $0x188] sm:$0xff]
  %v84 = vld [vmem:[%s1 + $0x190] sm:$0xff]
  %v85 = vld [vmem:[%s1 + $0x198] sm:$0xff]
  %v86 = vld [vmem:[%s1 + $0x1a0] sm:$0xff]
  %v87 = vld [vmem:[%s1 + $0x1a8] sm:$0xff]
  %v88 = vld [vmem:[%s1 + $0x1b0] sm:$0xff]
  %v89 = vld [vmem:[%s1 + $0x1b8] sm:$0xff]
  %v90 = vld [vmem:[%s1 + $0x1c0] sm:$0xff]
  %v91 = vld [vmem:[%s1 + $0x1c8] sm:$0xff]
  %v92 = vld [vmem:[%s1 + $0x1d0] sm:$0xff]
  %v93 = vld [vmem:[%s1 + $0x1d8] sm:$0xff]
  %v94 = vld [vmem:[%s1 + $0x1e0] sm:$0xff]
  %v95 = vld [vmem:[%s1 + $0x1e8] sm:$0xff]
  %v96 = vld [vmem:[%s1 + $0x1f0] sm:$0xff]
  %v97 = vld [vmem:[%s1 + $0x1f8] sm:$0xff]
  %v98 = vld [vmem:[%s1 + $0x200] sm:$0xff]
  %v99 = vld [vmem:[%s1 + $0x208] sm:$0xff]
  %v100 = vld [vmem:[%s1 + $0x210] sm:$0xff]
  %v101 = vld [vmem:[%s1 + $0x218] sm:$0xff]
  %v102 = vld [vmem:[%s1 + $0x220] sm:$0xff]
  %v103 = vld [vmem:[%s1 + $0x228] sm:$0xff]
  %v104 = vld [vmem:[%s1 + $0x230] sm:$0xff]
  %v105 = vld [vmem:[%s1 + $0x238] sm:$0xff]
  %v106 = vld [vmem:[%s1 + $0x240] sm:$0xff]
  %v107 = vld [vmem:[%s1 + $0x248] sm:$0xff]
  %v108 = vld [vmem:[%s1 + $0x250] sm:$0xff]
  %v109 = vld [vmem:[%s1 + $0x258] sm:$0xff]
  %v110 = vld [vmem:[%s1 + $0x260] sm:$0xff]
  %v111 = vld [vmem:[%s1 + $0x268] sm:$0xff]
  %v112 = vld [vmem:[%s1 + $0x270] sm:$0xff]
  %v113 = vld [vmem:[%s1 + $0x278] sm:$0xff]
  %v114 = vld [vmem:[%s1 + $0x280] sm:$0xff]
  %v115 = vld [vmem:[%s1 + $0x288] sm:$0xff]
  %v116 = vld [vmem:[%s1 + $0x290] sm:$0xff]
  %v117 = vld [vmem:[%s1 + $0x298] sm:$0xff]
  %v118 = vld [vmem:[%s1 + $0x2a0] sm:$0xff]
  %v119 = vld [vmem:[%s1 + $0x2a8] sm:$0xff]
  %v120 = vld [vmem:[%s1 + $0x2b0] sm:$0xff]
  %v121 = vld [vmem:[%s1 + $0x2b8] sm:$0xff]
  %v122 = vld [vmem:[%s1 + $0x2c0] sm:$0xff]
  %v123 = vld [vmem:[%s1 + $0x2c8] sm:$0xff]
  %v124 = vld [vmem:[%s1 + $0x2d0] sm:$0xff]
  %v125 = vld [vmem:[%s1 + $0x2d8] sm:$0xff]
  %v126 = vld [vmem:[%s1 + $0x2e0] sm:$0xff]
  %v127 = vld [vmem:[%s1 + $0x2e8] sm:$0xff]
  %v128 = vld [vmem:[%s1 + $0x2f0] sm:$0xff]
  %v129 = vld [vmem:[%s1 + $0x2f8] sm:$0xff]
  %v130 = vld [vmem:[%s1 + $0x300] sm:$0xff]
  %v131 = vld [vmem:[%s1 + $0x308] sm:$0xff]
  %v132 = vld [vmem:[%s1 + $0x310] sm:$0xff]
  %v133 = vld [vmem:[%s1 + $0x318] sm:$0xff]
  %v134 = vld [vmem:[%s1 + $0x320] sm:$0xff]
  %v135 = vld [vmem:[%s1 + $0x328] sm:$0xff]
  %v136 = vld [vmem:[%s1 + $0x330] sm:$0xff]
  %v137 = vld [vmem:[%s1 + $0x338] sm:$0xff]
  %v138 = vld [vmem:[%s1 + $0x340] sm:$0xff]
  %v139 = vld [vmem:[%s1 + $0x348] sm:$0xff]
  %v140 = vld [vmem:[%s1 + $0x350] sm:$0xff]
  %v141 = vld [vmem:[%s1 + $0x358] sm:$0xff]
  %v142 = vld [vmem:[%s1 + $0x360] sm:$0xff]
  %v143 = vld [vmem:[%s1 + $0x368] sm:$0xff]
  %v144 = vld [vmem:[%s1 + $0x370] sm:$0xff]
  %v145 = vld [vmem:[%s1 + $0x378] sm:$0xff]
  %v146 = vld [vmem:[%s1 + $0x380] sm:$0xff]
  %v147 = vld [vmem:[%s1 + $0x388] sm:$0xff]
  %v148 = vld [vmem:[%s1 + $0x390] sm:$0xff]
  %v149 = vld [vmem:[%s1 + $0x398] sm:$0xff]
  %v150 = vld [vmem:[%s1 + $0x3a0] sm:$0xff]
  %v151 = vld [vmem:[%s1 + $0x3a8] sm:$0xff]
  %v152 = vld [vmem:[%s1 + $0x3b0] sm:$0xff]
  %v153 = vld [vmem:[%s1 + $0x3b8] sm:$0xff]
  %v154 = vld [vmem:[%s1 + $0x3c0] sm:$0xff]
  %v155 = vld [vmem:[%s1 + $0x3c8] sm:$0xff]
  %v156 = vld [vmem:[%s1 + $0x3d0] sm:$0xff]
  %v157 = vld [vmem:[%s1 + $0x3d8] sm:$0xff]
  %v158 = vld [vmem:[%s1 + $0x3e0] sm:$0xff]
  %v159 = vld [vmem:[%s1 + $0x3e8] sm:$0xff]
  %v160 = vld [vmem:[%s1 + $0x3f0] sm:$0xff]
  %v161 = vld [vmem:[%s1 + $0x3f8] sm:$0xff]
  %v162 = vld [vmem:[%s1 + $0x400] sm:$0xff]
  %v163 = vld [vmem:[%s1 + $0x408] sm:$0xff]
  %v164 = vld [vmem:[%s1 + $0x410] sm:$0xff]
  %v165 = vld [vmem:[%s1 + $0x418] sm:$0xff]
  %v166 = vld [vmem:[%s1 + $0x420] sm:$0xff]
  %v167 = vld [vmem:[%s1 + $0x428] sm:$0xff]
  %v168 = vld [vmem:[%s1 + $0x430] sm:$0xff]
  %v169 = vld [vmem:[%s1 + $0x438] sm:$0xff]
  %v170 = vld [vmem:[%s1 + $0x440] sm:$0xff]
  %v171 = vld [vmem:[%s1 + $0x448] sm:$0xff]
  %v172 = vld [vmem:[%s1 + $0x450] sm:$0xff]
  %v173 = vld [vmem:[%s1 + $0x458] sm:$0xff]
  %v174 = vld [vmem:[%s1 + $0x460] sm:$0xff]
  %v175 = vld [vmem:[%s1 + $0x468] sm:$0xff]
  %v176 = vld [vmem:[%s1 + $0x470] sm:$0xff]
  %v177 = vld [vmem:[%s1 + $0x478] sm:$0xff]
  %v178 = vld [vmem:[%s1 + $0x480] sm:$0xff]
  %v179 = vld [vmem:[%s1 + $0x488] sm:$0xff]
  %v180 = vld [vmem:[%s1 + $0x490] sm:$0xff]
  %v181 = vld [vmem:[%s1 + $0x498] sm:$0xff]
  %v182 = vld [vmem:[%s1 + $0x4a0] sm:$0xff]
  %v183 = vld [vmem:[%s1 + $0x4a8] sm:$0xff]
  %v184 = vld [vmem:[%s1 + $0x4b0] sm:$0xff]
  %v185 = vld [vmem:[%s1 + $0x4b8] sm:$0xff]
  %v186 = vld [vmem:[%s1 + $0x4c0] sm:$0xff]
  %v187 = vld [vmem:[%s1 + $0x4c8] sm:$0xff]
  %v188 = vld [vmem:[%s1 + $0x4d0] sm:$0xff]
  %v189 = vld [vmem:[%s1 + $0x4d8] sm:$0xff]
  %v190 = vld [vmem:[%s1 + $0x4e0] sm:$0xff]
  %v191 = vld [vmem:[%s1 + $0x4e8] sm:$0xff]
  %v192 = vld [vmem:[%s1 + $0x4f0] sm:$0xff]
  %v193 = vld [vmem:[%s1 + $0x4f8] sm:$0xff]
  %v194 = vld [vmem:[%s1 + $0x500] sm:$0xff]
  %v195 = vld [vmem:[%s1 + $0x508] sm:$0xff]
  %v196 = vld [vmem:[%s1 + $0x510] sm:$0xff]
  %v197 = vld [vmem:[%s1 + $0x518] sm:$0xff]
  %v198 = vld [vmem:[%s1 + $0x520] sm:$0xff]
  %v199 = vld [vmem:[%s1 + $0x528] sm:$0xff]
  %v200 = vld [vmem:[%s1 + $0x530] sm:$0xff]
  %v201 = vld [vmem:[%s1 + $0x538] sm:$0xff]
  %v202 = vld [vmem:[%s1 + $0x540] sm:$0xff]
  %v203 = vld [vmem:[%s1 + $0x548] sm:$0xff]
  %v204 = vld [vmem:[%s1 + $0x550] sm:$0xff]
  %v205 = vld [vmem:[%s1 + $0x558] sm:$0xff]
  %v206 = vld [vmem:[%s1 + $0x560] sm:$0xff]
  %v207 = vld [vmem:[%s1 + $0x568] sm:$0xff]
  %v208 = vld [vmem:[%s1 + $0x570] sm:$0xff]
  %v209 = vld [vmem:[%s1 + $0x578] sm:$0xff]
  %v210 = vld [vmem:[%s1 + $0x580] sm:$0xff]
  %v211 = vld [vmem:[%s1 + $0x588] sm:$0xff]
  %v212 = vld [vmem:[%s1 + $0x590] sm:$0xff]
  %v213 = vld [vmem:[%s1 + $0x598] sm:$0xff]
  %v214 = vld [vmem:[%s1 + $0x5a0] sm:$0xff]
  %v215 = vld [vmem:[%s1 + $0x5a8] sm:$0xff]
  %v216 = vld [vmem:[%s1 + $0x5b0] sm:$0xff]
  %v217 = vld [vmem:[%s1 + $0x5b8] sm:$0xff]
  %v218 = vld [vmem:[%s1 + $0x5c0] sm:$0xff]
  %v219 = vld [vmem:[%s1 + $0x5c8] sm:$0xff]
  %v220 = vld [vmem:[%s1 + $0x5d0] sm:$0xff]
  %v221 = vld [vmem:[%s1 + $0x5d8] sm:$0xff]
  %v222 = vld [vmem:[%s1 + $0x5e0] sm:$0xff]
  %v223 = vld [vmem:[%s1 + $0x5e8] sm:$0xff]
  %v224 = vld [vmem:[%s1 + $0x5f0] sm:$0xff]
  %v225 = vld [vmem:[%s1 + $0x5f8] sm:$0xff]
  %v226 = vld [vmem:[%s1 + $0x600] sm:$0xff]
  %v227 = vld [vmem:[%s1 + $0x608] sm:$0xff]
  %v228 = vld [vmem:[%s1 + $0x610] sm:$0xff]
  %v229 = vld [vmem:[%s1 + $0x618] sm:$0xff]
  %v230 = vld [vmem:[%s1 + $0x620] sm:$0xff]
  %v231 = vld [vmem:[%s1 + $0x628] sm:$0xff]
  %v232 = vld [vmem:[%s1 + $0x630] sm:$0xff]
  %v233 = vld [vmem:[%s1 + $0x638] sm:$0xff]
  %v234 = vld [vmem:[%s1 + $0x640] sm:$0xff]
  %v235 = vld [vmem:[%s1 + $0x648] sm:$0xff]
  %v236 = vld [vmem:[%s1 + $0x650] sm:$0xff]
  %v237 = vld [vmem:[%s1 + $0x658] sm:$0xff]
  %v238 = vld [vmem:[%s1 + $0x660] sm:$0xff]
  %v239 = vld [vmem:[%s1 + $0x668] sm:$0xff]
  %v240 = vld [vmem:[%s1 + $0x670] sm:$0xff]
  %v241 = vld [vmem:[%s1 + $0x678] sm:$0xff]
  %v242 = vld [vmem:[%s1 + $0x680] sm:$0xff]
  %v243 = vld [vmem:[%s1 + $0x688] sm:$0xff]
  %v244 = vld [vmem:[%s1 + $0x690] sm:$0xff]
  %v245 = vld [vmem:[%s1 + $0x698] sm:$0xff]
  %v246 = vld [vmem:[%s1 + $0x6a0] sm:$0xff]
  %v247 = vld [vmem:[%s1 + $0x6a8] sm:$0xff]
  %v248 = vld [vmem:[%s1 + $0x6b0] sm:$0xff]
  %v249 = vld [vmem:[%s1 + $0x6b8] sm:$0xff]
  %v250 = vld [vmem:[%s1 + $0x6c0] sm:$0xff]
  %v251 = vld [vmem:[%s1 + $0x6c8] sm:$0xff]
  %v252 = vld [vmem:[%s1 + $0x6d0] sm:$0xff]
  %v253 = vld [vmem:[%s1 + $0x6d8] sm:$0xff]
  %v254 = vld [vmem:[%s1 + $0x6e0] sm:$0xff]
  %v255 = vld [vmem:[%s1 + $0x6e8] sm:$0xff]
  %v256 = vld [vmem:[%s1 + $0x6f0] sm:$0xff]
  %v257 = vld [vmem:[%s1 + $0x6f8] sm:$0xff]
  %v258 = vld [vmem:[%s1 + $0x700] sm:$0xff]
  %v259 = vld [vmem:[%s1 + $0x708] sm:$0xff]
  %v260 = vld [vmem:[%s1 + $0x710] sm:$0xff]
  %v261 = vld [vmem:[%s1 + $0x718] sm:$0xff]
  %v262 = vld [vmem:[%s1 + $0x720] sm:$0xff]
  %v263 = vld [vmem:[%s1 + $0x728] sm:$0xff]
  %v264 = vld [vmem:[%s1 + $0x730] sm:$0xff]
  %v265 = vld [vmem:[%s1 + $0x738] sm:$0xff]
  %v266 = vld [vmem:[%s1 + $0x740] sm:$0xff]
  %v267 = vld [vmem:[%s1 + $0x748] sm:$0xff]
  %v268 = vld [vmem:[%s1 + $0x750] sm:$0xff]
  %v269 = vld [vmem:[%s1 + $0x758] sm:$0xff]
  %v270 = vld [vmem:[%s1 + $0x760] sm:$0xff]
  %v271 = vld [vmem:[%s1 + $0x768] sm:$0xff]
  %v272 = vld [vmem:[%s1 + $0x770] sm:$0xff]
  %v273 = vld [vmem:[%s1 + $0x778] sm:$0xff]
  %v274 = vld [vmem:[%s1 + $0x780] sm:$0xff]
  %v275 = vld [vmem:[%s1 + $0x788] sm:$0xff]
  %v276 = vld [vmem:[%s1 + $0x790] sm:$0xff]
  %v277 = vld [vmem:[%s1 + $0x798] sm:$0xff]
  %v278 = vld [vmem:[%s1 + $0x7a0] sm:$0xff]
  %v279 = vld [vmem:[%s1 + $0x7a8] sm:$0xff]
  %v280 = vld [vmem:[%s1 + $0x7b0] sm:$0xff]
  %v281 = vld [vmem:[%s1 + $0x7b8] sm:$0xff]
  %v282 = vld [vmem:[%s1 + $0x7c0] sm:$0xff]
  %v283 = vld [vmem:[%s1 + $0x7c8] sm:$0xff]
  %v284 = vld [vmem:[%s1 + $0x7d0] sm:$0xff]
  %v285 = vld [vmem:[%s1 + $0x7d8] sm:$0xff]
  %v286 = vld [vmem:[%s1 + $0x7e0] sm:$0xff]
  %v287 = vld [vmem:[%s1 + $0x7e8] sm:$0xff]
  %v288 = vld [vmem:[%s1 + $0x7f0] sm:$0xff]
  %v289 = vld [vmem:[%s1 + $0x7f8] sm:$0xff]
  %v290 = vld [vmem:[%s1 + $0x800] sm:$0xff]
  %v291 = vld [vmem:[%s1 + $0x808] sm:$0xff]
  %v292 = vld [vmem:[%s1 + $0x810] sm:$0xff]
  %v293 = vld [vmem:[%s1 + $0x818] sm:$0xff]
  %v294 = vld [vmem:[%s1 + $0x820] sm:$0xff]
  %v295 = vld [vmem:[%s1 + $0x828] sm:$0xff]
  %v296 = vld [vmem:[%s1 + $0x830] sm:$0xff]
  %v297 = vld [vmem:[%s1 + $0x838] sm:$0xff]
  %v298 = vld [vmem:[%s1 + $0x840] sm:$0xff]
  %v299 = vld [vmem:[%s1 + $0x848] sm:$0xff]
  %v300 = vld [vmem:[%s1 + $0x850] sm:$0xff]
  %v301 = vld [vmem:[%s1 + $0x858] sm:$0xff]
  %v302 = vld [vmem:[%s1 + $0x860] sm:$0xff]
  %v303 = vld [vmem:[%s1 + $0x868] sm:$0xff]
  %v304 = vld [vmem:[%s1 + $0x870] sm:$0xff]
  %v305 = vld [vmem:[%s1 + $0x878] sm:$0xff]
  %v306 = vld [vmem:[%s1 + $0x880] sm:$0xff]
  %v307 = vld [vmem:[%s1 + $0x888] sm:$0xff]
  %v308 = vld [vmem:[%s1 + $0x890] sm:$0xff]
  %v309 = vld [vmem:[%s1 + $0x898] sm:$0xff]
  %v310 = vld [vmem:[%s1 + $0x8a0] sm:$0xff]
  %v311 = vld [vmem:[%s1 + $0x8a8] sm:$0xff]
  %v312 = vld [vmem:[%s1 + $0x8b0] sm:$0xff]
  %v313 = vld [vmem:[%s1 + $0x8b8] sm:$0xff]
  %v314 = vld [vmem:[%s1 + $0x8c0] sm:$0xff]
  %v315 = vld [vmem:[%s1 + $0x8c8] sm:$0xff]
  %v316 = vld [vmem:[%s1 + $0x8d0] sm:$0xff]
  %v317 = vld [vmem:[%s1 + $0x8d8] sm:$0xff]
  %v318 = vld [vmem:[%s1 + $0x8e0] sm:$0xff]
  %v319 = vld [vmem:[%s1 + $0x8e8] sm:$0xff]
  %v320 = vld [vmem:[%s1 + $0x8f0] sm:$0xff]
  %v321 = vld [vmem:[%s1 + $0x8f8] sm:$0xff]
  %v322 = vld [vmem:[%s1 + $0x900] sm:$0xff]
  %v323 = vld [vmem:[%s1 + $0x908] sm:$0xff]
  %v324 = vld [vmem:[%s1 + $0x910] sm:$0xff]
  %v325 = vld [vmem:[%s1 + $0x918] sm:$0xff]
  %v326 = vld [vmem:[%s1 + $0x920] sm:$0xff]
  %v327 = vld [vmem:[%s1 + $0x928] sm:$0xff]
  %v328 = vld [vmem:[%s1 + $0x930] sm:$0xff]
  %v329 = vld [vmem:[%s1 + $0x938] sm:$0xff]
  %v330 = vld [vmem:[%s1 + $0x940] sm:$0xff]
  %v331 = vld [vmem:[%s1 + $0x948] sm:$0xff]
  %v332 = vld [vmem:[%s1 + $0x950] sm:$0xff]
  %v333 = vld [vmem:[%s1 + $0x958] sm:$0xff]
  %v334 = vld [vmem:[%s1 + $0x960] sm:$0xff]
  %v335 = vld [vmem:[%s1 + $0x968] sm:$0xff]
  %v336 = vld [vmem:[%s1 + $0x970] sm:$0xff]
  %v337 = vld [vmem:[%s1 + $0x978] sm:$0xff]
  %v338 = vld [vmem:[%s1 + $0x980] sm:$0xff]
  %v339 = vld [vmem:[%s1 + $0x988] sm:$0xff]
  %v340 = vld [vmem:[%s1 + $0x990] sm:$0xff]
  %v341 = vld [vmem:[%s1 + $0x998] sm:$0xff]
  %v342 = vld [vmem:[%s1 + $0x9a0] sm:$0xff]
  %v343 = vld [vmem:[%s1 + $0x9a8] sm:$0xff]
  %v344 = vld [vmem:[%s1 + $0x9b0] sm:$0xff]
  %v345 = vld [vmem:[%s1 + $0x9b8] sm:$0xff]
  %v346 = vld [vmem:[%s1 + $0x9c0] sm:$0xff]
  %v347 = vld [vmem:[%s1 + $0x9c8] sm:$0xff]
  %v348 = vld [vmem:[%s1 + $0x9d0] sm:$0xff]
  %v349 = vld [vmem:[%s1 + $0x9d8] sm:$0xff]
  %v350 = vld [vmem:[%s1 + $0x9e0] sm:$0xff]
  %v351 = vld [vmem:[%s1 + $0x9e8] sm:$0xff]
  %v352 = vld [vmem:[%s1 + $0x9f0] sm:$0xff]
  %v353 = vld [vmem:[%s1 + $0x9f8] sm:$0xff]
  %v354 = vld [vmem:[%s1 + $0xa00] sm:$0xff]
  %v355 = vld [vmem:[%s1 + $0xa08] sm:$0xff]
  %v356 = vld [vmem:[%s1 + $0xa10] sm:$0xff]
  %v357 = vld [vmem:[%s1 + $0xa18] sm:$0xff]
  %v358 = vld [vmem:[%s1 + $0xa20] sm:$0xff]
  %v359 = vld [vmem:[%s1 + $0xa28] sm:$0xff]
  %v360 = vld [vmem:[%s1 + $0xa30] sm:$0xff]
  %v361 = vld [vmem:[%s1 + $0xa38] sm:$0xff]
  %v362 = vld [vmem:[%s1 + $0xa40] sm:$0xff]
  %v363 = vld [vmem:[%s1 + $0xa48] sm:$0xff]
  %v364 = vld [vmem:[%s1 + $0xa50] sm:$0xff]
  %v365 = vld [vmem:[%s1 + $0xa58] sm:$0xff]
  %v366 = vld [vmem:[%s1 + $0xa60] sm:$0xff]
  %v367 = vld [vmem:[%s1 + $0xa68] sm:$0xff]
  %v368 = vld [vmem:[%s1 + $0xa70] sm:$0xff]
  %v369 = vld [vmem:[%s1 + $0xa78] sm:$0xff]
  %v370 = vld [vmem:[%s1 + $0xa80] sm:$0xff]
  %v371 = vld [vmem:[%s1 + $0xa88] sm:$0xff]
  %v372 = vld [vmem:[%s1 + $0xa90] sm:$0xff]
  %v373 = vld [vmem:[%s1 + $0xa98] sm:$0xff]
  %v374 = vld [vmem:[%s1 + $0xaa0] sm:$0xff]
  %v375 = vld [vmem:[%s1 + $0xaa8] sm:$0xff]
  %v376 = vld [vmem:[%s1 + $0xab0] sm:$0xff]
  %v377 = vld [vmem:[%s1 + $0xab8] sm:$0xff]
  %v378 = vld [vmem:[%s1 + $0xac0] sm:$0xff]
  %v379 = vld [vmem:[%s1 + $0xac8] sm:$0xff]
  %v380 = vld [vmem:[%s1 + $0xad0] sm:$0xff]
  %v381 = vld [vmem:[%s1 + $0xad8] sm:$0xff]
  %v382 = vld [vmem:[%s1 + $0xae0] sm:$0xff]
  %v383 = vld [vmem:[%s1 + $0xae8] sm:$0xff]
  %v384 = vld [vmem:[%s1 + $0xaf0] sm:$0xff]
  %v385 = vld [vmem:[%s1 + $0xaf8] sm:$0xff]
  %v386 = vld [vmem:[%s1 + $0xb00] sm:$0xff]
  %v387 = vld [vmem:[%s1 + $0xb08] sm:$0xff]
  %v388 = vld [vmem:[%s1 + $0xb10] sm:$0xff]
  %v389 = vld [vmem:[%s1 + $0xb18] sm:$0xff]
  %v390 = vld [vmem:[%s1 + $0xb20] sm:$0xff]
  %v391 = vld [vmem:[%s1 + $0xb28] sm:$0xff]
  %v392 = vld [vmem:[%s1 + $0xb30] sm:$0xff]
  %v393 = vld [vmem:[%s1 + $0xb38] sm:$0xff]
  %v394 = vld [vmem:[%s1 + $0xb40] sm:$0xff]
  %v395 = vld [vmem:[%s1 + $0xb48] sm:$0xff]
  %v396 = vld [vmem:[%s1 + $0xb50] sm:$0xff]
  %v397 = vld [vmem:[%s1 + $0xb58] sm:$0xff]
  %v398 = vld [vmem:[%s1 + $0xb60] sm:$0xff]
  %v399 = vld [vmem:[%s1 + $0xb68] sm:$0xff]
  %v400 = vld [vmem:[%s1 + $0xb70] sm:$0xff]
  %v401 = vld [vmem:[%s1 + $0xb78] sm:$0xff]
  %v402 = vld [vmem:[%s1 + $0xb80] sm:$0xff]
  %v403 = vld [vmem:[%s1 + $0xb88] sm:$0xff]
  %v404 = vld [vmem:[%s1 + $0xb90] sm:$0xff]
  %v405 = vld [vmem:[%s1 + $0xb98] sm:$0xff]
  %v406 = vld [vmem:[%s1 + $0xba0] sm:$0xff]
  %v407 = vld [vmem:[%s1 + $0xba8] sm:$0xff]
  %v408 = vld [vmem:[%s1 + $0xbb0] sm:$0xff]
  %v409 = vld [vmem:[%s1 + $0xbb8] sm:$0xff]
  %v410 = vld [vmem:[%s1 + $0xbc0] sm:$0xff]
  %v411 = vld [vmem:[%s1 + $0xbc8] sm:$0xff]
  %v412 = vld [vmem:[%s1 + $0xbd0] sm:$0xff]
  %v413 = vld [vmem:[%s1 + $0xbd8] sm:$0xff]
  %v414 = vld [vmem:[%s1 + $0xbe0] sm:$0xff]
  %v415 = vld [vmem:[%s1 + $0xbe8] sm:$0xff]
  %v416 = vld [vmem:[%s1 + $0xbf0] sm:$0xff]
  %v417 = vld [vmem:[%s1 + $0xbf8] sm:$0xff]
  %v418 = vld [vmem:[%s1 + $0xc00] sm:$0xff]
  %v419 = vld [vmem:[%s1 + $0xc08] sm:$0xff]
  %v420 = vld [vmem:[%s1 + $0xc10] sm:$0xff]
  %v421 = vld [vmem:[%s1 + $0xc18] sm:$0xff]
  %v422 = vld [vmem:[%s1 + $0xc20] sm:$0xff]
  %v423 = vld [vmem:[%s1 + $0xc28] sm:$0xff]
  %v424 = vld [vmem:[%s1 + $0xc30] sm:$0xff]
  %v425 = vld [vmem:[%s1 + $0xc38] sm:$0xff]
  %v426 = vld [vmem:[%s1 + $0xc40] sm:$0xff]
  %v427 = vld [vmem:[%s1 + $0xc48] sm:$0xff]
  %v428 = vld [vmem:[%s1 + $0xc50] sm:$0xff]
  %v429 = vld [vmem:[%s1 + $0xc58] sm:$0xff]
  %v430 = vld [vmem:[%s1 + $0xc60] sm:$0xff]
  %v431 = vld [vmem:[%s1 + $0xc68] sm:$0xff]
  %v432 = vld [vmem:[%s1 + $0xc70] sm:$0xff]
  %v433 = vld [vmem:[%s1 + $0xc78] sm:$0xff]
  %v434 = vld [vmem:[%s1 + $0xc80] sm:$0xff]
  %v435 = vld [vmem:[%s1 + $0xc88] sm:$0xff]
  %v436 = vld [vmem:[%s1 + $0xc90] sm:$0xff]
  %v437 = vld [vmem:[%s1 + $0xc98] sm:$0xff]
  %v438 = vld [vmem:[%s1 + $0xca0] sm:$0xff]
  %v439 = vld [vmem:[%s1 + $0xca8] sm:$0xff]
  %v440 = vld [vmem:[%s1 + $0xcb0] sm:$0xff]
  %v441 = vld [vmem:[%s1 + $0xcb8] sm:$0xff]
  %v442 = vld [vmem:[%s1 + $0xcc0] sm:$0xff]
  %v443 = vld [vmem:[%s1 + $0xcc8] sm:$0xff]
  %v444 = vld [vmem:[%s1 + $0xcd0] sm:$0xff]
  %v445 = vld [vmem:[%s1 + $0xcd8] sm:$0xff]
  %v446 = vld [vmem:[%s1 + $0xce0] sm:$0xff]
  %v447 = vld [vmem:[%s1 + $0xce8] sm:$0xff]
  %v448 = vld [vmem:[%s1 + $0xcf0] sm:$0xff]
  %v449 = vld [vmem:[%s1 + $0xcf8] sm:$0xff]
  %v450 = vld [vmem:[%s1 + $0xd00] sm:$0xff]
  %v451 = vld [vmem:[%s1 + $0xd08] sm:$0xff]
  %v452 = vld [vmem:[%s1 + $0xd10] sm:$0xff]
  %v453 = vld [vmem:[%s1 + $0xd18] sm:$0xff]
  %v454 = vld [vmem:[%s1 + $0xd20] sm:$0xff]
  %v455 = vld [vmem:[%s1 + $0xd28] sm:$0xff]
  %v456 = vld [vmem:[%s1 + $0xd30] sm:$0xff]
  %v457 = vld [vmem:[%s1 + $0xd38] sm:$0xff]
  %v458 = vld [vmem:[%s1 + $0xd40] sm:$0xff]
  %v459 = vld [vmem:[%s1 + $0xd48] sm:$0xff]
  %v460 = vld [vmem:[%s1 + $0xd50] sm:$0xff]
  %v461 = vld [vmem:[%s1 + $0xd58] sm:$0xff]
  %v462 = vld [vmem:[%s1 + $0xd60] sm:$0xff]
  %v463 = vld [vmem:[%s1 + $0xd68] sm:$0xff]
  %v464 = vld [vmem:[%s1 + $0xd70] sm:$0xff]
  %v465 = vld [vmem:[%s1 + $0xd78] sm:$0xff]
  %v466 = vld [vmem:[%s1 + $0xd80] sm:$0xff]
  %v467 = vld [vmem:[%s1 + $0xd88] sm:$0xff]
  %v468 = vld [vmem:[%s1 + $0xd90] sm:$0xff]
  %v469 = vld [vmem:[%s1 + $0xd98] sm:$0xff]
  %v470 = vld [vmem:[%s1 + $0xda0] sm:$0xff]
  %v471 = vld [vmem:[%s1 + $0xda8] sm:$0xff]
  %v472 = vld [vmem:[%s1 + $0xdb0] sm:$0xff]
  %v473 = vld [vmem:[%s1 + $0xdb8] sm:$0xff]
  %v474 = vld [vmem:[%s1 + $0xdc0] sm:$0xff]
  %v475 = vld [vmem:[%s1 + $0xdc8] sm:$0xff]
  %v476 = vld [vmem:[%s1 + $0xdd0] sm:$0xff]
  %v477 = vld [vmem:[%s1 + $0xdd8] sm:$0xff]
  %v478 = vld [vmem:[%s1 + $0xde0] sm:$0xff]
  %v479 = vld [vmem:[%s1 + $0xde8] sm:$0xff]
  %v480 = vld [vmem:[%s1 + $0xdf0] sm:$0xff]
  %v481 = vld [vmem:[%s1 + $0xdf8] sm:$0xff]
  %v482 = vld [vmem:[%s1 + $0xe00] sm:$0xff]
  %v483 = vld [vmem:[%s1 + $0xe08] sm:$0xff]
  %v484 = vld [vmem:[%s1 + $0xe10] sm:$0xff]
  %v485 = vld [vmem:[%s1 + $0xe18] sm:$0xff]
  %v486 = vld [vmem:[%s1 + $0xe20] sm:$0xff]
  %v487 = vld [vmem:[%s1 + $0xe28] sm:$0xff]
  %v488 = vld [vmem:[%s1 + $0xe30] sm:$0xff]
  %v489 = vld [vmem:[%s1 + $0xe38] sm:$0xff]
  %v490 = vld [vmem:[%s1 + $0xe40] sm:$0xff]
  %v491 = vld [vmem:[%s1 + $0xe48] sm:$0xff]
  %v492 = vld [vmem:[%s1 + $0xe50] sm:$0xff]
  %v493 = vld [vmem:[%s1 + $0xe58] sm:$0xff]
  %v494 = vld [vmem:[%s1 + $0xe60] sm:$0xff]
  %v495 = vld [vmem:[%s1 + $0xe68] sm:$0xff]
  %v496 = vld [vmem:[%s1 + $0xe70] sm:$0xff]
  %v497 = vld [vmem:[%s1 + $0xe78] sm:$0xff]
  %v498 = vld [vmem:[%s1 + $0xe80] sm:$0xff]
  %v499 = vld [vmem:[%s1 + $0xe88] sm:$0xff]
  %v500 = vld [vmem:[%s1 + $0xe90] sm:$0xff]
  %v501 = vld [vmem:[%s1 + $0xe98] sm:$0xff]
  %v502 = vld [vmem:[%s1 + $0xea0] sm:$0xff]
  %v503 = vld [vmem:[%s1 + $0xea8] sm:$0xff]
  %v504 = vld [vmem:[%s1 + $0xeb0] sm:$0xff]
  %v505 = vld [vmem:[%s1 + $0xeb8] sm:$0xff]
  %v506 = vld [vmem:[%s1 + $0xec0] sm:$0xff]
  %v507 = vld [vmem:[%s1 + $0xec8] sm:$0xff]
  %v508 = vld [vmem:[%s1 + $0xed0] sm:$0xff]
  %v509 = vld [vmem:[%s1 + $0xed8] sm:$0xff]
  %v510 = vld [vmem:[%s1 + $0xee0] sm:$0xff]
  %v511 = vld [vmem:[%s1 + $0xee8] sm:$0xff]
  %v512 = vld [vmem:[%s1 + $0xef0] sm:$0xff]
  %v513 = vld [vmem:[%s1 + $0xef8] sm:$0xff]
  %v514 = vld [vmem:[%s1 + $0xf00] sm:$0xff]
  %v515 = vld [vmem:[%s1 + $0xf08] sm:$0xff]
  %v516 = vld [vmem:[%s1 + $0xf10] sm:$0xff]
  %v517 = vld [vmem:[%s1 + $0xf18] sm:$0xff]
  %v518 = vld [vmem:[%s1 + $0xf20] sm:$0xff]
  %v519 = vld [vmem:[%s1 + $0xf28] sm:$0xff]
  %v520 = vld [vmem:[%s1 + $0xf30] sm:$0xff]
  %v521 = vld [vmem:[%s1 + $0xf38] sm:$0xff]
  %v522 = vld [vmem:[%s1 + $0xf40] sm:$0xff]
  %v523 = vld [vmem:[%s1 + $0xf48] sm:$0xff]
  %v524 = vld [vmem:[%s1 + $0xf50] sm:$0xff]
  %v525 = vld [vmem:[%s1 + $0xf58] sm:$0xff]
  %v526 = vld [vmem:[%s1 + $0xf60] sm:$0xff]
  %v527 = vld [vmem:[%s1 + $0xf68] sm:$0xff]
  %v528 = vld [vmem:[%s1 + $0xf70] sm:$0xff]
  %v529 = vld [vmem:[%s1 + $0xf78] sm:$0xff]
  %v530 = vld [vmem:[%s1 + $0xf80] sm:$0xff]
  %v531 = vld [vmem:[%s1 + $0xf88] sm:$0xff]
  %v532 = vld [vmem:[%s1 + $0xf90] sm:$0xff]
  %v533 = vld [vmem:[%s1 + $0xf98] sm:$0xff]
  %v534 = vld [vmem:[%s1 + $0xfa0] sm:$0xff]
  %v535 = vld [vmem:[%s1 + $0xfa8] sm:$0xff]
  %v536 = vld [vmem:[%s1 + $0xfb0] sm:$0xff]
  %v537 = vld [vmem:[%s1 + $0xfb8] sm:$0xff]
  %v538 = vld [vmem:[%s1 + $0xfc0] sm:$0xff]
  %v539 = vld [vmem:[%s1 + $0xfc8] sm:$0xff]
  %v540 = vld [vmem:[%s1 + $0xfd0] sm:$0xff]
  %v541 = vld [vmem:[%s1 + $0xfd8] sm:$0xff]
  %v542 = vld [vmem:[%s1 + $0xfe0] sm:$0xff]
  %v543 = vld [vmem:[%s1 + $0xfe8] sm:$0xff]
  %v544 = vld [vmem:[%s1 + $0xff0] sm:$0xff]
  %v545 = vld [vmem:[%s1 + $0xff8] sm:$0xff]
  %v546 = vld [vmem:[%s1 + $0x1000] sm:$0xff]
  %v547 = vld [vmem:[%s1 + $0x1008] sm:$0xff]
  %v548 = vld [vmem:[%s1 + $0x1010] sm:$0xff]
  %v549 = vld [vmem:[%s1 + $0x1018] sm:$0xff]
  %v550 = vld [vmem:[%s1 + $0x1020] sm:$0xff]
  %v551 = vld [vmem:[%s1 + $0x1028] sm:$0xff]
  %v552 = vld [vmem:[%s1 + $0x1030] sm:$0xff]
  %v553 = vld [vmem:[%s1 + $0x1038] sm:$0xff]
  %v554 = vld [vmem:[%s1 + $0x1040] sm:$0xff]
  %v555 = vld [vmem:[%s1 + $0x1048] sm:$0xff]
  %v556 = vld [vmem:[%s1 + $0x1050] sm:$0xff]
  %v557 = vld [vmem:[%s1 + $0x1058] sm:$0xff]
  %v558 = vld [vmem:[%s1 + $0x1060] sm:$0xff]
  %v559 = vld [vmem:[%s1 + $0x1068] sm:$0xff]
  %v560 = vld [vmem:[%s1 + $0x1070] sm:$0xff]
  %v561 = vld [vmem:[%s1 + $0x1078] sm:$0xff]
  %v562 = vld [vmem:[%s1 + $0x1080] sm:$0xff]
  %v563 = vld [vmem:[%s1 + $0x1088] sm:$0xff]
  %v564 = vld [vmem:[%s1 + $0x1090] sm:$0xff]
  %v565 = vld [vmem:[%s1 + $0x1098] sm:$0xff]
  %v566 = vld [vmem:[%s1 + $0x10a0] sm:$0xff]
  %v567 = vld [vmem:[%s1 + $0x10a8] sm:$0xff]
  %v568 = vld [vmem:[%s1 + $0x10b0] sm:$0xff]
  %v569 = vld [vmem:[%s1 + $0x10b8] sm:$0xff]
  %v570 = vld [vmem:[%s1 + $0x10c0] sm:$0xff]
  %v571 = vld [vmem:[%s1 + $0x10c8] sm:$0xff]
  %v572 = vld [vmem:[%s1 + $0x10d0] sm:$0xff]
  %v573 = vld [vmem:[%s1 + $0x10d8] sm:$0xff]
  %v574 = vld [vmem:[%s1 + $0x10e0] sm:$0xff]
  %v575 = vld [vmem:[%s1 + $0x10e8] sm:$0xff]
  %v576 = vld [vmem:[%s1 + $0x10f0] sm:$0xff]
  %v577 = vld [vmem:[%s1 + $0x10f8] sm:$0xff]
  %v578 = vld [vmem:[%s1 + $0x1100] sm:$0xff]
  %v579 = vld [vmem:[%s1 + $0x1108] sm:$0xff]
  %v580 = vld [vmem:[%s1 + $0x1110] sm:$0xff]
  %v581 = vld [vmem:[%s1 + $0x1118] sm:$0xff]
  %v582 = vld [vmem:[%s1 + $0x1120] sm:$0xff]
  %v583 = vld [vmem:[%s1 + $0x1128] sm:$0xff]
  %v584 = vld [vmem:[%s1 + $0x1130] sm:$0xff]
  %v585 = vld [vmem:[%s1 + $0x1138] sm:$0xff]
  %v586 = vld [vmem:[%s1 + $0x1140] sm:$0xff]
  %v587 = vld [vmem:[%s1 + $0x1148] sm:$0xff]
  %v588 = vld [vmem:[%s1 + $0x1150] sm:$0xff]
  %v589 = vld [vmem:[%s1 + $0x1158] sm:$0xff]
  %v590 = vld [vmem:[%s1 + $0x1160] sm:$0xff]
  %v591 = vld [vmem:[%s1 + $0x1168] sm:$0xff]
  %v592 = vld [vmem:[%s1 + $0x1170] sm:$0xff]
  %v593 = vld [vmem:[%s1 + $0x1178] sm:$0xff]
  %v594 = vld [vmem:[%s1 + $0x1180] sm:$0xff]
  %v595 = vld [vmem:[%s1 + $0x1188] sm:$0xff]
  %v596 = vld [vmem:[%s1 + $0x1190] sm:$0xff]
  %v597 = vld [vmem:[%s1 + $0x1198] sm:$0xff]
  %v598 = vld [vmem:[%s1 + $0x11a0] sm:$0xff]
  %v599 = vld [vmem:[%s1 + $0x11a8] sm:$0xff]
  %v600 = vld [vmem:[%s1 + $0x11b0] sm:$0xff]
  %v601 = vld [vmem:[%s1 + $0x11b8] sm:$0xff]
  %v602 = vld [vmem:[%s1 + $0x11c0] sm:$0xff]
  %v603 = vld [vmem:[%s1 + $0x11c8] sm:$0xff]
  %v604 = vld [vmem:[%s1 + $0x11d0] sm:$0xff]
  %v605 = vld [vmem:[%s1 + $0x11d8] sm:$0xff]
  %v606 = vld [vmem:[%s1 + $0x11e0] sm:$0xff]
  %v607 = vld [vmem:[%s1 + $0x11e8] sm:$0xff]
  %v608 = vld [vmem:[%s1 + $0x11f0] sm:$0xff]
  %v609 = vld [vmem:[%s1 + $0x11f8] sm:$0xff]
  %v610 = vld [vmem:[%s1 + $0x1200] sm:$0xff]
  %v611 = vld [vmem:[%s1 + $0x1208] sm:$0xff]
  %v612 = vld [vmem:[%s1 + $0x1210] sm:$0xff]
  %v613 = vld [vmem:[%s1 + $0x1218] sm:$0xff]
  %v614 = vld [vmem:[%s1 + $0x1220] sm:$0xff]
  %v615 = vld [vmem:[%s1 + $0x1228] sm:$0xff]
  %v616 = vld [vmem:[%s1 + $0x1230] sm:$0xff]
  %v617 = vld [vmem:[%s1 + $0x1238] sm:$0xff]
  %v618 = vld [vmem:[%s1 + $0x1240] sm:$0xff]
  %v619 = vld [vmem:[%s1 + $0x1248] sm:$0xff]
  %v620 = vld [vmem:[%s1 + $0x1250] sm:$0xff]
  %v621 = vld [vmem:[%s1 + $0x1258] sm:$0xff]
  %v622 = vld [vmem:[%s1 + $0x1260] sm:$0xff]
  %v623 = vld [vmem:[%s1 + $0x1268] sm:$0xff]
  %v624 = vld [vmem:[%s1 + $0x1270] sm:$0xff]
  %v625 = vld [vmem:[%s1 + $0x1278] sm:$0xff]
  %v626 = vld [vmem:[%s1 + $0x1280] sm:$0xff]
  %v627 = vld [vmem:[%s1 + $0x1288] sm:$0xff]
  %v628 = vld [vmem:[%s1 + $0x1290] sm:$0xff]
  %v629 = vld [vmem:[%s1 + $0x1298] sm:$0xff]
  %v630 = vld [vmem:[%s1 + $0x12a0] sm:$0xff]
  %v631 = vld [vmem:[%s1 + $0x12a8] sm:$0xff]
  %v632 = vld [vmem:[%s1 + $0x12b0] sm:$0xff]
  %v633 = vld [vmem:[%s1 + $0x12b8] sm:$0xff]
  %v634 = vld [vmem:[%s1 + $0x12c0] sm:$0xff]
  %v635 = vld [vmem:[%s1 + $0x12c8] sm:$0xff]
  %v636 = vld [vmem:[%s1 + $0x12d0] sm:$0xff]
  %v637 = vld [vmem:[%s1 + $0x12d8] sm:$0xff]
  %v638 = vld [vmem:[%s1 + $0x12e0] sm:$0xff]
  %v639 = vld [vmem:[%s1 + $0x12e8] sm:$0xff]
  %v640 = vld [vmem:[%s1 + $0x12f0] sm:$0xff]
  %v641 = vld [vmem:[%s1 + $0x12f8] sm:$0xff]
  %v642 = vld [vmem:[%s1 + $0x1300] sm:$0xff]
  %v643 = vld [vmem:[%s1 + $0x1308] sm:$0xff]
  %v644 = vld [vmem:[%s1 + $0x1310] sm:$0xff]
  %v645 = vld [vmem:[%s1 + $0x1318] sm:$0xff]
  %v646 = vld [vmem:[%s1 + $0x1320] sm:$0xff]
  %v647 = vld [vmem:[%s1 + $0x1328] sm:$0xff]
  %v648 = vld [vmem:[%s1 + $0x1330] sm:$0xff]
  %v649 = vld [vmem:[%s1 + $0x1338] sm:$0xff]
  %v650 = vld [vmem:[%s1 + $0x1340] sm:$0xff]
  %v651 = vld [vmem:[%s1 + $0x1348] sm:$0xff]
  %v652 = vld [vmem:[%s1 + $0x1350] sm:$0xff]
  %v653 = vld [vmem:[%s1 + $0x1358] sm:$0xff]
  %v654 = vld [vmem:[%s1 + $0x1360] sm:$0xff]
  %v655 = vld [vmem:[%s1 + $0x1368] sm:$0xff]
  %v656 = vld [vmem:[%s1 + $0x1370] sm:$0xff]
  %v657 = vld [vmem:[%s1 + $0x1378] sm:$0xff]
  %v658 = vld [vmem:[%s1 + $0x1380] sm:$0xff]
  %v659 = vld [vmem:[%s1 + $0x1388] sm:$0xff]
  %v660 = vld [vmem:[%s1 + $0x1390] sm:$0xff]
  %v661 = vld [vmem:[%s1 + $0x1398] sm:$0xff]
  %v662 = vld [vmem:[%s1 + $0x13a0] sm:$0xff]
  %v663 = vld [vmem:[%s1 + $0x13a8] sm:$0xff]
  %v664 = vld [vmem:[%s1 + $0x13b0] sm:$0xff]
  %v665 = vld [vmem:[%s1 + $0x13b8] sm:$0xff]
  %v666 = vld [vmem:[%s1 + $0x13c0] sm:$0xff]
  %v667 = vld [vmem:[%s1 + $0x13c8] sm:$0xff]
  %v668 = vld [vmem:[%s1 + $0x13d0] sm:$0xff]
  %v669 = vld [vmem:[%s1 + $0x13d8] sm:$0xff]
  %v670 = vld [vmem:[%s1 + $0x13e0] sm:$0xff]
  %v671 = vld [vmem:[%s1 + $0x13e8] sm:$0xff]
  %v672 = vld [vmem:[%s1 + $0x13f0] sm:$0xff]
  %v673 = vld [vmem:[%s1 + $0x13f8] sm:$0xff]
  %v674 = vld [vmem:[%s1 + $0x1400] sm:$0xff]
  %v675 = vld [vmem:[%s1 + $0x1408] sm:$0xff]
  %v676 = vld [vmem:[%s1 + $0x1410] sm:$0xff]
  %v677 = vld [vmem:[%s1 + $0x1418] sm:$0xff]
  %v678 = vld [vmem:[%s1 + $0x1420] sm:$0xff]
  %v679 = vld [vmem:[%s1 + $0x1428] sm:$0xff]
  %v680 = vld [vmem:[%s1 + $0x1430] sm:$0xff]
  %v681 = vld [vmem:[%s1 + $0x1438] sm:$0xff]
  %v682 = vld [vmem:[%s1 + $0x1440] sm:$0xff]
  %v683 = vld [vmem:[%s1 + $0x1448] sm:$0xff]
  %v684 = vld [vmem:[%s1 + $0x1450] sm:$0xff]
  %v685 = vld [vmem:[%s1 + $0x1458] sm:$0xff]
  %v686 = vld [vmem:[%s1 + $0x1460] sm:$0xff]
  %v687 = vld [vmem:[%s1 + $0x1468] sm:$0xff]
  %v688 = vld [vmem:[%s1 + $0x1470] sm:$0xff]
  %v689 = vld [vmem:[%s1 + $0x1478] sm:$0xff]
  %v690 = vld [vmem:[%s1 + $0x1480] sm:$0xff]
  %v691 = vld [vmem:[%s1 + $0x1488] sm:$0xff]
  %v692 = vld [vmem:[%s1 + $0x1490] sm:$0xff]
  %v693 = vld [vmem:[%s1 + $0x1498] sm:$0xff]
  %v694 = vld [vmem:[%s1 + $0x14a0] sm:$0xff]
  %v695 = vld [vmem:[%s1 + $0x14a8] sm:$0xff]
  %v696 = vld [vmem:[%s1 + $0x14b0] sm:$0xff]
  %v697 = vld [vmem:[%s1 + $0x14b8] sm:$0xff]
  %v698 = vld [vmem:[%s1 + $0x14c0] sm:$0xff]
  %v699 = vld [vmem:[%s1 + $0x14c8] sm:$0xff]
  %v700 = vld [vmem:[%s1 + $0x14d0] sm:$0xff]
  %v701 = vld [vmem:[%s1 + $0x14d8] sm:$0xff]
  %v702 = vld [vmem:[%s1 + $0x14e0] sm:$0xff]
  %v703 = vld [vmem:[%s1 + $0x14e8] sm:$0xff]
  %v704 = vld [vmem:[%s1 + $0x14f0] sm:$0xff]
  %v705 = vld [vmem:[%s1 + $0x14f8] sm:$0xff]
  %v706 = vld [vmem:[%s1 + $0x1500] sm:$0xff]
  %v707 = vld [vmem:[%s1 + $0x1508] sm:$0xff]
  %v708 = vld [vmem:[%s1 + $0x1510] sm:$0xff]
  %v709 = vld [vmem:[%s1 + $0x1518] sm:$0xff]
  %v710 = vld [vmem:[%s1 + $0x1520] sm:$0xff]
  %v711 = vld [vmem:[%s1 + $0x1528] sm:$0xff]
  %v712 = vld [vmem:[%s1 + $0x1530] sm:$0xff]
  %v713 = vld [vmem:[%s1 + $0x1538] sm:$0xff]
  %v714 = vld [vmem:[%s1 + $0x1540] sm:$0xff]
  %v715 = vld [vmem:[%s1 + $0x1548] sm:$0xff]
  %v716 = vld [vmem:[%s1 + $0x1550] sm:$0xff]
  %v717 = vld [vmem:[%s1 + $0x1558] sm:$0xff]
  %v718 = vld [vmem:[%s1 + $0x1560] sm:$0xff]
  %v719 = vld [vmem:[%s1 + $0x1568] sm:$0xff]
  %v720 = vld [vmem:[%s1 + $0x1570] sm:$0xff]
  %v721 = vld [vmem:[%s1 + $0x1578] sm:$0xff]
  %v722 = vld [vmem:[%s1 + $0x1580] sm:$0xff]
  %v723 = vld [vmem:[%s1 + $0x1588] sm:$0xff]
  %v724 = vld [vmem:[%s1 + $0x1590] sm:$0xff]
  %v725 = vld [vmem:[%s1 + $0x1598] sm:$0xff]
  %v726 = vld [vmem:[%s1 + $0x15a0] sm:$0xff]
  %v727 = vld [vmem:[%s1 + $0x15a8] sm:$0xff]
  %v728 = vld [vmem:[%s1 + $0x15b0] sm:$0xff]
  %v729 = vld [vmem:[%s1 + $0x15b8] sm:$0xff]
  %v730 = vld [vmem:[%s1 + $0x15c0] sm:$0xff]
  %v731 = vld [vmem:[%s1 + $0x15c8] sm:$0xff]
  %v732 = vld [vmem:[%s1 + $0x15d0] sm:$0xff]
  %v733 = vld [vmem:[%s1 + $0x15d8] sm:$0xff]
  %v734 = vld [vmem:[%s1 + $0x15e0] sm:$0xff]
  %v735 = vld [vmem:[%s1 + $0x15e8] sm:$0xff]
  %v736 = vld [vmem:[%s1 + $0x15f0] sm:$0xff]
  %v737 = vld [vmem:[%s1 + $0x15f8] sm:$0xff]
  %v738 = vld [vmem:[%s1 + $0x1600] sm:$0xff]
  %v739 = vld [vmem:[%s1 + $0x1608] sm:$0xff]
  %v740 = vld [vmem:[%s1 + $0x1610] sm:$0xff]
  %v741 = vld [vmem:[%s1 + $0x1618] sm:$0xff]
  %v742 = vld [vmem:[%s1 + $0x1620] sm:$0xff]
  %v743 = vld [vmem:[%s1 + $0x1628] sm:$0xff]
  %v744 = vld [vmem:[%s1 + $0x1630] sm:$0xff]
  %v745 = vld [vmem:[%s1 + $0x1638] sm:$0xff]
  %v746 = vld [vmem:[%s1 + $0x1640] sm:$0xff]
  %v747 = vld [vmem:[%s1 + $0x1648] sm:$0xff]
  %v748 = vld [vmem:[%s1 + $0x1650] sm:$0xff]
  %v749 = vld [vmem:[%s1 + $0x1658] sm:$0xff]
  %v750 = vld [vmem:[%s1 + $0x1660] sm:$0xff]
  %v751 = vld [vmem:[%s1 + $0x1668] sm:$0xff]
  %v752 = vld [vmem:[%s1 + $0x1670] sm:$0xff]
  %v753 = vld [vmem:[%s1 + $0x1678] sm:$0xff]
  %v754 = vld [vmem:[%s1 + $0x1680] sm:$0xff]
  %v755 = vld [vmem:[%s1 + $0x1688] sm:$0xff]
  %v756 = vld [vmem:[%s1 + $0x1690] sm:$0xff]
  %v757 = vld [vmem:[%s1 + $0x1698] sm:$0xff]
  %v758 = vld [vmem:[%s1 + $0x16a0] sm:$0xff]
  %v759 = vld [vmem:[%s1 + $0x16a8] sm:$0xff]
  %v760 = vld [vmem:[%s1 + $0x16b0] sm:$0xff]
  %v761 = vld [vmem:[%s1 + $0x16b8] sm:$0xff]
  %v762 = vld [vmem:[%s1 + $0x16c0] sm:$0xff]
  %v763 = vld [vmem:[%s1 + $0x16c8] sm:$0xff]
  %v764 = vld [vmem:[%s1 + $0x16d0] sm:$0xff]
  %v765 = vld [vmem:[%s1 + $0x16d8] sm:$0xff]
  %v766 = vld [vmem:[%s1 + $0x16e0] sm:$0xff]
  %v767 = vld [vmem:[%s1 + $0x16e8] sm:$0xff]
  %v768 = vld [vmem:[%s1 + $0x16f0] sm:$0xff]
  %v769 = vld [vmem:[%s1 + $0x16f8] sm:$0xff]
  %v770 = vld [vmem:[%s1 + $0x1700] sm:$0xff]
  %v771 = vld [vmem:[%s1 + $0x1708] sm:$0xff]
  %v772 = vld [vmem:[%s1 + $0x1710] sm:$0xff]
  %v773 = vld [vmem:[%s1 + $0x1718] sm:$0xff]
  %v774 = vld [vmem:[%s1 + $0x1720] sm:$0xff]
  %v775 = vld [vmem:[%s1 + $0x1728] sm:$0xff]
  %v776 = vld [vmem:[%s1 + $0x1730] sm:$0xff]
  %v777 = vld [vmem:[%s1 + $0x1738] sm:$0xff]
  %v778 = vld [vmem:[%s1 + $0x1740] sm:$0xff]
  %v779 = vld [vmem:[%s1 + $0x1748] sm:$0xff]
  %v780 = vld [vmem:[%s1 + $0x1750] sm:$0xff]
  %v781 = vld [vmem:[%s1 + $0x1758] sm:$0xff]
  %v782 = vld [vmem:[%s1 + $0x1760] sm:$0xff]
  %v783 = vld [vmem:[%s1 + $0x1768] sm:$0xff]
  %v784 = vld [vmem:[%s1 + $0x1770] sm:$0xff]
  %v785 = vld [vmem:[%s1 + $0x1778] sm:$0xff]
  %v786 = vld [vmem:[%s1 + $0x1780] sm:$0xff]
  %v787 = vld [vmem:[%s1 + $0x1788] sm:$0xff]
  %v788 = vld [vmem:[%s1 + $0x1790] sm:$0xff]
  %v789 = vld [vmem:[%s1 + $0x1798] sm:$0xff]
  %v790 = vld [vmem:[%s1 + $0x17a0] sm:$0xff]
  %v791 = vld [vmem:[%s1 + $0x17a8] sm:$0xff]
  %v792 = vld [vmem:[%s1 + $0x17b0] sm:$0xff]
  %v793 = vld [vmem:[%s1 + $0x17b8] sm:$0xff]
  %v794 = vld [vmem:[%s1 + $0x17c0] sm:$0xff]
  %v795 = vld [vmem:[%s1 + $0x17c8] sm:$0xff]
  %v796 = vld [vmem:[%s1 + $0x17d0] sm:$0xff]
  %v797 = vld [vmem:[%s1 + $0x17d8] sm:$0xff]
  %v798 = vld [vmem:[%s1 + $0x17e0] sm:$0xff]
  %v799 = vld [vmem:[%s1 + $0x17e8] sm:$0xff]
  %v800 = vld [vmem:[%s1 + $0x17f0] sm:$0xff]
  %v801 = vld [vmem:[%s1 + $0x17f8] sm:$0xff]
  %v802 = vld [vmem:[%s1 + $0x1800] sm:$0xff]
  %v803 = vld [vmem:[%s1 + $0x1808] sm:$0xff]
  %v804 = vld [vmem:[%s1 + $0x1810] sm:$0xff]
  %v805 = vld [vmem:[%s1 + $0x1818] sm:$0xff]
  %v806 = vld [vmem:[%s1 + $0x1820] sm:$0xff]
  %v807 = vld [vmem:[%s1 + $0x1828] sm:$0xff]
  %v808 = vld [vmem:[%s1 + $0x1830] sm:$0xff]
  %v809 = vld [vmem:[%s1 + $0x1838] sm:$0xff]
  %v810 = vld [vmem:[%s1 + $0x1840] sm:$0xff]
  %v811 = vld [vmem:[%s1 + $0x1848] sm:$0xff]
  %v812 = vld [vmem:[%s1 + $0x1850] sm:$0xff]
  %v813 = vld [vmem:[%s1 + $0x1858] sm:$0xff]
  %v814 = vld [vmem:[%s1 + $0x1860] sm:$0xff]
  %v815 = vld [vmem:[%s1 + $0x1868] sm:$0xff]
  %v816 = vld [vmem:[%s1 + $0x1870] sm:$0xff]
  %v817 = vld [vmem:[%s1 + $0x1878] sm:$0xff]
  %v818 = vld [vmem:[%s1 + $0x1880] sm:$0xff]
  %v819 = vld [vmem:[%s1 + $0x1888] sm:$0xff]
  %v820 = vld [vmem:[%s1 + $0x1890] sm:$0xff]
  %v821 = vld [vmem:[%s1 + $0x1898] sm:$0xff]
  %v822 = vld [vmem:[%s1 + $0x18a0] sm:$0xff]
  %v823 = vld [vmem:[%s1 + $0x18a8] sm:$0xff]
  %v824 = vld [vmem:[%s1 + $0x18b0] sm:$0xff]
  %v825 = vld [vmem:[%s1 + $0x18b8] sm:$0xff]
  %v826 = vld [vmem:[%s1 + $0x18c0] sm:$0xff]
  %v827 = vld [vmem:[%s1 + $0x18c8] sm:$0xff]
  %v828 = vld [vmem:[%s1 + $0x18d0] sm:$0xff]
  %v829 = vld [vmem:[%s1 + $0x18d8] sm:$0xff]
  %v830 = vld [vmem:[%s1 + $0x18e0] sm:$0xff]
  %v831 = vld [vmem:[%s1 + $0x18e8] sm:$0xff]
  %v832 = vld [vmem:[%s1 + $0x18f0] sm:$0xff]
  %v833 = vld [vmem:[%s1 + $0x18f8] sm:$0xff]
  %v834 = vld [vmem:[%s1 + $0x1900] sm:$0xff]
  %v835 = vld [vmem:[%s1 + $0x1908] sm:$0xff]
  %v836 = vld [vmem:[%s1 + $0x1910] sm:$0xff]
  %v837 = vld [vmem:[%s1 + $0x1918] sm:$0xff]
  %v838 = vld [vmem:[%s1 + $0x1920] sm:$0xff]
  %v839 = vld [vmem:[%s1 + $0x1928] sm:$0xff]
  %v840 = vld [vmem:[%s1 + $0x1930] sm:$0xff]
  %v841 = vld [vmem:[%s1 + $0x1938] sm:$0xff]
  %v842 = vld [vmem:[%s1 + $0x1940] sm:$0xff]
  %v843 = vld [vmem:[%s1 + $0x1948] sm:$0xff]
  %v844 = vld [vmem:[%s1 + $0x1950] sm:$0xff]
  %v845 = vld [vmem:[%s1 + $0x1958] sm:$0xff]
  %v846 = vld [vmem:[%s1 + $0x1960] sm:$0xff]
  %v847 = vld [vmem:[%s1 + $0x1968] sm:$0xff]
  %v848 = vld [vmem:[%s1 + $0x1970] sm:$0xff]
  %v849 = vld [vmem:[%s1 + $0x1978] sm:$0xff]
  %v850 = vld [vmem:[%s1 + $0x1980] sm:$0xff]
  %v851 = vld [vmem:[%s1 + $0x1988] sm:$0xff]
  %v852 = vld [vmem:[%s1 + $0x1990] sm:$0xff]
  %v853 = vld [vmem:[%s1 + $0x1998] sm:$0xff]
  %v854 = vld [vmem:[%s1 + $0x19a0] sm:$0xff]
  %v855 = vld [vmem:[%s1 + $0x19a8] sm:$0xff]
  %v856 = vld [vmem:[%s1 + $0x19b0] sm:$0xff]
  %v857 = vld [vmem:[%s1 + $0x19b8] sm:$0xff]
  %v858 = vld [vmem:[%s1 + $0x19c0] sm:$0xff]
  %v859 = vld [vmem:[%s1 + $0x19c8] sm:$0xff]
  %v860 = vld [vmem:[%s1 + $0x19d0] sm:$0xff]
  %v861 = vld [vmem:[%s1 + $0x19d8] sm:$0xff]
  %v862 = vld [vmem:[%s1 + $0x19e0] sm:$0xff]
  %v863 = vld [vmem:[%s1 + $0x19e8] sm:$0xff]
  %v864 = vld [vmem:[%s1 + $0x19f0] sm:$0xff]
  %v865 = vld [vmem:[%s1 + $0x19f8] sm:$0xff]
  %v866 = vld [vmem:[%s1 + $0x1a00] sm:$0xff]
  %v867 = vld [vmem:[%s1 + $0x1a08] sm:$0xff]
  %v868 = vld [vmem:[%s1 + $0x1a10] sm:$0xff]
  %v869 = vld [vmem:[%s1 + $0x1a18] sm:$0xff]
  %v870 = vld [vmem:[%s1 + $0x1a20] sm:$0xff]
  %v871 = vld [vmem:[%s1 + $0x1a28] sm:$0xff]
  %v872 = vld [vmem:[%s1 + $0x1a30] sm:$0xff]
  %v873 = vld [vmem:[%s1 + $0x1a38] sm:$0xff]
  %v874 = vld [vmem:[%s1 + $0x1a40] sm:$0xff]
  %v875 = vld [vmem:[%s1 + $0x1a48] sm:$0xff]
  %v876 = vld [vmem:[%s1 + $0x1a50] sm:$0xff]
  %v877 = vld [vmem:[%s1 + $0x1a58] sm:$0xff]
  %v878 = vld [vmem:[%s1 + $0x1a60] sm:$0xff]
  %v879 = vld [vmem:[%s1 + $0x1a68] sm:$0xff]
  %v880 = vld [vmem:[%s1 + $0x1a70] sm:$0xff]
  %v881 = vld [vmem:[%s1 + $0x1a78] sm:$0xff]
  %v882 = vld [vmem:[%s1 + $0x1a80] sm:$0xff]
  %v883 = vld [vmem:[%s1 + $0x1a88] sm:$0xff]
  %v884 = vld [vmem:[%s1 + $0x1a90] sm:$0xff]
  %v885 = vld [vmem:[%s1 + $0x1a98] sm:$0xff]
  %v886 = vld [vmem:[%s1 + $0x1aa0] sm:$0xff]
  %v887 = vld [vmem:[%s1 + $0x1aa8] sm:$0xff]
  %v888 = vld [vmem:[%s1 + $0x1ab0] sm:$0xff]
  %v889 = vld [vmem:[%s1 + $0x1ab8] sm:$0xff]
  %v890 = vld [vmem:[%s1 + $0x1ac0] sm:$0xff]
  %v891 = vld [vmem:[%s1 + $0x1ac8] sm:$0xff]
  %v892 = vld [vmem:[%s1 + $0x1ad0] sm:$0xff]
  %v893 = vld [vmem:[%s1 + $0x1ad8] sm:$0xff]
  %v894 = vld [vmem:[%s1 + $0x1ae0] sm:$0xff]
  %v895 = vld [vmem:[%s1 + $0x1ae8] sm:$0xff]
  %v896 = vld [vmem:[%s1 + $0x1af0] sm:$0xff]
  %v897 = vld [vmem:[%s1 + $0x1af8] sm:$0xff]
  %v898 = vld [vmem:[%s1 + $0x1b00] sm:$0xff]
  %v899 = vld [vmem:[%s1 + $0x1b08] sm:$0xff]
  %v900 = vld [vmem:[%s1 + $0x1b10] sm:$0xff]
  %v901 = vld [vmem:[%s1 + $0x1b18] sm:$0xff]
  %v902 = vld [vmem:[%s1 + $0x1b20] sm:$0xff]
  %v903 = vld [vmem:[%s1 + $0x1b28] sm:$0xff]
  %v904 = vld [vmem:[%s1 + $0x1b30] sm:$0xff]
  %v905 = vld [vmem:[%s1 + $0x1b38] sm:$0xff]
  %v906 = vld [vmem:[%s1 + $0x1b40] sm:$0xff]
  %v907 = vld [vmem:[%s1 + $0x1b48] sm:$0xff]
  %v908 = vld [vmem:[%s1 + $0x1b50] sm:$0xff]
  %v909 = vld [vmem:[%s1 + $0x1b58] sm:$0xff]
  %v910 = vld [vmem:[%s1 + $0x1b60] sm:$0xff]
  %v911 = vld [vmem:[%s1 + $0x1b68] sm:$0xff]
  %v912 = vld [vmem:[%s1 + $0x1b70] sm:$0xff]
  %v913 = vld [vmem:[%s1 + $0x1b78] sm:$0xff]
  %v914 = vld [vmem:[%s1 + $0x1b80] sm:$0xff]
  %v915 = vld [vmem:[%s1 + $0x1b88] sm:$0xff]
  %v916 = vld [vmem:[%s1 + $0x1b90] sm:$0xff]
  %v917 = vld [vmem:[%s1 + $0x1b98] sm:$0xff]
  %v918 = vld [vmem:[%s1 + $0x1ba0] sm:$0xff]
  %v919 = vld [vmem:[%s1 + $0x1ba8] sm:$0xff]
  %v920 = vld [vmem:[%s1 + $0x1bb0] sm:$0xff]
  %v921 = vld [vmem:[%s1 + $0x1bb8] sm:$0xff]
  %v922 = vld [vmem:[%s1 + $0x1bc0] sm:$0xff]
  %v923 = vld [vmem:[%s1 + $0x1bc8] sm:$0xff]
  %v924 = vld [vmem:[%s1 + $0x1bd0] sm:$0xff]
  %v925 = vld [vmem:[%s1 + $0x1bd8] sm:$0xff]
  %v926 = vld [vmem:[%s1 + $0x1be0] sm:$0xff]
  %v927 = vld [vmem:[%s1 + $0x1be8] sm:$0xff]
  %v928 = vld [vmem:[%s1 + $0x1bf0] sm:$0xff]
  %v929 = vld [vmem:[%s1 + $0x1bf8] sm:$0xff]
  %v930 = vld [vmem:[%s1 + $0x1c00] sm:$0xff]
  %v931 = vld [vmem:[%s1 + $0x1c08] sm:$0xff]
  %v932 = vld [vmem:[%s1 + $0x1c10] sm:$0xff]
  %v933 = vld [vmem:[%s1 + $0x1c18] sm:$0xff]
  %v934 = vld [vmem:[%s1 + $0x1c20] sm:$0xff]
  %v935 = vld [vmem:[%s1 + $0x1c28] sm:$0xff]
  %v936 = vld [vmem:[%s1 + $0x1c30] sm:$0xff]
  %v937 = vld [vmem:[%s1 + $0x1c38] sm:$0xff]
  %v938 = vld [vmem:[%s1 + $0x1c40] sm:$0xff]
  %v939 = vld [vmem:[%s1 + $0x1c48] sm:$0xff]
  %v940 = vld [vmem:[%s1 + $0x1c50] sm:$0xff]
  %v941 = vld [vmem:[%s1 + $0x1c58] sm:$0xff]
  %v942 = vld [vmem:[%s1 + $0x1c60] sm:$0xff]
  %v943 = vld [vmem:[%s1 + $0x1c68] sm:$0xff]
  %v944 = vld [vmem:[%s1 + $0x1c70] sm:$0xff]
  %v945 = vld [vmem:[%s1 + $0x1c78] sm:$0xff]
  %v946 = vld [vmem:[%s1 + $0x1c80] sm:$0xff]
  %v947 = vld [vmem:[%s1 + $0x1c88] sm:$0xff]
  %v948 = vld [vmem:[%s1 + $0x1c90] sm:$0xff]
  %v949 = vld [vmem:[%s1 + $0x1c98] sm:$0xff]
  %v950 = vld [vmem:[%s1 + $0x1ca0] sm:$0xff]
  %v951 = vld [vmem:[%s1 + $0x1ca8] sm:$0xff]
  %v952 = vld [vmem:[%s1 + $0x1cb0] sm:$0xff]
  %v953 = vld [vmem:[%s1 + $0x1cb8] sm:$0xff]
  %v954 = vld [vmem:[%s1 + $0x1cc0] sm:$0xff]
  %v955 = vld [vmem:[%s1 + $0x1cc8] sm:$0xff]
  %v956 = vld [vmem:[%s1 + $0x1cd0] sm:$0xff]
  %v957 = vld [vmem:[%s1 + $0x1cd8] sm:$0xff]
  %v958 = vld [vmem:[%s1 + $0x1ce0] sm:$0xff]
  %v959 = vld [vmem:[%s1 + $0x1ce8] sm:$0xff]
  %v960 = vld [vmem:[%s1 + $0x1cf0] sm:$0xff]
  %v961 = vld [vmem:[%s1 + $0x1cf8] sm:$0xff]
  %v962 = vld [vmem:[%s1 + $0x1d00] sm:$0xff]
  %v963 = vld [vmem:[%s1 + $0x1d08] sm:$0xff]
  %v964 = vld [vmem:[%s1 + $0x1d10] sm:$0xff]
  %v965 = vld [vmem:[%s1 + $0x1d18] sm:$0xff]
  %v966 = vld [vmem:[%s1 + $0x1d20] sm:$0xff]
  %v967 = vld [vmem:[%s1 + $0x1d28] sm:$0xff]
  %v968 = vld [vmem:[%s1 + $0x1d30] sm:$0xff]
  %v969 = vld [vmem:[%s1 + $0x1d38] sm:$0xff]
  %v970 = vld [vmem:[%s1 + $0x1d40] sm:$0xff]
  %v971 = vld [vmem:[%s1 + $0x1d48] sm:$0xff]
  %v972 = vld [vmem:[%s1 + $0x1d50] sm:$0xff]
  %v973 = vld [vmem:[%s1 + $0x1d58] sm:$0xff]
  %v974 = vld [vmem:[%s1 + $0x1d60] sm:$0xff]
  %v975 = vld [vmem:[%s1 + $0x1d68] sm:$0xff]
  %v976 = vld [vmem:[%s1 + $0x1d70] sm:$0xff]
  %v977 = vld [vmem:[%s1 + $0x1d78] sm:$0xff]
  %v978 = vld [vmem:[%s1 + $0x1d80] sm:$0xff]
  %v979 = vld [vmem:[%s1 + $0x1d88] sm:$0xff]
  %v980 = vld [vmem:[%s1 + $0x1d90] sm:$0xff]
  %v981 = vld [vmem:[%s1 + $0x1d98] sm:$0xff]
  %v982 = vld [vmem:[%s1 + $0x1da0] sm:$0xff]
  %v983 = vld [vmem:[%s1 + $0x1da8] sm:$0xff]
  %v984 = vld [vmem:[%s1 + $0x1db0] sm:$0xff]
  %v985 = vld [vmem:[%s1 + $0x1db8] sm:$0xff]
  %v986 = vld [vmem:[%s1 + $0x1dc0] sm:$0xff]
  %v987 = vld [vmem:[%s1 + $0x1dc8] sm:$0xff]
  %v988 = vld [vmem:[%s1 + $0x1dd0] sm:$0xff]
  %v989 = vld [vmem:[%s1 + $0x1dd8] sm:$0xff]
  %v990 = vld [vmem:[%s1 + $0x1de0] sm:$0xff]
  %v991 = vld [vmem:[%s1 + $0x1de8] sm:$0xff]
  %v992 = vld [vmem:[%s1 + $0x1df0] sm:$0xff]
  %v993 = vld [vmem:[%s1 + $0x1df8] sm:$0xff]
  %v994 = vld [vmem:[%s1 + $0x1e00] sm:$0xff]
  %v995 = vld [vmem:[%s1 + $0x1e08] sm:$0xff]
  %v996 = vld [vmem:[%s1 + $0x1e10] sm:$0xff]
  %v997 = vld [vmem:[%s1 + $0x1e18] sm:$0xff]
  %v998 = vld [vmem:[%s1 + $0x1e20] sm:$0xff]
  %v999 = vld [vmem:[%s1 + $0x1e28] sm:$0xff]
  %v1000 = vld [vmem:[%s1 + $0x1e30] sm:$0xff]
  %v1001 = vld [vmem:[%s1 + $0x1e38] sm:$0xff]
  %v1002 = vld [vmem:[%s1 + $0x1e40] sm:$0xff]
  %v1003 = vld [vmem:[%s1 + $0x1e48] sm:$0xff]
  %v1004 = vld [vmem:[%s1 + $0x1e50] sm:$0xff]
  %v1005 = vld [vmem:[%s1 + $0x1e58] sm:$0xff]
  %v1006 = vld [vmem:[%s1 + $0x1e60] sm:$0xff]
  %v1007 = vld [vmem:[%s1 + $0x1e68] sm:$0xff]
  %v1008 = vld [vmem:[%s1 + $0x1e70] sm:$0xff]
  %v1009 = vld [vmem:[%s1 + $0x1e78] sm:$0xff]
  %v1010 = vld [vmem:[%s1 + $0x1e80] sm:$0xff]
  %v1011 = vld [vmem:[%s1 + $0x1e88] sm:$0xff]
  %v1012 = vld [vmem:[%s1 + $0x1e90] sm:$0xff]
  %v1013 = vld [vmem:[%s1 + $0x1e98] sm:$0xff]
  %v1014 = vld [vmem:[%s1 + $0x1ea0] sm:$0xff]
  %v1015 = vld [vmem:[%s1 + $0x1ea8] sm:$0xff]
  %v1016 = vld [vmem:[%s1 + $0x1eb0] sm:$0xff]
  %v1017 = vld [vmem:[%s1 + $0x1eb8] sm:$0xff]
  %v1018 = vld [vmem:[%s1 + $0x1ec0] sm:$0xff]
  %v1019 = vld [vmem:[%s1 + $0x1ec8] sm:$0xff]
  %v1020 = vld [vmem:[%s1 + $0x1ed0] sm:$0xff]
  %v1021 = vld [vmem:[%s1 + $0x1ed8] sm:$0xff]
  %v1022 = vld [vmem:[%s1 + $0x1ee0] sm:$0xff]
  %v1023 = vld [vmem:[%s1 + $0x1ee8] sm:$0xff]
  %v1024 = vld [vmem:[%s1 + $0x1ef0] sm:$0xff]
  %v1025 = vld [vmem:[%s1 + $0x1ef8] sm:$0xff]
  %v1026 = vld [vmem:[%s1 + $0x1f00] sm:$0xff]
  %v1027 = vld [vmem:[%s1 + $0x1f08] sm:$0xff]
  %v1028 = vld [vmem:[%s1 + $0x1f10] sm:$0xff]
  %v1029 = vld [vmem:[%s1 + $0x1f18] sm:$0xff]
  %v1030 = vld [vmem:[%s1 + $0x1f20] sm:$0xff]
  %v1031 = vld [vmem:[%s1 + $0x1f28] sm:$0xff]
  %v1032 = vld [vmem:[%s1 + $0x1f30] sm:$0xff]
  %v1033 = vld [vmem:[%s1 + $0x1f38] sm:$0xff]
  %v1034 = vld [vmem:[%s1 + $0x1f40] sm:$0xff]
  %v1035 = vld [vmem:[%s1 + $0x1f48] sm:$0xff]
  %v1036 = vld [vmem:[%s1 + $0x1f50] sm:$0xff]
  %v1037 = vld [vmem:[%s1 + $0x1f58] sm:$0xff]
  %v1038 = vld [vmem:[%s1 + $0x1f60] sm:$0xff]
  %v1039 = vld [vmem:[%s1 + $0x1f68] sm:$0xff]
  %v1040 = vld [vmem:[%s1 + $0x1f70] sm:$0xff]
  %v1041 = vld [vmem:[%s1 + $0x1f78] sm:$0xff]
  %v1042 = vld [vmem:[%s1 + $0x1f80] sm:$0xff]
  %v1043 = vld [vmem:[%s1 + $0x1f88] sm:$0xff]
  %v1044 = vld [vmem:[%s1 + $0x1f90] sm:$0xff]
  %v1045 = vld [vmem:[%s1 + $0x1f98] sm:$0xff]
  %v1046 = vld [vmem:[%s1 + $0x1fa0] sm:$0xff]
  %v1047 = vld [vmem:[%s1 + $0x1fa8] sm:$0xff]
  %v1048 = vld [vmem:[%s1 + $0x1fb0] sm:$0xff]
  %v1049 = vld [vmem:[%s1 + $0x1fb8] sm:$0xff]
  %v1050 = vld [vmem:[%s1 + $0x1fc0] sm:$0xff]
  %v1051 = vld [vmem:[%s1 + $0x1fc8] sm:$0xff]
  %v1052 = vld [vmem:[%s1 + $0x1fd0] sm:$0xff]
  %v1053 = vld [vmem:[%s1 + $0x1fd8] sm:$0xff]
  %v1054 = vld [vmem:[%s1 + $0x1fe0] sm:$0xff]
  %v1055 = vld [vmem:[%s1 + $0x1fe8] sm:$0xff]
  %v1056 = vld [vmem:[%s1 + $0x1ff0] sm:$0xff]
  %v1057 = vld [vmem:[%s1 + $0x1ff8] sm:$0xff]
  %v1058 = vld [vmem:[%s1 + $0x2000] sm:$0xff]
  %v1059 = vld [vmem:[%s1 + $0x2008] sm:$0xff]
  %v1060 = vld [vmem:[%s1 + $0x2010] sm:$0xff]
  %v1061 = vld [vmem:[%s1 + $0x2018] sm:$0xff]
  %v1062 = vld [vmem:[%s1 + $0x2020] sm:$0xff]
  %v1063 = vld [vmem:[%s1 + $0x2028] sm:$0xff]
  %v1064 = vld [vmem:[%s1 + $0x2030] sm:$0xff]
  %v1065 = vld [vmem:[%s1 + $0x2038] sm:$0xff]
  %v1066 = vld [vmem:[%s1 + $0x2040] sm:$0xff]
  %v1067 = vld [vmem:[%s1 + $0x2048] sm:$0xff]
  %v1068 = vld [vmem:[%s1 + $0x2050] sm:$0xff]
  %v1069 = vld [vmem:[%s1 + $0x2058] sm:$0xff]
  %v1070 = vld [vmem:[%s1 + $0x2060] sm:$0xff]
  %v1071 = vld [vmem:[%s1 + $0x2068] sm:$0xff]
  %v1072 = vld [vmem:[%s1 + $0x2070] sm:$0xff]
  %v1073 = vld [vmem:[%s1 + $0x2078] sm:$0xff]
  %v1074 = vld [vmem:[%s1 + $0x2080] sm:$0xff]
  %v1075 = vld [vmem:[%s1 + $0x2088] sm:$0xff]
  %v1076 = vld [vmem:[%s1 + $0x2090] sm:$0xff]
  %v1077 = vld [vmem:[%s1 + $0x2098] sm:$0xff]
  %v1078 = vld [vmem:[%s1 + $0x20a0] sm:$0xff]
  %v1079 = vld [vmem:[%s1 + $0x20a8] sm:$0xff]
  %v1080 = vld [vmem:[%s1 + $0x20b0] sm:$0xff]
  %v1081 = vld [vmem:[%s1 + $0x20b8] sm:$0xff]
  %v1082 = vld [vmem:[%s1 + $0x20c0] sm:$0xff]
  %v1083 = vld [vmem:[%s1 + $0x20c8] sm:$0xff]
  %v1084 = vld [vmem:[%s1 + $0x20d0] sm:$0xff]
  %v1085 = vld [vmem:[%s1 + $0x20d8] sm:$0xff]
  %v1086 = vld [vmem:[%s1 + $0x20e0] sm:$0xff]
  %v1087 = vld [vmem:[%s1 + $0x20e8] sm:$0xff]
  %v1088 = vld [vmem:[%s1 + $0x20f0] sm:$0xff]
  %v1089 = vld [vmem:[%s1 + $0x20f8] sm:$0xff]
  %v1090 = vld [vmem:[%s1 + $0x2100] sm:$0xff]
  %v1091 = vld [vmem:[%s1 + $0x2108] sm:$0xff]
  %v1092 = vld [vmem:[%s1 + $0x2110] sm:$0xff]
  %v1093 = vld [vmem:[%s1 + $0x2118] sm:$0xff]
  %v1094 = vld [vmem:[%s1 + $0x2120] sm:$0xff]
  %v1095 = vld [vmem:[%s1 + $0x2128] sm:$0xff]
  %v1096 = vld [vmem:[%s1 + $0x2130] sm:$0xff]
  %v1097 = vld [vmem:[%s1 + $0x2138] sm:$0xff]
  %v1098 = vld [vmem:[%s1 + $0x2140] sm:$0xff]
  %v1099 = vld [vmem:[%s1 + $0x2148] sm:$0xff]
  %v1100 = vld [vmem:[%s1 + $0x2150] sm:$0xff]
  %v1101 = vld [vmem:[%s1 + $0x2158] sm:$0xff]
  %v1102 = vld [vmem:[%s1 + $0x2160] sm:$0xff]
  %v1103 = vld [vmem:[%s1 + $0x2168] sm:$0xff]
  %v1104 = vld [vmem:[%s1 + $0x2170] sm:$0xff]
  %v1105 = vld [vmem:[%s1 + $0x2178] sm:$0xff]
  %v1106 = vld [vmem:[%s1 + $0x2180] sm:$0xff]
  %v1107 = vld [vmem:[%s1 + $0x2188] sm:$0xff]
  %v1108 = vld [vmem:[%s1 + $0x2190] sm:$0xff]
  %v1109 = vld [vmem:[%s1 + $0x2198] sm:$0xff]
  %v1110 = vld [vmem:[%s1 + $0x21a0] sm:$0xff]
  %v1111 = vld [vmem:[%s1 + $0x21a8] sm:$0xff]
  %v1112 = vld [vmem:[%s1 + $0x21b0] sm:$0xff]
  %v1113 = vld [vmem:[%s1 + $0x21b8] sm:$0xff]
  %v1114 = vld [vmem:[%s1 + $0x21c0] sm:$0xff]
  %v1115 = vld [vmem:[%s1 + $0x21c8] sm:$0xff]
  %v1116 = vld [vmem:[%s1 + $0x21d0] sm:$0xff]
  %v1117 = vld [vmem:[%s1 + $0x21d8] sm:$0xff]
  %v1118 = vld [vmem:[%s1 + $0x21e0] sm:$0xff]
  %v1119 = vld [vmem:[%s1 + $0x21e8] sm:$0xff]
  %v1120 = vld [vmem:[%s1 + $0x21f0] sm:$0xff]
  %v1121 = vld [vmem:[%s1 + $0x21f8] sm:$0xff]
  %v1122 = vld [vmem:[%s1 + $0x2200] sm:$0xff]
  %v1123 = vld [vmem:[%s1 + $0x2208] sm:$0xff]
  %v1124 = vld [vmem:[%s1 + $0x2210] sm:$0xff]
  %v1125 = vld [vmem:[%s1 + $0x2218] sm:$0xff]
  %v1126 = vld [vmem:[%s1 + $0x2220] sm:$0xff]
  %v1127 = vld [vmem:[%s1 + $0x2228] sm:$0xff]
  %v1128 = vld [vmem:[%s1 + $0x2230] sm:$0xff]
  %v1129 = vld [vmem:[%s1 + $0x2238] sm:$0xff]
  %v1130 = vld [vmem:[%s1 + $0x2240] sm:$0xff]
  %v1131 = vld [vmem:[%s1 + $0x2248] sm:$0xff]
  %v1132 = vld [vmem:[%s1 + $0x2250] sm:$0xff]
  %v1133 = vld [vmem:[%s1 + $0x2258] sm:$0xff]
  %v1134 = vld [vmem:[%s1 + $0x2260] sm:$0xff]
  %v1135 = vld [vmem:[%s1 + $0x2268] sm:$0xff]
  %v1136 = vld [vmem:[%s1 + $0x2270] sm:$0xff]
  %v1137 = vld [vmem:[%s1 + $0x2278] sm:$0xff]
  %v1138 = vld [vmem:[%s1 + $0x2280] sm:$0xff]
  %v1139 = vld [vmem:[%s1 + $0x2288] sm:$0xff]
  %v1140 = vld [vmem:[%s1 + $0x2290] sm:$0xff]
  %v1141 = vld [vmem:[%s1 + $0x2298] sm:$0xff]
  %v1142 = vld [vmem:[%s1 + $0x22a0] sm:$0xff]
  %v1143 = vld [vmem:[%s1 + $0x22a8] sm:$0xff]
  %v1144 = vld [vmem:[%s1 + $0x22b0] sm:$0xff]
  %v1145 = vld [vmem:[%s1 + $0x22b8] sm:$0xff]
  %v1146 = vld [vmem:[%s1 + $0x22c0] sm:$0xff]
  %v1147 = vld [vmem:[%s1 + $0x22c8] sm:$0xff]
  %v1148 = vld [vmem:[%s1 + $0x22d0] sm:$0xff]
  %v1149 = vld [vmem:[%s1 + $0x22d8] sm:$0xff]
  %v1150 = vld [vmem:[%s1 + $0x22e0] sm:$0xff]
  %v1151 = vld [vmem:[%s1 + $0x22e8] sm:$0xff]
  %v1152 = vld [vmem:[%s1 + $0x22f0] sm:$0xff]
  %v1153 = vld [vmem:[%s1 + $0x22f8] sm:$0xff]
  %v1154 = vld [vmem:[%s1 + $0x2300] sm:$0xff]
  %v1155 = vld [vmem:[%s1 + $0x2308] sm:$0xff]
  %v1156 = vld [vmem:[%s1 + $0x2310] sm:$0xff]
  %v1157 = vld [vmem:[%s1 + $0x2318] sm:$0xff]
  %v1158 = vld [vmem:[%s1 + $0x2320] sm:$0xff]
  %v1159 = vld [vmem:[%s1 + $0x2328] sm:$0xff]
  %v1160 = vld [vmem:[%s1 + $0x2330] sm:$0xff]
  %v1161 = vld [vmem:[%s1 + $0x2338] sm:$0xff]
  %v1162 = vld [vmem:[%s1 + $0x2340] sm:$0xff]
  %v1163 = vld [vmem:[%s1 + $0x2348] sm:$0xff]
  %v1164 = vld [vmem:[%s1 + $0x2350] sm:$0xff]
  %v1165 = vld [vmem:[%s1 + $0x2358] sm:$0xff]
  %v1166 = vld [vmem:[%s1 + $0x2360] sm:$0xff]
  %v1167 = vld [vmem:[%s1 + $0x2368] sm:$0xff]
  %v1168 = vld [vmem:[%s1 + $0x2370] sm:$0xff]
  %v1169 = vld [vmem:[%s1 + $0x2378] sm:$0xff]
  %v1170 = vld [vmem:[%s1 + $0x2380] sm:$0xff]
  %v1171 = vld [vmem:[%s1 + $0x2388] sm:$0xff]
  %v1172 = vld [vmem:[%s1 + $0x2390] sm:$0xff]
  %v1173 = vld [vmem:[%s1 + $0x2398] sm:$0xff]
  %v1174 = vld [vmem:[%s1 + $0x23a0] sm:$0xff]
  %v1175 = vld [vmem:[%s1 + $0x23a8] sm:$0xff]
  %v1176 = vld [vmem:[%s1 + $0x23b0] sm:$0xff]
  %v1177 = vld [vmem:[%s1 + $0x23b8] sm:$0xff]
  %v1178 = vld [vmem:[%s1 + $0x23c0] sm:$0xff]
  %v1179 = vld [vmem:[%s1 + $0x23c8] sm:$0xff]
  %v1180 = vld [vmem:[%s1 + $0x23d0] sm:$0xff]
  %v1181 = vld [vmem:[%s1 + $0x23d8] sm:$0xff]
  %v1182 = vld [vmem:[%s1 + $0x23e0] sm:$0xff]
  %v1183 = vld [vmem:[%s1 + $0x23e8] sm:$0xff]
  %v1184 = vld [vmem:[%s1 + $0x23f0] sm:$0xff]
  %v1185 = vld [vmem:[%s1 + $0x23f8] sm:$0xff]
  %v1186 = vld [vmem:[%s1 + $0x2400] sm:$0xff]
  %v1187 = vld [vmem:[%s1 + $0x2408] sm:$0xff]
  %v1188 = vld [vmem:[%s1 + $0x2410] sm:$0xff]
  %v1189 = vld [vmem:[%s1 + $0x2418] sm:$0xff]
  %v1190 = vld [vmem:[%s1 + $0x2420] sm:$0xff]
  %v1191 = vld [vmem:[%s1 + $0x2428] sm:$0xff]
  %v1192 = vld [vmem:[%s1 + $0x2430] sm:$0xff]
  %v1193 = vld [vmem:[%s1 + $0x2438] sm:$0xff]
  %v1194 = vld [vmem:[%s1 + $0x2440] sm:$0xff]
  %v1195 = vld [vmem:[%s1 + $0x2448] sm:$0xff]
  %v1196 = vld [vmem:[%s1 + $0x2450] sm:$0xff]
  %v1197 = vld [vmem:[%s1 + $0x2458] sm:$0xff]
  %v1198 = vld [vmem:[%s1 + $0x2460] sm:$0xff]
  %v1199 = vld [vmem:[%s1 + $0x2468] sm:$0xff]
  %v1200 = vld [vmem:[%s1 + $0x2470] sm:$0xff]
  %v1201 = vld [vmem:[%s1 + $0x2478] sm:$0xff]
  %v1202 = vld [vmem:[%s1 + $0x2480] sm:$0xff]
  %v1203 = vld [vmem:[%s1 + $0x2488] sm:$0xff]
  %v1204 = vld [vmem:[%s1 + $0x2490] sm:$0xff]
  %v1205 = vld [vmem:[%s1 + $0x2498] sm:$0xff]
  %v1206 = vld [vmem:[%s1 + $0x24a0] sm:$0xff]
  %v1207 = vld [vmem:[%s1 + $0x24a8] sm:$0xff]
  %v1208 = vld [vmem:[%s1 + $0x24b0] sm:$0xff]
  %v1209 = vld [vmem:[%s1 + $0x24b8] sm:$0xff]
  %v1210 = vld [vmem:[%s1 + $0x24c0] sm:$0xff]
  %v1211 = vld [vmem:[%s1 + $0x24c8] sm:$0xff]
  %v1212 = vld [vmem:[%s1 + $0x24d0] sm:$0xff]
  %v1213 = vld [vmem:[%s1 + $0x24d8] sm:$0xff]
  %v1214 = vld [vmem:[%s1 + $0x24e0] sm:$0xff]
  %v1215 = vld [vmem:[%s1 + $0x24e8] sm:$0xff]
  %v1216 = vld [vmem:[%s1 + $0x24f0] sm:$0xff]
  %v1217 = vld [vmem:[%s1 + $0x24f8] sm:$0xff]
  %v1218 = vld [vmem:[%s1 + $0x2500] sm:$0xff]
  %v1219 = vld [vmem:[%s1 + $0x2508] sm:$0xff]
  %v1220 = vld [vmem:[%s1 + $0x2510] sm:$0xff]
  %v1221 = vld [vmem:[%s1 + $0x2518] sm:$0xff]
  %v1222 = vld [vmem:[%s1 + $0x2520] sm:$0xff]
  %v1223 = vld [vmem:[%s1 + $0x2528] sm:$0xff]
  %v1224 = vld [vmem:[%s1 + $0x2530] sm:$0xff]
  %v1225 = vld [vmem:[%s1 + $0x2538] sm:$0xff]
  %v1226 = vld [vmem:[%s1 + $0x2540] sm:$0xff]
  %v1227 = vld [vmem:[%s1 + $0x2548] sm:$0xff]
  %v1228 = vld [vmem:[%s1 + $0x2550] sm:$0xff]
  %v1229 = vld [vmem:[%s1 + $0x2558] sm:$0xff]
  %v1230 = vld [vmem:[%s1 + $0x2560] sm:$0xff]
  %v1231 = vld [vmem:[%s1 + $0x2568] sm:$0xff]
  %v1232 = vld [vmem:[%s1 + $0x2570] sm:$0xff]
  %v1233 = vld [vmem:[%s1 + $0x2578] sm:$0xff]
  %v1234 = vld [vmem:[%s1 + $0x2580] sm:$0xff]
  %v1235 = vld [vmem:[%s1 + $0x2588] sm:$0xff]
  %v1236 = vld [vmem:[%s1 + $0x2590] sm:$0xff]
  %v1237 = vld [vmem:[%s1 + $0x2598] sm:$0xff]
  %v1238 = vld [vmem:[%s1 + $0x25a0] sm:$0xff]
  %v1239 = vld [vmem:[%s1 + $0x25a8] sm:$0xff]
  %v1240 = vld [vmem:[%s1 + $0x25b0] sm:$0xff]
  %v1241 = vld [vmem:[%s1 + $0x25b8] sm:$0xff]
  %v1242 = vld [vmem:[%s1 + $0x25c0] sm:$0xff]
  %v1243 = vld [vmem:[%s1 + $0x25c8] sm:$0xff]
  %v1244 = vld [vmem:[%s1 + $0x25d0] sm:$0xff]
  %v1245 = vld [vmem:[%s1 + $0x25d8] sm:$0xff]
  %v1246 = vld [vmem:[%s1 + $0x25e0] sm:$0xff]
  %v1247 = vld [vmem:[%s1 + $0x25e8] sm:$0xff]
  %v1248 = vld [vmem:[%s1 + $0x25f0] sm:$0xff]
  %v1249 = vld [vmem:[%s1 + $0x25f8] sm:$0xff]
  %v1250 = vld [vmem:[%s1 + $0x2600] sm:$0xff]
  %v1251 = vld [vmem:[%s1 + $0x2608] sm:$0xff]
  %v1252 = vld [vmem:[%s1 + $0x2610] sm:$0xff]
  %v1253 = vld [vmem:[%s1 + $0x2618] sm:$0xff]
  %v1254 = vld [vmem:[%s1 + $0x2620] sm:$0xff]
  %v1255 = vld [vmem:[%s1 + $0x2628] sm:$0xff]
  %v1256 = vld [vmem:[%s1 + $0x2630] sm:$0xff]
  %v1257 = vld [vmem:[%s1 + $0x2638] sm:$0xff]
  %v1258 = vld [vmem:[%s1 + $0x2640] sm:$0xff]
  %v1259 = vld [vmem:[%s1 + $0x2648] sm:$0xff]
  %v1260 = vld [vmem:[%s1 + $0x2650] sm:$0xff]
  %v1261 = vld [vmem:[%s1 + $0x2658] sm:$0xff]
  %v1262 = vld [vmem:[%s1 + $0x2660] sm:$0xff]
  %v1263 = vld [vmem:[%s1 + $0x2668] sm:$0xff]
  %v1264 = vld [vmem:[%s1 + $0x2670] sm:$0xff]
  %v1265 = vld [vmem:[%s1 + $0x2678] sm:$0xff]
  %v1266 = vld [vmem:[%s1 + $0x2680] sm:$0xff]
  %v1267 = vld [vmem:[%s1 + $0x2688] sm:$0xff]
  %v1268 = vld [vmem:[%s1 + $0x2690] sm:$0xff]
  %v1269 = vld [vmem:[%s1 + $0x2698] sm:$0xff]
  %v1270 = vld [vmem:[%s1 + $0x26a0] sm:$0xff]
  %v1271 = vld [vmem:[%s1 + $0x26a8] sm:$0xff]
  %v1272 = vld [vmem:[%s1 + $0x26b0] sm:$0xff]
  %v1273 = vld [vmem:[%s1 + $0x26b8] sm:$0xff]
  %v1274 = vld [vmem:[%s1 + $0x26c0] sm:$0xff]
  %v1275 = vld [vmem:[%s1 + $0x26c8] sm:$0xff]
  %v1276 = vld [vmem:[%s1 + $0x26d0] sm:$0xff]
  %v1277 = vld [vmem:[%s1 + $0x26d8] sm:$0xff]
  %v1278 = vld [vmem:[%s1 + $0x26e0] sm:$0xff]
  %v1279 = vld [vmem:[%s1 + $0x26e8] sm:$0xff]
  %v1280 = vld [vmem:[%s1 + $0x26f0] sm:$0xff]
  %v1281 = vld [vmem:[%s1 + $0x26f8] sm:$0xff]
  %v1282 = vld [vmem:[%s1 + $0x2700] sm:$0xff]
  %v1283 = vld [vmem:[%s1 + $0x2708] sm:$0xff]
  %v1284 = vld [vmem:[%s1 + $0x2710] sm:$0xff]
  %v1285 = vld [vmem:[%s1 + $0x2718] sm:$0xff]
  %v1286 = vld [vmem:[%s1 + $0x2720] sm:$0xff]
  %v1287 = vld [vmem:[%s1 + $0x2728] sm:$0xff]
  %v1288 = vld [vmem:[%s1 + $0x2730] sm:$0xff]
  %v1289 = vld [vmem:[%s1 + $0x2738] sm:$0xff]
  %v1290 = vld [vmem:[%s1 + $0x2740] sm:$0xff]
  %v1291 = vld [vmem:[%s1 + $0x2748] sm:$0xff]
  %v1292 = vld [vmem:[%s1 + $0x2750] sm:$0xff]
  %v1293 = vld [vmem:[%s1 + $0x2758] sm:$0xff]
  %v1294 = vld [vmem:[%s1 + $0x2760] sm:$0xff]
  %v1295 = vld [vmem:[%s1 + $0x2768] sm:$0xff]
  %v1296 = vld [vmem:[%s1 + $0x2770] sm:$0xff]
  %v1297 = vld [vmem:[%s1 + $0x2778] sm:$0xff]
  %v1298 = vld [vmem:[%s1 + $0x2780] sm:$0xff]
  %v1299 = vld [vmem:[%s1 + $0x2788] sm:$0xff]
  %v1300 = vld [vmem:[%s1 + $0x2790] sm:$0xff]
  %v1301 = vld [vmem:[%s1 + $0x2798] sm:$0xff]
  %v1302 = vld [vmem:[%s1 + $0x27a0] sm:$0xff]
  %v1303 = vld [vmem:[%s1 + $0x27a8] sm:$0xff]
  %v1304 = vld [vmem:[%s1 + $0x27b0] sm:$0xff]
  %v1305 = vld [vmem:[%s1 + $0x27b8] sm:$0xff]
  %v1306 = vld [vmem:[%s1 + $0x27c0] sm:$0xff]
  %v1307 = vld [vmem:[%s1 + $0x27c8] sm:$0xff]
  %v1308 = vld [vmem:[%s1 + $0x27d0] sm:$0xff]
  %v1309 = vld [vmem:[%s1 + $0x27d8] sm:$0xff]
  %v1310 = vld [vmem:[%s1 + $0x27e0] sm:$0xff]
  %v1311 = vld [vmem:[%s1 + $0x27e8] sm:$0xff]
  %v1312 = vld [vmem:[%s1 + $0x27f0] sm:$0xff]
  %v1313 = vld [vmem:[%s1 + $0x27f8] sm:$0xff]
  %v1314 = vld [vmem:[%s1 + $0x2800] sm:$0xff]
  %v1315 = vld [vmem:[%s1 + $0x2808] sm:$0xff]
  %v1316 = vld [vmem:[%s1 + $0x2810] sm:$0xff]
  %v1317 = vld [vmem:[%s1 + $0x2818] sm:$0xff]
  %v1318 = vld [vmem:[%s1 + $0x2820] sm:$0xff]
  %v1319 = vld [vmem:[%s1 + $0x2828] sm:$0xff]
  %v1320 = vld [vmem:[%s1 + $0x2830] sm:$0xff]
  %v1321 = vld [vmem:[%s1 + $0x2838] sm:$0xff]
  %v1322 = vld [vmem:[%s1 + $0x2840] sm:$0xff]
  %v1323 = vld [vmem:[%s1 + $0x2848] sm:$0xff]
  %v1324 = vld [vmem:[%s1 + $0x2850] sm:$0xff]
  %v1325 = vld [vmem:[%s1 + $0x2858] sm:$0xff]
  %v1326 = vld [vmem:[%s1 + $0x2860] sm:$0xff]
  %v1327 = vld [vmem:[%s1 + $0x2868] sm:$0xff]
  %v1328 = vld [vmem:[%s1 + $0x2870] sm:$0xff]
  %v1329 = vld [vmem:[%s1 + $0x2878] sm:$0xff]
  %v1330 = vld [vmem:[%s1 + $0x2880] sm:$0xff]
  %v1331 = vld [vmem:[%s1 + $0x2888] sm:$0xff]
  %v1332 = vld [vmem:[%s1 + $0x2890] sm:$0xff]
  %v1333 = vld [vmem:[%s1 + $0x2898] sm:$0xff]
  %v1334 = vld [vmem:[%s1 + $0x28a0] sm:$0xff]
  %v1335 = vld [vmem:[%s1 + $0x28a8] sm:$0xff]
  %v1336 = vld [vmem:[%s1 + $0x28b0] sm:$0xff]
  %v1337 = vld [vmem:[%s1 + $0x28b8] sm:$0xff]
  %v1338 = vld [vmem:[%s1 + $0x28c0] sm:$0xff]
  %v1339 = vld [vmem:[%s1 + $0x28c8] sm:$0xff]
  %v1340 = vld [vmem:[%s1 + $0x28d0] sm:$0xff]
  %v1341 = vld [vmem:[%s1 + $0x28d8] sm:$0xff]
  %v1342 = vld [vmem:[%s1 + $0x28e0] sm:$0xff]
  %v1343 = vld [vmem:[%s1 + $0x28e8] sm:$0xff]
  %v1344 = vld [vmem:[%s1 + $0x28f0] sm:$0xff]
  %v1345 = vld [vmem:[%s1 + $0x28f8] sm:$0xff]
  %v1346 = vld [vmem:[%s1 + $0x2900] sm:$0xff]
  %v1347 = vld [vmem:[%s1 + $0x2908] sm:$0xff]
  %v1348 = vld [vmem:[%s1 + $0x2910] sm:$0xff]
  %v1349 = vld [vmem:[%s1 + $0x2918] sm:$0xff]
  %v1350 = vld [vmem:[%s1 + $0x2920] sm:$0xff]
  %v1351 = vld [vmem:[%s1 + $0x2928] sm:$0xff]
  %v1352 = vld [vmem:[%s1 + $0x2930] sm:$0xff]
  %v1353 = vld [vmem:[%s1 + $0x2938] sm:$0xff]
  %v1354 = vld [vmem:[%s1 + $0x2940] sm:$0xff]
  %v1355 = vld [vmem:[%s1 + $0x2948] sm:$0xff]
  %v1356 = vld [vmem:[%s1 + $0x2950] sm:$0xff]
  %v1357 = vld [vmem:[%s1 + $0x2958] sm:$0xff]
  %v1358 = vld [vmem:[%s1 + $0x2960] sm:$0xff]
  %v1359 = vld [vmem:[%s1 + $0x2968] sm:$0xff]
  %v1360 = vld [vmem:[%s1 + $0x2970] sm:$0xff]
  %v1361 = vld [vmem:[%s1 + $0x2978] sm:$0xff]
  %v1362 = vld [vmem:[%s1 + $0x2980] sm:$0xff]
  %v1363 = vld [vmem:[%s1 + $0x2988] sm:$0xff]
  %v1364 = vld [vmem:[%s1 + $0x2990] sm:$0xff]
  %v1365 = vld [vmem:[%s1 + $0x2998] sm:$0xff]
  %v1366 = vld [vmem:[%s1 + $0x29a0] sm:$0xff]
  %v1367 = vld [vmem:[%s1 + $0x29a8] sm:$0xff]
  %v1368 = vld [vmem:[%s1 + $0x29b0] sm:$0xff]
  %v1369 = vld [vmem:[%s1 + $0x29b8] sm:$0xff]
  %v1370 = vld [vmem:[%s1 + $0x29c0] sm:$0xff]
  %v1371 = vld [vmem:[%s1 + $0x29c8] sm:$0xff]
  %v1372 = vld [vmem:[%s1 + $0x29d0] sm:$0xff]
  %v1373 = vld [vmem:[%s1 + $0x29d8] sm:$0xff]
  %v1374 = vld [vmem:[%s1 + $0x29e0] sm:$0xff]
  %v1375 = vld [vmem:[%s1 + $0x29e8] sm:$0xff]
  %v1376 = vld [vmem:[%s1 + $0x29f0] sm:$0xff]
  %v1377 = vld [vmem:[%s1 + $0x29f8] sm:$0xff]
  %v1378 = vld [vmem:[%s1 + $0x2a00] sm:$0xff]
  %v1379 = vld [vmem:[%s1 + $0x2a08] sm:$0xff]
  %v1380 = vld [vmem:[%s1 + $0x2a10] sm:$0xff]
  %v1381 = vld [vmem:[%s1 + $0x2a18] sm:$0xff]
  %v1382 = vld [vmem:[%s1 + $0x2a20] sm:$0xff]
  %v1383 = vld [vmem:[%s1 + $0x2a28] sm:$0xff]
  %v1384 = vld [vmem:[%s1 + $0x2a30] sm:$0xff]
  %v1385 = vld [vmem:[%s1 + $0x2a38] sm:$0xff]
  %v1386 = vld [vmem:[%s1 + $0x2a40] sm:$0xff]
  %v1387 = vld [vmem:[%s1 + $0x2a48] sm:$0xff]
  %v1388 = vld [vmem:[%s1 + $0x2a50] sm:$0xff]
  %v1389 = vld [vmem:[%s1 + $0x2a58] sm:$0xff]
  %v1390 = vld [vmem:[%s1 + $0x2a60] sm:$0xff]
  %v1391 = vld [vmem:[%s1 + $0x2a68] sm:$0xff]
  %v1392 = vld [vmem:[%s1 + $0x2a70] sm:$0xff]
  %v1393 = vld [vmem:[%s1 + $0x2a78] sm:$0xff]
  %v1394 = vld [vmem:[%s1 + $0x2a80] sm:$0xff]
  %v1395 = vld [vmem:[%s1 + $0x2a88] sm:$0xff]
  %v1396 = vld [vmem:[%s1 + $0x2a90] sm:$0xff]
  %v1397 = vld [vmem:[%s1 + $0x2a98] sm:$0xff]
  %v1398 = vld [vmem:[%s1 + $0x2aa0] sm:$0xff]
  %v1399 = vld [vmem:[%s1 + $0x2aa8] sm:$0xff]
  %v1400 = vld [vmem:[%s1 + $0x2ab0] sm:$0xff]
  %v1401 = vld [vmem:[%s1 + $0x2ab8] sm:$0xff]
  %v1402 = vld [vmem:[%s1 + $0x2ac0] sm:$0xff]
  %v1403 = vld [vmem:[%s1 + $0x2ac8] sm:$0xff]
  %v1404 = vld [vmem:[%s1 + $0x2ad0] sm:$0xff]
  %v1405 = vld [vmem:[%s1 + $0x2ad8] sm:$0xff]
  %v1406 = vld [vmem:[%s1 + $0x2ae0] sm:$0xff]
  %v1407 = vld [vmem:[%s1 + $0x2ae8] sm:$0xff]
  %v1408 = vld [vmem:[%s1 + $0x2af0] sm:$0xff]
  %v1409 = vld [vmem:[%s1 + $0x2af8] sm:$0xff]
  %v1410 = vld [vmem:[%s1 + $0x2b00] sm:$0xff]
  %v1411 = vld [vmem:[%s1 + $0x2b08] sm:$0xff]
  %v1412 = vld [vmem:[%s1 + $0x2b10] sm:$0xff]
  %v1413 = vld [vmem:[%s1 + $0x2b18] sm:$0xff]
  %v1414 = vld [vmem:[%s1 + $0x2b20] sm:$0xff]
  %v1415 = vld [vmem:[%s1 + $0x2b28] sm:$0xff]
  %v1416 = vld [vmem:[%s1 + $0x2b30] sm:$0xff]
  %v1417 = vld [vmem:[%s1 + $0x2b38] sm:$0xff]
  %v1418 = vld [vmem:[%s1 + $0x2b40] sm:$0xff]
  %v1419 = vld [vmem:[%s1 + $0x2b48] sm:$0xff]
  %v1420 = vld [vmem:[%s1 + $0x2b50] sm:$0xff]
  %v1421 = vld [vmem:[%s1 + $0x2b58] sm:$0xff]
  %v1422 = vld [vmem:[%s1 + $0x2b60] sm:$0xff]
  %v1423 = vld [vmem:[%s1 + $0x2b68] sm:$0xff]
  %v1424 = vld [vmem:[%s1 + $0x2b70] sm:$0xff]
  %v1425 = vld [vmem:[%s1 + $0x2b78] sm:$0xff]
  %v1426 = vld [vmem:[%s1 + $0x2b80] sm:$0xff]
  %v1427 = vld [vmem:[%s1 + $0x2b88] sm:$0xff]
  %v1428 = vld [vmem:[%s1 + $0x2b90] sm:$0xff]
  %v1429 = vld [vmem:[%s1 + $0x2b98] sm:$0xff]
  %v1430 = vld [vmem:[%s1 + $0x2ba0] sm:$0xff]
  %v1431 = vld [vmem:[%s1 + $0x2ba8] sm:$0xff]
  %v1432 = vld [vmem:[%s1 + $0x2bb0] sm:$0xff]
  %v1433 = vld [vmem:[%s1 + $0x2bb8] sm:$0xff]
  %v1434 = vld [vmem:[%s1 + $0x2bc0] sm:$0xff]
  %v1435 = vld [vmem:[%s1 + $0x2bc8] sm:$0xff]
  %v1436 = vld [vmem:[%s1 + $0x2bd0] sm:$0xff]
  %v1437 = vld [vmem:[%s1 + $0x2bd8] sm:$0xff]
  %v1438 = vld [vmem:[%s1 + $0x2be0] sm:$0xff]
  %v1439 = vld [vmem:[%s1 + $0x2be8] sm:$0xff]
  %v1440 = vld [vmem:[%s1 + $0x2bf0] sm:$0xff]
  %v1441 = vld [vmem:[%s1 + $0x2bf8] sm:$0xff]
  %v1442 = vld [vmem:[%s1 + $0x2c00] sm:$0xff]
  %v1443 = vld [vmem:[%s1 + $0x2c08] sm:$0xff]
  %v1444 = vld [vmem:[%s1 + $0x2c10] sm:$0xff]
  %v1445 = vld [vmem:[%s1 + $0x2c18] sm:$0xff]
  %v1446 = vld [vmem:[%s1 + $0x2c20] sm:$0xff]
  %v1447 = vld [vmem:[%s1 + $0x2c28] sm:$0xff]
  %v1448 = vld [vmem:[%s1 + $0x2c30] sm:$0xff]
  %v1449 = vld [vmem:[%s1 + $0x2c38] sm:$0xff]
  %v1450 = vld [vmem:[%s1 + $0x2c40] sm:$0xff]
  %v1451 = vld [vmem:[%s1 + $0x2c48] sm:$0xff]
  %v1452 = vld [vmem:[%s1 + $0x2c50] sm:$0xff]
  %v1453 = vld [vmem:[%s1 + $0x2c58] sm:$0xff]
  %v1454 = vld [vmem:[%s1 + $0x2c60] sm:$0xff]
  %v1455 = vld [vmem:[%s1 + $0x2c68] sm:$0xff]
  %v1456 = vld [vmem:[%s1 + $0x2c70] sm:$0xff]
  %v1457 = vld [vmem:[%s1 + $0x2c78] sm:$0xff]
  %v1458 = vld [vmem:[%s1 + $0x2c80] sm:$0xff]
  %v1459 = vld [vmem:[%s1 + $0x2c88] sm:$0xff]
  %v1460 = vld [vmem:[%s1 + $0x2c90] sm:$0xff]
  %v1461 = vld [vmem:[%s1 + $0x2c98] sm:$0xff]
  %v1462 = vld [vmem:[%s1 + $0x2ca0] sm:$0xff]
  %v1463 = vld [vmem:[%s1 + $0x2ca8] sm:$0xff]
  %v1464 = vld [vmem:[%s1 + $0x2cb0] sm:$0xff]
  %v1465 = vld [vmem:[%s1 + $0x2cb8] sm:$0xff]
  %v1466 = vld [vmem:[%s1 + $0x2cc0] sm:$0xff]
  %v1467 = vld [vmem:[%s1 + $0x2cc8] sm:$0xff]
  %v1468 = vld [vmem:[%s1 + $0x2cd0] sm:$0xff]
  %v1469 = vld [vmem:[%s1 + $0x2cd8] sm:$0xff]
  %v1470 = vld [vmem:[%s1 + $0x2ce0] sm:$0xff]
  %v1471 = vld [vmem:[%s1 + $0x2ce8] sm:$0xff]
  %v1472 = vld [vmem:[%s1 + $0x2cf0] sm:$0xff]
  %v1473 = vld [vmem:[%s1 + $0x2cf8] sm:$0xff]
  %v1474 = vld [vmem:[%s1 + $0x2d00] sm:$0xff]
  %v1475 = vld [vmem:[%s1 + $0x2d08] sm:$0xff]
  %v1476 = vld [vmem:[%s1 + $0x2d10] sm:$0xff]
  %v1477 = vld [vmem:[%s1 + $0x2d18] sm:$0xff]
  %v1478 = vld [vmem:[%s1 + $0x2d20] sm:$0xff]
  %v1479 = vld [vmem:[%s1 + $0x2d28] sm:$0xff]
  %v1480 = vld [vmem:[%s1 + $0x2d30] sm:$0xff]
  %v1481 = vld [vmem:[%s1 + $0x2d38] sm:$0xff]
  %v1482 = vld [vmem:[%s1 + $0x2d40] sm:$0xff]
  %v1483 = vld [vmem:[%s1 + $0x2d48] sm:$0xff]
  %v1484 = vld [vmem:[%s1 + $0x2d50] sm:$0xff]
  %v1485 = vld [vmem:[%s1 + $0x2d58] sm:$0xff]
  %v1486 = vld [vmem:[%s1 + $0x2d60] sm:$0xff]
  %v1487 = vld [vmem:[%s1 + $0x2d68] sm:$0xff]
  %v1488 = vld [vmem:[%s1 + $0x2d70] sm:$0xff]
  %v1489 = vld [vmem:[%s1 + $0x2d78] sm:$0xff]
  %v1490 = vld [vmem:[%s1 + $0x2d80] sm:$0xff]
  %v1491 = vld [vmem:[%s1 + $0x2d88] sm:$0xff]
  %v1492 = vld [vmem:[%s1 + $0x2d90] sm:$0xff]
  %v1493 = vld [vmem:[%s1 + $0x2d98] sm:$0xff]
  %v1494 = vld [vmem:[%s1 + $0x2da0] sm:$0xff]
  %v1495 = vld [vmem:[%s1 + $0x2da8] sm:$0xff]
  %v1496 = vld [vmem:[%s1 + $0x2db0] sm:$0xff]
  %v1497 = vld [vmem:[%s1 + $0x2db8] sm:$0xff]
  %v1498 = vld [vmem:[%s1 + $0x2dc0] sm:$0xff]
  %v1499 = vld [vmem:[%s1 + $0x2dc8] sm:$0xff]
  %v1500 = vld [vmem:[%s1 + $0x2dd0] sm:$0xff]
  %v1501 = vld [vmem:[%s1 + $0x2dd8] sm:$0xff]
  %v1502 = vld [vmem:[%s1 + $0x2de0] sm:$0xff]
  %v1503 = vld [vmem:[%s1 + $0x2de8] sm:$0xff]
  %v1504 = vld [vmem:[%s1 + $0x2df0] sm:$0xff]
  %v1505 = vld [vmem:[%s1 + $0x2df8] sm:$0xff]
  %v1506 = vld [vmem:[%s1 + $0x2e00] sm:$0xff]
  %v1507 = vld [vmem:[%s1 + $0x2e08] sm:$0xff]
  %v1508 = vld [vmem:[%s1 + $0x2e10] sm:$0xff]
  %v1509 = vld [vmem:[%s1 + $0x2e18] sm:$0xff]
  %v1510 = vld [vmem:[%s1 + $0x2e20] sm:$0xff]
  %v1511 = vld [vmem:[%s1 + $0x2e28] sm:$0xff]
  %v1512 = vld [vmem:[%s1 + $0x2e30] sm:$0xff]
  %v1513 = vld [vmem:[%s1 + $0x2e38] sm:$0xff]
  %v1514 = vld [vmem:[%s1 + $0x2e40] sm:$0xff]
  %v1515 = vld [vmem:[%s1 + $0x2e48] sm:$0xff]
  %v1516 = vld [vmem:[%s1 + $0x2e50] sm:$0xff]
  %v1517 = vld [vmem:[%s1 + $0x2e58] sm:$0xff]
  %v1518 = vld [vmem:[%s1 + $0x2e60] sm:$0xff]
  %v1519 = vld [vmem:[%s1 + $0x2e68] sm:$0xff]
  %v1520 = vld [vmem:[%s1 + $0x2e70] sm:$0xff]
  %v1521 = vld [vmem:[%s1 + $0x2e78] sm:$0xff]
  %v1522 = vld [vmem:[%s1 + $0x2e80] sm:$0xff]
  %v1523 = vld [vmem:[%s1 + $0x2e88] sm:$0xff]
  %v1524 = vld [vmem:[%s1 + $0x2e90] sm:$0xff]
  %v1525 = vld [vmem:[%s1 + $0x2e98] sm:$0xff]
  %v1526 = vld [vmem:[%s1 + $0x2ea0] sm:$0xff]
  %v1527 = vld [vmem:[%s1 + $0x2ea8] sm:$0xff]
  %v1528 = vld [vmem:[%s1 + $0x2eb0] sm:$0xff]
  %v1529 = vld [vmem:[%s1 + $0x2eb8] sm:$0xff]
  %v1530 = vld [vmem:[%s1 + $0x2ec0] sm:$0xff]
  %v1531 = vld [vmem:[%s1 + $0x2ec8] sm:$0xff]
  %v1532 = vld [vmem:[%s1 + $0x2ed0] sm:$0xff]
  %v1533 = vld [vmem:[%s1 + $0x2ed8] sm:$0xff]
  %v1534 = vld [vmem:[%s1 + $0x2ee0] sm:$0xff]
  %v1535 = vld [vmem:[%s1 + $0x2ee8] sm:$0xff]
  %v1536 = vld [vmem:[%s1 + $0x2ef0] sm:$0xff]
  %v1537 = vld [vmem:[%s1 + $0x2ef8] sm:$0xff]
  %v1538 = vld [vmem:[%s1 + $0x2f00] sm:$0xff]
  %v1539 = vld [vmem:[%s1 + $0x2f08] sm:$0xff]
  %v1540 = vld [vmem:[%s1 + $0x2f10] sm:$0xff]
  %v1541 = vld [vmem:[%s1 + $0x2f18] sm:$0xff]
  %v1542 = vld [vmem:[%s1 + $0x2f20] sm:$0xff]
  %v1543 = vld [vmem:[%s1 + $0x2f28] sm:$0xff]
  %v1544 = vld [vmem:[%s1 + $0x2f30] sm:$0xff]
  %v1545 = vld [vmem:[%s1 + $0x2f38] sm:$0xff]
  %v1546 = vld [vmem:[%s1 + $0x2f40] sm:$0xff]
  %v1547 = vld [vmem:[%s1 + $0x2f48] sm:$0xff]
  %v1548 = vld [vmem:[%s1 + $0x2f50] sm:$0xff]
  %v1549 = vld [vmem:[%s1 + $0x2f58] sm:$0xff]
  %v1550 = vld [vmem:[%s1 + $0x2f60] sm:$0xff]
  %v1551 = vld [vmem:[%s1 + $0x2f68] sm:$0xff]
  %v1552 = vld [vmem:[%s1 + $0x2f70] sm:$0xff]
  %v1553 = vld [vmem:[%s1 + $0x2f78] sm:$0xff]
  %v1554 = vld [vmem:[%s1 + $0x2f80] sm:$0xff]
  %v1555 = vld [vmem:[%s1 + $0x2f88] sm:$0xff]
  %v1556 = vld [vmem:[%s1 + $0x2f90] sm:$0xff]
  %v1557 = vld [vmem:[%s1 + $0x2f98] sm:$0xff]
  %v1558 = vld [vmem:[%s1 + $0x2fa0] sm:$0xff]
  %v1559 = vld [vmem:[%s1 + $0x2fa8] sm:$0xff]
  %v1560 = vld [vmem:[%s1 + $0x2fb0] sm:$0xff]
  %v1561 = vld [vmem:[%s1 + $0x2fb8] sm:$0xff]
  %v1562 = vld [vmem:[%s1 + $0x2fc0] sm:$0xff]
  %v1563 = vld [vmem:[%s1 + $0x2fc8] sm:$0xff]
  %v1564 = vld [vmem:[%s1 + $0x2fd0] sm:$0xff]
  %v1565 = vld [vmem:[%s1 + $0x2fd8] sm:$0xff]
  %v1566 = vld [vmem:[%s1 + $0x2fe0] sm:$0xff]
  %v1567 = vld [vmem:[%s1 + $0x2fe8] sm:$0xff]
  %v1568 = vld [vmem:[%s1 + $0x2ff0] sm:$0xff]
  %v1569 = vld [vmem:[%s1 + $0x2ff8] sm:$0xff]
  %v1570 = vld [vmem:[%s1 + $0x3000] sm:$0xff]
  %v1571 = vld [vmem:[%s1 + $0x3008] sm:$0xff]
  %v1572 = vld [vmem:[%s1 + $0x3010] sm:$0xff]
  %v1573 = vld [vmem:[%s1 + $0x3018] sm:$0xff]
  %v1574 = vld [vmem:[%s1 + $0x3020] sm:$0xff]
  %v1575 = vld [vmem:[%s1 + $0x3028] sm:$0xff]
  %v1576 = vld [vmem:[%s1 + $0x3030] sm:$0xff]
  %v1577 = vld [vmem:[%s1 + $0x3038] sm:$0xff]
  %v1578 = vld [vmem:[%s1 + $0x3040] sm:$0xff]
  %v1579 = vld [vmem:[%s1 + $0x3048] sm:$0xff]
  %v1580 = vld [vmem:[%s1 + $0x3050] sm:$0xff]
  %v1581 = vld [vmem:[%s1 + $0x3058] sm:$0xff]
  %v1582 = vld [vmem:[%s1 + $0x3060] sm:$0xff]
  %v1583 = vld [vmem:[%s1 + $0x3068] sm:$0xff]
  %v1584 = vld [vmem:[%s1 + $0x3070] sm:$0xff]
  %v1585 = vld [vmem:[%s1 + $0x3078] sm:$0xff]
  %v1586 = vld [vmem:[%s1 + $0x3080] sm:$0xff]
  %v1587 = vld [vmem:[%s1 + $0x3088] sm:$0xff]
  %v1588 = vld [vmem:[%s1 + $0x3090] sm:$0xff]
  %v1589 = vld [vmem:[%s1 + $0x3098] sm:$0xff]
  %v1590 = vld [vmem:[%s1 + $0x30a0] sm:$0xff]
  %v1591 = vld [vmem:[%s1 + $0x30a8] sm:$0xff]
  %v1592 = vld [vmem:[%s1 + $0x30b0] sm:$0xff]
  %v1593 = vld [vmem:[%s1 + $0x30b8] sm:$0xff]
  %v1594 = vld [vmem:[%s1 + $0x30c0] sm:$0xff]
  %v1595 = vld [vmem:[%s1 + $0x30c8] sm:$0xff]
  %v1596 = vld [vmem:[%s1 + $0x30d0] sm:$0xff]
  %v1597 = vld [vmem:[%s1 + $0x30d8] sm:$0xff]
  %v1598 = vld [vmem:[%s1 + $0x30e0] sm:$0xff]
  %v1599 = vld [vmem:[%s1 + $0x30e8] sm:$0xff]
  %v1600 = vld [vmem:[%s1 + $0x30f0] sm:$0xff]
  %v1601 = vld [vmem:[%s1 + $0x30f8] sm:$0xff]
  %v1602 = vld [vmem:[%s1 + $0x3100] sm:$0xff]
  %v1603 = vld [vmem:[%s1 + $0x3108] sm:$0xff]
  %v1604 = vld [vmem:[%s1 + $0x3110] sm:$0xff]
  %v1605 = vld [vmem:[%s1 + $0x3118] sm:$0xff]
  %v1606 = vld [vmem:[%s1 + $0x3120] sm:$0xff]
  %v1607 = vld [vmem:[%s1 + $0x3128] sm:$0xff]
  %v1608 = vld [vmem:[%s1 + $0x3130] sm:$0xff]
  %v1609 = vld [vmem:[%s1 + $0x3138] sm:$0xff]
  %v1610 = vld [vmem:[%s1 + $0x3140] sm:$0xff]
  %v1611 = vld [vmem:[%s1 + $0x3148] sm:$0xff]
  %v1612 = vld [vmem:[%s1 + $0x3150] sm:$0xff]
  %v1613 = vld [vmem:[%s1 + $0x3158] sm:$0xff]
  %v1614 = vld [vmem:[%s1 + $0x3160] sm:$0xff]
  %v1615 = vld [vmem:[%s1 + $0x3168] sm:$0xff]
  %v1616 = vld [vmem:[%s1 + $0x3170] sm:$0xff]
  %v1617 = vld [vmem:[%s1 + $0x3178] sm:$0xff]
  %v1618 = vld [vmem:[%s1 + $0x3180] sm:$0xff]
  %v1619 = vld [vmem:[%s1 + $0x3188] sm:$0xff]
  %v1620 = vld [vmem:[%s1 + $0x3190] sm:$0xff]
  %v1621 = vld [vmem:[%s1 + $0x3198] sm:$0xff]
  %v1622 = vld [vmem:[%s1 + $0x31a0] sm:$0xff]
  %v1623 = vld [vmem:[%s1 + $0x31a8] sm:$0xff]
  %v1624 = vld [vmem:[%s1 + $0x31b0] sm:$0xff]
  %v1625 = vld [vmem:[%s1 + $0x31b8] sm:$0xff]
  %v1626 = vld [vmem:[%s1 + $0x31c0] sm:$0xff]
  %v1627 = vld [vmem:[%s1 + $0x31c8] sm:$0xff]
  %v1628 = vld [vmem:[%s1 + $0x31d0] sm:$0xff]
  %v1629 = vld [vmem:[%s1 + $0x31d8] sm:$0xff]
  %v1630 = vld [vmem:[%s1 + $0x31e0] sm:$0xff]
  %v1631 = vld [vmem:[%s1 + $0x31e8] sm:$0xff]
  %v1632 = vld [vmem:[%s1 + $0x31f0] sm:$0xff]
  %v1633 = vld [vmem:[%s1 + $0x31f8] sm:$0xff]
  %v1634 = vld [vmem:[%s2] sm:$0xff]
  %v1636 = vlaneseq
  %v1637 = vshrl.u32 %v1636, 7
  %v1638 = vsub.s32 0, %v1637
  %v1639 = vrot.slane %v1634, %v1638
  %v1640 = vlaneseq
  %v1641 = vshrl.u32 %v1640, 7
  %v1642 = vsub.s32 1, %v1641
  %v1643 = vrot.slane %v1634, %v1642
  %v1644 = vlaneseq
  %v1645 = vshrl.u32 %v1644, 7
  %v1646 = vsub.s32 2, %v1645
  %v1647 = vrot.slane %v1634, %v1646
  %v1648 = vlaneseq
  %v1649 = vshrl.u32 %v1648, 7
  %v1650 = vsub.s32 3, %v1649
  %v1651 = vrot.slane %v1634, %v1650
  %v1652 = vlaneseq
  %v1653 = vshrl.u32 %v1652, 7
  %v1654 = vsub.s32 4, %v1653
  %v1655 = vrot.slane %v1634, %v1654
  %v1656 = vlaneseq
  %v1657 = vshrl.u32 %v1656, 7
  %v1658 = vsub.s32 5, %v1657
  %v1659 = vrot.slane %v1634, %v1658
  %v1660 = vlaneseq
  %v1661 = vshrl.u32 %v1660, 7
  %v1662 = vsub.s32 6, %v1661
  %v1663 = vrot.slane %v1634, %v1662
  %v1664 = vlaneseq
  %v1665 = vshrl.u32 %v1664, 7
  %v1666 = vsub.s32 7, %v1665
  %v1667 = vrot.slane %v1634, %v1666
  %v1689 = vunpack.c.l.b16 %v21
  %v1690 = vunpack.c.h.b16 %v21
  %v1691 = vunpack.c.l.b16 %v22
  %v1692 = vunpack.c.h.b16 %v22
  %v1693 = vunpack.c.l.b16 %v23
  %v1694 = vunpack.c.h.b16 %v23
  %v1695 = vunpack.c.l.b16 %v24
  %v1696 = vunpack.c.h.b16 %v24
  %v1697 = vunpack.c.l.b16 %v25
  %v1698 = vunpack.c.h.b16 %v25
  %v1699 = vunpack.c.l.b16 %v26
  %v1700 = vunpack.c.h.b16 %v26
  %v1701 = vunpack.c.l.b16 %v27
  %v1702 = vunpack.c.h.b16 %v27
  %v1703 = vunpack.c.l.b16 %v28
  %v1704 = vunpack.c.h.b16 %v28
  %v1705 = vunpack.c.l.b16 %v29
  %v1706 = vunpack.c.h.b16 %v29
  %v1707 = vunpack.c.l.b16 %v30
  %v1708 = vunpack.c.h.b16 %v30
  %v1709 = vunpack.c.l.b16 %v31
  %v1710 = vunpack.c.h.b16 %v31
  %v1711 = vunpack.c.l.b16 %v32
  %v1712 = vunpack.c.h.b16 %v32
  %v1713 = vunpack.c.l.b16 %v33
  %v1714 = vpack.c.b16 %v1689, %v1689
  %v1715 = vpack.c.b16 %v1690, %v1690
  %v1716 = vpack.c.b16 %v1691, %v1691
  %v1717 = vpack.c.b16 %v1692, %v1692
  %v1718 = vpack.c.b16 %v1693, %v1693
  %v1719 = vpack.c.b16 %v1694, %v1694
  %v1720 = vpack.c.b16 %v1695, %v1695
  %v1721 = vpack.c.b16 %v1696, %v1696
  %v1722 = vpack.c.b16 %v1697, %v1697
  %v1723 = vpack.c.b16 %v1698, %v1698
  %v1724 = vpack.c.b16 %v1699, %v1699
  %v1725 = vpack.c.b16 %v1700, %v1700
  %v1726 = vpack.c.b16 %v1701, %v1701
  %v1727 = vpack.c.b16 %v1702, %v1702
  %v1728 = vpack.c.b16 %v1703, %v1703
  %v1729 = vpack.c.b16 %v1704, %v1704
  %v1730 = vpack.c.b16 %v1705, %v1705
  %v1731 = vpack.c.b16 %v1706, %v1706
  %v1732 = vpack.c.b16 %v1707, %v1707
  %v1733 = vpack.c.b16 %v1708, %v1708
  %v1734 = vpack.c.b16 %v1709, %v1709
  %v1735 = vpack.c.b16 %v1710, %v1710
  %v1736 = vpack.c.b16 %v1711, %v1711
  %v1737 = vpack.c.b16 %v1712, %v1712
  %v1738 = vpack.c.b16 %v1713, %v1713
  %v3364 = vunpack.c.l.b16 %v34
  %v3365 = vunpack.c.h.b16 %v34
  %v3366 = vunpack.c.l.b16 %v35
  %v3367 = vunpack.c.h.b16 %v35
  %v3368 = vunpack.c.l.b16 %v36
  %v3369 = vunpack.c.h.b16 %v36
  %v3370 = vunpack.c.l.b16 %v37
  %v3371 = vunpack.c.h.b16 %v37
  %v3372 = vunpack.c.l.b16 %v38
  %v3373 = vunpack.c.h.b16 %v38
  %v3374 = vunpack.c.l.b16 %v39
  %v3375 = vunpack.c.h.b16 %v39
  %v3376 = vunpack.c.l.b16 %v40
  %v3377 = vunpack.c.h.b16 %v40
  %v3378 = vunpack.c.l.b16 %v41
  %v3379 = vunpack.c.h.b16 %v41
  %v3380 = vunpack.c.l.b16 %v42
  %v3381 = vunpack.c.h.b16 %v42
  %v3382 = vunpack.c.l.b16 %v43
  %v3383 = vunpack.c.h.b16 %v43
  %v3384 = vunpack.c.l.b16 %v44
  %v3385 = vunpack.c.h.b16 %v44
  %v3386 = vunpack.c.l.b16 %v45
  %v3387 = vunpack.c.h.b16 %v45
  %v3388 = vunpack.c.l.b16 %v46
  %v3389 = vunpack.c.h.b16 %v46
  %v3390 = vunpack.c.l.b16 %v47
  %v3391 = vunpack.c.h.b16 %v47
  %v3392 = vunpack.c.l.b16 %v48
  %v3393 = vunpack.c.h.b16 %v48
  %v3394 = vunpack.c.l.b16 %v49
  %v3395 = vunpack.c.h.b16 %v49
  %v3396 = vunpack.c.l.b16 %v50
  %v3397 = vunpack.c.h.b16 %v50
  %v3398 = vunpack.c.l.b16 %v51
  %v3399 = vunpack.c.h.b16 %v51
  %v3400 = vunpack.c.l.b16 %v52
  %v3401 = vunpack.c.h.b16 %v52
  %v3402 = vunpack.c.l.b16 %v53
  %v3403 = vunpack.c.h.b16 %v53
  %v3404 = vunpack.c.l.b16 %v54
  %v3405 = vunpack.c.h.b16 %v54
  %v3406 = vunpack.c.l.b16 %v55
  %v3407 = vunpack.c.h.b16 %v55
  %v3408 = vunpack.c.l.b16 %v56
  %v3409 = vunpack.c.h.b16 %v56
  %v3410 = vunpack.c.l.b16 %v57
  %v3411 = vunpack.c.h.b16 %v57
  %v3412 = vunpack.c.l.b16 %v58
  %v3413 = vunpack.c.h.b16 %v58
  %v3414 = vunpack.c.l.b16 %v59
  %v3415 = vunpack.c.h.b16 %v59
  %v3416 = vunpack.c.l.b16 %v60
  %v3417 = vunpack.c.h.b16 %v60
  %v3418 = vunpack.c.l.b16 %v61
  %v3419 = vunpack.c.h.b16 %v61
  %v3420 = vunpack.c.l.b16 %v62
  %v3421 = vunpack.c.h.b16 %v62
  %v3422 = vunpack.c.l.b16 %v63
  %v3423 = vunpack.c.h.b16 %v63
  %v3424 = vunpack.c.l.b16 %v64
  %v3425 = vunpack.c.h.b16 %v64
  %v3426 = vunpack.c.l.b16 %v65
  %v3427 = vunpack.c.h.b16 %v65
  %v3428 = vunpack.c.l.b16 %v66
  %v3429 = vunpack.c.h.b16 %v66
  %v3430 = vunpack.c.l.b16 %v67
  %v3431 = vunpack.c.h.b16 %v67
  %v3432 = vunpack.c.l.b16 %v68
  %v3433 = vunpack.c.h.b16 %v68
  %v3434 = vunpack.c.l.b16 %v69
  %v3435 = vunpack.c.h.b16 %v69
  %v3436 = vunpack.c.l.b16 %v70
  %v3437 = vunpack.c.h.b16 %v70
  %v3438 = vunpack.c.l.b16 %v71
  %v3439 = vunpack.c.h.b16 %v71
  %v3440 = vunpack.c.l.b16 %v72
  %v3441 = vunpack.c.h.b16 %v72
  %v3442 = vunpack.c.l.b16 %v73
  %v3443 = vunpack.c.h.b16 %v73
  %v3444 = vunpack.c.l.b16 %v74
  %v3445 = vunpack.c.h.b16 %v74
  %v3446 = vunpack.c.l.b16 %v75
  %v3447 = vunpack.c.h.b16 %v75
  %v3448 = vunpack.c.l.b16 %v76
  %v3449 = vunpack.c.h.b16 %v76
  %v3450 = vunpack.c.l.b16 %v77
  %v3451 = vunpack.c.h.b16 %v77
  %v3452 = vunpack.c.l.b16 %v78
  %v3453 = vunpack.c.h.b16 %v78
  %v3454 = vunpack.c.l.b16 %v79
  %v3455 = vunpack.c.h.b16 %v79
  %v3456 = vunpack.c.l.b16 %v80
  %v3457 = vunpack.c.h.b16 %v80
  %v3458 = vunpack.c.l.b16 %v81
  %v3459 = vunpack.c.h.b16 %v81
  %v3460 = vunpack.c.l.b16 %v82
  %v3461 = vunpack.c.h.b16 %v82
  %v3462 = vunpack.c.l.b16 %v83
  %v3463 = vunpack.c.h.b16 %v83
  %v3464 = vunpack.c.l.b16 %v84
  %v3465 = vunpack.c.h.b16 %v84
  %v3466 = vunpack.c.l.b16 %v85
  %v3467 = vunpack.c.h.b16 %v85
  %v3468 = vunpack.c.l.b16 %v86
  %v3469 = vunpack.c.h.b16 %v86
  %v3470 = vunpack.c.l.b16 %v87
  %v3471 = vunpack.c.h.b16 %v87
  %v3472 = vunpack.c.l.b16 %v88
  %v3473 = vunpack.c.h.b16 %v88
  %v3474 = vunpack.c.l.b16 %v89
  %v3475 = vunpack.c.h.b16 %v89
  %v3476 = vunpack.c.l.b16 %v90
  %v3477 = vunpack.c.h.b16 %v90
  %v3478 = vunpack.c.l.b16 %v91
  %v3479 = vunpack.c.h.b16 %v91
  %v3480 = vunpack.c.l.b16 %v92
  %v3481 = vunpack.c.h.b16 %v92
  %v3482 = vunpack.c.l.b16 %v93
  %v3483 = vunpack.c.h.b16 %v93
  %v3484 = vunpack.c.l.b16 %v94
  %v3485 = vunpack.c.h.b16 %v94
  %v3486 = vunpack.c.l.b16 %v95
  %v3487 = vunpack.c.h.b16 %v95
  %v3488 = vunpack.c.l.b16 %v96
  %v3489 = vunpack.c.h.b16 %v96
  %v3490 = vunpack.c.l.b16 %v97
  %v3491 = vunpack.c.h.b16 %v97
  %v3492 = vunpack.c.l.b16 %v98
  %v3493 = vunpack.c.h.b16 %v98
  %v3494 = vunpack.c.l.b16 %v99
  %v3495 = vunpack.c.h.b16 %v99
  %v3496 = vunpack.c.l.b16 %v100
  %v3497 = vunpack.c.h.b16 %v100
  %v3498 = vunpack.c.l.b16 %v101
  %v3499 = vunpack.c.h.b16 %v101
  %v3500 = vunpack.c.l.b16 %v102
  %v3501 = vunpack.c.h.b16 %v102
  %v3502 = vunpack.c.l.b16 %v103
  %v3503 = vunpack.c.h.b16 %v103
  %v3504 = vunpack.c.l.b16 %v104
  %v3505 = vunpack.c.h.b16 %v104
  %v3506 = vunpack.c.l.b16 %v105
  %v3507 = vunpack.c.h.b16 %v105
  %v3508 = vunpack.c.l.b16 %v106
  %v3509 = vunpack.c.h.b16 %v106
  %v3510 = vunpack.c.l.b16 %v107
  %v3511 = vunpack.c.h.b16 %v107
  %v3512 = vunpack.c.l.b16 %v108
  %v3513 = vunpack.c.h.b16 %v108
  %v3514 = vunpack.c.l.b16 %v109
  %v3515 = vunpack.c.h.b16 %v109
  %v3516 = vunpack.c.l.b16 %v110
  %v3517 = vunpack.c.h.b16 %v110
  %v3518 = vunpack.c.l.b16 %v111
  %v3519 = vunpack.c.h.b16 %v111
  %v3520 = vunpack.c.l.b16 %v112
  %v3521 = vunpack.c.h.b16 %v112
  %v3522 = vunpack.c.l.b16 %v113
  %v3523 = vunpack.c.h.b16 %v113
  %v3524 = vunpack.c.l.b16 %v114
  %v3525 = vunpack.c.h.b16 %v114
  %v3526 = vunpack.c.l.b16 %v115
  %v3527 = vunpack.c.h.b16 %v115
  %v3528 = vunpack.c.l.b16 %v116
  %v3529 = vunpack.c.h.b16 %v116
  %v3530 = vunpack.c.l.b16 %v117
  %v3531 = vunpack.c.h.b16 %v117
  %v3532 = vunpack.c.l.b16 %v118
  %v3533 = vunpack.c.h.b16 %v118
  %v3534 = vunpack.c.l.b16 %v119
  %v3535 = vunpack.c.h.b16 %v119
  %v3536 = vunpack.c.l.b16 %v120
  %v3537 = vunpack.c.h.b16 %v120
  %v3538 = vunpack.c.l.b16 %v121
  %v3539 = vunpack.c.h.b16 %v121
  %v3540 = vunpack.c.l.b16 %v122
  %v3541 = vunpack.c.h.b16 %v122
  %v3542 = vunpack.c.l.b16 %v123
  %v3543 = vunpack.c.h.b16 %v123
  %v3544 = vunpack.c.l.b16 %v124
  %v3545 = vunpack.c.h.b16 %v124
  %v3546 = vunpack.c.l.b16 %v125
  %v3547 = vunpack.c.h.b16 %v125
  %v3548 = vunpack.c.l.b16 %v126
  %v3549 = vunpack.c.h.b16 %v126
  %v3550 = vunpack.c.l.b16 %v127
  %v3551 = vunpack.c.h.b16 %v127
  %v3552 = vunpack.c.l.b16 %v128
  %v3553 = vunpack.c.h.b16 %v128
  %v3554 = vunpack.c.l.b16 %v129
  %v3555 = vunpack.c.h.b16 %v129
  %v3556 = vunpack.c.l.b16 %v130
  %v3557 = vunpack.c.h.b16 %v130
  %v3558 = vunpack.c.l.b16 %v131
  %v3559 = vunpack.c.h.b16 %v131
  %v3560 = vunpack.c.l.b16 %v132
  %v3561 = vunpack.c.h.b16 %v132
  %v3562 = vunpack.c.l.b16 %v133
  %v3563 = vunpack.c.h.b16 %v133
  %v3564 = vunpack.c.l.b16 %v134
  %v3565 = vunpack.c.h.b16 %v134
  %v3566 = vunpack.c.l.b16 %v135
  %v3567 = vunpack.c.h.b16 %v135
  %v3568 = vunpack.c.l.b16 %v136
  %v3569 = vunpack.c.h.b16 %v136
  %v3570 = vunpack.c.l.b16 %v137
  %v3571 = vunpack.c.h.b16 %v137
  %v3572 = vunpack.c.l.b16 %v138
  %v3573 = vunpack.c.h.b16 %v138
  %v3574 = vunpack.c.l.b16 %v139
  %v3575 = vunpack.c.h.b16 %v139
  %v3576 = vunpack.c.l.b16 %v140
  %v3577 = vunpack.c.h.b16 %v140
  %v3578 = vunpack.c.l.b16 %v141
  %v3579 = vunpack.c.h.b16 %v141
  %v3580 = vunpack.c.l.b16 %v142
  %v3581 = vunpack.c.h.b16 %v142
  %v3582 = vunpack.c.l.b16 %v143
  %v3583 = vunpack.c.h.b16 %v143
  %v3584 = vunpack.c.l.b16 %v144
  %v3585 = vunpack.c.h.b16 %v144
  %v3586 = vunpack.c.l.b16 %v145
  %v3587 = vunpack.c.h.b16 %v145
  %v3588 = vunpack.c.l.b16 %v146
  %v3589 = vunpack.c.h.b16 %v146
  %v3590 = vunpack.c.l.b16 %v147
  %v3591 = vunpack.c.h.b16 %v147
  %v3592 = vunpack.c.l.b16 %v148
  %v3593 = vunpack.c.h.b16 %v148
  %v3594 = vunpack.c.l.b16 %v149
  %v3595 = vunpack.c.h.b16 %v149
  %v3596 = vunpack.c.l.b16 %v150
  %v3597 = vunpack.c.h.b16 %v150
  %v3598 = vunpack.c.l.b16 %v151
  %v3599 = vunpack.c.h.b16 %v151
  %v3600 = vunpack.c.l.b16 %v152
  %v3601 = vunpack.c.h.b16 %v152
  %v3602 = vunpack.c.l.b16 %v153
  %v3603 = vunpack.c.h.b16 %v153
  %v3604 = vunpack.c.l.b16 %v154
  %v3605 = vunpack.c.h.b16 %v154
  %v3606 = vunpack.c.l.b16 %v155
  %v3607 = vunpack.c.h.b16 %v155
  %v3608 = vunpack.c.l.b16 %v156
  %v3609 = vunpack.c.h.b16 %v156
  %v3610 = vunpack.c.l.b16 %v157
  %v3611 = vunpack.c.h.b16 %v157
  %v3612 = vunpack.c.l.b16 %v158
  %v3613 = vunpack.c.h.b16 %v158
  %v3614 = vunpack.c.l.b16 %v159
  %v3615 = vunpack.c.h.b16 %v159
  %v3616 = vunpack.c.l.b16 %v160
  %v3617 = vunpack.c.h.b16 %v160
  %v3618 = vunpack.c.l.b16 %v161
  %v3619 = vunpack.c.h.b16 %v161
  %v3620 = vunpack.c.l.b16 %v162
  %v3621 = vunpack.c.h.b16 %v162
  %v3622 = vunpack.c.l.b16 %v163
  %v3623 = vunpack.c.h.b16 %v163
  %v3624 = vunpack.c.l.b16 %v164
  %v3625 = vunpack.c.h.b16 %v164
  %v3626 = vunpack.c.l.b16 %v165
  %v3627 = vunpack.c.h.b16 %v165
  %v3628 = vunpack.c.l.b16 %v166
  %v3629 = vunpack.c.h.b16 %v166
  %v3630 = vunpack.c.l.b16 %v167
  %v3631 = vunpack.c.h.b16 %v167
  %v3632 = vunpack.c.l.b16 %v168
  %v3633 = vunpack.c.h.b16 %v168
  %v3634 = vunpack.c.l.b16 %v169
  %v3635 = vunpack.c.h.b16 %v169
  %v3636 = vunpack.c.l.b16 %v170
  %v3637 = vunpack.c.h.b16 %v170
  %v3638 = vunpack.c.l.b16 %v171
  %v3639 = vunpack.c.h.b16 %v171
  %v3640 = vunpack.c.l.b16 %v172
  %v3641 = vunpack.c.h.b16 %v172
  %v3642 = vunpack.c.l.b16 %v173
  %v3643 = vunpack.c.h.b16 %v173
  %v3644 = vunpack.c.l.b16 %v174
  %v3645 = vunpack.c.h.b16 %v174
  %v3646 = vunpack.c.l.b16 %v175
  %v3647 = vunpack.c.h.b16 %v175
  %v3648 = vunpack.c.l.b16 %v176
  %v3649 = vunpack.c.h.b16 %v176
  %v3650 = vunpack.c.l.b16 %v177
  %v3651 = vunpack.c.h.b16 %v177
  %v3652 = vunpack.c.l.b16 %v178
  %v3653 = vunpack.c.h.b16 %v178
  %v3654 = vunpack.c.l.b16 %v179
  %v3655 = vunpack.c.h.b16 %v179
  %v3656 = vunpack.c.l.b16 %v180
  %v3657 = vunpack.c.h.b16 %v180
  %v3658 = vunpack.c.l.b16 %v181
  %v3659 = vunpack.c.h.b16 %v181
  %v3660 = vunpack.c.l.b16 %v182
  %v3661 = vunpack.c.h.b16 %v182
  %v3662 = vunpack.c.l.b16 %v183
  %v3663 = vunpack.c.h.b16 %v183
  %v3664 = vunpack.c.l.b16 %v184
  %v3665 = vunpack.c.h.b16 %v184
  %v3666 = vunpack.c.l.b16 %v185
  %v3667 = vunpack.c.h.b16 %v185
  %v3668 = vunpack.c.l.b16 %v186
  %v3669 = vunpack.c.h.b16 %v186
  %v3670 = vunpack.c.l.b16 %v187
  %v3671 = vunpack.c.h.b16 %v187
  %v3672 = vunpack.c.l.b16 %v188
  %v3673 = vunpack.c.h.b16 %v188
  %v3674 = vunpack.c.l.b16 %v189
  %v3675 = vunpack.c.h.b16 %v189
  %v3676 = vunpack.c.l.b16 %v190
  %v3677 = vunpack.c.h.b16 %v190
  %v3678 = vunpack.c.l.b16 %v191
  %v3679 = vunpack.c.h.b16 %v191
  %v3680 = vunpack.c.l.b16 %v192
  %v3681 = vunpack.c.h.b16 %v192
  %v3682 = vunpack.c.l.b16 %v193
  %v3683 = vunpack.c.h.b16 %v193
  %v3684 = vunpack.c.l.b16 %v194
  %v3685 = vunpack.c.h.b16 %v194
  %v3686 = vunpack.c.l.b16 %v195
  %v3687 = vunpack.c.h.b16 %v195
  %v3688 = vunpack.c.l.b16 %v196
  %v3689 = vunpack.c.h.b16 %v196
  %v3690 = vunpack.c.l.b16 %v197
  %v3691 = vunpack.c.h.b16 %v197
  %v3692 = vunpack.c.l.b16 %v198
  %v3693 = vunpack.c.h.b16 %v198
  %v3694 = vunpack.c.l.b16 %v199
  %v3695 = vunpack.c.h.b16 %v199
  %v3696 = vunpack.c.l.b16 %v200
  %v3697 = vunpack.c.h.b16 %v200
  %v3698 = vunpack.c.l.b16 %v201
  %v3699 = vunpack.c.h.b16 %v201
  %v3700 = vunpack.c.l.b16 %v202
  %v3701 = vunpack.c.h.b16 %v202
  %v3702 = vunpack.c.l.b16 %v203
  %v3703 = vunpack.c.h.b16 %v203
  %v3704 = vunpack.c.l.b16 %v204
  %v3705 = vunpack.c.h.b16 %v204
  %v3706 = vunpack.c.l.b16 %v205
  %v3707 = vunpack.c.h.b16 %v205
  %v3708 = vunpack.c.l.b16 %v206
  %v3709 = vunpack.c.h.b16 %v206
  %v3710 = vunpack.c.l.b16 %v207
  %v3711 = vunpack.c.h.b16 %v207
  %v3712 = vunpack.c.l.b16 %v208
  %v3713 = vunpack.c.h.b16 %v208
  %v3714 = vunpack.c.l.b16 %v209
  %v3715 = vunpack.c.h.b16 %v209
  %v3716 = vunpack.c.l.b16 %v210
  %v3717 = vunpack.c.h.b16 %v210
  %v3718 = vunpack.c.l.b16 %v211
  %v3719 = vunpack.c.h.b16 %v211
  %v3720 = vunpack.c.l.b16 %v212
  %v3721 = vunpack.c.h.b16 %v212
  %v3722 = vunpack.c.l.b16 %v213
  %v3723 = vunpack.c.h.b16 %v213
  %v3724 = vunpack.c.l.b16 %v214
  %v3725 = vunpack.c.h.b16 %v214
  %v3726 = vunpack.c.l.b16 %v215
  %v3727 = vunpack.c.h.b16 %v215
  %v3728 = vunpack.c.l.b16 %v216
  %v3729 = vunpack.c.h.b16 %v216
  %v3730 = vunpack.c.l.b16 %v217
  %v3731 = vunpack.c.h.b16 %v217
  %v3732 = vunpack.c.l.b16 %v218
  %v3733 = vunpack.c.h.b16 %v218
  %v3734 = vunpack.c.l.b16 %v219
  %v3735 = vunpack.c.h.b16 %v219
  %v3736 = vunpack.c.l.b16 %v220
  %v3737 = vunpack.c.h.b16 %v220
  %v3738 = vunpack.c.l.b16 %v221
  %v3739 = vunpack.c.h.b16 %v221
  %v3740 = vunpack.c.l.b16 %v222
  %v3741 = vunpack.c.h.b16 %v222
  %v3742 = vunpack.c.l.b16 %v223
  %v3743 = vunpack.c.h.b16 %v223
  %v3744 = vunpack.c.l.b16 %v224
  %v3745 = vunpack.c.h.b16 %v224
  %v3746 = vunpack.c.l.b16 %v225
  %v3747 = vunpack.c.h.b16 %v225
  %v3748 = vunpack.c.l.b16 %v226
  %v3749 = vunpack.c.h.b16 %v226
  %v3750 = vunpack.c.l.b16 %v227
  %v3751 = vunpack.c.h.b16 %v227
  %v3752 = vunpack.c.l.b16 %v228
  %v3753 = vunpack.c.h.b16 %v228
  %v3754 = vunpack.c.l.b16 %v229
  %v3755 = vunpack.c.h.b16 %v229
  %v3756 = vunpack.c.l.b16 %v230
  %v3757 = vunpack.c.h.b16 %v230
  %v3758 = vunpack.c.l.b16 %v231
  %v3759 = vunpack.c.h.b16 %v231
  %v3760 = vunpack.c.l.b16 %v232
  %v3761 = vunpack.c.h.b16 %v232
  %v3762 = vunpack.c.l.b16 %v233
  %v3763 = vunpack.c.h.b16 %v233
  %v3764 = vunpack.c.l.b16 %v234
  %v3765 = vunpack.c.h.b16 %v234
  %v3766 = vunpack.c.l.b16 %v235
  %v3767 = vunpack.c.h.b16 %v235
  %v3768 = vunpack.c.l.b16 %v236
  %v3769 = vunpack.c.h.b16 %v236
  %v3770 = vunpack.c.l.b16 %v237
  %v3771 = vunpack.c.h.b16 %v237
  %v3772 = vunpack.c.l.b16 %v238
  %v3773 = vunpack.c.h.b16 %v238
  %v3774 = vunpack.c.l.b16 %v239
  %v3775 = vunpack.c.h.b16 %v239
  %v3776 = vunpack.c.l.b16 %v240
  %v3777 = vunpack.c.h.b16 %v240
  %v3778 = vunpack.c.l.b16 %v241
  %v3779 = vunpack.c.h.b16 %v241
  %v3780 = vunpack.c.l.b16 %v242
  %v3781 = vunpack.c.h.b16 %v242
  %v3782 = vunpack.c.l.b16 %v243
  %v3783 = vunpack.c.h.b16 %v243
  %v3784 = vunpack.c.l.b16 %v244
  %v3785 = vunpack.c.h.b16 %v244
  %v3786 = vunpack.c.l.b16 %v245
  %v3787 = vunpack.c.h.b16 %v245
  %v3788 = vunpack.c.l.b16 %v246
  %v3789 = vunpack.c.h.b16 %v246
  %v3790 = vunpack.c.l.b16 %v247
  %v3791 = vunpack.c.h.b16 %v247
  %v3792 = vunpack.c.l.b16 %v248
  %v3793 = vunpack.c.h.b16 %v248
  %v3794 = vunpack.c.l.b16 %v249
  %v3795 = vunpack.c.h.b16 %v249
  %v3796 = vunpack.c.l.b16 %v250
  %v3797 = vunpack.c.h.b16 %v250
  %v3798 = vunpack.c.l.b16 %v251
  %v3799 = vunpack.c.h.b16 %v251
  %v3800 = vunpack.c.l.b16 %v252
  %v3801 = vunpack.c.h.b16 %v252
  %v3802 = vunpack.c.l.b16 %v253
  %v3803 = vunpack.c.h.b16 %v253
  %v3804 = vunpack.c.l.b16 %v254
  %v3805 = vunpack.c.h.b16 %v254
  %v3806 = vunpack.c.l.b16 %v255
  %v3807 = vunpack.c.h.b16 %v255
  %v3808 = vunpack.c.l.b16 %v256
  %v3809 = vunpack.c.h.b16 %v256
  %v3810 = vunpack.c.l.b16 %v257
  %v3811 = vunpack.c.h.b16 %v257
  %v3812 = vunpack.c.l.b16 %v258
  %v3813 = vunpack.c.h.b16 %v258
  %v3814 = vunpack.c.l.b16 %v259
  %v3815 = vunpack.c.h.b16 %v259
  %v3816 = vunpack.c.l.b16 %v260
  %v3817 = vunpack.c.h.b16 %v260
  %v3818 = vunpack.c.l.b16 %v261
  %v3819 = vunpack.c.h.b16 %v261
  %v3820 = vunpack.c.l.b16 %v262
  %v3821 = vunpack.c.h.b16 %v262
  %v3822 = vunpack.c.l.b16 %v263
  %v3823 = vunpack.c.h.b16 %v263
  %v3824 = vunpack.c.l.b16 %v264
  %v3825 = vunpack.c.h.b16 %v264
  %v3826 = vunpack.c.l.b16 %v265
  %v3827 = vunpack.c.h.b16 %v265
  %v3828 = vunpack.c.l.b16 %v266
  %v3829 = vunpack.c.h.b16 %v266
  %v3830 = vunpack.c.l.b16 %v267
  %v3831 = vunpack.c.h.b16 %v267
  %v3832 = vunpack.c.l.b16 %v268
  %v3833 = vunpack.c.h.b16 %v268
  %v3834 = vunpack.c.l.b16 %v269
  %v3835 = vunpack.c.h.b16 %v269
  %v3836 = vunpack.c.l.b16 %v270
  %v3837 = vunpack.c.h.b16 %v270
  %v3838 = vunpack.c.l.b16 %v271
  %v3839 = vunpack.c.h.b16 %v271
  %v3840 = vunpack.c.l.b16 %v272
  %v3841 = vunpack.c.h.b16 %v272
  %v3842 = vunpack.c.l.b16 %v273
  %v3843 = vunpack.c.h.b16 %v273
  %v3844 = vunpack.c.l.b16 %v274
  %v3845 = vunpack.c.h.b16 %v274
  %v3846 = vunpack.c.l.b16 %v275
  %v3847 = vunpack.c.h.b16 %v275
  %v3848 = vunpack.c.l.b16 %v276
  %v3849 = vunpack.c.h.b16 %v276
  %v3850 = vunpack.c.l.b16 %v277
  %v3851 = vunpack.c.h.b16 %v277
  %v3852 = vunpack.c.l.b16 %v278
  %v3853 = vunpack.c.h.b16 %v278
  %v3854 = vunpack.c.l.b16 %v279
  %v3855 = vunpack.c.h.b16 %v279
  %v3856 = vunpack.c.l.b16 %v280
  %v3857 = vunpack.c.h.b16 %v280
  %v3858 = vunpack.c.l.b16 %v281
  %v3859 = vunpack.c.h.b16 %v281
  %v3860 = vunpack.c.l.b16 %v282
  %v3861 = vunpack.c.h.b16 %v282
  %v3862 = vunpack.c.l.b16 %v283
  %v3863 = vunpack.c.h.b16 %v283
  %v3864 = vunpack.c.l.b16 %v284
  %v3865 = vunpack.c.h.b16 %v284
  %v3866 = vunpack.c.l.b16 %v285
  %v3867 = vunpack.c.h.b16 %v285
  %v3868 = vunpack.c.l.b16 %v286
  %v3869 = vunpack.c.h.b16 %v286
  %v3870 = vunpack.c.l.b16 %v287
  %v3871 = vunpack.c.h.b16 %v287
  %v3872 = vunpack.c.l.b16 %v288
  %v3873 = vunpack.c.h.b16 %v288
  %v3874 = vunpack.c.l.b16 %v289
  %v3875 = vunpack.c.h.b16 %v289
  %v3876 = vunpack.c.l.b16 %v290
  %v3877 = vunpack.c.h.b16 %v290
  %v3878 = vunpack.c.l.b16 %v291
  %v3879 = vunpack.c.h.b16 %v291
  %v3880 = vunpack.c.l.b16 %v292
  %v3881 = vunpack.c.h.b16 %v292
  %v3882 = vunpack.c.l.b16 %v293
  %v3883 = vunpack.c.h.b16 %v293
  %v3884 = vunpack.c.l.b16 %v294
  %v3885 = vunpack.c.h.b16 %v294
  %v3886 = vunpack.c.l.b16 %v295
  %v3887 = vunpack.c.h.b16 %v295
  %v3888 = vunpack.c.l.b16 %v296
  %v3889 = vunpack.c.h.b16 %v296
  %v3890 = vunpack.c.l.b16 %v297
  %v3891 = vunpack.c.h.b16 %v297
  %v3892 = vunpack.c.l.b16 %v298
  %v3893 = vunpack.c.h.b16 %v298
  %v3894 = vunpack.c.l.b16 %v299
  %v3895 = vunpack.c.h.b16 %v299
  %v3896 = vunpack.c.l.b16 %v300
  %v3897 = vunpack.c.h.b16 %v300
  %v3898 = vunpack.c.l.b16 %v301
  %v3899 = vunpack.c.h.b16 %v301
  %v3900 = vunpack.c.l.b16 %v302
  %v3901 = vunpack.c.h.b16 %v302
  %v3902 = vunpack.c.l.b16 %v303
  %v3903 = vunpack.c.h.b16 %v303
  %v3904 = vunpack.c.l.b16 %v304
  %v3905 = vunpack.c.h.b16 %v304
  %v3906 = vunpack.c.l.b16 %v305
  %v3907 = vunpack.c.h.b16 %v305
  %v3908 = vunpack.c.l.b16 %v306
  %v3909 = vunpack.c.h.b16 %v306
  %v3910 = vunpack.c.l.b16 %v307
  %v3911 = vunpack.c.h.b16 %v307
  %v3912 = vunpack.c.l.b16 %v308
  %v3913 = vunpack.c.h.b16 %v308
  %v3914 = vunpack.c.l.b16 %v309
  %v3915 = vunpack.c.h.b16 %v309
  %v3916 = vunpack.c.l.b16 %v310
  %v3917 = vunpack.c.h.b16 %v310
  %v3918 = vunpack.c.l.b16 %v311
  %v3919 = vunpack.c.h.b16 %v311
  %v3920 = vunpack.c.l.b16 %v312
  %v3921 = vunpack.c.h.b16 %v312
  %v3922 = vunpack.c.l.b16 %v313
  %v3923 = vunpack.c.h.b16 %v313
  %v3924 = vunpack.c.l.b16 %v314
  %v3925 = vunpack.c.h.b16 %v314
  %v3926 = vunpack.c.l.b16 %v315
  %v3927 = vunpack.c.h.b16 %v315
  %v3928 = vunpack.c.l.b16 %v316
  %v3929 = vunpack.c.h.b16 %v316
  %v3930 = vunpack.c.l.b16 %v317
  %v3931 = vunpack.c.h.b16 %v317
  %v3932 = vunpack.c.l.b16 %v318
  %v3933 = vunpack.c.h.b16 %v318
  %v3934 = vunpack.c.l.b16 %v319
  %v3935 = vunpack.c.h.b16 %v319
  %v3936 = vunpack.c.l.b16 %v320
  %v3937 = vunpack.c.h.b16 %v320
  %v3938 = vunpack.c.l.b16 %v321
  %v3939 = vunpack.c.h.b16 %v321
  %v3940 = vunpack.c.l.b16 %v322
  %v3941 = vunpack.c.h.b16 %v322
  %v3942 = vunpack.c.l.b16 %v323
  %v3943 = vunpack.c.h.b16 %v323
  %v3944 = vunpack.c.l.b16 %v324
  %v3945 = vunpack.c.h.b16 %v324
  %v3946 = vunpack.c.l.b16 %v325
  %v3947 = vunpack.c.h.b16 %v325
  %v3948 = vunpack.c.l.b16 %v326
  %v3949 = vunpack.c.h.b16 %v326
  %v3950 = vunpack.c.l.b16 %v327
  %v3951 = vunpack.c.h.b16 %v327
  %v3952 = vunpack.c.l.b16 %v328
  %v3953 = vunpack.c.h.b16 %v328
  %v3954 = vunpack.c.l.b16 %v329
  %v3955 = vunpack.c.h.b16 %v329
  %v3956 = vunpack.c.l.b16 %v330
  %v3957 = vunpack.c.h.b16 %v330
  %v3958 = vunpack.c.l.b16 %v331
  %v3959 = vunpack.c.h.b16 %v331
  %v3960 = vunpack.c.l.b16 %v332
  %v3961 = vunpack.c.h.b16 %v332
  %v3962 = vunpack.c.l.b16 %v333
  %v3963 = vunpack.c.h.b16 %v333
  %v3964 = vunpack.c.l.b16 %v334
  %v3965 = vunpack.c.h.b16 %v334
  %v3966 = vunpack.c.l.b16 %v335
  %v3967 = vunpack.c.h.b16 %v335
  %v3968 = vunpack.c.l.b16 %v336
  %v3969 = vunpack.c.h.b16 %v336
  %v3970 = vunpack.c.l.b16 %v337
  %v3971 = vunpack.c.h.b16 %v337
  %v3972 = vunpack.c.l.b16 %v338
  %v3973 = vunpack.c.h.b16 %v338
  %v3974 = vunpack.c.l.b16 %v339
  %v3975 = vunpack.c.h.b16 %v339
  %v3976 = vunpack.c.l.b16 %v340
  %v3977 = vunpack.c.h.b16 %v340
  %v3978 = vunpack.c.l.b16 %v341
  %v3979 = vunpack.c.h.b16 %v341
  %v3980 = vunpack.c.l.b16 %v342
  %v3981 = vunpack.c.h.b16 %v342
  %v3982 = vunpack.c.l.b16 %v343
  %v3983 = vunpack.c.h.b16 %v343
  %v3984 = vunpack.c.l.b16 %v344
  %v3985 = vunpack.c.h.b16 %v344
  %v3986 = vunpack.c.l.b16 %v345
  %v3987 = vunpack.c.h.b16 %v345
  %v3988 = vunpack.c.l.b16 %v346
  %v3989 = vunpack.c.h.b16 %v346
  %v3990 = vunpack.c.l.b16 %v347
  %v3991 = vunpack.c.h.b16 %v347
  %v3992 = vunpack.c.l.b16 %v348
  %v3993 = vunpack.c.h.b16 %v348
  %v3994 = vunpack.c.l.b16 %v349
  %v3995 = vunpack.c.h.b16 %v349
  %v3996 = vunpack.c.l.b16 %v350
  %v3997 = vunpack.c.h.b16 %v350
  %v3998 = vunpack.c.l.b16 %v351
  %v3999 = vunpack.c.h.b16 %v351
  %v4000 = vunpack.c.l.b16 %v352
  %v4001 = vunpack.c.h.b16 %v352
  %v4002 = vunpack.c.l.b16 %v353
  %v4003 = vunpack.c.h.b16 %v353
  %v4004 = vunpack.c.l.b16 %v354
  %v4005 = vunpack.c.h.b16 %v354
  %v4006 = vunpack.c.l.b16 %v355
  %v4007 = vunpack.c.h.b16 %v355
  %v4008 = vunpack.c.l.b16 %v356
  %v4009 = vunpack.c.h.b16 %v356
  %v4010 = vunpack.c.l.b16 %v357
  %v4011 = vunpack.c.h.b16 %v357
  %v4012 = vunpack.c.l.b16 %v358
  %v4013 = vunpack.c.h.b16 %v358
  %v4014 = vunpack.c.l.b16 %v359
  %v4015 = vunpack.c.h.b16 %v359
  %v4016 = vunpack.c.l.b16 %v360
  %v4017 = vunpack.c.h.b16 %v360
  %v4018 = vunpack.c.l.b16 %v361
  %v4019 = vunpack.c.h.b16 %v361
  %v4020 = vunpack.c.l.b16 %v362
  %v4021 = vunpack.c.h.b16 %v362
  %v4022 = vunpack.c.l.b16 %v363
  %v4023 = vunpack.c.h.b16 %v363
  %v4024 = vunpack.c.l.b16 %v364
  %v4025 = vunpack.c.h.b16 %v364
  %v4026 = vunpack.c.l.b16 %v365
  %v4027 = vunpack.c.h.b16 %v365
  %v4028 = vunpack.c.l.b16 %v366
  %v4029 = vunpack.c.h.b16 %v366
  %v4030 = vunpack.c.l.b16 %v367
  %v4031 = vunpack.c.h.b16 %v367
  %v4032 = vunpack.c.l.b16 %v368
  %v4033 = vunpack.c.h.b16 %v368
  %v4034 = vunpack.c.l.b16 %v369
  %v4035 = vunpack.c.h.b16 %v369
  %v4036 = vunpack.c.l.b16 %v370
  %v4037 = vunpack.c.h.b16 %v370
  %v4038 = vunpack.c.l.b16 %v371
  %v4039 = vunpack.c.h.b16 %v371
  %v4040 = vunpack.c.l.b16 %v372
  %v4041 = vunpack.c.h.b16 %v372
  %v4042 = vunpack.c.l.b16 %v373
  %v4043 = vunpack.c.h.b16 %v373
  %v4044 = vunpack.c.l.b16 %v374
  %v4045 = vunpack.c.h.b16 %v374
  %v4046 = vunpack.c.l.b16 %v375
  %v4047 = vunpack.c.h.b16 %v375
  %v4048 = vunpack.c.l.b16 %v376
  %v4049 = vunpack.c.h.b16 %v376
  %v4050 = vunpack.c.l.b16 %v377
  %v4051 = vunpack.c.h.b16 %v377
  %v4052 = vunpack.c.l.b16 %v378
  %v4053 = vunpack.c.h.b16 %v378
  %v4054 = vunpack.c.l.b16 %v379
  %v4055 = vunpack.c.h.b16 %v379
  %v4056 = vunpack.c.l.b16 %v380
  %v4057 = vunpack.c.h.b16 %v380
  %v4058 = vunpack.c.l.b16 %v381
  %v4059 = vunpack.c.h.b16 %v381
  %v4060 = vunpack.c.l.b16 %v382
  %v4061 = vunpack.c.h.b16 %v382
  %v4062 = vunpack.c.l.b16 %v383
  %v4063 = vunpack.c.h.b16 %v383
  %v4064 = vunpack.c.l.b16 %v384
  %v4065 = vunpack.c.h.b16 %v384
  %v4066 = vunpack.c.l.b16 %v385
  %v4067 = vunpack.c.h.b16 %v385
  %v4068 = vunpack.c.l.b16 %v386
  %v4069 = vunpack.c.h.b16 %v386
  %v4070 = vunpack.c.l.b16 %v387
  %v4071 = vunpack.c.h.b16 %v387
  %v4072 = vunpack.c.l.b16 %v388
  %v4073 = vunpack.c.h.b16 %v388
  %v4074 = vunpack.c.l.b16 %v389
  %v4075 = vunpack.c.h.b16 %v389
  %v4076 = vunpack.c.l.b16 %v390
  %v4077 = vunpack.c.h.b16 %v390
  %v4078 = vunpack.c.l.b16 %v391
  %v4079 = vunpack.c.h.b16 %v391
  %v4080 = vunpack.c.l.b16 %v392
  %v4081 = vunpack.c.h.b16 %v392
  %v4082 = vunpack.c.l.b16 %v393
  %v4083 = vunpack.c.h.b16 %v393
  %v4084 = vunpack.c.l.b16 %v394
  %v4085 = vunpack.c.h.b16 %v394
  %v4086 = vunpack.c.l.b16 %v395
  %v4087 = vunpack.c.h.b16 %v395
  %v4088 = vunpack.c.l.b16 %v396
  %v4089 = vunpack.c.h.b16 %v396
  %v4090 = vunpack.c.l.b16 %v397
  %v4091 = vunpack.c.h.b16 %v397
  %v4092 = vunpack.c.l.b16 %v398
  %v4093 = vunpack.c.h.b16 %v398
  %v4094 = vunpack.c.l.b16 %v399
  %v4095 = vunpack.c.h.b16 %v399
  %v4096 = vunpack.c.l.b16 %v400
  %v4097 = vunpack.c.h.b16 %v400
  %v4098 = vunpack.c.l.b16 %v401
  %v4099 = vunpack.c.h.b16 %v401
  %v4100 = vunpack.c.l.b16 %v402
  %v4101 = vunpack.c.h.b16 %v402
  %v4102 = vunpack.c.l.b16 %v403
  %v4103 = vunpack.c.h.b16 %v403
  %v4104 = vunpack.c.l.b16 %v404
  %v4105 = vunpack.c.h.b16 %v404
  %v4106 = vunpack.c.l.b16 %v405
  %v4107 = vunpack.c.h.b16 %v405
  %v4108 = vunpack.c.l.b16 %v406
  %v4109 = vunpack.c.h.b16 %v406
  %v4110 = vunpack.c.l.b16 %v407
  %v4111 = vunpack.c.h.b16 %v407
  %v4112 = vunpack.c.l.b16 %v408
  %v4113 = vunpack.c.h.b16 %v408
  %v4114 = vunpack.c.l.b16 %v409
  %v4115 = vunpack.c.h.b16 %v409
  %v4116 = vunpack.c.l.b16 %v410
  %v4117 = vunpack.c.h.b16 %v410
  %v4118 = vunpack.c.l.b16 %v411
  %v4119 = vunpack.c.h.b16 %v411
  %v4120 = vunpack.c.l.b16 %v412
  %v4121 = vunpack.c.h.b16 %v412
  %v4122 = vunpack.c.l.b16 %v413
  %v4123 = vunpack.c.h.b16 %v413
  %v4124 = vunpack.c.l.b16 %v414
  %v4125 = vunpack.c.h.b16 %v414
  %v4126 = vunpack.c.l.b16 %v415
  %v4127 = vunpack.c.h.b16 %v415
  %v4128 = vunpack.c.l.b16 %v416
  %v4129 = vunpack.c.h.b16 %v416
  %v4130 = vunpack.c.l.b16 %v417
  %v4131 = vunpack.c.h.b16 %v417
  %v4132 = vunpack.c.l.b16 %v418
  %v4133 = vunpack.c.h.b16 %v418
  %v4134 = vunpack.c.l.b16 %v419
  %v4135 = vunpack.c.h.b16 %v419
  %v4136 = vunpack.c.l.b16 %v420
  %v4137 = vunpack.c.h.b16 %v420
  %v4138 = vunpack.c.l.b16 %v421
  %v4139 = vunpack.c.h.b16 %v421
  %v4140 = vunpack.c.l.b16 %v422
  %v4141 = vunpack.c.h.b16 %v422
  %v4142 = vunpack.c.l.b16 %v423
  %v4143 = vunpack.c.h.b16 %v423
  %v4144 = vunpack.c.l.b16 %v424
  %v4145 = vunpack.c.h.b16 %v424
  %v4146 = vunpack.c.l.b16 %v425
  %v4147 = vunpack.c.h.b16 %v425
  %v4148 = vunpack.c.l.b16 %v426
  %v4149 = vunpack.c.h.b16 %v426
  %v4150 = vunpack.c.l.b16 %v427
  %v4151 = vunpack.c.h.b16 %v427
  %v4152 = vunpack.c.l.b16 %v428
  %v4153 = vunpack.c.h.b16 %v428
  %v4154 = vunpack.c.l.b16 %v429
  %v4155 = vunpack.c.h.b16 %v429
  %v4156 = vunpack.c.l.b16 %v430
  %v4157 = vunpack.c.h.b16 %v430
  %v4158 = vunpack.c.l.b16 %v431
  %v4159 = vunpack.c.h.b16 %v431
  %v4160 = vunpack.c.l.b16 %v432
  %v4161 = vunpack.c.h.b16 %v432
  %v4162 = vunpack.c.l.b16 %v433
  %v4163 = vunpack.c.h.b16 %v433
  %v4164 = vunpack.c.l.b16 %v434
  %v4165 = vunpack.c.h.b16 %v434
  %v4166 = vunpack.c.l.b16 %v435
  %v4167 = vunpack.c.h.b16 %v435
  %v4168 = vunpack.c.l.b16 %v436
  %v4169 = vunpack.c.h.b16 %v436
  %v4170 = vunpack.c.l.b16 %v437
  %v4171 = vunpack.c.h.b16 %v437
  %v4172 = vunpack.c.l.b16 %v438
  %v4173 = vunpack.c.h.b16 %v438
  %v4174 = vunpack.c.l.b16 %v439
  %v4175 = vunpack.c.h.b16 %v439
  %v4176 = vunpack.c.l.b16 %v440
  %v4177 = vunpack.c.h.b16 %v440
  %v4178 = vunpack.c.l.b16 %v441
  %v4179 = vunpack.c.h.b16 %v441
  %v4180 = vunpack.c.l.b16 %v442
  %v4181 = vunpack.c.h.b16 %v442
  %v4182 = vunpack.c.l.b16 %v443
  %v4183 = vunpack.c.h.b16 %v443
  %v4184 = vunpack.c.l.b16 %v444
  %v4185 = vunpack.c.h.b16 %v444
  %v4186 = vunpack.c.l.b16 %v445
  %v4187 = vunpack.c.h.b16 %v445
  %v4188 = vunpack.c.l.b16 %v446
  %v4189 = vunpack.c.h.b16 %v446
  %v4190 = vunpack.c.l.b16 %v447
  %v4191 = vunpack.c.h.b16 %v447
  %v4192 = vunpack.c.l.b16 %v448
  %v4193 = vunpack.c.h.b16 %v448
  %v4194 = vunpack.c.l.b16 %v449
  %v4195 = vunpack.c.h.b16 %v449
  %v4196 = vunpack.c.l.b16 %v450
  %v4197 = vunpack.c.h.b16 %v450
  %v4198 = vunpack.c.l.b16 %v451
  %v4199 = vunpack.c.h.b16 %v451
  %v4200 = vunpack.c.l.b16 %v452
  %v4201 = vunpack.c.h.b16 %v452
  %v4202 = vunpack.c.l.b16 %v453
  %v4203 = vunpack.c.h.b16 %v453
  %v4204 = vunpack.c.l.b16 %v454
  %v4205 = vunpack.c.h.b16 %v454
  %v4206 = vunpack.c.l.b16 %v455
  %v4207 = vunpack.c.h.b16 %v455
  %v4208 = vunpack.c.l.b16 %v456
  %v4209 = vunpack.c.h.b16 %v456
  %v4210 = vunpack.c.l.b16 %v457
  %v4211 = vunpack.c.h.b16 %v457
  %v4212 = vunpack.c.l.b16 %v458
  %v4213 = vunpack.c.h.b16 %v458
  %v4214 = vunpack.c.l.b16 %v459
  %v4215 = vunpack.c.h.b16 %v459
  %v4216 = vunpack.c.l.b16 %v460
  %v4217 = vunpack.c.h.b16 %v460
  %v4218 = vunpack.c.l.b16 %v461
  %v4219 = vunpack.c.h.b16 %v461
  %v4220 = vunpack.c.l.b16 %v462
  %v4221 = vunpack.c.h.b16 %v462
  %v4222 = vunpack.c.l.b16 %v463
  %v4223 = vunpack.c.h.b16 %v463
  %v4224 = vunpack.c.l.b16 %v464
  %v4225 = vunpack.c.h.b16 %v464
  %v4226 = vunpack.c.l.b16 %v465
  %v4227 = vunpack.c.h.b16 %v465
  %v4228 = vunpack.c.l.b16 %v466
  %v4229 = vunpack.c.h.b16 %v466
  %v4230 = vunpack.c.l.b16 %v467
  %v4231 = vunpack.c.h.b16 %v467
  %v4232 = vunpack.c.l.b16 %v468
  %v4233 = vunpack.c.h.b16 %v468
  %v4234 = vunpack.c.l.b16 %v469
  %v4235 = vunpack.c.h.b16 %v469
  %v4236 = vunpack.c.l.b16 %v470
  %v4237 = vunpack.c.h.b16 %v470
  %v4238 = vunpack.c.l.b16 %v471
  %v4239 = vunpack.c.h.b16 %v471
  %v4240 = vunpack.c.l.b16 %v472
  %v4241 = vunpack.c.h.b16 %v472
  %v4242 = vunpack.c.l.b16 %v473
  %v4243 = vunpack.c.h.b16 %v473
  %v4244 = vunpack.c.l.b16 %v474
  %v4245 = vunpack.c.h.b16 %v474
  %v4246 = vunpack.c.l.b16 %v475
  %v4247 = vunpack.c.h.b16 %v475
  %v4248 = vunpack.c.l.b16 %v476
  %v4249 = vunpack.c.h.b16 %v476
  %v4250 = vunpack.c.l.b16 %v477
  %v4251 = vunpack.c.h.b16 %v477
  %v4252 = vunpack.c.l.b16 %v478
  %v4253 = vunpack.c.h.b16 %v478
  %v4254 = vunpack.c.l.b16 %v479
  %v4255 = vunpack.c.h.b16 %v479
  %v4256 = vunpack.c.l.b16 %v480
  %v4257 = vunpack.c.h.b16 %v480
  %v4258 = vunpack.c.l.b16 %v481
  %v4259 = vunpack.c.h.b16 %v481
  %v4260 = vunpack.c.l.b16 %v482
  %v4261 = vunpack.c.h.b16 %v482
  %v4262 = vunpack.c.l.b16 %v483
  %v4263 = vunpack.c.h.b16 %v483
  %v4264 = vunpack.c.l.b16 %v484
  %v4265 = vunpack.c.h.b16 %v484
  %v4266 = vunpack.c.l.b16 %v485
  %v4267 = vunpack.c.h.b16 %v485
  %v4268 = vunpack.c.l.b16 %v486
  %v4269 = vunpack.c.h.b16 %v486
  %v4270 = vunpack.c.l.b16 %v487
  %v4271 = vunpack.c.h.b16 %v487
  %v4272 = vunpack.c.l.b16 %v488
  %v4273 = vunpack.c.h.b16 %v488
  %v4274 = vunpack.c.l.b16 %v489
  %v4275 = vunpack.c.h.b16 %v489
  %v4276 = vunpack.c.l.b16 %v490
  %v4277 = vunpack.c.h.b16 %v490
  %v4278 = vunpack.c.l.b16 %v491
  %v4279 = vunpack.c.h.b16 %v491
  %v4280 = vunpack.c.l.b16 %v492
  %v4281 = vunpack.c.h.b16 %v492
  %v4282 = vunpack.c.l.b16 %v493
  %v4283 = vunpack.c.h.b16 %v493
  %v4284 = vunpack.c.l.b16 %v494
  %v4285 = vunpack.c.h.b16 %v494
  %v4286 = vunpack.c.l.b16 %v495
  %v4287 = vunpack.c.h.b16 %v495
  %v4288 = vunpack.c.l.b16 %v496
  %v4289 = vunpack.c.h.b16 %v496
  %v4290 = vunpack.c.l.b16 %v497
  %v4291 = vunpack.c.h.b16 %v497
  %v4292 = vunpack.c.l.b16 %v498
  %v4293 = vunpack.c.h.b16 %v498
  %v4294 = vunpack.c.l.b16 %v499
  %v4295 = vunpack.c.h.b16 %v499
  %v4296 = vunpack.c.l.b16 %v500
  %v4297 = vunpack.c.h.b16 %v500
  %v4298 = vunpack.c.l.b16 %v501
  %v4299 = vunpack.c.h.b16 %v501
  %v4300 = vunpack.c.l.b16 %v502
  %v4301 = vunpack.c.h.b16 %v502
  %v4302 = vunpack.c.l.b16 %v503
  %v4303 = vunpack.c.h.b16 %v503
  %v4304 = vunpack.c.l.b16 %v504
  %v4305 = vunpack.c.h.b16 %v504
  %v4306 = vunpack.c.l.b16 %v505
  %v4307 = vunpack.c.h.b16 %v505
  %v4308 = vunpack.c.l.b16 %v506
  %v4309 = vunpack.c.h.b16 %v506
  %v4310 = vunpack.c.l.b16 %v507
  %v4311 = vunpack.c.h.b16 %v507
  %v4312 = vunpack.c.l.b16 %v508
  %v4313 = vunpack.c.h.b16 %v508
  %v4314 = vunpack.c.l.b16 %v509
  %v4315 = vunpack.c.h.b16 %v509
  %v4316 = vunpack.c.l.b16 %v510
  %v4317 = vunpack.c.h.b16 %v510
  %v4318 = vunpack.c.l.b16 %v511
  %v4319 = vunpack.c.h.b16 %v511
  %v4320 = vunpack.c.l.b16 %v512
  %v4321 = vunpack.c.h.b16 %v512
  %v4322 = vunpack.c.l.b16 %v513
  %v4323 = vunpack.c.h.b16 %v513
  %v4324 = vunpack.c.l.b16 %v514
  %v4325 = vunpack.c.h.b16 %v514
  %v4326 = vunpack.c.l.b16 %v515
  %v4327 = vunpack.c.h.b16 %v515
  %v4328 = vunpack.c.l.b16 %v516
  %v4329 = vunpack.c.h.b16 %v516
  %v4330 = vunpack.c.l.b16 %v517
  %v4331 = vunpack.c.h.b16 %v517
  %v4332 = vunpack.c.l.b16 %v518
  %v4333 = vunpack.c.h.b16 %v518
  %v4334 = vunpack.c.l.b16 %v519
  %v4335 = vunpack.c.h.b16 %v519
  %v4336 = vunpack.c.l.b16 %v520
  %v4337 = vunpack.c.h.b16 %v520
  %v4338 = vunpack.c.l.b16 %v521
  %v4339 = vunpack.c.h.b16 %v521
  %v4340 = vunpack.c.l.b16 %v522
  %v4341 = vunpack.c.h.b16 %v522
  %v4342 = vunpack.c.l.b16 %v523
  %v4343 = vunpack.c.h.b16 %v523
  %v4344 = vunpack.c.l.b16 %v524
  %v4345 = vunpack.c.h.b16 %v524
  %v4346 = vunpack.c.l.b16 %v525
  %v4347 = vunpack.c.h.b16 %v525
  %v4348 = vunpack.c.l.b16 %v526
  %v4349 = vunpack.c.h.b16 %v526
  %v4350 = vunpack.c.l.b16 %v527
  %v4351 = vunpack.c.h.b16 %v527
  %v4352 = vunpack.c.l.b16 %v528
  %v4353 = vunpack.c.h.b16 %v528
  %v4354 = vunpack.c.l.b16 %v529
  %v4355 = vunpack.c.h.b16 %v529
  %v4356 = vunpack.c.l.b16 %v530
  %v4357 = vunpack.c.h.b16 %v530
  %v4358 = vunpack.c.l.b16 %v531
  %v4359 = vunpack.c.h.b16 %v531
  %v4360 = vunpack.c.l.b16 %v532
  %v4361 = vunpack.c.h.b16 %v532
  %v4362 = vunpack.c.l.b16 %v533
  %v4363 = vunpack.c.h.b16 %v533
  %v4364 = vunpack.c.l.b16 %v534
  %v4365 = vunpack.c.h.b16 %v534
  %v4366 = vunpack.c.l.b16 %v535
  %v4367 = vunpack.c.h.b16 %v535
  %v4368 = vunpack.c.l.b16 %v536
  %v4369 = vunpack.c.h.b16 %v536
  %v4370 = vunpack.c.l.b16 %v537
  %v4371 = vunpack.c.h.b16 %v537
  %v4372 = vunpack.c.l.b16 %v538
  %v4373 = vunpack.c.h.b16 %v538
  %v4374 = vunpack.c.l.b16 %v539
  %v4375 = vunpack.c.h.b16 %v539
  %v4376 = vunpack.c.l.b16 %v540
  %v4377 = vunpack.c.h.b16 %v540
  %v4378 = vunpack.c.l.b16 %v541
  %v4379 = vunpack.c.h.b16 %v541
  %v4380 = vunpack.c.l.b16 %v542
  %v4381 = vunpack.c.h.b16 %v542
  %v4382 = vunpack.c.l.b16 %v543
  %v4383 = vunpack.c.h.b16 %v543
  %v4384 = vunpack.c.l.b16 %v544
  %v4385 = vunpack.c.h.b16 %v544
  %v4386 = vunpack.c.l.b16 %v545
  %v4387 = vunpack.c.h.b16 %v545
  %v4388 = vunpack.c.l.b16 %v546
  %v4389 = vunpack.c.h.b16 %v546
  %v4390 = vunpack.c.l.b16 %v547
  %v4391 = vunpack.c.h.b16 %v547
  %v4392 = vunpack.c.l.b16 %v548
  %v4393 = vunpack.c.h.b16 %v548
  %v4394 = vunpack.c.l.b16 %v549
  %v4395 = vunpack.c.h.b16 %v549
  %v4396 = vunpack.c.l.b16 %v550
  %v4397 = vunpack.c.h.b16 %v550
  %v4398 = vunpack.c.l.b16 %v551
  %v4399 = vunpack.c.h.b16 %v551
  %v4400 = vunpack.c.l.b16 %v552
  %v4401 = vunpack.c.h.b16 %v552
  %v4402 = vunpack.c.l.b16 %v553
  %v4403 = vunpack.c.h.b16 %v553
  %v4404 = vunpack.c.l.b16 %v554
  %v4405 = vunpack.c.h.b16 %v554
  %v4406 = vunpack.c.l.b16 %v555
  %v4407 = vunpack.c.h.b16 %v555
  %v4408 = vunpack.c.l.b16 %v556
  %v4409 = vunpack.c.h.b16 %v556
  %v4410 = vunpack.c.l.b16 %v557
  %v4411 = vunpack.c.h.b16 %v557
  %v4412 = vunpack.c.l.b16 %v558
  %v4413 = vunpack.c.h.b16 %v558
  %v4414 = vunpack.c.l.b16 %v559
  %v4415 = vunpack.c.h.b16 %v559
  %v4416 = vunpack.c.l.b16 %v560
  %v4417 = vunpack.c.h.b16 %v560
  %v4418 = vunpack.c.l.b16 %v561
  %v4419 = vunpack.c.h.b16 %v561
  %v4420 = vunpack.c.l.b16 %v562
  %v4421 = vunpack.c.h.b16 %v562
  %v4422 = vunpack.c.l.b16 %v563
  %v4423 = vunpack.c.h.b16 %v563
  %v4424 = vunpack.c.l.b16 %v564
  %v4425 = vunpack.c.h.b16 %v564
  %v4426 = vunpack.c.l.b16 %v565
  %v4427 = vunpack.c.h.b16 %v565
  %v4428 = vunpack.c.l.b16 %v566
  %v4429 = vunpack.c.h.b16 %v566
  %v4430 = vunpack.c.l.b16 %v567
  %v4431 = vunpack.c.h.b16 %v567
  %v4432 = vunpack.c.l.b16 %v568
  %v4433 = vunpack.c.h.b16 %v568
  %v4434 = vunpack.c.l.b16 %v569
  %v4435 = vunpack.c.h.b16 %v569
  %v4436 = vunpack.c.l.b16 %v570
  %v4437 = vunpack.c.h.b16 %v570
  %v4438 = vunpack.c.l.b16 %v571
  %v4439 = vunpack.c.h.b16 %v571
  %v4440 = vunpack.c.l.b16 %v572
  %v4441 = vunpack.c.h.b16 %v572
  %v4442 = vunpack.c.l.b16 %v573
  %v4443 = vunpack.c.h.b16 %v573
  %v4444 = vunpack.c.l.b16 %v574
  %v4445 = vunpack.c.h.b16 %v574
  %v4446 = vunpack.c.l.b16 %v575
  %v4447 = vunpack.c.h.b16 %v575
  %v4448 = vunpack.c.l.b16 %v576
  %v4449 = vunpack.c.h.b16 %v576
  %v4450 = vunpack.c.l.b16 %v577
  %v4451 = vunpack.c.h.b16 %v577
  %v4452 = vunpack.c.l.b16 %v578
  %v4453 = vunpack.c.h.b16 %v578
  %v4454 = vunpack.c.l.b16 %v579
  %v4455 = vunpack.c.h.b16 %v579
  %v4456 = vunpack.c.l.b16 %v580
  %v4457 = vunpack.c.h.b16 %v580
  %v4458 = vunpack.c.l.b16 %v581
  %v4459 = vunpack.c.h.b16 %v581
  %v4460 = vunpack.c.l.b16 %v582
  %v4461 = vunpack.c.h.b16 %v582
  %v4462 = vunpack.c.l.b16 %v583
  %v4463 = vunpack.c.h.b16 %v583
  %v4464 = vunpack.c.l.b16 %v584
  %v4465 = vunpack.c.h.b16 %v584
  %v4466 = vunpack.c.l.b16 %v585
  %v4467 = vunpack.c.h.b16 %v585
  %v4468 = vunpack.c.l.b16 %v586
  %v4469 = vunpack.c.h.b16 %v586
  %v4470 = vunpack.c.l.b16 %v587
  %v4471 = vunpack.c.h.b16 %v587
  %v4472 = vunpack.c.l.b16 %v588
  %v4473 = vunpack.c.h.b16 %v588
  %v4474 = vunpack.c.l.b16 %v589
  %v4475 = vunpack.c.h.b16 %v589
  %v4476 = vunpack.c.l.b16 %v590
  %v4477 = vunpack.c.h.b16 %v590
  %v4478 = vunpack.c.l.b16 %v591
  %v4479 = vunpack.c.h.b16 %v591
  %v4480 = vunpack.c.l.b16 %v592
  %v4481 = vunpack.c.h.b16 %v592
  %v4482 = vunpack.c.l.b16 %v593
  %v4483 = vunpack.c.h.b16 %v593
  %v4484 = vunpack.c.l.b16 %v594
  %v4485 = vunpack.c.h.b16 %v594
  %v4486 = vunpack.c.l.b16 %v595
  %v4487 = vunpack.c.h.b16 %v595
  %v4488 = vunpack.c.l.b16 %v596
  %v4489 = vunpack.c.h.b16 %v596
  %v4490 = vunpack.c.l.b16 %v597
  %v4491 = vunpack.c.h.b16 %v597
  %v4492 = vunpack.c.l.b16 %v598
  %v4493 = vunpack.c.h.b16 %v598
  %v4494 = vunpack.c.l.b16 %v599
  %v4495 = vunpack.c.h.b16 %v599
  %v4496 = vunpack.c.l.b16 %v600
  %v4497 = vunpack.c.h.b16 %v600
  %v4498 = vunpack.c.l.b16 %v601
  %v4499 = vunpack.c.h.b16 %v601
  %v4500 = vunpack.c.l.b16 %v602
  %v4501 = vunpack.c.h.b16 %v602
  %v4502 = vunpack.c.l.b16 %v603
  %v4503 = vunpack.c.h.b16 %v603
  %v4504 = vunpack.c.l.b16 %v604
  %v4505 = vunpack.c.h.b16 %v604
  %v4506 = vunpack.c.l.b16 %v605
  %v4507 = vunpack.c.h.b16 %v605
  %v4508 = vunpack.c.l.b16 %v606
  %v4509 = vunpack.c.h.b16 %v606
  %v4510 = vunpack.c.l.b16 %v607
  %v4511 = vunpack.c.h.b16 %v607
  %v4512 = vunpack.c.l.b16 %v608
  %v4513 = vunpack.c.h.b16 %v608
  %v4514 = vunpack.c.l.b16 %v609
  %v4515 = vunpack.c.h.b16 %v609
  %v4516 = vunpack.c.l.b16 %v610
  %v4517 = vunpack.c.h.b16 %v610
  %v4518 = vunpack.c.l.b16 %v611
  %v4519 = vunpack.c.h.b16 %v611
  %v4520 = vunpack.c.l.b16 %v612
  %v4521 = vunpack.c.h.b16 %v612
  %v4522 = vunpack.c.l.b16 %v613
  %v4523 = vunpack.c.h.b16 %v613
  %v4524 = vunpack.c.l.b16 %v614
  %v4525 = vunpack.c.h.b16 %v614
  %v4526 = vunpack.c.l.b16 %v615
  %v4527 = vunpack.c.h.b16 %v615
  %v4528 = vunpack.c.l.b16 %v616
  %v4529 = vunpack.c.h.b16 %v616
  %v4530 = vunpack.c.l.b16 %v617
  %v4531 = vunpack.c.h.b16 %v617
  %v4532 = vunpack.c.l.b16 %v618
  %v4533 = vunpack.c.h.b16 %v618
  %v4534 = vunpack.c.l.b16 %v619
  %v4535 = vunpack.c.h.b16 %v619
  %v4536 = vunpack.c.l.b16 %v620
  %v4537 = vunpack.c.h.b16 %v620
  %v4538 = vunpack.c.l.b16 %v621
  %v4539 = vunpack.c.h.b16 %v621
  %v4540 = vunpack.c.l.b16 %v622
  %v4541 = vunpack.c.h.b16 %v622
  %v4542 = vunpack.c.l.b16 %v623
  %v4543 = vunpack.c.h.b16 %v623
  %v4544 = vunpack.c.l.b16 %v624
  %v4545 = vunpack.c.h.b16 %v624
  %v4546 = vunpack.c.l.b16 %v625
  %v4547 = vunpack.c.h.b16 %v625
  %v4548 = vunpack.c.l.b16 %v626
  %v4549 = vunpack.c.h.b16 %v626
  %v4550 = vunpack.c.l.b16 %v627
  %v4551 = vunpack.c.h.b16 %v627
  %v4552 = vunpack.c.l.b16 %v628
  %v4553 = vunpack.c.h.b16 %v628
  %v4554 = vunpack.c.l.b16 %v629
  %v4555 = vunpack.c.h.b16 %v629
  %v4556 = vunpack.c.l.b16 %v630
  %v4557 = vunpack.c.h.b16 %v630
  %v4558 = vunpack.c.l.b16 %v631
  %v4559 = vunpack.c.h.b16 %v631
  %v4560 = vunpack.c.l.b16 %v632
  %v4561 = vunpack.c.h.b16 %v632
  %v4562 = vunpack.c.l.b16 %v633
  %v4563 = vunpack.c.h.b16 %v633
  %v4564 = vunpack.c.l.b16 %v634
  %v4565 = vunpack.c.h.b16 %v634
  %v4566 = vunpack.c.l.b16 %v635
  %v4567 = vunpack.c.h.b16 %v635
  %v4568 = vunpack.c.l.b16 %v636
  %v4569 = vunpack.c.h.b16 %v636
  %v4570 = vunpack.c.l.b16 %v637
  %v4571 = vunpack.c.h.b16 %v637
  %v4572 = vunpack.c.l.b16 %v638
  %v4573 = vunpack.c.h.b16 %v638
  %v4574 = vunpack.c.l.b16 %v639
  %v4575 = vunpack.c.h.b16 %v639
  %v4576 = vunpack.c.l.b16 %v640
  %v4577 = vunpack.c.h.b16 %v640
  %v4578 = vunpack.c.l.b16 %v641
  %v4579 = vunpack.c.h.b16 %v641
  %v4580 = vunpack.c.l.b16 %v642
  %v4581 = vunpack.c.h.b16 %v642
  %v4582 = vunpack.c.l.b16 %v643
  %v4583 = vunpack.c.h.b16 %v643
  %v4584 = vunpack.c.l.b16 %v644
  %v4585 = vunpack.c.h.b16 %v644
  %v4586 = vunpack.c.l.b16 %v645
  %v4587 = vunpack.c.h.b16 %v645
  %v4588 = vunpack.c.l.b16 %v646
  %v4589 = vunpack.c.h.b16 %v646
  %v4590 = vunpack.c.l.b16 %v647
  %v4591 = vunpack.c.h.b16 %v647
  %v4592 = vunpack.c.l.b16 %v648
  %v4593 = vunpack.c.h.b16 %v648
  %v4594 = vunpack.c.l.b16 %v649
  %v4595 = vunpack.c.h.b16 %v649
  %v4596 = vunpack.c.l.b16 %v650
  %v4597 = vunpack.c.h.b16 %v650
  %v4598 = vunpack.c.l.b16 %v651
  %v4599 = vunpack.c.h.b16 %v651
  %v4600 = vunpack.c.l.b16 %v652
  %v4601 = vunpack.c.h.b16 %v652
  %v4602 = vunpack.c.l.b16 %v653
  %v4603 = vunpack.c.h.b16 %v653
  %v4604 = vunpack.c.l.b16 %v654
  %v4605 = vunpack.c.h.b16 %v654
  %v4606 = vunpack.c.l.b16 %v655
  %v4607 = vunpack.c.h.b16 %v655
  %v4608 = vunpack.c.l.b16 %v656
  %v4609 = vunpack.c.h.b16 %v656
  %v4610 = vunpack.c.l.b16 %v657
  %v4611 = vunpack.c.h.b16 %v657
  %v4612 = vunpack.c.l.b16 %v658
  %v4613 = vunpack.c.h.b16 %v658
  %v4614 = vunpack.c.l.b16 %v659
  %v4615 = vunpack.c.h.b16 %v659
  %v4616 = vunpack.c.l.b16 %v660
  %v4617 = vunpack.c.h.b16 %v660
  %v4618 = vunpack.c.l.b16 %v661
  %v4619 = vunpack.c.h.b16 %v661
  %v4620 = vunpack.c.l.b16 %v662
  %v4621 = vunpack.c.h.b16 %v662
  %v4622 = vunpack.c.l.b16 %v663
  %v4623 = vunpack.c.h.b16 %v663
  %v4624 = vunpack.c.l.b16 %v664
  %v4625 = vunpack.c.h.b16 %v664
  %v4626 = vunpack.c.l.b16 %v665
  %v4627 = vunpack.c.h.b16 %v665
  %v4628 = vunpack.c.l.b16 %v666
  %v4629 = vunpack.c.h.b16 %v666
  %v4630 = vunpack.c.l.b16 %v667
  %v4631 = vunpack.c.h.b16 %v667
  %v4632 = vunpack.c.l.b16 %v668
  %v4633 = vunpack.c.h.b16 %v668
  %v4634 = vunpack.c.l.b16 %v669
  %v4635 = vunpack.c.h.b16 %v669
  %v4636 = vunpack.c.l.b16 %v670
  %v4637 = vunpack.c.h.b16 %v670
  %v4638 = vunpack.c.l.b16 %v671
  %v4639 = vunpack.c.h.b16 %v671
  %v4640 = vunpack.c.l.b16 %v672
  %v4641 = vunpack.c.h.b16 %v672
  %v4642 = vunpack.c.l.b16 %v673
  %v4643 = vunpack.c.h.b16 %v673
  %v4644 = vunpack.c.l.b16 %v674
  %v4645 = vunpack.c.h.b16 %v674
  %v4646 = vunpack.c.l.b16 %v675
  %v4647 = vunpack.c.h.b16 %v675
  %v4648 = vunpack.c.l.b16 %v676
  %v4649 = vunpack.c.h.b16 %v676
  %v4650 = vunpack.c.l.b16 %v677
  %v4651 = vunpack.c.h.b16 %v677
  %v4652 = vunpack.c.l.b16 %v678
  %v4653 = vunpack.c.h.b16 %v678
  %v4654 = vunpack.c.l.b16 %v679
  %v4655 = vunpack.c.h.b16 %v679
  %v4656 = vunpack.c.l.b16 %v680
  %v4657 = vunpack.c.h.b16 %v680
  %v4658 = vunpack.c.l.b16 %v681
  %v4659 = vunpack.c.h.b16 %v681
  %v4660 = vunpack.c.l.b16 %v682
  %v4661 = vunpack.c.h.b16 %v682
  %v4662 = vunpack.c.l.b16 %v683
  %v4663 = vunpack.c.h.b16 %v683
  %v4664 = vunpack.c.l.b16 %v684
  %v4665 = vunpack.c.h.b16 %v684
  %v4666 = vunpack.c.l.b16 %v685
  %v4667 = vunpack.c.h.b16 %v685
  %v4668 = vunpack.c.l.b16 %v686
  %v4669 = vunpack.c.h.b16 %v686
  %v4670 = vunpack.c.l.b16 %v687
  %v4671 = vunpack.c.h.b16 %v687
  %v4672 = vunpack.c.l.b16 %v688
  %v4673 = vunpack.c.h.b16 %v688
  %v4674 = vunpack.c.l.b16 %v689
  %v4675 = vunpack.c.h.b16 %v689
  %v4676 = vunpack.c.l.b16 %v690
  %v4677 = vunpack.c.h.b16 %v690
  %v4678 = vunpack.c.l.b16 %v691
  %v4679 = vunpack.c.h.b16 %v691
  %v4680 = vunpack.c.l.b16 %v692
  %v4681 = vunpack.c.h.b16 %v692
  %v4682 = vunpack.c.l.b16 %v693
  %v4683 = vunpack.c.h.b16 %v693
  %v4684 = vunpack.c.l.b16 %v694
  %v4685 = vunpack.c.h.b16 %v694
  %v4686 = vunpack.c.l.b16 %v695
  %v4687 = vunpack.c.h.b16 %v695
  %v4688 = vunpack.c.l.b16 %v696
  %v4689 = vunpack.c.h.b16 %v696
  %v4690 = vunpack.c.l.b16 %v697
  %v4691 = vunpack.c.h.b16 %v697
  %v4692 = vunpack.c.l.b16 %v698
  %v4693 = vunpack.c.h.b16 %v698
  %v4694 = vunpack.c.l.b16 %v699
  %v4695 = vunpack.c.h.b16 %v699
  %v4696 = vunpack.c.l.b16 %v700
  %v4697 = vunpack.c.h.b16 %v700
  %v4698 = vunpack.c.l.b16 %v701
  %v4699 = vunpack.c.h.b16 %v701
  %v4700 = vunpack.c.l.b16 %v702
  %v4701 = vunpack.c.h.b16 %v702
  %v4702 = vunpack.c.l.b16 %v703
  %v4703 = vunpack.c.h.b16 %v703
  %v4704 = vunpack.c.l.b16 %v704
  %v4705 = vunpack.c.h.b16 %v704
  %v4706 = vunpack.c.l.b16 %v705
  %v4707 = vunpack.c.h.b16 %v705
  %v4708 = vunpack.c.l.b16 %v706
  %v4709 = vunpack.c.h.b16 %v706
  %v4710 = vunpack.c.l.b16 %v707
  %v4711 = vunpack.c.h.b16 %v707
  %v4712 = vunpack.c.l.b16 %v708
  %v4713 = vunpack.c.h.b16 %v708
  %v4714 = vunpack.c.l.b16 %v709
  %v4715 = vunpack.c.h.b16 %v709
  %v4716 = vunpack.c.l.b16 %v710
  %v4717 = vunpack.c.h.b16 %v710
  %v4718 = vunpack.c.l.b16 %v711
  %v4719 = vunpack.c.h.b16 %v711
  %v4720 = vunpack.c.l.b16 %v712
  %v4721 = vunpack.c.h.b16 %v712
  %v4722 = vunpack.c.l.b16 %v713
  %v4723 = vunpack.c.h.b16 %v713
  %v4724 = vunpack.c.l.b16 %v714
  %v4725 = vunpack.c.h.b16 %v714
  %v4726 = vunpack.c.l.b16 %v715
  %v4727 = vunpack.c.h.b16 %v715
  %v4728 = vunpack.c.l.b16 %v716
  %v4729 = vunpack.c.h.b16 %v716
  %v4730 = vunpack.c.l.b16 %v717
  %v4731 = vunpack.c.h.b16 %v717
  %v4732 = vunpack.c.l.b16 %v718
  %v4733 = vunpack.c.h.b16 %v718
  %v4734 = vunpack.c.l.b16 %v719
  %v4735 = vunpack.c.h.b16 %v719
  %v4736 = vunpack.c.l.b16 %v720
  %v4737 = vunpack.c.h.b16 %v720
  %v4738 = vunpack.c.l.b16 %v721
  %v4739 = vunpack.c.h.b16 %v721
  %v4740 = vunpack.c.l.b16 %v722
  %v4741 = vunpack.c.h.b16 %v722
  %v4742 = vunpack.c.l.b16 %v723
  %v4743 = vunpack.c.h.b16 %v723
  %v4744 = vunpack.c.l.b16 %v724
  %v4745 = vunpack.c.h.b16 %v724
  %v4746 = vunpack.c.l.b16 %v725
  %v4747 = vunpack.c.h.b16 %v725
  %v4748 = vunpack.c.l.b16 %v726
  %v4749 = vunpack.c.h.b16 %v726
  %v4750 = vunpack.c.l.b16 %v727
  %v4751 = vunpack.c.h.b16 %v727
  %v4752 = vunpack.c.l.b16 %v728
  %v4753 = vunpack.c.h.b16 %v728
  %v4754 = vunpack.c.l.b16 %v729
  %v4755 = vunpack.c.h.b16 %v729
  %v4756 = vunpack.c.l.b16 %v730
  %v4757 = vunpack.c.h.b16 %v730
  %v4758 = vunpack.c.l.b16 %v731
  %v4759 = vunpack.c.h.b16 %v731
  %v4760 = vunpack.c.l.b16 %v732
  %v4761 = vunpack.c.h.b16 %v732
  %v4762 = vunpack.c.l.b16 %v733
  %v4763 = vunpack.c.h.b16 %v733
  %v4764 = vunpack.c.l.b16 %v734
  %v4765 = vunpack.c.h.b16 %v734
  %v4766 = vunpack.c.l.b16 %v735
  %v4767 = vunpack.c.h.b16 %v735
  %v4768 = vunpack.c.l.b16 %v736
  %v4769 = vunpack.c.h.b16 %v736
  %v4770 = vunpack.c.l.b16 %v737
  %v4771 = vunpack.c.h.b16 %v737
  %v4772 = vunpack.c.l.b16 %v738
  %v4773 = vunpack.c.h.b16 %v738
  %v4774 = vunpack.c.l.b16 %v739
  %v4775 = vunpack.c.h.b16 %v739
  %v4776 = vunpack.c.l.b16 %v740
  %v4777 = vunpack.c.h.b16 %v740
  %v4778 = vunpack.c.l.b16 %v741
  %v4779 = vunpack.c.h.b16 %v741
  %v4780 = vunpack.c.l.b16 %v742
  %v4781 = vunpack.c.h.b16 %v742
  %v4782 = vunpack.c.l.b16 %v743
  %v4783 = vunpack.c.h.b16 %v743
  %v4784 = vunpack.c.l.b16 %v744
  %v4785 = vunpack.c.h.b16 %v744
  %v4786 = vunpack.c.l.b16 %v745
  %v4787 = vunpack.c.h.b16 %v745
  %v4788 = vunpack.c.l.b16 %v746
  %v4789 = vunpack.c.h.b16 %v746
  %v4790 = vunpack.c.l.b16 %v747
  %v4791 = vunpack.c.h.b16 %v747
  %v4792 = vunpack.c.l.b16 %v748
  %v4793 = vunpack.c.h.b16 %v748
  %v4794 = vunpack.c.l.b16 %v749
  %v4795 = vunpack.c.h.b16 %v749
  %v4796 = vunpack.c.l.b16 %v750
  %v4797 = vunpack.c.h.b16 %v750
  %v4798 = vunpack.c.l.b16 %v751
  %v4799 = vunpack.c.h.b16 %v751
  %v4800 = vunpack.c.l.b16 %v752
  %v4801 = vunpack.c.h.b16 %v752
  %v4802 = vunpack.c.l.b16 %v753
  %v4803 = vunpack.c.h.b16 %v753
  %v4804 = vunpack.c.l.b16 %v754
  %v4805 = vunpack.c.h.b16 %v754
  %v4806 = vunpack.c.l.b16 %v755
  %v4807 = vunpack.c.h.b16 %v755
  %v4808 = vunpack.c.l.b16 %v756
  %v4809 = vunpack.c.h.b16 %v756
  %v4810 = vunpack.c.l.b16 %v757
  %v4811 = vunpack.c.h.b16 %v757
  %v4812 = vunpack.c.l.b16 %v758
  %v4813 = vunpack.c.h.b16 %v758
  %v4814 = vunpack.c.l.b16 %v759
  %v4815 = vunpack.c.h.b16 %v759
  %v4816 = vunpack.c.l.b16 %v760
  %v4817 = vunpack.c.h.b16 %v760
  %v4818 = vunpack.c.l.b16 %v761
  %v4819 = vunpack.c.h.b16 %v761
  %v4820 = vunpack.c.l.b16 %v762
  %v4821 = vunpack.c.h.b16 %v762
  %v4822 = vunpack.c.l.b16 %v763
  %v4823 = vunpack.c.h.b16 %v763
  %v4824 = vunpack.c.l.b16 %v764
  %v4825 = vunpack.c.h.b16 %v764
  %v4826 = vunpack.c.l.b16 %v765
  %v4827 = vunpack.c.h.b16 %v765
  %v4828 = vunpack.c.l.b16 %v766
  %v4829 = vunpack.c.h.b16 %v766
  %v4830 = vunpack.c.l.b16 %v767
  %v4831 = vunpack.c.h.b16 %v767
  %v4832 = vunpack.c.l.b16 %v768
  %v4833 = vunpack.c.h.b16 %v768
  %v4834 = vunpack.c.l.b16 %v769
  %v4835 = vunpack.c.h.b16 %v769
  %v4836 = vunpack.c.l.b16 %v770
  %v4837 = vunpack.c.h.b16 %v770
  %v4838 = vunpack.c.l.b16 %v771
  %v4839 = vunpack.c.h.b16 %v771
  %v4840 = vunpack.c.l.b16 %v772
  %v4841 = vunpack.c.h.b16 %v772
  %v4842 = vunpack.c.l.b16 %v773
  %v4843 = vunpack.c.h.b16 %v773
  %v4844 = vunpack.c.l.b16 %v774
  %v4845 = vunpack.c.h.b16 %v774
  %v4846 = vunpack.c.l.b16 %v775
  %v4847 = vunpack.c.h.b16 %v775
  %v4848 = vunpack.c.l.b16 %v776
  %v4849 = vunpack.c.h.b16 %v776
  %v4850 = vunpack.c.l.b16 %v777
  %v4851 = vunpack.c.h.b16 %v777
  %v4852 = vunpack.c.l.b16 %v778
  %v4853 = vunpack.c.h.b16 %v778
  %v4854 = vunpack.c.l.b16 %v779
  %v4855 = vunpack.c.h.b16 %v779
  %v4856 = vunpack.c.l.b16 %v780
  %v4857 = vunpack.c.h.b16 %v780
  %v4858 = vunpack.c.l.b16 %v781
  %v4859 = vunpack.c.h.b16 %v781
  %v4860 = vunpack.c.l.b16 %v782
  %v4861 = vunpack.c.h.b16 %v782
  %v4862 = vunpack.c.l.b16 %v783
  %v4863 = vunpack.c.h.b16 %v783
  %v4864 = vunpack.c.l.b16 %v784
  %v4865 = vunpack.c.h.b16 %v784
  %v4866 = vunpack.c.l.b16 %v785
  %v4867 = vunpack.c.h.b16 %v785
  %v4868 = vunpack.c.l.b16 %v786
  %v4869 = vunpack.c.h.b16 %v786
  %v4870 = vunpack.c.l.b16 %v787
  %v4871 = vunpack.c.h.b16 %v787
  %v4872 = vunpack.c.l.b16 %v788
  %v4873 = vunpack.c.h.b16 %v788
  %v4874 = vunpack.c.l.b16 %v789
  %v4875 = vunpack.c.h.b16 %v789
  %v4876 = vunpack.c.l.b16 %v790
  %v4877 = vunpack.c.h.b16 %v790
  %v4878 = vunpack.c.l.b16 %v791
  %v4879 = vunpack.c.h.b16 %v791
  %v4880 = vunpack.c.l.b16 %v792
  %v4881 = vunpack.c.h.b16 %v792
  %v4882 = vunpack.c.l.b16 %v793
  %v4883 = vunpack.c.h.b16 %v793
  %v4884 = vunpack.c.l.b16 %v794
  %v4885 = vunpack.c.h.b16 %v794
  %v4886 = vunpack.c.l.b16 %v795
  %v4887 = vunpack.c.h.b16 %v795
  %v4888 = vunpack.c.l.b16 %v796
  %v4889 = vunpack.c.h.b16 %v796
  %v4890 = vunpack.c.l.b16 %v797
  %v4891 = vunpack.c.h.b16 %v797
  %v4892 = vunpack.c.l.b16 %v798
  %v4893 = vunpack.c.h.b16 %v798
  %v4894 = vunpack.c.l.b16 %v799
  %v4895 = vunpack.c.h.b16 %v799
  %v4896 = vunpack.c.l.b16 %v800
  %v4897 = vunpack.c.h.b16 %v800
  %v4898 = vunpack.c.l.b16 %v801
  %v4899 = vunpack.c.h.b16 %v801
  %v4900 = vunpack.c.l.b16 %v802
  %v4901 = vunpack.c.h.b16 %v802
  %v4902 = vunpack.c.l.b16 %v803
  %v4903 = vunpack.c.h.b16 %v803
  %v4904 = vunpack.c.l.b16 %v804
  %v4905 = vunpack.c.h.b16 %v804
  %v4906 = vunpack.c.l.b16 %v805
  %v4907 = vunpack.c.h.b16 %v805
  %v4908 = vunpack.c.l.b16 %v806
  %v4909 = vunpack.c.h.b16 %v806
  %v4910 = vunpack.c.l.b16 %v807
  %v4911 = vunpack.c.h.b16 %v807
  %v4912 = vunpack.c.l.b16 %v808
  %v4913 = vunpack.c.h.b16 %v808
  %v4914 = vunpack.c.l.b16 %v809
  %v4915 = vunpack.c.h.b16 %v809
  %v4916 = vunpack.c.l.b16 %v810
  %v4917 = vunpack.c.h.b16 %v810
  %v4918 = vunpack.c.l.b16 %v811
  %v4919 = vunpack.c.h.b16 %v811
  %v4920 = vunpack.c.l.b16 %v812
  %v4921 = vunpack.c.h.b16 %v812
  %v4922 = vunpack.c.l.b16 %v813
  %v4923 = vunpack.c.h.b16 %v813
  %v4924 = vunpack.c.l.b16 %v814
  %v4925 = vunpack.c.h.b16 %v814
  %v4926 = vunpack.c.l.b16 %v815
  %v4927 = vunpack.c.h.b16 %v815
  %v4928 = vunpack.c.l.b16 %v816
  %v4929 = vunpack.c.h.b16 %v816
  %v4930 = vunpack.c.l.b16 %v817
  %v4931 = vunpack.c.h.b16 %v817
  %v4932 = vunpack.c.l.b16 %v818
  %v4933 = vunpack.c.h.b16 %v818
  %v4934 = vunpack.c.l.b16 %v819
  %v4935 = vunpack.c.h.b16 %v819
  %v4936 = vunpack.c.l.b16 %v820
  %v4937 = vunpack.c.h.b16 %v820
  %v4938 = vunpack.c.l.b16 %v821
  %v4939 = vunpack.c.h.b16 %v821
  %v4940 = vunpack.c.l.b16 %v822
  %v4941 = vunpack.c.h.b16 %v822
  %v4942 = vunpack.c.l.b16 %v823
  %v4943 = vunpack.c.h.b16 %v823
  %v4944 = vunpack.c.l.b16 %v824
  %v4945 = vunpack.c.h.b16 %v824
  %v4946 = vunpack.c.l.b16 %v825
  %v4947 = vunpack.c.h.b16 %v825
  %v4948 = vunpack.c.l.b16 %v826
  %v4949 = vunpack.c.h.b16 %v826
  %v4950 = vunpack.c.l.b16 %v827
  %v4951 = vunpack.c.h.b16 %v827
  %v4952 = vunpack.c.l.b16 %v828
  %v4953 = vunpack.c.h.b16 %v828
  %v4954 = vunpack.c.l.b16 %v829
  %v4955 = vunpack.c.h.b16 %v829
  %v4956 = vunpack.c.l.b16 %v830
  %v4957 = vunpack.c.h.b16 %v830
  %v4958 = vunpack.c.l.b16 %v831
  %v4959 = vunpack.c.h.b16 %v831
  %v4960 = vunpack.c.l.b16 %v832
  %v4961 = vunpack.c.h.b16 %v832
  %v4962 = vunpack.c.l.b16 %v833
  %v4963 = vunpack.c.h.b16 %v833
  %v4964 = vunpack.c.l.b16 %v834
  %v4965 = vunpack.c.h.b16 %v834
  %v4966 = vunpack.c.l.b16 %v835
  %v4967 = vunpack.c.h.b16 %v835
  %v4968 = vunpack.c.l.b16 %v836
  %v4969 = vunpack.c.h.b16 %v836
  %v4970 = vunpack.c.l.b16 %v837
  %v4971 = vunpack.c.h.b16 %v837
  %v4972 = vunpack.c.l.b16 %v838
  %v4973 = vunpack.c.h.b16 %v838
  %v4974 = vunpack.c.l.b16 %v839
  %v4975 = vunpack.c.h.b16 %v839
  %v4976 = vunpack.c.l.b16 %v840
  %v4977 = vunpack.c.h.b16 %v840
  %v4978 = vunpack.c.l.b16 %v841
  %v4979 = vunpack.c.h.b16 %v841
  %v4980 = vunpack.c.l.b16 %v842
  %v4981 = vunpack.c.h.b16 %v842
  %v4982 = vunpack.c.l.b16 %v843
  %v4983 = vunpack.c.h.b16 %v843
  %v4984 = vunpack.c.l.b16 %v844
  %v4985 = vunpack.c.h.b16 %v844
  %v4986 = vunpack.c.l.b16 %v845
  %v4987 = vunpack.c.h.b16 %v845
  %v4988 = vunpack.c.l.b16 %v846
  %v4989 = vunpack.c.h.b16 %v846
  %v4990 = vunpack.c.l.b16 %v847
  %v4991 = vunpack.c.h.b16 %v847
  %v4992 = vunpack.c.l.b16 %v848
  %v4993 = vunpack.c.h.b16 %v848
  %v4994 = vunpack.c.l.b16 %v849
  %v4995 = vunpack.c.h.b16 %v849
  %v4996 = vunpack.c.l.b16 %v850
  %v4997 = vunpack.c.h.b16 %v850
  %v4998 = vunpack.c.l.b16 %v851
  %v4999 = vunpack.c.h.b16 %v851
  %v5000 = vunpack.c.l.b16 %v852
  %v5001 = vunpack.c.h.b16 %v852
  %v5002 = vunpack.c.l.b16 %v853
  %v5003 = vunpack.c.h.b16 %v853
  %v5004 = vunpack.c.l.b16 %v854
  %v5005 = vunpack.c.h.b16 %v854
  %v5006 = vunpack.c.l.b16 %v855
  %v5007 = vunpack.c.h.b16 %v855
  %v5008 = vunpack.c.l.b16 %v856
  %v5009 = vunpack.c.h.b16 %v856
  %v5010 = vunpack.c.l.b16 %v857
  %v5011 = vunpack.c.h.b16 %v857
  %v5012 = vunpack.c.l.b16 %v858
  %v5013 = vunpack.c.h.b16 %v858
  %v5014 = vunpack.c.l.b16 %v859
  %v5015 = vunpack.c.h.b16 %v859
  %v5016 = vunpack.c.l.b16 %v860
  %v5017 = vunpack.c.h.b16 %v860
  %v5018 = vunpack.c.l.b16 %v861
  %v5019 = vunpack.c.h.b16 %v861
  %v5020 = vunpack.c.l.b16 %v862
  %v5021 = vunpack.c.h.b16 %v862
  %v5022 = vunpack.c.l.b16 %v863
  %v5023 = vunpack.c.h.b16 %v863
  %v5024 = vunpack.c.l.b16 %v864
  %v5025 = vunpack.c.h.b16 %v864
  %v5026 = vunpack.c.l.b16 %v865
  %v5027 = vunpack.c.h.b16 %v865
  %v5028 = vunpack.c.l.b16 %v866
  %v5029 = vunpack.c.h.b16 %v866
  %v5030 = vunpack.c.l.b16 %v867
  %v5031 = vunpack.c.h.b16 %v867
  %v5032 = vunpack.c.l.b16 %v868
  %v5033 = vunpack.c.h.b16 %v868
  %v5034 = vunpack.c.l.b16 %v869
  %v5035 = vunpack.c.h.b16 %v869
  %v5036 = vunpack.c.l.b16 %v870
  %v5037 = vunpack.c.h.b16 %v870
  %v5038 = vunpack.c.l.b16 %v871
  %v5039 = vunpack.c.h.b16 %v871
  %v5040 = vunpack.c.l.b16 %v872
  %v5041 = vunpack.c.h.b16 %v872
  %v5042 = vunpack.c.l.b16 %v873
  %v5043 = vunpack.c.h.b16 %v873
  %v5044 = vunpack.c.l.b16 %v874
  %v5045 = vunpack.c.h.b16 %v874
  %v5046 = vunpack.c.l.b16 %v875
  %v5047 = vunpack.c.h.b16 %v875
  %v5048 = vunpack.c.l.b16 %v876
  %v5049 = vunpack.c.h.b16 %v876
  %v5050 = vunpack.c.l.b16 %v877
  %v5051 = vunpack.c.h.b16 %v877
  %v5052 = vunpack.c.l.b16 %v878
  %v5053 = vunpack.c.h.b16 %v878
  %v5054 = vunpack.c.l.b16 %v879
  %v5055 = vunpack.c.h.b16 %v879
  %v5056 = vunpack.c.l.b16 %v880
  %v5057 = vunpack.c.h.b16 %v880
  %v5058 = vunpack.c.l.b16 %v881
  %v5059 = vunpack.c.h.b16 %v881
  %v5060 = vunpack.c.l.b16 %v882
  %v5061 = vunpack.c.h.b16 %v882
  %v5062 = vunpack.c.l.b16 %v883
  %v5063 = vunpack.c.h.b16 %v883
  %v5064 = vunpack.c.l.b16 %v884
  %v5065 = vunpack.c.h.b16 %v884
  %v5066 = vunpack.c.l.b16 %v885
  %v5067 = vunpack.c.h.b16 %v885
  %v5068 = vunpack.c.l.b16 %v886
  %v5069 = vunpack.c.h.b16 %v886
  %v5070 = vunpack.c.l.b16 %v887
  %v5071 = vunpack.c.h.b16 %v887
  %v5072 = vunpack.c.l.b16 %v888
  %v5073 = vunpack.c.h.b16 %v888
  %v5074 = vunpack.c.l.b16 %v889
  %v5075 = vunpack.c.h.b16 %v889
  %v5076 = vunpack.c.l.b16 %v890
  %v5077 = vunpack.c.h.b16 %v890
  %v5078 = vunpack.c.l.b16 %v891
  %v5079 = vunpack.c.h.b16 %v891
  %v5080 = vunpack.c.l.b16 %v892
  %v5081 = vunpack.c.h.b16 %v892
  %v5082 = vunpack.c.l.b16 %v893
  %v5083 = vunpack.c.h.b16 %v893
  %v5084 = vunpack.c.l.b16 %v894
  %v5085 = vunpack.c.h.b16 %v894
  %v5086 = vunpack.c.l.b16 %v895
  %v5087 = vunpack.c.h.b16 %v895
  %v5088 = vunpack.c.l.b16 %v896
  %v5089 = vunpack.c.h.b16 %v896
  %v5090 = vunpack.c.l.b16 %v897
  %v5091 = vunpack.c.h.b16 %v897
  %v5092 = vunpack.c.l.b16 %v898
  %v5093 = vunpack.c.h.b16 %v898
  %v5094 = vunpack.c.l.b16 %v899
  %v5095 = vunpack.c.h.b16 %v899
  %v5096 = vunpack.c.l.b16 %v900
  %v5097 = vunpack.c.h.b16 %v900
  %v5098 = vunpack.c.l.b16 %v901
  %v5099 = vunpack.c.h.b16 %v901
  %v5100 = vunpack.c.l.b16 %v902
  %v5101 = vunpack.c.h.b16 %v902
  %v5102 = vunpack.c.l.b16 %v903
  %v5103 = vunpack.c.h.b16 %v903
  %v5104 = vunpack.c.l.b16 %v904
  %v5105 = vunpack.c.h.b16 %v904
  %v5106 = vunpack.c.l.b16 %v905
  %v5107 = vunpack.c.h.b16 %v905
  %v5108 = vunpack.c.l.b16 %v906
  %v5109 = vunpack.c.h.b16 %v906
  %v5110 = vunpack.c.l.b16 %v907
  %v5111 = vunpack.c.h.b16 %v907
  %v5112 = vunpack.c.l.b16 %v908
  %v5113 = vunpack.c.h.b16 %v908
  %v5114 = vunpack.c.l.b16 %v909
  %v5115 = vunpack.c.h.b16 %v909
  %v5116 = vunpack.c.l.b16 %v910
  %v5117 = vunpack.c.h.b16 %v910
  %v5118 = vunpack.c.l.b16 %v911
  %v5119 = vunpack.c.h.b16 %v911
  %v5120 = vunpack.c.l.b16 %v912
  %v5121 = vunpack.c.h.b16 %v912
  %v5122 = vunpack.c.l.b16 %v913
  %v5123 = vunpack.c.h.b16 %v913
  %v5124 = vunpack.c.l.b16 %v914
  %v5125 = vunpack.c.h.b16 %v914
  %v5126 = vunpack.c.l.b16 %v915
  %v5127 = vunpack.c.h.b16 %v915
  %v5128 = vunpack.c.l.b16 %v916
  %v5129 = vunpack.c.h.b16 %v916
  %v5130 = vunpack.c.l.b16 %v917
  %v5131 = vunpack.c.h.b16 %v917
  %v5132 = vunpack.c.l.b16 %v918
  %v5133 = vunpack.c.h.b16 %v918
  %v5134 = vunpack.c.l.b16 %v919
  %v5135 = vunpack.c.h.b16 %v919
  %v5136 = vunpack.c.l.b16 %v920
  %v5137 = vunpack.c.h.b16 %v920
  %v5138 = vunpack.c.l.b16 %v921
  %v5139 = vunpack.c.h.b16 %v921
  %v5140 = vunpack.c.l.b16 %v922
  %v5141 = vunpack.c.h.b16 %v922
  %v5142 = vunpack.c.l.b16 %v923
  %v5143 = vunpack.c.h.b16 %v923
  %v5144 = vunpack.c.l.b16 %v924
  %v5145 = vunpack.c.h.b16 %v924
  %v5146 = vunpack.c.l.b16 %v925
  %v5147 = vunpack.c.h.b16 %v925
  %v5148 = vunpack.c.l.b16 %v926
  %v5149 = vunpack.c.h.b16 %v926
  %v5150 = vunpack.c.l.b16 %v927
  %v5151 = vunpack.c.h.b16 %v927
  %v5152 = vunpack.c.l.b16 %v928
  %v5153 = vunpack.c.h.b16 %v928
  %v5154 = vunpack.c.l.b16 %v929
  %v5155 = vunpack.c.h.b16 %v929
  %v5156 = vunpack.c.l.b16 %v930
  %v5157 = vunpack.c.h.b16 %v930
  %v5158 = vunpack.c.l.b16 %v931
  %v5159 = vunpack.c.h.b16 %v931
  %v5160 = vunpack.c.l.b16 %v932
  %v5161 = vunpack.c.h.b16 %v932
  %v5162 = vunpack.c.l.b16 %v933
  %v5163 = vunpack.c.h.b16 %v933
  %v5164 = vunpack.c.l.b16 %v934
  %v5165 = vunpack.c.h.b16 %v934
  %v5166 = vunpack.c.l.b16 %v935
  %v5167 = vunpack.c.h.b16 %v935
  %v5168 = vunpack.c.l.b16 %v936
  %v5169 = vunpack.c.h.b16 %v936
  %v5170 = vunpack.c.l.b16 %v937
  %v5171 = vunpack.c.h.b16 %v937
  %v5172 = vunpack.c.l.b16 %v938
  %v5173 = vunpack.c.h.b16 %v938
  %v5174 = vunpack.c.l.b16 %v939
  %v5175 = vunpack.c.h.b16 %v939
  %v5176 = vunpack.c.l.b16 %v940
  %v5177 = vunpack.c.h.b16 %v940
  %v5178 = vunpack.c.l.b16 %v941
  %v5179 = vunpack.c.h.b16 %v941
  %v5180 = vunpack.c.l.b16 %v942
  %v5181 = vunpack.c.h.b16 %v942
  %v5182 = vunpack.c.l.b16 %v943
  %v5183 = vunpack.c.h.b16 %v943
  %v5184 = vunpack.c.l.b16 %v944
  %v5185 = vunpack.c.h.b16 %v944
  %v5186 = vunpack.c.l.b16 %v945
  %v5187 = vunpack.c.h.b16 %v945
  %v5188 = vunpack.c.l.b16 %v946
  %v5189 = vunpack.c.h.b16 %v946
  %v5190 = vunpack.c.l.b16 %v947
  %v5191 = vunpack.c.h.b16 %v947
  %v5192 = vunpack.c.l.b16 %v948
  %v5193 = vunpack.c.h.b16 %v948
  %v5194 = vunpack.c.l.b16 %v949
  %v5195 = vunpack.c.h.b16 %v949
  %v5196 = vunpack.c.l.b16 %v950
  %v5197 = vunpack.c.h.b16 %v950
  %v5198 = vunpack.c.l.b16 %v951
  %v5199 = vunpack.c.h.b16 %v951
  %v5200 = vunpack.c.l.b16 %v952
  %v5201 = vunpack.c.h.b16 %v952
  %v5202 = vunpack.c.l.b16 %v953
  %v5203 = vunpack.c.h.b16 %v953
  %v5204 = vunpack.c.l.b16 %v954
  %v5205 = vunpack.c.h.b16 %v954
  %v5206 = vunpack.c.l.b16 %v955
  %v5207 = vunpack.c.h.b16 %v955
  %v5208 = vunpack.c.l.b16 %v956
  %v5209 = vunpack.c.h.b16 %v956
  %v5210 = vunpack.c.l.b16 %v957
  %v5211 = vunpack.c.h.b16 %v957
  %v5212 = vunpack.c.l.b16 %v958
  %v5213 = vunpack.c.h.b16 %v958
  %v5214 = vunpack.c.l.b16 %v959
  %v5215 = vunpack.c.h.b16 %v959
  %v5216 = vunpack.c.l.b16 %v960
  %v5217 = vunpack.c.h.b16 %v960
  %v5218 = vunpack.c.l.b16 %v961
  %v5219 = vunpack.c.h.b16 %v961
  %v5220 = vunpack.c.l.b16 %v962
  %v5221 = vunpack.c.h.b16 %v962
  %v5222 = vunpack.c.l.b16 %v963
  %v5223 = vunpack.c.h.b16 %v963
  %v5224 = vunpack.c.l.b16 %v964
  %v5225 = vunpack.c.h.b16 %v964
  %v5226 = vunpack.c.l.b16 %v965
  %v5227 = vunpack.c.h.b16 %v965
  %v5228 = vunpack.c.l.b16 %v966
  %v5229 = vunpack.c.h.b16 %v966
  %v5230 = vunpack.c.l.b16 %v967
  %v5231 = vunpack.c.h.b16 %v967
  %v5232 = vunpack.c.l.b16 %v968
  %v5233 = vunpack.c.h.b16 %v968
  %v5234 = vunpack.c.l.b16 %v969
  %v5235 = vunpack.c.h.b16 %v969
  %v5236 = vunpack.c.l.b16 %v970
  %v5237 = vunpack.c.h.b16 %v970
  %v5238 = vunpack.c.l.b16 %v971
  %v5239 = vunpack.c.h.b16 %v971
  %v5240 = vunpack.c.l.b16 %v972
  %v5241 = vunpack.c.h.b16 %v972
  %v5242 = vunpack.c.l.b16 %v973
  %v5243 = vunpack.c.h.b16 %v973
  %v5244 = vunpack.c.l.b16 %v974
  %v5245 = vunpack.c.h.b16 %v974
  %v5246 = vunpack.c.l.b16 %v975
  %v5247 = vunpack.c.h.b16 %v975
  %v5248 = vunpack.c.l.b16 %v976
  %v5249 = vunpack.c.h.b16 %v976
  %v5250 = vunpack.c.l.b16 %v977
  %v5251 = vunpack.c.h.b16 %v977
  %v5252 = vunpack.c.l.b16 %v978
  %v5253 = vunpack.c.h.b16 %v978
  %v5254 = vunpack.c.l.b16 %v979
  %v5255 = vunpack.c.h.b16 %v979
  %v5256 = vunpack.c.l.b16 %v980
  %v5257 = vunpack.c.h.b16 %v980
  %v5258 = vunpack.c.l.b16 %v981
  %v5259 = vunpack.c.h.b16 %v981
  %v5260 = vunpack.c.l.b16 %v982
  %v5261 = vunpack.c.h.b16 %v982
  %v5262 = vunpack.c.l.b16 %v983
  %v5263 = vunpack.c.h.b16 %v983
  %v5264 = vunpack.c.l.b16 %v984
  %v5265 = vunpack.c.h.b16 %v984
  %v5266 = vunpack.c.l.b16 %v985
  %v5267 = vunpack.c.h.b16 %v985
  %v5268 = vunpack.c.l.b16 %v986
  %v5269 = vunpack.c.h.b16 %v986
  %v5270 = vunpack.c.l.b16 %v987
  %v5271 = vunpack.c.h.b16 %v987
  %v5272 = vunpack.c.l.b16 %v988
  %v5273 = vunpack.c.h.b16 %v988
  %v5274 = vunpack.c.l.b16 %v989
  %v5275 = vunpack.c.h.b16 %v989
  %v5276 = vunpack.c.l.b16 %v990
  %v5277 = vunpack.c.h.b16 %v990
  %v5278 = vunpack.c.l.b16 %v991
  %v5279 = vunpack.c.h.b16 %v991
  %v5280 = vunpack.c.l.b16 %v992
  %v5281 = vunpack.c.h.b16 %v992
  %v5282 = vunpack.c.l.b16 %v993
  %v5283 = vunpack.c.h.b16 %v993
  %v5284 = vunpack.c.l.b16 %v994
  %v5285 = vunpack.c.h.b16 %v994
  %v5286 = vunpack.c.l.b16 %v995
  %v5287 = vunpack.c.h.b16 %v995
  %v5288 = vunpack.c.l.b16 %v996
  %v5289 = vunpack.c.h.b16 %v996
  %v5290 = vunpack.c.l.b16 %v997
  %v5291 = vunpack.c.h.b16 %v997
  %v5292 = vunpack.c.l.b16 %v998
  %v5293 = vunpack.c.h.b16 %v998
  %v5294 = vunpack.c.l.b16 %v999
  %v5295 = vunpack.c.h.b16 %v999
  %v5296 = vunpack.c.l.b16 %v1000
  %v5297 = vunpack.c.h.b16 %v1000
  %v5298 = vunpack.c.l.b16 %v1001
  %v5299 = vunpack.c.h.b16 %v1001
  %v5300 = vunpack.c.l.b16 %v1002
  %v5301 = vunpack.c.h.b16 %v1002
  %v5302 = vunpack.c.l.b16 %v1003
  %v5303 = vunpack.c.h.b16 %v1003
  %v5304 = vunpack.c.l.b16 %v1004
  %v5305 = vunpack.c.h.b16 %v1004
  %v5306 = vunpack.c.l.b16 %v1005
  %v5307 = vunpack.c.h.b16 %v1005
  %v5308 = vunpack.c.l.b16 %v1006
  %v5309 = vunpack.c.h.b16 %v1006
  %v5310 = vunpack.c.l.b16 %v1007
  %v5311 = vunpack.c.h.b16 %v1007
  %v5312 = vunpack.c.l.b16 %v1008
  %v5313 = vunpack.c.h.b16 %v1008
  %v5314 = vunpack.c.l.b16 %v1009
  %v5315 = vunpack.c.h.b16 %v1009
  %v5316 = vunpack.c.l.b16 %v1010
  %v5317 = vunpack.c.h.b16 %v1010
  %v5318 = vunpack.c.l.b16 %v1011
  %v5319 = vunpack.c.h.b16 %v1011
  %v5320 = vunpack.c.l.b16 %v1012
  %v5321 = vunpack.c.h.b16 %v1012
  %v5322 = vunpack.c.l.b16 %v1013
  %v5323 = vunpack.c.h.b16 %v1013
  %v5324 = vunpack.c.l.b16 %v1014
  %v5325 = vunpack.c.h.b16 %v1014
  %v5326 = vunpack.c.l.b16 %v1015
  %v5327 = vunpack.c.h.b16 %v1015
  %v5328 = vunpack.c.l.b16 %v1016
  %v5329 = vunpack.c.h.b16 %v1016
  %v5330 = vunpack.c.l.b16 %v1017
  %v5331 = vunpack.c.h.b16 %v1017
  %v5332 = vunpack.c.l.b16 %v1018
  %v5333 = vunpack.c.h.b16 %v1018
  %v5334 = vunpack.c.l.b16 %v1019
  %v5335 = vunpack.c.h.b16 %v1019
  %v5336 = vunpack.c.l.b16 %v1020
  %v5337 = vunpack.c.h.b16 %v1020
  %v5338 = vunpack.c.l.b16 %v1021
  %v5339 = vunpack.c.h.b16 %v1021
  %v5340 = vunpack.c.l.b16 %v1022
  %v5341 = vunpack.c.h.b16 %v1022
  %v5342 = vunpack.c.l.b16 %v1023
  %v5343 = vunpack.c.h.b16 %v1023
  %v5344 = vunpack.c.l.b16 %v1024
  %v5345 = vunpack.c.h.b16 %v1024
  %v5346 = vunpack.c.l.b16 %v1025
  %v5347 = vunpack.c.h.b16 %v1025
  %v5348 = vunpack.c.l.b16 %v1026
  %v5349 = vunpack.c.h.b16 %v1026
  %v5350 = vunpack.c.l.b16 %v1027
  %v5351 = vunpack.c.h.b16 %v1027
  %v5352 = vunpack.c.l.b16 %v1028
  %v5353 = vunpack.c.h.b16 %v1028
  %v5354 = vunpack.c.l.b16 %v1029
  %v5355 = vunpack.c.h.b16 %v1029
  %v5356 = vunpack.c.l.b16 %v1030
  %v5357 = vunpack.c.h.b16 %v1030
  %v5358 = vunpack.c.l.b16 %v1031
  %v5359 = vunpack.c.h.b16 %v1031
  %v5360 = vunpack.c.l.b16 %v1032
  %v5361 = vunpack.c.h.b16 %v1032
  %v5362 = vunpack.c.l.b16 %v1033
  %v5363 = vunpack.c.h.b16 %v1033
  %v5364 = vunpack.c.l.b16 %v1034
  %v5365 = vunpack.c.h.b16 %v1034
  %v5366 = vunpack.c.l.b16 %v1035
  %v5367 = vunpack.c.h.b16 %v1035
  %v5368 = vunpack.c.l.b16 %v1036
  %v5369 = vunpack.c.h.b16 %v1036
  %v5370 = vunpack.c.l.b16 %v1037
  %v5371 = vunpack.c.h.b16 %v1037
  %v5372 = vunpack.c.l.b16 %v1038
  %v5373 = vunpack.c.h.b16 %v1038
  %v5374 = vunpack.c.l.b16 %v1039
  %v5375 = vunpack.c.h.b16 %v1039
  %v5376 = vunpack.c.l.b16 %v1040
  %v5377 = vunpack.c.h.b16 %v1040
  %v5378 = vunpack.c.l.b16 %v1041
  %v5379 = vunpack.c.h.b16 %v1041
  %v5380 = vunpack.c.l.b16 %v1042
  %v5381 = vunpack.c.h.b16 %v1042
  %v5382 = vunpack.c.l.b16 %v1043
  %v5383 = vunpack.c.h.b16 %v1043
  %v5384 = vunpack.c.l.b16 %v1044
  %v5385 = vunpack.c.h.b16 %v1044
  %v5386 = vunpack.c.l.b16 %v1045
  %v5387 = vunpack.c.h.b16 %v1045
  %v5388 = vunpack.c.l.b16 %v1046
  %v5389 = vunpack.c.h.b16 %v1046
  %v5390 = vunpack.c.l.b16 %v1047
  %v5391 = vunpack.c.h.b16 %v1047
  %v5392 = vunpack.c.l.b16 %v1048
  %v5393 = vunpack.c.h.b16 %v1048
  %v5394 = vunpack.c.l.b16 %v1049
  %v5395 = vunpack.c.h.b16 %v1049
  %v5396 = vunpack.c.l.b16 %v1050
  %v5397 = vunpack.c.h.b16 %v1050
  %v5398 = vunpack.c.l.b16 %v1051
  %v5399 = vunpack.c.h.b16 %v1051
  %v5400 = vunpack.c.l.b16 %v1052
  %v5401 = vunpack.c.h.b16 %v1052
  %v5402 = vunpack.c.l.b16 %v1053
  %v5403 = vunpack.c.h.b16 %v1053
  %v5404 = vunpack.c.l.b16 %v1054
  %v5405 = vunpack.c.h.b16 %v1054
  %v5406 = vunpack.c.l.b16 %v1055
  %v5407 = vunpack.c.h.b16 %v1055
  %v5408 = vunpack.c.l.b16 %v1056
  %v5409 = vunpack.c.h.b16 %v1056
  %v5410 = vunpack.c.l.b16 %v1057
  %v5411 = vunpack.c.h.b16 %v1057
  %v5412 = vunpack.c.l.b16 %v1058
  %v5413 = vunpack.c.h.b16 %v1058
  %v5414 = vunpack.c.l.b16 %v1059
  %v5415 = vunpack.c.h.b16 %v1059
  %v5416 = vunpack.c.l.b16 %v1060
  %v5417 = vunpack.c.h.b16 %v1060
  %v5418 = vunpack.c.l.b16 %v1061
  %v5419 = vunpack.c.h.b16 %v1061
  %v5420 = vunpack.c.l.b16 %v1062
  %v5421 = vunpack.c.h.b16 %v1062
  %v5422 = vunpack.c.l.b16 %v1063
  %v5423 = vunpack.c.h.b16 %v1063
  %v5424 = vunpack.c.l.b16 %v1064
  %v5425 = vunpack.c.h.b16 %v1064
  %v5426 = vunpack.c.l.b16 %v1065
  %v5427 = vunpack.c.h.b16 %v1065
  %v5428 = vunpack.c.l.b16 %v1066
  %v5429 = vunpack.c.h.b16 %v1066
  %v5430 = vunpack.c.l.b16 %v1067
  %v5431 = vunpack.c.h.b16 %v1067
  %v5432 = vunpack.c.l.b16 %v1068
  %v5433 = vunpack.c.h.b16 %v1068
  %v5434 = vunpack.c.l.b16 %v1069
  %v5435 = vunpack.c.h.b16 %v1069
  %v5436 = vunpack.c.l.b16 %v1070
  %v5437 = vunpack.c.h.b16 %v1070
  %v5438 = vunpack.c.l.b16 %v1071
  %v5439 = vunpack.c.h.b16 %v1071
  %v5440 = vunpack.c.l.b16 %v1072
  %v5441 = vunpack.c.h.b16 %v1072
  %v5442 = vunpack.c.l.b16 %v1073
  %v5443 = vunpack.c.h.b16 %v1073
  %v5444 = vunpack.c.l.b16 %v1074
  %v5445 = vunpack.c.h.b16 %v1074
  %v5446 = vunpack.c.l.b16 %v1075
  %v5447 = vunpack.c.h.b16 %v1075
  %v5448 = vunpack.c.l.b16 %v1076
  %v5449 = vunpack.c.h.b16 %v1076
  %v5450 = vunpack.c.l.b16 %v1077
  %v5451 = vunpack.c.h.b16 %v1077
  %v5452 = vunpack.c.l.b16 %v1078
  %v5453 = vunpack.c.h.b16 %v1078
  %v5454 = vunpack.c.l.b16 %v1079
  %v5455 = vunpack.c.h.b16 %v1079
  %v5456 = vunpack.c.l.b16 %v1080
  %v5457 = vunpack.c.h.b16 %v1080
  %v5458 = vunpack.c.l.b16 %v1081
  %v5459 = vunpack.c.h.b16 %v1081
  %v5460 = vunpack.c.l.b16 %v1082
  %v5461 = vunpack.c.h.b16 %v1082
  %v5462 = vunpack.c.l.b16 %v1083
  %v5463 = vunpack.c.h.b16 %v1083
  %v5464 = vunpack.c.l.b16 %v1084
  %v5465 = vunpack.c.h.b16 %v1084
  %v5466 = vunpack.c.l.b16 %v1085
  %v5467 = vunpack.c.h.b16 %v1085
  %v5468 = vunpack.c.l.b16 %v1086
  %v5469 = vunpack.c.h.b16 %v1086
  %v5470 = vunpack.c.l.b16 %v1087
  %v5471 = vunpack.c.h.b16 %v1087
  %v5472 = vunpack.c.l.b16 %v1088
  %v5473 = vunpack.c.h.b16 %v1088
  %v5474 = vunpack.c.l.b16 %v1089
  %v5475 = vunpack.c.h.b16 %v1089
  %v5476 = vunpack.c.l.b16 %v1090
  %v5477 = vunpack.c.h.b16 %v1090
  %v5478 = vunpack.c.l.b16 %v1091
  %v5479 = vunpack.c.h.b16 %v1091
  %v5480 = vunpack.c.l.b16 %v1092
  %v5481 = vunpack.c.h.b16 %v1092
  %v5482 = vunpack.c.l.b16 %v1093
  %v5483 = vunpack.c.h.b16 %v1093
  %v5484 = vunpack.c.l.b16 %v1094
  %v5485 = vunpack.c.h.b16 %v1094
  %v5486 = vunpack.c.l.b16 %v1095
  %v5487 = vunpack.c.h.b16 %v1095
  %v5488 = vunpack.c.l.b16 %v1096
  %v5489 = vunpack.c.h.b16 %v1096
  %v5490 = vunpack.c.l.b16 %v1097
  %v5491 = vunpack.c.h.b16 %v1097
  %v5492 = vunpack.c.l.b16 %v1098
  %v5493 = vunpack.c.h.b16 %v1098
  %v5494 = vunpack.c.l.b16 %v1099
  %v5495 = vunpack.c.h.b16 %v1099
  %v5496 = vunpack.c.l.b16 %v1100
  %v5497 = vunpack.c.h.b16 %v1100
  %v5498 = vunpack.c.l.b16 %v1101
  %v5499 = vunpack.c.h.b16 %v1101
  %v5500 = vunpack.c.l.b16 %v1102
  %v5501 = vunpack.c.h.b16 %v1102
  %v5502 = vunpack.c.l.b16 %v1103
  %v5503 = vunpack.c.h.b16 %v1103
  %v5504 = vunpack.c.l.b16 %v1104
  %v5505 = vunpack.c.h.b16 %v1104
  %v5506 = vunpack.c.l.b16 %v1105
  %v5507 = vunpack.c.h.b16 %v1105
  %v5508 = vunpack.c.l.b16 %v1106
  %v5509 = vunpack.c.h.b16 %v1106
  %v5510 = vunpack.c.l.b16 %v1107
  %v5511 = vunpack.c.h.b16 %v1107
  %v5512 = vunpack.c.l.b16 %v1108
  %v5513 = vunpack.c.h.b16 %v1108
  %v5514 = vunpack.c.l.b16 %v1109
  %v5515 = vunpack.c.h.b16 %v1109
  %v5516 = vunpack.c.l.b16 %v1110
  %v5517 = vunpack.c.h.b16 %v1110
  %v5518 = vunpack.c.l.b16 %v1111
  %v5519 = vunpack.c.h.b16 %v1111
  %v5520 = vunpack.c.l.b16 %v1112
  %v5521 = vunpack.c.h.b16 %v1112
  %v5522 = vunpack.c.l.b16 %v1113
  %v5523 = vunpack.c.h.b16 %v1113
  %v5524 = vunpack.c.l.b16 %v1114
  %v5525 = vunpack.c.h.b16 %v1114
  %v5526 = vunpack.c.l.b16 %v1115
  %v5527 = vunpack.c.h.b16 %v1115
  %v5528 = vunpack.c.l.b16 %v1116
  %v5529 = vunpack.c.h.b16 %v1116
  %v5530 = vunpack.c.l.b16 %v1117
  %v5531 = vunpack.c.h.b16 %v1117
  %v5532 = vunpack.c.l.b16 %v1118
  %v5533 = vunpack.c.h.b16 %v1118
  %v5534 = vunpack.c.l.b16 %v1119
  %v5535 = vunpack.c.h.b16 %v1119
  %v5536 = vunpack.c.l.b16 %v1120
  %v5537 = vunpack.c.h.b16 %v1120
  %v5538 = vunpack.c.l.b16 %v1121
  %v5539 = vunpack.c.h.b16 %v1121
  %v5540 = vunpack.c.l.b16 %v1122
  %v5541 = vunpack.c.h.b16 %v1122
  %v5542 = vunpack.c.l.b16 %v1123
  %v5543 = vunpack.c.h.b16 %v1123
  %v5544 = vunpack.c.l.b16 %v1124
  %v5545 = vunpack.c.h.b16 %v1124
  %v5546 = vunpack.c.l.b16 %v1125
  %v5547 = vunpack.c.h.b16 %v1125
  %v5548 = vunpack.c.l.b16 %v1126
  %v5549 = vunpack.c.h.b16 %v1126
  %v5550 = vunpack.c.l.b16 %v1127
  %v5551 = vunpack.c.h.b16 %v1127
  %v5552 = vunpack.c.l.b16 %v1128
  %v5553 = vunpack.c.h.b16 %v1128
  %v5554 = vunpack.c.l.b16 %v1129
  %v5555 = vunpack.c.h.b16 %v1129
  %v5556 = vunpack.c.l.b16 %v1130
  %v5557 = vunpack.c.h.b16 %v1130
  %v5558 = vunpack.c.l.b16 %v1131
  %v5559 = vunpack.c.h.b16 %v1131
  %v5560 = vunpack.c.l.b16 %v1132
  %v5561 = vunpack.c.h.b16 %v1132
  %v5562 = vunpack.c.l.b16 %v1133
  %v5563 = vunpack.c.h.b16 %v1133
  %v5564 = vunpack.c.l.b16 %v1134
  %v5565 = vunpack.c.h.b16 %v1134
  %v5566 = vunpack.c.l.b16 %v1135
  %v5567 = vunpack.c.h.b16 %v1135
  %v5568 = vunpack.c.l.b16 %v1136
  %v5569 = vunpack.c.h.b16 %v1136
  %v5570 = vunpack.c.l.b16 %v1137
  %v5571 = vunpack.c.h.b16 %v1137
  %v5572 = vunpack.c.l.b16 %v1138
  %v5573 = vunpack.c.h.b16 %v1138
  %v5574 = vunpack.c.l.b16 %v1139
  %v5575 = vunpack.c.h.b16 %v1139
  %v5576 = vunpack.c.l.b16 %v1140
  %v5577 = vunpack.c.h.b16 %v1140
  %v5578 = vunpack.c.l.b16 %v1141
  %v5579 = vunpack.c.h.b16 %v1141
  %v5580 = vunpack.c.l.b16 %v1142
  %v5581 = vunpack.c.h.b16 %v1142
  %v5582 = vunpack.c.l.b16 %v1143
  %v5583 = vunpack.c.h.b16 %v1143
  %v5584 = vunpack.c.l.b16 %v1144
  %v5585 = vunpack.c.h.b16 %v1144
  %v5586 = vunpack.c.l.b16 %v1145
  %v5587 = vunpack.c.h.b16 %v1145
  %v5588 = vunpack.c.l.b16 %v1146
  %v5589 = vunpack.c.h.b16 %v1146
  %v5590 = vunpack.c.l.b16 %v1147
  %v5591 = vunpack.c.h.b16 %v1147
  %v5592 = vunpack.c.l.b16 %v1148
  %v5593 = vunpack.c.h.b16 %v1148
  %v5594 = vunpack.c.l.b16 %v1149
  %v5595 = vunpack.c.h.b16 %v1149
  %v5596 = vunpack.c.l.b16 %v1150
  %v5597 = vunpack.c.h.b16 %v1150
  %v5598 = vunpack.c.l.b16 %v1151
  %v5599 = vunpack.c.h.b16 %v1151
  %v5600 = vunpack.c.l.b16 %v1152
  %v5601 = vunpack.c.h.b16 %v1152
  %v5602 = vunpack.c.l.b16 %v1153
  %v5603 = vunpack.c.h.b16 %v1153
  %v5604 = vunpack.c.l.b16 %v1154
  %v5605 = vunpack.c.h.b16 %v1154
  %v5606 = vunpack.c.l.b16 %v1155
  %v5607 = vunpack.c.h.b16 %v1155
  %v5608 = vunpack.c.l.b16 %v1156
  %v5609 = vunpack.c.h.b16 %v1156
  %v5610 = vunpack.c.l.b16 %v1157
  %v5611 = vunpack.c.h.b16 %v1157
  %v5612 = vunpack.c.l.b16 %v1158
  %v5613 = vunpack.c.h.b16 %v1158
  %v5614 = vunpack.c.l.b16 %v1159
  %v5615 = vunpack.c.h.b16 %v1159
  %v5616 = vunpack.c.l.b16 %v1160
  %v5617 = vunpack.c.h.b16 %v1160
  %v5618 = vunpack.c.l.b16 %v1161
  %v5619 = vunpack.c.h.b16 %v1161
  %v5620 = vunpack.c.l.b16 %v1162
  %v5621 = vunpack.c.h.b16 %v1162
  %v5622 = vunpack.c.l.b16 %v1163
  %v5623 = vunpack.c.h.b16 %v1163
  %v5624 = vunpack.c.l.b16 %v1164
  %v5625 = vunpack.c.h.b16 %v1164
  %v5626 = vunpack.c.l.b16 %v1165
  %v5627 = vunpack.c.h.b16 %v1165
  %v5628 = vunpack.c.l.b16 %v1166
  %v5629 = vunpack.c.h.b16 %v1166
  %v5630 = vunpack.c.l.b16 %v1167
  %v5631 = vunpack.c.h.b16 %v1167
  %v5632 = vunpack.c.l.b16 %v1168
  %v5633 = vunpack.c.h.b16 %v1168
  %v5634 = vunpack.c.l.b16 %v1169
  %v5635 = vunpack.c.h.b16 %v1169
  %v5636 = vunpack.c.l.b16 %v1170
  %v5637 = vunpack.c.h.b16 %v1170
  %v5638 = vunpack.c.l.b16 %v1171
  %v5639 = vunpack.c.h.b16 %v1171
  %v5640 = vunpack.c.l.b16 %v1172
  %v5641 = vunpack.c.h.b16 %v1172
  %v5642 = vunpack.c.l.b16 %v1173
  %v5643 = vunpack.c.h.b16 %v1173
  %v5644 = vunpack.c.l.b16 %v1174
  %v5645 = vunpack.c.h.b16 %v1174
  %v5646 = vunpack.c.l.b16 %v1175
  %v5647 = vunpack.c.h.b16 %v1175
  %v5648 = vunpack.c.l.b16 %v1176
  %v5649 = vunpack.c.h.b16 %v1176
  %v5650 = vunpack.c.l.b16 %v1177
  %v5651 = vunpack.c.h.b16 %v1177
  %v5652 = vunpack.c.l.b16 %v1178
  %v5653 = vunpack.c.h.b16 %v1178
  %v5654 = vunpack.c.l.b16 %v1179
  %v5655 = vunpack.c.h.b16 %v1179
  %v5656 = vunpack.c.l.b16 %v1180
  %v5657 = vunpack.c.h.b16 %v1180
  %v5658 = vunpack.c.l.b16 %v1181
  %v5659 = vunpack.c.h.b16 %v1181
  %v5660 = vunpack.c.l.b16 %v1182
  %v5661 = vunpack.c.h.b16 %v1182
  %v5662 = vunpack.c.l.b16 %v1183
  %v5663 = vunpack.c.h.b16 %v1183
  %v5664 = vunpack.c.l.b16 %v1184
  %v5665 = vunpack.c.h.b16 %v1184
  %v5666 = vunpack.c.l.b16 %v1185
  %v5667 = vunpack.c.h.b16 %v1185
  %v5668 = vunpack.c.l.b16 %v1186
  %v5669 = vunpack.c.h.b16 %v1186
  %v5670 = vunpack.c.l.b16 %v1187
  %v5671 = vunpack.c.h.b16 %v1187
  %v5672 = vunpack.c.l.b16 %v1188
  %v5673 = vunpack.c.h.b16 %v1188
  %v5674 = vunpack.c.l.b16 %v1189
  %v5675 = vunpack.c.h.b16 %v1189
  %v5676 = vunpack.c.l.b16 %v1190
  %v5677 = vunpack.c.h.b16 %v1190
  %v5678 = vunpack.c.l.b16 %v1191
  %v5679 = vunpack.c.h.b16 %v1191
  %v5680 = vunpack.c.l.b16 %v1192
  %v5681 = vunpack.c.h.b16 %v1192
  %v5682 = vunpack.c.l.b16 %v1193
  %v5683 = vunpack.c.h.b16 %v1193
  %v5684 = vunpack.c.l.b16 %v1194
  %v5685 = vunpack.c.h.b16 %v1194
  %v5686 = vunpack.c.l.b16 %v1195
  %v5687 = vunpack.c.h.b16 %v1195
  %v5688 = vunpack.c.l.b16 %v1196
  %v5689 = vunpack.c.h.b16 %v1196
  %v5690 = vunpack.c.l.b16 %v1197
  %v5691 = vunpack.c.h.b16 %v1197
  %v5692 = vunpack.c.l.b16 %v1198
  %v5693 = vunpack.c.h.b16 %v1198
  %v5694 = vunpack.c.l.b16 %v1199
  %v5695 = vunpack.c.h.b16 %v1199
  %v5696 = vunpack.c.l.b16 %v1200
  %v5697 = vunpack.c.h.b16 %v1200
  %v5698 = vunpack.c.l.b16 %v1201
  %v5699 = vunpack.c.h.b16 %v1201
  %v5700 = vunpack.c.l.b16 %v1202
  %v5701 = vunpack.c.h.b16 %v1202
  %v5702 = vunpack.c.l.b16 %v1203
  %v5703 = vunpack.c.h.b16 %v1203
  %v5704 = vunpack.c.l.b16 %v1204
  %v5705 = vunpack.c.h.b16 %v1204
  %v5706 = vunpack.c.l.b16 %v1205
  %v5707 = vunpack.c.h.b16 %v1205
  %v5708 = vunpack.c.l.b16 %v1206
  %v5709 = vunpack.c.h.b16 %v1206
  %v5710 = vunpack.c.l.b16 %v1207
  %v5711 = vunpack.c.h.b16 %v1207
  %v5712 = vunpack.c.l.b16 %v1208
  %v5713 = vunpack.c.h.b16 %v1208
  %v5714 = vunpack.c.l.b16 %v1209
  %v5715 = vunpack.c.h.b16 %v1209
  %v5716 = vunpack.c.l.b16 %v1210
  %v5717 = vunpack.c.h.b16 %v1210
  %v5718 = vunpack.c.l.b16 %v1211
  %v5719 = vunpack.c.h.b16 %v1211
  %v5720 = vunpack.c.l.b16 %v1212
  %v5721 = vunpack.c.h.b16 %v1212
  %v5722 = vunpack.c.l.b16 %v1213
  %v5723 = vunpack.c.h.b16 %v1213
  %v5724 = vunpack.c.l.b16 %v1214
  %v5725 = vunpack.c.h.b16 %v1214
  %v5726 = vunpack.c.l.b16 %v1215
  %v5727 = vunpack.c.h.b16 %v1215
  %v5728 = vunpack.c.l.b16 %v1216
  %v5729 = vunpack.c.h.b16 %v1216
  %v5730 = vunpack.c.l.b16 %v1217
  %v5731 = vunpack.c.h.b16 %v1217
  %v5732 = vunpack.c.l.b16 %v1218
  %v5733 = vunpack.c.h.b16 %v1218
  %v5734 = vunpack.c.l.b16 %v1219
  %v5735 = vunpack.c.h.b16 %v1219
  %v5736 = vunpack.c.l.b16 %v1220
  %v5737 = vunpack.c.h.b16 %v1220
  %v5738 = vunpack.c.l.b16 %v1221
  %v5739 = vunpack.c.h.b16 %v1221
  %v5740 = vunpack.c.l.b16 %v1222
  %v5741 = vunpack.c.h.b16 %v1222
  %v5742 = vunpack.c.l.b16 %v1223
  %v5743 = vunpack.c.h.b16 %v1223
  %v5744 = vunpack.c.l.b16 %v1224
  %v5745 = vunpack.c.h.b16 %v1224
  %v5746 = vunpack.c.l.b16 %v1225
  %v5747 = vunpack.c.h.b16 %v1225
  %v5748 = vunpack.c.l.b16 %v1226
  %v5749 = vunpack.c.h.b16 %v1226
  %v5750 = vunpack.c.l.b16 %v1227
  %v5751 = vunpack.c.h.b16 %v1227
  %v5752 = vunpack.c.l.b16 %v1228
  %v5753 = vunpack.c.h.b16 %v1228
  %v5754 = vunpack.c.l.b16 %v1229
  %v5755 = vunpack.c.h.b16 %v1229
  %v5756 = vunpack.c.l.b16 %v1230
  %v5757 = vunpack.c.h.b16 %v1230
  %v5758 = vunpack.c.l.b16 %v1231
  %v5759 = vunpack.c.h.b16 %v1231
  %v5760 = vunpack.c.l.b16 %v1232
  %v5761 = vunpack.c.h.b16 %v1232
  %v5762 = vunpack.c.l.b16 %v1233
  %v5763 = vunpack.c.h.b16 %v1233
  %v5764 = vunpack.c.l.b16 %v1234
  %v5765 = vunpack.c.h.b16 %v1234
  %v5766 = vunpack.c.l.b16 %v1235
  %v5767 = vunpack.c.h.b16 %v1235
  %v5768 = vunpack.c.l.b16 %v1236
  %v5769 = vunpack.c.h.b16 %v1236
  %v5770 = vunpack.c.l.b16 %v1237
  %v5771 = vunpack.c.h.b16 %v1237
  %v5772 = vunpack.c.l.b16 %v1238
  %v5773 = vunpack.c.h.b16 %v1238
  %v5774 = vunpack.c.l.b16 %v1239
  %v5775 = vunpack.c.h.b16 %v1239
  %v5776 = vunpack.c.l.b16 %v1240
  %v5777 = vunpack.c.h.b16 %v1240
  %v5778 = vunpack.c.l.b16 %v1241
  %v5779 = vunpack.c.h.b16 %v1241
  %v5780 = vunpack.c.l.b16 %v1242
  %v5781 = vunpack.c.h.b16 %v1242
  %v5782 = vunpack.c.l.b16 %v1243
  %v5783 = vunpack.c.h.b16 %v1243
  %v5784 = vunpack.c.l.b16 %v1244
  %v5785 = vunpack.c.h.b16 %v1244
  %v5786 = vunpack.c.l.b16 %v1245
  %v5787 = vunpack.c.h.b16 %v1245
  %v5788 = vunpack.c.l.b16 %v1246
  %v5789 = vunpack.c.h.b16 %v1246
  %v5790 = vunpack.c.l.b16 %v1247
  %v5791 = vunpack.c.h.b16 %v1247
  %v5792 = vunpack.c.l.b16 %v1248
  %v5793 = vunpack.c.h.b16 %v1248
  %v5794 = vunpack.c.l.b16 %v1249
  %v5795 = vunpack.c.h.b16 %v1249
  %v5796 = vunpack.c.l.b16 %v1250
  %v5797 = vunpack.c.h.b16 %v1250
  %v5798 = vunpack.c.l.b16 %v1251
  %v5799 = vunpack.c.h.b16 %v1251
  %v5800 = vunpack.c.l.b16 %v1252
  %v5801 = vunpack.c.h.b16 %v1252
  %v5802 = vunpack.c.l.b16 %v1253
  %v5803 = vunpack.c.h.b16 %v1253
  %v5804 = vunpack.c.l.b16 %v1254
  %v5805 = vunpack.c.h.b16 %v1254
  %v5806 = vunpack.c.l.b16 %v1255
  %v5807 = vunpack.c.h.b16 %v1255
  %v5808 = vunpack.c.l.b16 %v1256
  %v5809 = vunpack.c.h.b16 %v1256
  %v5810 = vunpack.c.l.b16 %v1257
  %v5811 = vunpack.c.h.b16 %v1257
  %v5812 = vunpack.c.l.b16 %v1258
  %v5813 = vunpack.c.h.b16 %v1258
  %v5814 = vunpack.c.l.b16 %v1259
  %v5815 = vunpack.c.h.b16 %v1259
  %v5816 = vunpack.c.l.b16 %v1260
  %v5817 = vunpack.c.h.b16 %v1260
  %v5818 = vunpack.c.l.b16 %v1261
  %v5819 = vunpack.c.h.b16 %v1261
  %v5820 = vunpack.c.l.b16 %v1262
  %v5821 = vunpack.c.h.b16 %v1262
  %v5822 = vunpack.c.l.b16 %v1263
  %v5823 = vunpack.c.h.b16 %v1263
  %v5824 = vunpack.c.l.b16 %v1264
  %v5825 = vunpack.c.h.b16 %v1264
  %v5826 = vunpack.c.l.b16 %v1265
  %v5827 = vunpack.c.h.b16 %v1265
  %v5828 = vunpack.c.l.b16 %v1266
  %v5829 = vunpack.c.h.b16 %v1266
  %v5830 = vunpack.c.l.b16 %v1267
  %v5831 = vunpack.c.h.b16 %v1267
  %v5832 = vunpack.c.l.b16 %v1268
  %v5833 = vunpack.c.h.b16 %v1268
  %v5834 = vunpack.c.l.b16 %v1269
  %v5835 = vunpack.c.h.b16 %v1269
  %v5836 = vunpack.c.l.b16 %v1270
  %v5837 = vunpack.c.h.b16 %v1270
  %v5838 = vunpack.c.l.b16 %v1271
  %v5839 = vunpack.c.h.b16 %v1271
  %v5840 = vunpack.c.l.b16 %v1272
  %v5841 = vunpack.c.h.b16 %v1272
  %v5842 = vunpack.c.l.b16 %v1273
  %v5843 = vunpack.c.h.b16 %v1273
  %v5844 = vunpack.c.l.b16 %v1274
  %v5845 = vunpack.c.h.b16 %v1274
  %v5846 = vunpack.c.l.b16 %v1275
  %v5847 = vunpack.c.h.b16 %v1275
  %v5848 = vunpack.c.l.b16 %v1276
  %v5849 = vunpack.c.h.b16 %v1276
  %v5850 = vunpack.c.l.b16 %v1277
  %v5851 = vunpack.c.h.b16 %v1277
  %v5852 = vunpack.c.l.b16 %v1278
  %v5853 = vunpack.c.h.b16 %v1278
  %v5854 = vunpack.c.l.b16 %v1279
  %v5855 = vunpack.c.h.b16 %v1279
  %v5856 = vunpack.c.l.b16 %v1280
  %v5857 = vunpack.c.h.b16 %v1280
  %v5858 = vunpack.c.l.b16 %v1281
  %v5859 = vunpack.c.h.b16 %v1281
  %v5860 = vunpack.c.l.b16 %v1282
  %v5861 = vunpack.c.h.b16 %v1282
  %v5862 = vunpack.c.l.b16 %v1283
  %v5863 = vunpack.c.h.b16 %v1283
  %v5864 = vunpack.c.l.b16 %v1284
  %v5865 = vunpack.c.h.b16 %v1284
  %v5866 = vunpack.c.l.b16 %v1285
  %v5867 = vunpack.c.h.b16 %v1285
  %v5868 = vunpack.c.l.b16 %v1286
  %v5869 = vunpack.c.h.b16 %v1286
  %v5870 = vunpack.c.l.b16 %v1287
  %v5871 = vunpack.c.h.b16 %v1287
  %v5872 = vunpack.c.l.b16 %v1288
  %v5873 = vunpack.c.h.b16 %v1288
  %v5874 = vunpack.c.l.b16 %v1289
  %v5875 = vunpack.c.h.b16 %v1289
  %v5876 = vunpack.c.l.b16 %v1290
  %v5877 = vunpack.c.h.b16 %v1290
  %v5878 = vunpack.c.l.b16 %v1291
  %v5879 = vunpack.c.h.b16 %v1291
  %v5880 = vunpack.c.l.b16 %v1292
  %v5881 = vunpack.c.h.b16 %v1292
  %v5882 = vunpack.c.l.b16 %v1293
  %v5883 = vunpack.c.h.b16 %v1293
  %v5884 = vunpack.c.l.b16 %v1294
  %v5885 = vunpack.c.h.b16 %v1294
  %v5886 = vunpack.c.l.b16 %v1295
  %v5887 = vunpack.c.h.b16 %v1295
  %v5888 = vunpack.c.l.b16 %v1296
  %v5889 = vunpack.c.h.b16 %v1296
  %v5890 = vunpack.c.l.b16 %v1297
  %v5891 = vunpack.c.h.b16 %v1297
  %v5892 = vunpack.c.l.b16 %v1298
  %v5893 = vunpack.c.h.b16 %v1298
  %v5894 = vunpack.c.l.b16 %v1299
  %v5895 = vunpack.c.h.b16 %v1299
  %v5896 = vunpack.c.l.b16 %v1300
  %v5897 = vunpack.c.h.b16 %v1300
  %v5898 = vunpack.c.l.b16 %v1301
  %v5899 = vunpack.c.h.b16 %v1301
  %v5900 = vunpack.c.l.b16 %v1302
  %v5901 = vunpack.c.h.b16 %v1302
  %v5902 = vunpack.c.l.b16 %v1303
  %v5903 = vunpack.c.h.b16 %v1303
  %v5904 = vunpack.c.l.b16 %v1304
  %v5905 = vunpack.c.h.b16 %v1304
  %v5906 = vunpack.c.l.b16 %v1305
  %v5907 = vunpack.c.h.b16 %v1305
  %v5908 = vunpack.c.l.b16 %v1306
  %v5909 = vunpack.c.h.b16 %v1306
  %v5910 = vunpack.c.l.b16 %v1307
  %v5911 = vunpack.c.h.b16 %v1307
  %v5912 = vunpack.c.l.b16 %v1308
  %v5913 = vunpack.c.h.b16 %v1308
  %v5914 = vunpack.c.l.b16 %v1309
  %v5915 = vunpack.c.h.b16 %v1309
  %v5916 = vunpack.c.l.b16 %v1310
  %v5917 = vunpack.c.h.b16 %v1310
  %v5918 = vunpack.c.l.b16 %v1311
  %v5919 = vunpack.c.h.b16 %v1311
  %v5920 = vunpack.c.l.b16 %v1312
  %v5921 = vunpack.c.h.b16 %v1312
  %v5922 = vunpack.c.l.b16 %v1313
  %v5923 = vunpack.c.h.b16 %v1313
  %v5924 = vunpack.c.l.b16 %v1314
  %v5925 = vunpack.c.h.b16 %v1314
  %v5926 = vunpack.c.l.b16 %v1315
  %v5927 = vunpack.c.h.b16 %v1315
  %v5928 = vunpack.c.l.b16 %v1316
  %v5929 = vunpack.c.h.b16 %v1316
  %v5930 = vunpack.c.l.b16 %v1317
  %v5931 = vunpack.c.h.b16 %v1317
  %v5932 = vunpack.c.l.b16 %v1318
  %v5933 = vunpack.c.h.b16 %v1318
  %v5934 = vunpack.c.l.b16 %v1319
  %v5935 = vunpack.c.h.b16 %v1319
  %v5936 = vunpack.c.l.b16 %v1320
  %v5937 = vunpack.c.h.b16 %v1320
  %v5938 = vunpack.c.l.b16 %v1321
  %v5939 = vunpack.c.h.b16 %v1321
  %v5940 = vunpack.c.l.b16 %v1322
  %v5941 = vunpack.c.h.b16 %v1322
  %v5942 = vunpack.c.l.b16 %v1323
  %v5943 = vunpack.c.h.b16 %v1323
  %v5944 = vunpack.c.l.b16 %v1324
  %v5945 = vunpack.c.h.b16 %v1324
  %v5946 = vunpack.c.l.b16 %v1325
  %v5947 = vunpack.c.h.b16 %v1325
  %v5948 = vunpack.c.l.b16 %v1326
  %v5949 = vunpack.c.h.b16 %v1326
  %v5950 = vunpack.c.l.b16 %v1327
  %v5951 = vunpack.c.h.b16 %v1327
  %v5952 = vunpack.c.l.b16 %v1328
  %v5953 = vunpack.c.h.b16 %v1328
  %v5954 = vunpack.c.l.b16 %v1329
  %v5955 = vunpack.c.h.b16 %v1329
  %v5956 = vunpack.c.l.b16 %v1330
  %v5957 = vunpack.c.h.b16 %v1330
  %v5958 = vunpack.c.l.b16 %v1331
  %v5959 = vunpack.c.h.b16 %v1331
  %v5960 = vunpack.c.l.b16 %v1332
  %v5961 = vunpack.c.h.b16 %v1332
  %v5962 = vunpack.c.l.b16 %v1333
  %v5963 = vunpack.c.h.b16 %v1333
  %v5964 = vunpack.c.l.b16 %v1334
  %v5965 = vunpack.c.h.b16 %v1334
  %v5966 = vunpack.c.l.b16 %v1335
  %v5967 = vunpack.c.h.b16 %v1335
  %v5968 = vunpack.c.l.b16 %v1336
  %v5969 = vunpack.c.h.b16 %v1336
  %v5970 = vunpack.c.l.b16 %v1337
  %v5971 = vunpack.c.h.b16 %v1337
  %v5972 = vunpack.c.l.b16 %v1338
  %v5973 = vunpack.c.h.b16 %v1338
  %v5974 = vunpack.c.l.b16 %v1339
  %v5975 = vunpack.c.h.b16 %v1339
  %v5976 = vunpack.c.l.b16 %v1340
  %v5977 = vunpack.c.h.b16 %v1340
  %v5978 = vunpack.c.l.b16 %v1341
  %v5979 = vunpack.c.h.b16 %v1341
  %v5980 = vunpack.c.l.b16 %v1342
  %v5981 = vunpack.c.h.b16 %v1342
  %v5982 = vunpack.c.l.b16 %v1343
  %v5983 = vunpack.c.h.b16 %v1343
  %v5984 = vunpack.c.l.b16 %v1344
  %v5985 = vunpack.c.h.b16 %v1344
  %v5986 = vunpack.c.l.b16 %v1345
  %v5987 = vunpack.c.h.b16 %v1345
  %v5988 = vunpack.c.l.b16 %v1346
  %v5989 = vunpack.c.h.b16 %v1346
  %v5990 = vunpack.c.l.b16 %v1347
  %v5991 = vunpack.c.h.b16 %v1347
  %v5992 = vunpack.c.l.b16 %v1348
  %v5993 = vunpack.c.h.b16 %v1348
  %v5994 = vunpack.c.l.b16 %v1349
  %v5995 = vunpack.c.h.b16 %v1349
  %v5996 = vunpack.c.l.b16 %v1350
  %v5997 = vunpack.c.h.b16 %v1350
  %v5998 = vunpack.c.l.b16 %v1351
  %v5999 = vunpack.c.h.b16 %v1351
  %v6000 = vunpack.c.l.b16 %v1352
  %v6001 = vunpack.c.h.b16 %v1352
  %v6002 = vunpack.c.l.b16 %v1353
  %v6003 = vunpack.c.h.b16 %v1353
  %v6004 = vunpack.c.l.b16 %v1354
  %v6005 = vunpack.c.h.b16 %v1354
  %v6006 = vunpack.c.l.b16 %v1355
  %v6007 = vunpack.c.h.b16 %v1355
  %v6008 = vunpack.c.l.b16 %v1356
  %v6009 = vunpack.c.h.b16 %v1356
  %v6010 = vunpack.c.l.b16 %v1357
  %v6011 = vunpack.c.h.b16 %v1357
  %v6012 = vunpack.c.l.b16 %v1358
  %v6013 = vunpack.c.h.b16 %v1358
  %v6014 = vunpack.c.l.b16 %v1359
  %v6015 = vunpack.c.h.b16 %v1359
  %v6016 = vunpack.c.l.b16 %v1360
  %v6017 = vunpack.c.h.b16 %v1360
  %v6018 = vunpack.c.l.b16 %v1361
  %v6019 = vunpack.c.h.b16 %v1361
  %v6020 = vunpack.c.l.b16 %v1362
  %v6021 = vunpack.c.h.b16 %v1362
  %v6022 = vunpack.c.l.b16 %v1363
  %v6023 = vunpack.c.h.b16 %v1363
  %v6024 = vunpack.c.l.b16 %v1364
  %v6025 = vunpack.c.h.b16 %v1364
  %v6026 = vunpack.c.l.b16 %v1365
  %v6027 = vunpack.c.h.b16 %v1365
  %v6028 = vunpack.c.l.b16 %v1366
  %v6029 = vunpack.c.h.b16 %v1366
  %v6030 = vunpack.c.l.b16 %v1367
  %v6031 = vunpack.c.h.b16 %v1367
  %v6032 = vunpack.c.l.b16 %v1368
  %v6033 = vunpack.c.h.b16 %v1368
  %v6034 = vunpack.c.l.b16 %v1369
  %v6035 = vunpack.c.h.b16 %v1369
  %v6036 = vunpack.c.l.b16 %v1370
  %v6037 = vunpack.c.h.b16 %v1370
  %v6038 = vunpack.c.l.b16 %v1371
  %v6039 = vunpack.c.h.b16 %v1371
  %v6040 = vunpack.c.l.b16 %v1372
  %v6041 = vunpack.c.h.b16 %v1372
  %v6042 = vunpack.c.l.b16 %v1373
  %v6043 = vunpack.c.h.b16 %v1373
  %v6044 = vunpack.c.l.b16 %v1374
  %v6045 = vunpack.c.h.b16 %v1374
  %v6046 = vunpack.c.l.b16 %v1375
  %v6047 = vunpack.c.h.b16 %v1375
  %v6048 = vunpack.c.l.b16 %v1376
  %v6049 = vunpack.c.h.b16 %v1376
  %v6050 = vunpack.c.l.b16 %v1377
  %v6051 = vunpack.c.h.b16 %v1377
  %v6052 = vunpack.c.l.b16 %v1378
  %v6053 = vunpack.c.h.b16 %v1378
  %v6054 = vunpack.c.l.b16 %v1379
  %v6055 = vunpack.c.h.b16 %v1379
  %v6056 = vunpack.c.l.b16 %v1380
  %v6057 = vunpack.c.h.b16 %v1380
  %v6058 = vunpack.c.l.b16 %v1381
  %v6059 = vunpack.c.h.b16 %v1381
  %v6060 = vunpack.c.l.b16 %v1382
  %v6061 = vunpack.c.h.b16 %v1382
  %v6062 = vunpack.c.l.b16 %v1383
  %v6063 = vunpack.c.h.b16 %v1383
  %v6064 = vunpack.c.l.b16 %v1384
  %v6065 = vunpack.c.h.b16 %v1384
  %v6066 = vunpack.c.l.b16 %v1385
  %v6067 = vunpack.c.h.b16 %v1385
  %v6068 = vunpack.c.l.b16 %v1386
  %v6069 = vunpack.c.h.b16 %v1386
  %v6070 = vunpack.c.l.b16 %v1387
  %v6071 = vunpack.c.h.b16 %v1387
  %v6072 = vunpack.c.l.b16 %v1388
  %v6073 = vunpack.c.h.b16 %v1388
  %v6074 = vunpack.c.l.b16 %v1389
  %v6075 = vunpack.c.h.b16 %v1389
  %v6076 = vunpack.c.l.b16 %v1390
  %v6077 = vunpack.c.h.b16 %v1390
  %v6078 = vunpack.c.l.b16 %v1391
  %v6079 = vunpack.c.h.b16 %v1391
  %v6080 = vunpack.c.l.b16 %v1392
  %v6081 = vunpack.c.h.b16 %v1392
  %v6082 = vunpack.c.l.b16 %v1393
  %v6083 = vunpack.c.h.b16 %v1393
  %v6084 = vunpack.c.l.b16 %v1394
  %v6085 = vunpack.c.h.b16 %v1394
  %v6086 = vunpack.c.l.b16 %v1395
  %v6087 = vunpack.c.h.b16 %v1395
  %v6088 = vunpack.c.l.b16 %v1396
  %v6089 = vunpack.c.h.b16 %v1396
  %v6090 = vunpack.c.l.b16 %v1397
  %v6091 = vunpack.c.h.b16 %v1397
  %v6092 = vunpack.c.l.b16 %v1398
  %v6093 = vunpack.c.h.b16 %v1398
  %v6094 = vunpack.c.l.b16 %v1399
  %v6095 = vunpack.c.h.b16 %v1399
  %v6096 = vunpack.c.l.b16 %v1400
  %v6097 = vunpack.c.h.b16 %v1400
  %v6098 = vunpack.c.l.b16 %v1401
  %v6099 = vunpack.c.h.b16 %v1401
  %v6100 = vunpack.c.l.b16 %v1402
  %v6101 = vunpack.c.h.b16 %v1402
  %v6102 = vunpack.c.l.b16 %v1403
  %v6103 = vunpack.c.h.b16 %v1403
  %v6104 = vunpack.c.l.b16 %v1404
  %v6105 = vunpack.c.h.b16 %v1404
  %v6106 = vunpack.c.l.b16 %v1405
  %v6107 = vunpack.c.h.b16 %v1405
  %v6108 = vunpack.c.l.b16 %v1406
  %v6109 = vunpack.c.h.b16 %v1406
  %v6110 = vunpack.c.l.b16 %v1407
  %v6111 = vunpack.c.h.b16 %v1407
  %v6112 = vunpack.c.l.b16 %v1408
  %v6113 = vunpack.c.h.b16 %v1408
  %v6114 = vunpack.c.l.b16 %v1409
  %v6115 = vunpack.c.h.b16 %v1409
  %v6116 = vunpack.c.l.b16 %v1410
  %v6117 = vunpack.c.h.b16 %v1410
  %v6118 = vunpack.c.l.b16 %v1411
  %v6119 = vunpack.c.h.b16 %v1411
  %v6120 = vunpack.c.l.b16 %v1412
  %v6121 = vunpack.c.h.b16 %v1412
  %v6122 = vunpack.c.l.b16 %v1413
  %v6123 = vunpack.c.h.b16 %v1413
  %v6124 = vunpack.c.l.b16 %v1414
  %v6125 = vunpack.c.h.b16 %v1414
  %v6126 = vunpack.c.l.b16 %v1415
  %v6127 = vunpack.c.h.b16 %v1415
  %v6128 = vunpack.c.l.b16 %v1416
  %v6129 = vunpack.c.h.b16 %v1416
  %v6130 = vunpack.c.l.b16 %v1417
  %v6131 = vunpack.c.h.b16 %v1417
  %v6132 = vunpack.c.l.b16 %v1418
  %v6133 = vunpack.c.h.b16 %v1418
  %v6134 = vunpack.c.l.b16 %v1419
  %v6135 = vunpack.c.h.b16 %v1419
  %v6136 = vunpack.c.l.b16 %v1420
  %v6137 = vunpack.c.h.b16 %v1420
  %v6138 = vunpack.c.l.b16 %v1421
  %v6139 = vunpack.c.h.b16 %v1421
  %v6140 = vunpack.c.l.b16 %v1422
  %v6141 = vunpack.c.h.b16 %v1422
  %v6142 = vunpack.c.l.b16 %v1423
  %v6143 = vunpack.c.h.b16 %v1423
  %v6144 = vunpack.c.l.b16 %v1424
  %v6145 = vunpack.c.h.b16 %v1424
  %v6146 = vunpack.c.l.b16 %v1425
  %v6147 = vunpack.c.h.b16 %v1425
  %v6148 = vunpack.c.l.b16 %v1426
  %v6149 = vunpack.c.h.b16 %v1426
  %v6150 = vunpack.c.l.b16 %v1427
  %v6151 = vunpack.c.h.b16 %v1427
  %v6152 = vunpack.c.l.b16 %v1428
  %v6153 = vunpack.c.h.b16 %v1428
  %v6154 = vunpack.c.l.b16 %v1429
  %v6155 = vunpack.c.h.b16 %v1429
  %v6156 = vunpack.c.l.b16 %v1430
  %v6157 = vunpack.c.h.b16 %v1430
  %v6158 = vunpack.c.l.b16 %v1431
  %v6159 = vunpack.c.h.b16 %v1431
  %v6160 = vunpack.c.l.b16 %v1432
  %v6161 = vunpack.c.h.b16 %v1432
  %v6162 = vunpack.c.l.b16 %v1433
  %v6163 = vunpack.c.h.b16 %v1433
  %v6164 = vunpack.c.l.b16 %v1434
  %v6165 = vunpack.c.h.b16 %v1434
  %v6166 = vunpack.c.l.b16 %v1435
  %v6167 = vunpack.c.h.b16 %v1435
  %v6168 = vunpack.c.l.b16 %v1436
  %v6169 = vunpack.c.h.b16 %v1436
  %v6170 = vunpack.c.l.b16 %v1437
  %v6171 = vunpack.c.h.b16 %v1437
  %v6172 = vunpack.c.l.b16 %v1438
  %v6173 = vunpack.c.h.b16 %v1438
  %v6174 = vunpack.c.l.b16 %v1439
  %v6175 = vunpack.c.h.b16 %v1439
  %v6176 = vunpack.c.l.b16 %v1440
  %v6177 = vunpack.c.h.b16 %v1440
  %v6178 = vunpack.c.l.b16 %v1441
  %v6179 = vunpack.c.h.b16 %v1441
  %v6180 = vunpack.c.l.b16 %v1442
  %v6181 = vunpack.c.h.b16 %v1442
  %v6182 = vunpack.c.l.b16 %v1443
  %v6183 = vunpack.c.h.b16 %v1443
  %v6184 = vunpack.c.l.b16 %v1444
  %v6185 = vunpack.c.h.b16 %v1444
  %v6186 = vunpack.c.l.b16 %v1445
  %v6187 = vunpack.c.h.b16 %v1445
  %v6188 = vunpack.c.l.b16 %v1446
  %v6189 = vunpack.c.h.b16 %v1446
  %v6190 = vunpack.c.l.b16 %v1447
  %v6191 = vunpack.c.h.b16 %v1447
  %v6192 = vunpack.c.l.b16 %v1448
  %v6193 = vunpack.c.h.b16 %v1448
  %v6194 = vunpack.c.l.b16 %v1449
  %v6195 = vunpack.c.h.b16 %v1449
  %v6196 = vunpack.c.l.b16 %v1450
  %v6197 = vunpack.c.h.b16 %v1450
  %v6198 = vunpack.c.l.b16 %v1451
  %v6199 = vunpack.c.h.b16 %v1451
  %v6200 = vunpack.c.l.b16 %v1452
  %v6201 = vunpack.c.h.b16 %v1452
  %v6202 = vunpack.c.l.b16 %v1453
  %v6203 = vunpack.c.h.b16 %v1453
  %v6204 = vunpack.c.l.b16 %v1454
  %v6205 = vunpack.c.h.b16 %v1454
  %v6206 = vunpack.c.l.b16 %v1455
  %v6207 = vunpack.c.h.b16 %v1455
  %v6208 = vunpack.c.l.b16 %v1456
  %v6209 = vunpack.c.h.b16 %v1456
  %v6210 = vunpack.c.l.b16 %v1457
  %v6211 = vunpack.c.h.b16 %v1457
  %v6212 = vunpack.c.l.b16 %v1458
  %v6213 = vunpack.c.h.b16 %v1458
  %v6214 = vunpack.c.l.b16 %v1459
  %v6215 = vunpack.c.h.b16 %v1459
  %v6216 = vunpack.c.l.b16 %v1460
  %v6217 = vunpack.c.h.b16 %v1460
  %v6218 = vunpack.c.l.b16 %v1461
  %v6219 = vunpack.c.h.b16 %v1461
  %v6220 = vunpack.c.l.b16 %v1462
  %v6221 = vunpack.c.h.b16 %v1462
  %v6222 = vunpack.c.l.b16 %v1463
  %v6223 = vunpack.c.h.b16 %v1463
  %v6224 = vunpack.c.l.b16 %v1464
  %v6225 = vunpack.c.h.b16 %v1464
  %v6226 = vunpack.c.l.b16 %v1465
  %v6227 = vunpack.c.h.b16 %v1465
  %v6228 = vunpack.c.l.b16 %v1466
  %v6229 = vunpack.c.h.b16 %v1466
  %v6230 = vunpack.c.l.b16 %v1467
  %v6231 = vunpack.c.h.b16 %v1467
  %v6232 = vunpack.c.l.b16 %v1468
  %v6233 = vunpack.c.h.b16 %v1468
  %v6234 = vunpack.c.l.b16 %v1469
  %v6235 = vunpack.c.h.b16 %v1469
  %v6236 = vunpack.c.l.b16 %v1470
  %v6237 = vunpack.c.h.b16 %v1470
  %v6238 = vunpack.c.l.b16 %v1471
  %v6239 = vunpack.c.h.b16 %v1471
  %v6240 = vunpack.c.l.b16 %v1472
  %v6241 = vunpack.c.h.b16 %v1472
  %v6242 = vunpack.c.l.b16 %v1473
  %v6243 = vunpack.c.h.b16 %v1473
  %v6244 = vunpack.c.l.b16 %v1474
  %v6245 = vunpack.c.h.b16 %v1474
  %v6246 = vunpack.c.l.b16 %v1475
  %v6247 = vunpack.c.h.b16 %v1475
  %v6248 = vunpack.c.l.b16 %v1476
  %v6249 = vunpack.c.h.b16 %v1476
  %v6250 = vunpack.c.l.b16 %v1477
  %v6251 = vunpack.c.h.b16 %v1477
  %v6252 = vunpack.c.l.b16 %v1478
  %v6253 = vunpack.c.h.b16 %v1478
  %v6254 = vunpack.c.l.b16 %v1479
  %v6255 = vunpack.c.h.b16 %v1479
  %v6256 = vunpack.c.l.b16 %v1480
  %v6257 = vunpack.c.h.b16 %v1480
  %v6258 = vunpack.c.l.b16 %v1481
  %v6259 = vunpack.c.h.b16 %v1481
  %v6260 = vunpack.c.l.b16 %v1482
  %v6261 = vunpack.c.h.b16 %v1482
  %v6262 = vunpack.c.l.b16 %v1483
  %v6263 = vunpack.c.h.b16 %v1483
  %v6264 = vunpack.c.l.b16 %v1484
  %v6265 = vunpack.c.h.b16 %v1484
  %v6266 = vunpack.c.l.b16 %v1485
  %v6267 = vunpack.c.h.b16 %v1485
  %v6268 = vunpack.c.l.b16 %v1486
  %v6269 = vunpack.c.h.b16 %v1486
  %v6270 = vunpack.c.l.b16 %v1487
  %v6271 = vunpack.c.h.b16 %v1487
  %v6272 = vunpack.c.l.b16 %v1488
  %v6273 = vunpack.c.h.b16 %v1488
  %v6274 = vunpack.c.l.b16 %v1489
  %v6275 = vunpack.c.h.b16 %v1489
  %v6276 = vunpack.c.l.b16 %v1490
  %v6277 = vunpack.c.h.b16 %v1490
  %v6278 = vunpack.c.l.b16 %v1491
  %v6279 = vunpack.c.h.b16 %v1491
  %v6280 = vunpack.c.l.b16 %v1492
  %v6281 = vunpack.c.h.b16 %v1492
  %v6282 = vunpack.c.l.b16 %v1493
  %v6283 = vunpack.c.h.b16 %v1493
  %v6284 = vunpack.c.l.b16 %v1494
  %v6285 = vunpack.c.h.b16 %v1494
  %v6286 = vunpack.c.l.b16 %v1495
  %v6287 = vunpack.c.h.b16 %v1495
  %v6288 = vunpack.c.l.b16 %v1496
  %v6289 = vunpack.c.h.b16 %v1496
  %v6290 = vunpack.c.l.b16 %v1497
  %v6291 = vunpack.c.h.b16 %v1497
  %v6292 = vunpack.c.l.b16 %v1498
  %v6293 = vunpack.c.h.b16 %v1498
  %v6294 = vunpack.c.l.b16 %v1499
  %v6295 = vunpack.c.h.b16 %v1499
  %v6296 = vunpack.c.l.b16 %v1500
  %v6297 = vunpack.c.h.b16 %v1500
  %v6298 = vunpack.c.l.b16 %v1501
  %v6299 = vunpack.c.h.b16 %v1501
  %v6300 = vunpack.c.l.b16 %v1502
  %v6301 = vunpack.c.h.b16 %v1502
  %v6302 = vunpack.c.l.b16 %v1503
  %v6303 = vunpack.c.h.b16 %v1503
  %v6304 = vunpack.c.l.b16 %v1504
  %v6305 = vunpack.c.h.b16 %v1504
  %v6306 = vunpack.c.l.b16 %v1505
  %v6307 = vunpack.c.h.b16 %v1505
  %v6308 = vunpack.c.l.b16 %v1506
  %v6309 = vunpack.c.h.b16 %v1506
  %v6310 = vunpack.c.l.b16 %v1507
  %v6311 = vunpack.c.h.b16 %v1507
  %v6312 = vunpack.c.l.b16 %v1508
  %v6313 = vunpack.c.h.b16 %v1508
  %v6314 = vunpack.c.l.b16 %v1509
  %v6315 = vunpack.c.h.b16 %v1509
  %v6316 = vunpack.c.l.b16 %v1510
  %v6317 = vunpack.c.h.b16 %v1510
  %v6318 = vunpack.c.l.b16 %v1511
  %v6319 = vunpack.c.h.b16 %v1511
  %v6320 = vunpack.c.l.b16 %v1512
  %v6321 = vunpack.c.h.b16 %v1512
  %v6322 = vunpack.c.l.b16 %v1513
  %v6323 = vunpack.c.h.b16 %v1513
  %v6324 = vunpack.c.l.b16 %v1514
  %v6325 = vunpack.c.h.b16 %v1514
  %v6326 = vunpack.c.l.b16 %v1515
  %v6327 = vunpack.c.h.b16 %v1515
  %v6328 = vunpack.c.l.b16 %v1516
  %v6329 = vunpack.c.h.b16 %v1516
  %v6330 = vunpack.c.l.b16 %v1517
  %v6331 = vunpack.c.h.b16 %v1517
  %v6332 = vunpack.c.l.b16 %v1518
  %v6333 = vunpack.c.h.b16 %v1518
  %v6334 = vunpack.c.l.b16 %v1519
  %v6335 = vunpack.c.h.b16 %v1519
  %v6336 = vunpack.c.l.b16 %v1520
  %v6337 = vunpack.c.h.b16 %v1520
  %v6338 = vunpack.c.l.b16 %v1521
  %v6339 = vunpack.c.h.b16 %v1521
  %v6340 = vunpack.c.l.b16 %v1522
  %v6341 = vunpack.c.h.b16 %v1522
  %v6342 = vunpack.c.l.b16 %v1523
  %v6343 = vunpack.c.h.b16 %v1523
  %v6344 = vunpack.c.l.b16 %v1524
  %v6345 = vunpack.c.h.b16 %v1524
  %v6346 = vunpack.c.l.b16 %v1525
  %v6347 = vunpack.c.h.b16 %v1525
  %v6348 = vunpack.c.l.b16 %v1526
  %v6349 = vunpack.c.h.b16 %v1526
  %v6350 = vunpack.c.l.b16 %v1527
  %v6351 = vunpack.c.h.b16 %v1527
  %v6352 = vunpack.c.l.b16 %v1528
  %v6353 = vunpack.c.h.b16 %v1528
  %v6354 = vunpack.c.l.b16 %v1529
  %v6355 = vunpack.c.h.b16 %v1529
  %v6356 = vunpack.c.l.b16 %v1530
  %v6357 = vunpack.c.h.b16 %v1530
  %v6358 = vunpack.c.l.b16 %v1531
  %v6359 = vunpack.c.h.b16 %v1531
  %v6360 = vunpack.c.l.b16 %v1532
  %v6361 = vunpack.c.h.b16 %v1532
  %v6362 = vunpack.c.l.b16 %v1533
  %v6363 = vunpack.c.h.b16 %v1533
  %v6364 = vunpack.c.l.b16 %v1534
  %v6365 = vunpack.c.h.b16 %v1534
  %v6366 = vunpack.c.l.b16 %v1535
  %v6367 = vunpack.c.h.b16 %v1535
  %v6368 = vunpack.c.l.b16 %v1536
  %v6369 = vunpack.c.h.b16 %v1536
  %v6370 = vunpack.c.l.b16 %v1537
  %v6371 = vunpack.c.h.b16 %v1537
  %v6372 = vunpack.c.l.b16 %v1538
  %v6373 = vunpack.c.h.b16 %v1538
  %v6374 = vunpack.c.l.b16 %v1539
  %v6375 = vunpack.c.h.b16 %v1539
  %v6376 = vunpack.c.l.b16 %v1540
  %v6377 = vunpack.c.h.b16 %v1540
  %v6378 = vunpack.c.l.b16 %v1541
  %v6379 = vunpack.c.h.b16 %v1541
  %v6380 = vunpack.c.l.b16 %v1542
  %v6381 = vunpack.c.h.b16 %v1542
  %v6382 = vunpack.c.l.b16 %v1543
  %v6383 = vunpack.c.h.b16 %v1543
  %v6384 = vunpack.c.l.b16 %v1544
  %v6385 = vunpack.c.h.b16 %v1544
  %v6386 = vunpack.c.l.b16 %v1545
  %v6387 = vunpack.c.h.b16 %v1545
  %v6388 = vunpack.c.l.b16 %v1546
  %v6389 = vunpack.c.h.b16 %v1546
  %v6390 = vunpack.c.l.b16 %v1547
  %v6391 = vunpack.c.h.b16 %v1547
  %v6392 = vunpack.c.l.b16 %v1548
  %v6393 = vunpack.c.h.b16 %v1548
  %v6394 = vunpack.c.l.b16 %v1549
  %v6395 = vunpack.c.h.b16 %v1549
  %v6396 = vunpack.c.l.b16 %v1550
  %v6397 = vunpack.c.h.b16 %v1550
  %v6398 = vunpack.c.l.b16 %v1551
  %v6399 = vunpack.c.h.b16 %v1551
  %v6400 = vunpack.c.l.b16 %v1552
  %v6401 = vunpack.c.h.b16 %v1552
  %v6402 = vunpack.c.l.b16 %v1553
  %v6403 = vunpack.c.h.b16 %v1553
  %v6404 = vunpack.c.l.b16 %v1554
  %v6405 = vunpack.c.h.b16 %v1554
  %v6406 = vunpack.c.l.b16 %v1555
  %v6407 = vunpack.c.h.b16 %v1555
  %v6408 = vunpack.c.l.b16 %v1556
  %v6409 = vunpack.c.h.b16 %v1556
  %v6410 = vunpack.c.l.b16 %v1557
  %v6411 = vunpack.c.h.b16 %v1557
  %v6412 = vunpack.c.l.b16 %v1558
  %v6413 = vunpack.c.h.b16 %v1558
  %v6414 = vunpack.c.l.b16 %v1559
  %v6415 = vunpack.c.h.b16 %v1559
  %v6416 = vunpack.c.l.b16 %v1560
  %v6417 = vunpack.c.h.b16 %v1560
  %v6418 = vunpack.c.l.b16 %v1561
  %v6419 = vunpack.c.h.b16 %v1561
  %v6420 = vunpack.c.l.b16 %v1562
  %v6421 = vunpack.c.h.b16 %v1562
  %v6422 = vunpack.c.l.b16 %v1563
  %v6423 = vunpack.c.h.b16 %v1563
  %v6424 = vunpack.c.l.b16 %v1564
  %v6425 = vunpack.c.h.b16 %v1564
  %v6426 = vunpack.c.l.b16 %v1565
  %v6427 = vunpack.c.h.b16 %v1565
  %v6428 = vunpack.c.l.b16 %v1566
  %v6429 = vunpack.c.h.b16 %v1566
  %v6430 = vunpack.c.l.b16 %v1567
  %v6431 = vunpack.c.h.b16 %v1567
  %v6432 = vunpack.c.l.b16 %v1568
  %v6433 = vunpack.c.h.b16 %v1568
  %v6434 = vunpack.c.l.b16 %v1569
  %v6435 = vunpack.c.h.b16 %v1569
  %v6436 = vunpack.c.l.b16 %v1570
  %v6437 = vunpack.c.h.b16 %v1570
  %v6438 = vunpack.c.l.b16 %v1571
  %v6439 = vunpack.c.h.b16 %v1571
  %v6440 = vunpack.c.l.b16 %v1572
  %v6441 = vunpack.c.h.b16 %v1572
  %v6442 = vunpack.c.l.b16 %v1573
  %v6443 = vunpack.c.h.b16 %v1573
  %v6444 = vunpack.c.l.b16 %v1574
  %v6445 = vunpack.c.h.b16 %v1574
  %v6446 = vunpack.c.l.b16 %v1575
  %v6447 = vunpack.c.h.b16 %v1575
  %v6448 = vunpack.c.l.b16 %v1576
  %v6449 = vunpack.c.h.b16 %v1576
  %v6450 = vunpack.c.l.b16 %v1577
  %v6451 = vunpack.c.h.b16 %v1577
  %v6452 = vunpack.c.l.b16 %v1578
  %v6453 = vunpack.c.h.b16 %v1578
  %v6454 = vunpack.c.l.b16 %v1579
  %v6455 = vunpack.c.h.b16 %v1579
  %v6456 = vunpack.c.l.b16 %v1580
  %v6457 = vunpack.c.h.b16 %v1580
  %v6458 = vunpack.c.l.b16 %v1581
  %v6459 = vunpack.c.h.b16 %v1581
  %v6460 = vunpack.c.l.b16 %v1582
  %v6461 = vunpack.c.h.b16 %v1582
  %v6462 = vunpack.c.l.b16 %v1583
  %v6463 = vunpack.c.h.b16 %v1583
  %v6464 = vunpack.c.l.b16 %v1584
  %v6465 = vunpack.c.h.b16 %v1584
  %v6466 = vunpack.c.l.b16 %v1585
  %v6467 = vunpack.c.h.b16 %v1585
  %v6468 = vunpack.c.l.b16 %v1586
  %v6469 = vunpack.c.h.b16 %v1586
  %v6470 = vunpack.c.l.b16 %v1587
  %v6471 = vunpack.c.h.b16 %v1587
  %v6472 = vunpack.c.l.b16 %v1588
  %v6473 = vunpack.c.h.b16 %v1588
  %v6474 = vunpack.c.l.b16 %v1589
  %v6475 = vunpack.c.h.b16 %v1589
  %v6476 = vunpack.c.l.b16 %v1590
  %v6477 = vunpack.c.h.b16 %v1590
  %v6478 = vunpack.c.l.b16 %v1591
  %v6479 = vunpack.c.h.b16 %v1591
  %v6480 = vunpack.c.l.b16 %v1592
  %v6481 = vunpack.c.h.b16 %v1592
  %v6482 = vunpack.c.l.b16 %v1593
  %v6483 = vunpack.c.h.b16 %v1593
  %v6484 = vunpack.c.l.b16 %v1594
  %v6485 = vunpack.c.h.b16 %v1594
  %v6486 = vunpack.c.l.b16 %v1595
  %v6487 = vunpack.c.h.b16 %v1595
  %v6488 = vunpack.c.l.b16 %v1596
  %v6489 = vunpack.c.h.b16 %v1596
  %v6490 = vunpack.c.l.b16 %v1597
  %v6491 = vunpack.c.h.b16 %v1597
  %v6492 = vunpack.c.l.b16 %v1598
  %v6493 = vunpack.c.h.b16 %v1598
  %v6494 = vunpack.c.l.b16 %v1599
  %v6495 = vunpack.c.h.b16 %v1599
  %v6496 = vunpack.c.l.b16 %v1600
  %v6497 = vunpack.c.h.b16 %v1600
  %v6498 = vunpack.c.l.b16 %v1601
  %v6499 = vunpack.c.h.b16 %v1601
  %v6500 = vunpack.c.l.b16 %v1602
  %v6501 = vunpack.c.h.b16 %v1602
  %v6502 = vunpack.c.l.b16 %v1603
  %v6503 = vunpack.c.h.b16 %v1603
  %v6504 = vunpack.c.l.b16 %v1604
  %v6505 = vunpack.c.h.b16 %v1604
  %v6506 = vunpack.c.l.b16 %v1605
  %v6507 = vunpack.c.h.b16 %v1605
  %v6508 = vunpack.c.l.b16 %v1606
  %v6509 = vunpack.c.h.b16 %v1606
  %v6510 = vunpack.c.l.b16 %v1607
  %v6511 = vunpack.c.h.b16 %v1607
  %v6512 = vunpack.c.l.b16 %v1608
  %v6513 = vunpack.c.h.b16 %v1608
  %v6514 = vunpack.c.l.b16 %v1609
  %v6515 = vunpack.c.h.b16 %v1609
  %v6516 = vunpack.c.l.b16 %v1610
  %v6517 = vunpack.c.h.b16 %v1610
  %v6518 = vunpack.c.l.b16 %v1611
  %v6519 = vunpack.c.h.b16 %v1611
  %v6520 = vunpack.c.l.b16 %v1612
  %v6521 = vunpack.c.h.b16 %v1612
  %v6522 = vunpack.c.l.b16 %v1613
  %v6523 = vunpack.c.h.b16 %v1613
  %v6524 = vunpack.c.l.b16 %v1614
  %v6525 = vunpack.c.h.b16 %v1614
  %v6526 = vunpack.c.l.b16 %v1615
  %v6527 = vunpack.c.h.b16 %v1615
  %v6528 = vunpack.c.l.b16 %v1616
  %v6529 = vunpack.c.h.b16 %v1616
  %v6530 = vunpack.c.l.b16 %v1617
  %v6531 = vunpack.c.h.b16 %v1617
  %v6532 = vunpack.c.l.b16 %v1618
  %v6533 = vunpack.c.h.b16 %v1618
  %v6534 = vunpack.c.l.b16 %v1619
  %v6535 = vunpack.c.h.b16 %v1619
  %v6536 = vunpack.c.l.b16 %v1620
  %v6537 = vunpack.c.h.b16 %v1620
  %v6538 = vunpack.c.l.b16 %v1621
  %v6539 = vunpack.c.h.b16 %v1621
  %v6540 = vunpack.c.l.b16 %v1622
  %v6541 = vunpack.c.h.b16 %v1622
  %v6542 = vunpack.c.l.b16 %v1623
  %v6543 = vunpack.c.h.b16 %v1623
  %v6544 = vunpack.c.l.b16 %v1624
  %v6545 = vunpack.c.h.b16 %v1624
  %v6546 = vunpack.c.l.b16 %v1625
  %v6547 = vunpack.c.h.b16 %v1625
  %v6548 = vunpack.c.l.b16 %v1626
  %v6549 = vunpack.c.h.b16 %v1626
  %v6550 = vunpack.c.l.b16 %v1627
  %v6551 = vunpack.c.h.b16 %v1627
  %v6552 = vunpack.c.l.b16 %v1628
  %v6553 = vunpack.c.h.b16 %v1628
  %v6554 = vunpack.c.l.b16 %v1629
  %v6555 = vunpack.c.h.b16 %v1629
  %v6556 = vunpack.c.l.b16 %v1630
  %v6557 = vunpack.c.h.b16 %v1630
  %v6558 = vunpack.c.l.b16 %v1631
  %v6559 = vunpack.c.h.b16 %v1631
  %v6560 = vunpack.c.l.b16 %v1632
  %v6561 = vunpack.c.h.b16 %v1632
  %v6562 = vunpack.c.l.b16 %v1633
  %v6563 = vunpack.c.h.b16 %v1633
  %v6564 = vpack.c.b16 %v3372, %v3364
  %v6565 = vpack.c.b16 %v3373, %v3365
  %v6566 = vpack.c.b16 %v3374, %v3366
  %v6567 = vpack.c.b16 %v3375, %v3367
  %v6568 = vpack.c.b16 %v3376, %v3368
  %v6569 = vpack.c.b16 %v3377, %v3369
  %v6570 = vpack.c.b16 %v3378, %v3370
  %v6571 = vpack.c.b16 %v3379, %v3371
  %v6572 = vpack.c.b16 %v3388, %v3380
  %v6573 = vpack.c.b16 %v3389, %v3381
  %v6574 = vpack.c.b16 %v3390, %v3382
  %v6575 = vpack.c.b16 %v3391, %v3383
  %v6576 = vpack.c.b16 %v3392, %v3384
  %v6577 = vpack.c.b16 %v3393, %v3385
  %v6578 = vpack.c.b16 %v3394, %v3386
  %v6579 = vpack.c.b16 %v3395, %v3387
  %v6580 = vpack.c.b16 %v3404, %v3396
  %v6581 = vpack.c.b16 %v3405, %v3397
  %v6582 = vpack.c.b16 %v3406, %v3398
  %v6583 = vpack.c.b16 %v3407, %v3399
  %v6584 = vpack.c.b16 %v3408, %v3400
  %v6585 = vpack.c.b16 %v3409, %v3401
  %v6586 = vpack.c.b16 %v3410, %v3402
  %v6587 = vpack.c.b16 %v3411, %v3403
  %v6588 = vpack.c.b16 %v3420, %v3412
  %v6589 = vpack.c.b16 %v3421, %v3413
  %v6590 = vpack.c.b16 %v3422, %v3414
  %v6591 = vpack.c.b16 %v3423, %v3415
  %v6592 = vpack.c.b16 %v3424, %v3416
  %v6593 = vpack.c.b16 %v3425, %v3417
  %v6594 = vpack.c.b16 %v3426, %v3418
  %v6595 = vpack.c.b16 %v3427, %v3419
  %v6596 = vpack.c.b16 %v3436, %v3428
  %v6597 = vpack.c.b16 %v3437, %v3429
  %v6598 = vpack.c.b16 %v3438, %v3430
  %v6599 = vpack.c.b16 %v3439, %v3431
  %v6600 = vpack.c.b16 %v3440, %v3432
  %v6601 = vpack.c.b16 %v3441, %v3433
  %v6602 = vpack.c.b16 %v3442, %v3434
  %v6603 = vpack.c.b16 %v3443, %v3435
  %v6604 = vpack.c.b16 %v3452, %v3444
  %v6605 = vpack.c.b16 %v3453, %v3445
  %v6606 = vpack.c.b16 %v3454, %v3446
  %v6607 = vpack.c.b16 %v3455, %v3447
  %v6608 = vpack.c.b16 %v3456, %v3448
  %v6609 = vpack.c.b16 %v3457, %v3449
  %v6610 = vpack.c.b16 %v3458, %v3450
  %v6611 = vpack.c.b16 %v3459, %v3451
  %v6612 = vpack.c.b16 %v3468, %v3460
  %v6613 = vpack.c.b16 %v3469, %v3461
  %v6614 = vpack.c.b16 %v3470, %v3462
  %v6615 = vpack.c.b16 %v3471, %v3463
  %v6616 = vpack.c.b16 %v3472, %v3464
  %v6617 = vpack.c.b16 %v3473, %v3465
  %v6618 = vpack.c.b16 %v3474, %v3466
  %v6619 = vpack.c.b16 %v3475, %v3467
  %v6620 = vpack.c.b16 %v3484, %v3476
  %v6621 = vpack.c.b16 %v3485, %v3477
  %v6622 = vpack.c.b16 %v3486, %v3478
  %v6623 = vpack.c.b16 %v3487, %v3479
  %v6624 = vpack.c.b16 %v3488, %v3480
  %v6625 = vpack.c.b16 %v3489, %v3481
  %v6626 = vpack.c.b16 %v3490, %v3482
  %v6627 = vpack.c.b16 %v3491, %v3483
  %v6628 = vpack.c.b16 %v3500, %v3492
  %v6629 = vpack.c.b16 %v3501, %v3493
  %v6630 = vpack.c.b16 %v3502, %v3494
  %v6631 = vpack.c.b16 %v3503, %v3495
  %v6632 = vpack.c.b16 %v3504, %v3496
  %v6633 = vpack.c.b16 %v3505, %v3497
  %v6634 = vpack.c.b16 %v3506, %v3498
  %v6635 = vpack.c.b16 %v3507, %v3499
  %v6636 = vpack.c.b16 %v3516, %v3508
  %v6637 = vpack.c.b16 %v3517, %v3509
  %v6638 = vpack.c.b16 %v3518, %v3510
  %v6639 = vpack.c.b16 %v3519, %v3511
  %v6640 = vpack.c.b16 %v3520, %v3512
  %v6641 = vpack.c.b16 %v3521, %v3513
  %v6642 = vpack.c.b16 %v3522, %v3514
  %v6643 = vpack.c.b16 %v3523, %v3515
  %v6644 = vpack.c.b16 %v3532, %v3524
  %v6645 = vpack.c.b16 %v3533, %v3525
  %v6646 = vpack.c.b16 %v3534, %v3526
  %v6647 = vpack.c.b16 %v3535, %v3527
  %v6648 = vpack.c.b16 %v3536, %v3528
  %v6649 = vpack.c.b16 %v3537, %v3529
  %v6650 = vpack.c.b16 %v3538, %v3530
  %v6651 = vpack.c.b16 %v3539, %v3531
  %v6652 = vpack.c.b16 %v3548, %v3540
  %v6653 = vpack.c.b16 %v3549, %v3541
  %v6654 = vpack.c.b16 %v3550, %v3542
  %v6655 = vpack.c.b16 %v3551, %v3543
  %v6656 = vpack.c.b16 %v3552, %v3544
  %v6657 = vpack.c.b16 %v3553, %v3545
  %v6658 = vpack.c.b16 %v3554, %v3546
  %v6659 = vpack.c.b16 %v3555, %v3547
  %v6660 = vpack.c.b16 %v3564, %v3556
  %v6661 = vpack.c.b16 %v3565, %v3557
  %v6662 = vpack.c.b16 %v3566, %v3558
  %v6663 = vpack.c.b16 %v3567, %v3559
  %v6664 = vpack.c.b16 %v3568, %v3560
  %v6665 = vpack.c.b16 %v3569, %v3561
  %v6666 = vpack.c.b16 %v3570, %v3562
  %v6667 = vpack.c.b16 %v3571, %v3563
  %v6668 = vpack.c.b16 %v3580, %v3572
  %v6669 = vpack.c.b16 %v3581, %v3573
  %v6670 = vpack.c.b16 %v3582, %v3574
  %v6671 = vpack.c.b16 %v3583, %v3575
  %v6672 = vpack.c.b16 %v3584, %v3576
  %v6673 = vpack.c.b16 %v3585, %v3577
  %v6674 = vpack.c.b16 %v3586, %v3578
  %v6675 = vpack.c.b16 %v3587, %v3579
  %v6676 = vpack.c.b16 %v3596, %v3588
  %v6677 = vpack.c.b16 %v3597, %v3589
  %v6678 = vpack.c.b16 %v3598, %v3590
  %v6679 = vpack.c.b16 %v3599, %v3591
  %v6680 = vpack.c.b16 %v3600, %v3592
  %v6681 = vpack.c.b16 %v3601, %v3593
  %v6682 = vpack.c.b16 %v3602, %v3594
  %v6683 = vpack.c.b16 %v3603, %v3595
  %v6684 = vpack.c.b16 %v3612, %v3604
  %v6685 = vpack.c.b16 %v3613, %v3605
  %v6686 = vpack.c.b16 %v3614, %v3606
  %v6687 = vpack.c.b16 %v3615, %v3607
  %v6688 = vpack.c.b16 %v3616, %v3608
  %v6689 = vpack.c.b16 %v3617, %v3609
  %v6690 = vpack.c.b16 %v3618, %v3610
  %v6691 = vpack.c.b16 %v3619, %v3611
  %v6692 = vpack.c.b16 %v3628, %v3620
  %v6693 = vpack.c.b16 %v3629, %v3621
  %v6694 = vpack.c.b16 %v3630, %v3622
  %v6695 = vpack.c.b16 %v3631, %v3623
  %v6696 = vpack.c.b16 %v3632, %v3624
  %v6697 = vpack.c.b16 %v3633, %v3625
  %v6698 = vpack.c.b16 %v3634, %v3626
  %v6699 = vpack.c.b16 %v3635, %v3627
  %v6700 = vpack.c.b16 %v3644, %v3636
  %v6701 = vpack.c.b16 %v3645, %v3637
  %v6702 = vpack.c.b16 %v3646, %v3638
  %v6703 = vpack.c.b16 %v3647, %v3639
  %v6704 = vpack.c.b16 %v3648, %v3640
  %v6705 = vpack.c.b16 %v3649, %v3641
  %v6706 = vpack.c.b16 %v3650, %v3642
  %v6707 = vpack.c.b16 %v3651, %v3643
  %v6708 = vpack.c.b16 %v3660, %v3652
  %v6709 = vpack.c.b16 %v3661, %v3653
  %v6710 = vpack.c.b16 %v3662, %v3654
  %v6711 = vpack.c.b16 %v3663, %v3655
  %v6712 = vpack.c.b16 %v3664, %v3656
  %v6713 = vpack.c.b16 %v3665, %v3657
  %v6714 = vpack.c.b16 %v3666, %v3658
  %v6715 = vpack.c.b16 %v3667, %v3659
  %v6716 = vpack.c.b16 %v3676, %v3668
  %v6717 = vpack.c.b16 %v3677, %v3669
  %v6718 = vpack.c.b16 %v3678, %v3670
  %v6719 = vpack.c.b16 %v3679, %v3671
  %v6720 = vpack.c.b16 %v3680, %v3672
  %v6721 = vpack.c.b16 %v3681, %v3673
  %v6722 = vpack.c.b16 %v3682, %v3674
  %v6723 = vpack.c.b16 %v3683, %v3675
  %v6724 = vpack.c.b16 %v3692, %v3684
  %v6725 = vpack.c.b16 %v3693, %v3685
  %v6726 = vpack.c.b16 %v3694, %v3686
  %v6727 = vpack.c.b16 %v3695, %v3687
  %v6728 = vpack.c.b16 %v3696, %v3688
  %v6729 = vpack.c.b16 %v3697, %v3689
  %v6730 = vpack.c.b16 %v3698, %v3690
  %v6731 = vpack.c.b16 %v3699, %v3691
  %v6732 = vpack.c.b16 %v3708, %v3700
  %v6733 = vpack.c.b16 %v3709, %v3701
  %v6734 = vpack.c.b16 %v3710, %v3702
  %v6735 = vpack.c.b16 %v3711, %v3703
  %v6736 = vpack.c.b16 %v3712, %v3704
  %v6737 = vpack.c.b16 %v3713, %v3705
  %v6738 = vpack.c.b16 %v3714, %v3706
  %v6739 = vpack.c.b16 %v3715, %v3707
  %v6740 = vpack.c.b16 %v3724, %v3716
  %v6741 = vpack.c.b16 %v3725, %v3717
  %v6742 = vpack.c.b16 %v3726, %v3718
  %v6743 = vpack.c.b16 %v3727, %v3719
  %v6744 = vpack.c.b16 %v3728, %v3720
  %v6745 = vpack.c.b16 %v3729, %v3721
  %v6746 = vpack.c.b16 %v3730, %v3722
  %v6747 = vpack.c.b16 %v3731, %v3723
  %v6748 = vpack.c.b16 %v3740, %v3732
  %v6749 = vpack.c.b16 %v3741, %v3733
  %v6750 = vpack.c.b16 %v3742, %v3734
  %v6751 = vpack.c.b16 %v3743, %v3735
  %v6752 = vpack.c.b16 %v3744, %v3736
  %v6753 = vpack.c.b16 %v3745, %v3737
  %v6754 = vpack.c.b16 %v3746, %v3738
  %v6755 = vpack.c.b16 %v3747, %v3739
  %v6756 = vpack.c.b16 %v3756, %v3748
  %v6757 = vpack.c.b16 %v3757, %v3749
  %v6758 = vpack.c.b16 %v3758, %v3750
  %v6759 = vpack.c.b16 %v3759, %v3751
  %v6760 = vpack.c.b16 %v3760, %v3752
  %v6761 = vpack.c.b16 %v3761, %v3753
  %v6762 = vpack.c.b16 %v3762, %v3754
  %v6763 = vpack.c.b16 %v3763, %v3755
  %v6764 = vpack.c.b16 %v3772, %v3764
  %v6765 = vpack.c.b16 %v3773, %v3765
  %v6766 = vpack.c.b16 %v3774, %v3766
  %v6767 = vpack.c.b16 %v3775, %v3767
  %v6768 = vpack.c.b16 %v3776, %v3768
  %v6769 = vpack.c.b16 %v3777, %v3769
  %v6770 = vpack.c.b16 %v3778, %v3770
  %v6771 = vpack.c.b16 %v3779, %v3771
  %v6772 = vpack.c.b16 %v3788, %v3780
  %v6773 = vpack.c.b16 %v3789, %v3781
  %v6774 = vpack.c.b16 %v3790, %v3782
  %v6775 = vpack.c.b16 %v3791, %v3783
  %v6776 = vpack.c.b16 %v3792, %v3784
  %v6777 = vpack.c.b16 %v3793, %v3785
  %v6778 = vpack.c.b16 %v3794, %v3786
  %v6779 = vpack.c.b16 %v3795, %v3787
  %v6780 = vpack.c.b16 %v3804, %v3796
  %v6781 = vpack.c.b16 %v3805, %v3797
  %v6782 = vpack.c.b16 %v3806, %v3798
  %v6783 = vpack.c.b16 %v3807, %v3799
  %v6784 = vpack.c.b16 %v3808, %v3800
  %v6785 = vpack.c.b16 %v3809, %v3801
  %v6786 = vpack.c.b16 %v3810, %v3802
  %v6787 = vpack.c.b16 %v3811, %v3803
  %v6788 = vpack.c.b16 %v3820, %v3812
  %v6789 = vpack.c.b16 %v3821, %v3813
  %v6790 = vpack.c.b16 %v3822, %v3814
  %v6791 = vpack.c.b16 %v3823, %v3815
  %v6792 = vpack.c.b16 %v3824, %v3816
  %v6793 = vpack.c.b16 %v3825, %v3817
  %v6794 = vpack.c.b16 %v3826, %v3818
  %v6795 = vpack.c.b16 %v3827, %v3819
  %v6796 = vpack.c.b16 %v3836, %v3828
  %v6797 = vpack.c.b16 %v3837, %v3829
  %v6798 = vpack.c.b16 %v3838, %v3830
  %v6799 = vpack.c.b16 %v3839, %v3831
  %v6800 = vpack.c.b16 %v3840, %v3832
  %v6801 = vpack.c.b16 %v3841, %v3833
  %v6802 = vpack.c.b16 %v3842, %v3834
  %v6803 = vpack.c.b16 %v3843, %v3835
  %v6804 = vpack.c.b16 %v3852, %v3844
  %v6805 = vpack.c.b16 %v3853, %v3845
  %v6806 = vpack.c.b16 %v3854, %v3846
  %v6807 = vpack.c.b16 %v3855, %v3847
  %v6808 = vpack.c.b16 %v3856, %v3848
  %v6809 = vpack.c.b16 %v3857, %v3849
  %v6810 = vpack.c.b16 %v3858, %v3850
  %v6811 = vpack.c.b16 %v3859, %v3851
  %v6812 = vpack.c.b16 %v3868, %v3860
  %v6813 = vpack.c.b16 %v3869, %v3861
  %v6814 = vpack.c.b16 %v3870, %v3862
  %v6815 = vpack.c.b16 %v3871, %v3863
  %v6816 = vpack.c.b16 %v3872, %v3864
  %v6817 = vpack.c.b16 %v3873, %v3865
  %v6818 = vpack.c.b16 %v3874, %v3866
  %v6819 = vpack.c.b16 %v3875, %v3867
  %v6820 = vpack.c.b16 %v3884, %v3876
  %v6821 = vpack.c.b16 %v3885, %v3877
  %v6822 = vpack.c.b16 %v3886, %v3878
  %v6823 = vpack.c.b16 %v3887, %v3879
  %v6824 = vpack.c.b16 %v3888, %v3880
  %v6825 = vpack.c.b16 %v3889, %v3881
  %v6826 = vpack.c.b16 %v3890, %v3882
  %v6827 = vpack.c.b16 %v3891, %v3883
  %v6828 = vpack.c.b16 %v3900, %v3892
  %v6829 = vpack.c.b16 %v3901, %v3893
  %v6830 = vpack.c.b16 %v3902, %v3894
  %v6831 = vpack.c.b16 %v3903, %v3895
  %v6832 = vpack.c.b16 %v3904, %v3896
  %v6833 = vpack.c.b16 %v3905, %v3897
  %v6834 = vpack.c.b16 %v3906, %v3898
  %v6835 = vpack.c.b16 %v3907, %v3899
  %v6836 = vpack.c.b16 %v3916, %v3908
  %v6837 = vpack.c.b16 %v3917, %v3909
  %v6838 = vpack.c.b16 %v3918, %v3910
  %v6839 = vpack.c.b16 %v3919, %v3911
  %v6840 = vpack.c.b16 %v3920, %v3912
  %v6841 = vpack.c.b16 %v3921, %v3913
  %v6842 = vpack.c.b16 %v3922, %v3914
  %v6843 = vpack.c.b16 %v3923, %v3915
  %v6844 = vpack.c.b16 %v3932, %v3924
  %v6845 = vpack.c.b16 %v3933, %v3925
  %v6846 = vpack.c.b16 %v3934, %v3926
  %v6847 = vpack.c.b16 %v3935, %v3927
  %v6848 = vpack.c.b16 %v3936, %v3928
  %v6849 = vpack.c.b16 %v3937, %v3929
  %v6850 = vpack.c.b16 %v3938, %v3930
  %v6851 = vpack.c.b16 %v3939, %v3931
  %v6852 = vpack.c.b16 %v3948, %v3940
  %v6853 = vpack.c.b16 %v3949, %v3941
  %v6854 = vpack.c.b16 %v3950, %v3942
  %v6855 = vpack.c.b16 %v3951, %v3943
  %v6856 = vpack.c.b16 %v3952, %v3944
  %v6857 = vpack.c.b16 %v3953, %v3945
  %v6858 = vpack.c.b16 %v3954, %v3946
  %v6859 = vpack.c.b16 %v3955, %v3947
  %v6860 = vpack.c.b16 %v3964, %v3956
  %v6861 = vpack.c.b16 %v3965, %v3957
  %v6862 = vpack.c.b16 %v3966, %v3958
  %v6863 = vpack.c.b16 %v3967, %v3959
  %v6864 = vpack.c.b16 %v3968, %v3960
  %v6865 = vpack.c.b16 %v3969, %v3961
  %v6866 = vpack.c.b16 %v3970, %v3962
  %v6867 = vpack.c.b16 %v3971, %v3963
  %v6868 = vpack.c.b16 %v3980, %v3972
  %v6869 = vpack.c.b16 %v3981, %v3973
  %v6870 = vpack.c.b16 %v3982, %v3974
  %v6871 = vpack.c.b16 %v3983, %v3975
  %v6872 = vpack.c.b16 %v3984, %v3976
  %v6873 = vpack.c.b16 %v3985, %v3977
  %v6874 = vpack.c.b16 %v3986, %v3978
  %v6875 = vpack.c.b16 %v3987, %v3979
  %v6876 = vpack.c.b16 %v3996, %v3988
  %v6877 = vpack.c.b16 %v3997, %v3989
  %v6878 = vpack.c.b16 %v3998, %v3990
  %v6879 = vpack.c.b16 %v3999, %v3991
  %v6880 = vpack.c.b16 %v4000, %v3992
  %v6881 = vpack.c.b16 %v4001, %v3993
  %v6882 = vpack.c.b16 %v4002, %v3994
  %v6883 = vpack.c.b16 %v4003, %v3995
  %v6884 = vpack.c.b16 %v4012, %v4004
  %v6885 = vpack.c.b16 %v4013, %v4005
  %v6886 = vpack.c.b16 %v4014, %v4006
  %v6887 = vpack.c.b16 %v4015, %v4007
  %v6888 = vpack.c.b16 %v4016, %v4008
  %v6889 = vpack.c.b16 %v4017, %v4009
  %v6890 = vpack.c.b16 %v4018, %v4010
  %v6891 = vpack.c.b16 %v4019, %v4011
  %v6892 = vpack.c.b16 %v4028, %v4020
  %v6893 = vpack.c.b16 %v4029, %v4021
  %v6894 = vpack.c.b16 %v4030, %v4022
  %v6895 = vpack.c.b16 %v4031, %v4023
  %v6896 = vpack.c.b16 %v4032, %v4024
  %v6897 = vpack.c.b16 %v4033, %v4025
  %v6898 = vpack.c.b16 %v4034, %v4026
  %v6899 = vpack.c.b16 %v4035, %v4027
  %v6900 = vpack.c.b16 %v4044, %v4036
  %v6901 = vpack.c.b16 %v4045, %v4037
  %v6902 = vpack.c.b16 %v4046, %v4038
  %v6903 = vpack.c.b16 %v4047, %v4039
  %v6904 = vpack.c.b16 %v4048, %v4040
  %v6905 = vpack.c.b16 %v4049, %v4041
  %v6906 = vpack.c.b16 %v4050, %v4042
  %v6907 = vpack.c.b16 %v4051, %v4043
  %v6908 = vpack.c.b16 %v4060, %v4052
  %v6909 = vpack.c.b16 %v4061, %v4053
  %v6910 = vpack.c.b16 %v4062, %v4054
  %v6911 = vpack.c.b16 %v4063, %v4055
  %v6912 = vpack.c.b16 %v4064, %v4056
  %v6913 = vpack.c.b16 %v4065, %v4057
  %v6914 = vpack.c.b16 %v4066, %v4058
  %v6915 = vpack.c.b16 %v4067, %v4059
  %v6916 = vpack.c.b16 %v4076, %v4068
  %v6917 = vpack.c.b16 %v4077, %v4069
  %v6918 = vpack.c.b16 %v4078, %v4070
  %v6919 = vpack.c.b16 %v4079, %v4071
  %v6920 = vpack.c.b16 %v4080, %v4072
  %v6921 = vpack.c.b16 %v4081, %v4073
  %v6922 = vpack.c.b16 %v4082, %v4074
  %v6923 = vpack.c.b16 %v4083, %v4075
  %v6924 = vpack.c.b16 %v4092, %v4084
  %v6925 = vpack.c.b16 %v4093, %v4085
  %v6926 = vpack.c.b16 %v4094, %v4086
  %v6927 = vpack.c.b16 %v4095, %v4087
  %v6928 = vpack.c.b16 %v4096, %v4088
  %v6929 = vpack.c.b16 %v4097, %v4089
  %v6930 = vpack.c.b16 %v4098, %v4090
  %v6931 = vpack.c.b16 %v4099, %v4091
  %v6932 = vpack.c.b16 %v4108, %v4100
  %v6933 = vpack.c.b16 %v4109, %v4101
  %v6934 = vpack.c.b16 %v4110, %v4102
  %v6935 = vpack.c.b16 %v4111, %v4103
  %v6936 = vpack.c.b16 %v4112, %v4104
  %v6937 = vpack.c.b16 %v4113, %v4105
  %v6938 = vpack.c.b16 %v4114, %v4106
  %v6939 = vpack.c.b16 %v4115, %v4107
  %v6940 = vpack.c.b16 %v4124, %v4116
  %v6941 = vpack.c.b16 %v4125, %v4117
  %v6942 = vpack.c.b16 %v4126, %v4118
  %v6943 = vpack.c.b16 %v4127, %v4119
  %v6944 = vpack.c.b16 %v4128, %v4120
  %v6945 = vpack.c.b16 %v4129, %v4121
  %v6946 = vpack.c.b16 %v4130, %v4122
  %v6947 = vpack.c.b16 %v4131, %v4123
  %v6948 = vpack.c.b16 %v4140, %v4132
  %v6949 = vpack.c.b16 %v4141, %v4133
  %v6950 = vpack.c.b16 %v4142, %v4134
  %v6951 = vpack.c.b16 %v4143, %v4135
  %v6952 = vpack.c.b16 %v4144, %v4136
  %v6953 = vpack.c.b16 %v4145, %v4137
  %v6954 = vpack.c.b16 %v4146, %v4138
  %v6955 = vpack.c.b16 %v4147, %v4139
  %v6956 = vpack.c.b16 %v4156, %v4148
  %v6957 = vpack.c.b16 %v4157, %v4149
  %v6958 = vpack.c.b16 %v4158, %v4150
  %v6959 = vpack.c.b16 %v4159, %v4151
  %v6960 = vpack.c.b16 %v4160, %v4152
  %v6961 = vpack.c.b16 %v4161, %v4153
  %v6962 = vpack.c.b16 %v4162, %v4154
  %v6963 = vpack.c.b16 %v4163, %v4155
  %v6964 = vpack.c.b16 %v4172, %v4164
  %v6965 = vpack.c.b16 %v4173, %v4165
  %v6966 = vpack.c.b16 %v4174, %v4166
  %v6967 = vpack.c.b16 %v4175, %v4167
  %v6968 = vpack.c.b16 %v4176, %v4168
  %v6969 = vpack.c.b16 %v4177, %v4169
  %v6970 = vpack.c.b16 %v4178, %v4170
  %v6971 = vpack.c.b16 %v4179, %v4171
  %v6972 = vpack.c.b16 %v4188, %v4180
  %v6973 = vpack.c.b16 %v4189, %v4181
  %v6974 = vpack.c.b16 %v4190, %v4182
  %v6975 = vpack.c.b16 %v4191, %v4183
  %v6976 = vpack.c.b16 %v4192, %v4184
  %v6977 = vpack.c.b16 %v4193, %v4185
  %v6978 = vpack.c.b16 %v4194, %v4186
  %v6979 = vpack.c.b16 %v4195, %v4187
  %v6980 = vpack.c.b16 %v4204, %v4196
  %v6981 = vpack.c.b16 %v4205, %v4197
  %v6982 = vpack.c.b16 %v4206, %v4198
  %v6983 = vpack.c.b16 %v4207, %v4199
  %v6984 = vpack.c.b16 %v4208, %v4200
  %v6985 = vpack.c.b16 %v4209, %v4201
  %v6986 = vpack.c.b16 %v4210, %v4202
  %v6987 = vpack.c.b16 %v4211, %v4203
  %v6988 = vpack.c.b16 %v4220, %v4212
  %v6989 = vpack.c.b16 %v4221, %v4213
  %v6990 = vpack.c.b16 %v4222, %v4214
  %v6991 = vpack.c.b16 %v4223, %v4215
  %v6992 = vpack.c.b16 %v4224, %v4216
  %v6993 = vpack.c.b16 %v4225, %v4217
  %v6994 = vpack.c.b16 %v4226, %v4218
  %v6995 = vpack.c.b16 %v4227, %v4219
  %v6996 = vpack.c.b16 %v4236, %v4228
  %v6997 = vpack.c.b16 %v4237, %v4229
  %v6998 = vpack.c.b16 %v4238, %v4230
  %v6999 = vpack.c.b16 %v4239, %v4231
  %v7000 = vpack.c.b16 %v4240, %v4232
  %v7001 = vpack.c.b16 %v4241, %v4233
  %v7002 = vpack.c.b16 %v4242, %v4234
  %v7003 = vpack.c.b16 %v4243, %v4235
  %v7004 = vpack.c.b16 %v4252, %v4244
  %v7005 = vpack.c.b16 %v4253, %v4245
  %v7006 = vpack.c.b16 %v4254, %v4246
  %v7007 = vpack.c.b16 %v4255, %v4247
  %v7008 = vpack.c.b16 %v4256, %v4248
  %v7009 = vpack.c.b16 %v4257, %v4249
  %v7010 = vpack.c.b16 %v4258, %v4250
  %v7011 = vpack.c.b16 %v4259, %v4251
  %v7012 = vpack.c.b16 %v4268, %v4260
  %v7013 = vpack.c.b16 %v4269, %v4261
  %v7014 = vpack.c.b16 %v4270, %v4262
  %v7015 = vpack.c.b16 %v4271, %v4263
  %v7016 = vpack.c.b16 %v4272, %v4264
  %v7017 = vpack.c.b16 %v4273, %v4265
  %v7018 = vpack.c.b16 %v4274, %v4266
  %v7019 = vpack.c.b16 %v4275, %v4267
  %v7020 = vpack.c.b16 %v4284, %v4276
  %v7021 = vpack.c.b16 %v4285, %v4277
  %v7022 = vpack.c.b16 %v4286, %v4278
  %v7023 = vpack.c.b16 %v4287, %v4279
  %v7024 = vpack.c.b16 %v4288, %v4280
  %v7025 = vpack.c.b16 %v4289, %v4281
  %v7026 = vpack.c.b16 %v4290, %v4282
  %v7027 = vpack.c.b16 %v4291, %v4283
  %v7028 = vpack.c.b16 %v4300, %v4292
  %v7029 = vpack.c.b16 %v4301, %v4293
  %v7030 = vpack.c.b16 %v4302, %v4294
  %v7031 = vpack.c.b16 %v4303, %v4295
  %v7032 = vpack.c.b16 %v4304, %v4296
  %v7033 = vpack.c.b16 %v4305, %v4297
  %v7034 = vpack.c.b16 %v4306, %v4298
  %v7035 = vpack.c.b16 %v4307, %v4299
  %v7036 = vpack.c.b16 %v4316, %v4308
  %v7037 = vpack.c.b16 %v4317, %v4309
  %v7038 = vpack.c.b16 %v4318, %v4310
  %v7039 = vpack.c.b16 %v4319, %v4311
  %v7040 = vpack.c.b16 %v4320, %v4312
  %v7041 = vpack.c.b16 %v4321, %v4313
  %v7042 = vpack.c.b16 %v4322, %v4314
  %v7043 = vpack.c.b16 %v4323, %v4315
  %v7044 = vpack.c.b16 %v4332, %v4324
  %v7045 = vpack.c.b16 %v4333, %v4325
  %v7046 = vpack.c.b16 %v4334, %v4326
  %v7047 = vpack.c.b16 %v4335, %v4327
  %v7048 = vpack.c.b16 %v4336, %v4328
  %v7049 = vpack.c.b16 %v4337, %v4329
  %v7050 = vpack.c.b16 %v4338, %v4330
  %v7051 = vpack.c.b16 %v4339, %v4331
  %v7052 = vpack.c.b16 %v4348, %v4340
  %v7053 = vpack.c.b16 %v4349, %v4341
  %v7054 = vpack.c.b16 %v4350, %v4342
  %v7055 = vpack.c.b16 %v4351, %v4343
  %v7056 = vpack.c.b16 %v4352, %v4344
  %v7057 = vpack.c.b16 %v4353, %v4345
  %v7058 = vpack.c.b16 %v4354, %v4346
  %v7059 = vpack.c.b16 %v4355, %v4347
  %v7060 = vpack.c.b16 %v4364, %v4356
  %v7061 = vpack.c.b16 %v4365, %v4357
  %v7062 = vpack.c.b16 %v4366, %v4358
  %v7063 = vpack.c.b16 %v4367, %v4359
  %v7064 = vpack.c.b16 %v4368, %v4360
  %v7065 = vpack.c.b16 %v4369, %v4361
  %v7066 = vpack.c.b16 %v4370, %v4362
  %v7067 = vpack.c.b16 %v4371, %v4363
  %v7068 = vpack.c.b16 %v4380, %v4372
  %v7069 = vpack.c.b16 %v4381, %v4373
  %v7070 = vpack.c.b16 %v4382, %v4374
  %v7071 = vpack.c.b16 %v4383, %v4375
  %v7072 = vpack.c.b16 %v4384, %v4376
  %v7073 = vpack.c.b16 %v4385, %v4377
  %v7074 = vpack.c.b16 %v4386, %v4378
  %v7075 = vpack.c.b16 %v4387, %v4379
  %v7076 = vpack.c.b16 %v4396, %v4388
  %v7077 = vpack.c.b16 %v4397, %v4389
  %v7078 = vpack.c.b16 %v4398, %v4390
  %v7079 = vpack.c.b16 %v4399, %v4391
  %v7080 = vpack.c.b16 %v4400, %v4392
  %v7081 = vpack.c.b16 %v4401, %v4393
  %v7082 = vpack.c.b16 %v4402, %v4394
  %v7083 = vpack.c.b16 %v4403, %v4395
  %v7084 = vpack.c.b16 %v4412, %v4404
  %v7085 = vpack.c.b16 %v4413, %v4405
  %v7086 = vpack.c.b16 %v4414, %v4406
  %v7087 = vpack.c.b16 %v4415, %v4407
  %v7088 = vpack.c.b16 %v4416, %v4408
  %v7089 = vpack.c.b16 %v4417, %v4409
  %v7090 = vpack.c.b16 %v4418, %v4410
  %v7091 = vpack.c.b16 %v4419, %v4411
  %v7092 = vpack.c.b16 %v4428, %v4420
  %v7093 = vpack.c.b16 %v4429, %v4421
  %v7094 = vpack.c.b16 %v4430, %v4422
  %v7095 = vpack.c.b16 %v4431, %v4423
  %v7096 = vpack.c.b16 %v4432, %v4424
  %v7097 = vpack.c.b16 %v4433, %v4425
  %v7098 = vpack.c.b16 %v4434, %v4426
  %v7099 = vpack.c.b16 %v4435, %v4427
  %v7100 = vpack.c.b16 %v4444, %v4436
  %v7101 = vpack.c.b16 %v4445, %v4437
  %v7102 = vpack.c.b16 %v4446, %v4438
  %v7103 = vpack.c.b16 %v4447, %v4439
  %v7104 = vpack.c.b16 %v4448, %v4440
  %v7105 = vpack.c.b16 %v4449, %v4441
  %v7106 = vpack.c.b16 %v4450, %v4442
  %v7107 = vpack.c.b16 %v4451, %v4443
  %v7108 = vpack.c.b16 %v4460, %v4452
  %v7109 = vpack.c.b16 %v4461, %v4453
  %v7110 = vpack.c.b16 %v4462, %v4454
  %v7111 = vpack.c.b16 %v4463, %v4455
  %v7112 = vpack.c.b16 %v4464, %v4456
  %v7113 = vpack.c.b16 %v4465, %v4457
  %v7114 = vpack.c.b16 %v4466, %v4458
  %v7115 = vpack.c.b16 %v4467, %v4459
  %v7116 = vpack.c.b16 %v4476, %v4468
  %v7117 = vpack.c.b16 %v4477, %v4469
  %v7118 = vpack.c.b16 %v4478, %v4470
  %v7119 = vpack.c.b16 %v4479, %v4471
  %v7120 = vpack.c.b16 %v4480, %v4472
  %v7121 = vpack.c.b16 %v4481, %v4473
  %v7122 = vpack.c.b16 %v4482, %v4474
  %v7123 = vpack.c.b16 %v4483, %v4475
  %v7124 = vpack.c.b16 %v4492, %v4484
  %v7125 = vpack.c.b16 %v4493, %v4485
  %v7126 = vpack.c.b16 %v4494, %v4486
  %v7127 = vpack.c.b16 %v4495, %v4487
  %v7128 = vpack.c.b16 %v4496, %v4488
  %v7129 = vpack.c.b16 %v4497, %v4489
  %v7130 = vpack.c.b16 %v4498, %v4490
  %v7131 = vpack.c.b16 %v4499, %v4491
  %v7132 = vpack.c.b16 %v4508, %v4500
  %v7133 = vpack.c.b16 %v4509, %v4501
  %v7134 = vpack.c.b16 %v4510, %v4502
  %v7135 = vpack.c.b16 %v4511, %v4503
  %v7136 = vpack.c.b16 %v4512, %v4504
  %v7137 = vpack.c.b16 %v4513, %v4505
  %v7138 = vpack.c.b16 %v4514, %v4506
  %v7139 = vpack.c.b16 %v4515, %v4507
  %v7140 = vpack.c.b16 %v4524, %v4516
  %v7141 = vpack.c.b16 %v4525, %v4517
  %v7142 = vpack.c.b16 %v4526, %v4518
  %v7143 = vpack.c.b16 %v4527, %v4519
  %v7144 = vpack.c.b16 %v4528, %v4520
  %v7145 = vpack.c.b16 %v4529, %v4521
  %v7146 = vpack.c.b16 %v4530, %v4522
  %v7147 = vpack.c.b16 %v4531, %v4523
  %v7148 = vpack.c.b16 %v4540, %v4532
  %v7149 = vpack.c.b16 %v4541, %v4533
  %v7150 = vpack.c.b16 %v4542, %v4534
  %v7151 = vpack.c.b16 %v4543, %v4535
  %v7152 = vpack.c.b16 %v4544, %v4536
  %v7153 = vpack.c.b16 %v4545, %v4537
  %v7154 = vpack.c.b16 %v4546, %v4538
  %v7155 = vpack.c.b16 %v4547, %v4539
  %v7156 = vpack.c.b16 %v4556, %v4548
  %v7157 = vpack.c.b16 %v4557, %v4549
  %v7158 = vpack.c.b16 %v4558, %v4550
  %v7159 = vpack.c.b16 %v4559, %v4551
  %v7160 = vpack.c.b16 %v4560, %v4552
  %v7161 = vpack.c.b16 %v4561, %v4553
  %v7162 = vpack.c.b16 %v4562, %v4554
  %v7163 = vpack.c.b16 %v4563, %v4555
  %v7164 = vpack.c.b16 %v4572, %v4564
  %v7165 = vpack.c.b16 %v4573, %v4565
  %v7166 = vpack.c.b16 %v4574, %v4566
  %v7167 = vpack.c.b16 %v4575, %v4567
  %v7168 = vpack.c.b16 %v4576, %v4568
  %v7169 = vpack.c.b16 %v4577, %v4569
  %v7170 = vpack.c.b16 %v4578, %v4570
  %v7171 = vpack.c.b16 %v4579, %v4571
  %v7172 = vpack.c.b16 %v4588, %v4580
  %v7173 = vpack.c.b16 %v4589, %v4581
  %v7174 = vpack.c.b16 %v4590, %v4582
  %v7175 = vpack.c.b16 %v4591, %v4583
  %v7176 = vpack.c.b16 %v4592, %v4584
  %v7177 = vpack.c.b16 %v4593, %v4585
  %v7178 = vpack.c.b16 %v4594, %v4586
  %v7179 = vpack.c.b16 %v4595, %v4587
  %v7180 = vpack.c.b16 %v4604, %v4596
  %v7181 = vpack.c.b16 %v4605, %v4597
  %v7182 = vpack.c.b16 %v4606, %v4598
  %v7183 = vpack.c.b16 %v4607, %v4599
  %v7184 = vpack.c.b16 %v4608, %v4600
  %v7185 = vpack.c.b16 %v4609, %v4601
  %v7186 = vpack.c.b16 %v4610, %v4602
  %v7187 = vpack.c.b16 %v4611, %v4603
  %v7188 = vpack.c.b16 %v4620, %v4612
  %v7189 = vpack.c.b16 %v4621, %v4613
  %v7190 = vpack.c.b16 %v4622, %v4614
  %v7191 = vpack.c.b16 %v4623, %v4615
  %v7192 = vpack.c.b16 %v4624, %v4616
  %v7193 = vpack.c.b16 %v4625, %v4617
  %v7194 = vpack.c.b16 %v4626, %v4618
  %v7195 = vpack.c.b16 %v4627, %v4619
  %v7196 = vpack.c.b16 %v4636, %v4628
  %v7197 = vpack.c.b16 %v4637, %v4629
  %v7198 = vpack.c.b16 %v4638, %v4630
  %v7199 = vpack.c.b16 %v4639, %v4631
  %v7200 = vpack.c.b16 %v4640, %v4632
  %v7201 = vpack.c.b16 %v4641, %v4633
  %v7202 = vpack.c.b16 %v4642, %v4634
  %v7203 = vpack.c.b16 %v4643, %v4635
  %v7204 = vpack.c.b16 %v4652, %v4644
  %v7205 = vpack.c.b16 %v4653, %v4645
  %v7206 = vpack.c.b16 %v4654, %v4646
  %v7207 = vpack.c.b16 %v4655, %v4647
  %v7208 = vpack.c.b16 %v4656, %v4648
  %v7209 = vpack.c.b16 %v4657, %v4649
  %v7210 = vpack.c.b16 %v4658, %v4650
  %v7211 = vpack.c.b16 %v4659, %v4651
  %v7212 = vpack.c.b16 %v4668, %v4660
  %v7213 = vpack.c.b16 %v4669, %v4661
  %v7214 = vpack.c.b16 %v4670, %v4662
  %v7215 = vpack.c.b16 %v4671, %v4663
  %v7216 = vpack.c.b16 %v4672, %v4664
  %v7217 = vpack.c.b16 %v4673, %v4665
  %v7218 = vpack.c.b16 %v4674, %v4666
  %v7219 = vpack.c.b16 %v4675, %v4667
  %v7220 = vpack.c.b16 %v4684, %v4676
  %v7221 = vpack.c.b16 %v4685, %v4677
  %v7222 = vpack.c.b16 %v4686, %v4678
  %v7223 = vpack.c.b16 %v4687, %v4679
  %v7224 = vpack.c.b16 %v4688, %v4680
  %v7225 = vpack.c.b16 %v4689, %v4681
  %v7226 = vpack.c.b16 %v4690, %v4682
  %v7227 = vpack.c.b16 %v4691, %v4683
  %v7228 = vpack.c.b16 %v4700, %v4692
  %v7229 = vpack.c.b16 %v4701, %v4693
  %v7230 = vpack.c.b16 %v4702, %v4694
  %v7231 = vpack.c.b16 %v4703, %v4695
  %v7232 = vpack.c.b16 %v4704, %v4696
  %v7233 = vpack.c.b16 %v4705, %v4697
  %v7234 = vpack.c.b16 %v4706, %v4698
  %v7235 = vpack.c.b16 %v4707, %v4699
  %v7236 = vpack.c.b16 %v4716, %v4708
  %v7237 = vpack.c.b16 %v4717, %v4709
  %v7238 = vpack.c.b16 %v4718, %v4710
  %v7239 = vpack.c.b16 %v4719, %v4711
  %v7240 = vpack.c.b16 %v4720, %v4712
  %v7241 = vpack.c.b16 %v4721, %v4713
  %v7242 = vpack.c.b16 %v4722, %v4714
  %v7243 = vpack.c.b16 %v4723, %v4715
  %v7244 = vpack.c.b16 %v4732, %v4724
  %v7245 = vpack.c.b16 %v4733, %v4725
  %v7246 = vpack.c.b16 %v4734, %v4726
  %v7247 = vpack.c.b16 %v4735, %v4727
  %v7248 = vpack.c.b16 %v4736, %v4728
  %v7249 = vpack.c.b16 %v4737, %v4729
  %v7250 = vpack.c.b16 %v4738, %v4730
  %v7251 = vpack.c.b16 %v4739, %v4731
  %v7252 = vpack.c.b16 %v4748, %v4740
  %v7253 = vpack.c.b16 %v4749, %v4741
  %v7254 = vpack.c.b16 %v4750, %v4742
  %v7255 = vpack.c.b16 %v4751, %v4743
  %v7256 = vpack.c.b16 %v4752, %v4744
  %v7257 = vpack.c.b16 %v4753, %v4745
  %v7258 = vpack.c.b16 %v4754, %v4746
  %v7259 = vpack.c.b16 %v4755, %v4747
  %v7260 = vpack.c.b16 %v4764, %v4756
  %v7261 = vpack.c.b16 %v4765, %v4757
  %v7262 = vpack.c.b16 %v4766, %v4758
  %v7263 = vpack.c.b16 %v4767, %v4759
  %v7264 = vpack.c.b16 %v4768, %v4760
  %v7265 = vpack.c.b16 %v4769, %v4761
  %v7266 = vpack.c.b16 %v4770, %v4762
  %v7267 = vpack.c.b16 %v4771, %v4763
  %v7268 = vpack.c.b16 %v4780, %v4772
  %v7269 = vpack.c.b16 %v4781, %v4773
  %v7270 = vpack.c.b16 %v4782, %v4774
  %v7271 = vpack.c.b16 %v4783, %v4775
  %v7272 = vpack.c.b16 %v4784, %v4776
  %v7273 = vpack.c.b16 %v4785, %v4777
  %v7274 = vpack.c.b16 %v4786, %v4778
  %v7275 = vpack.c.b16 %v4787, %v4779
  %v7276 = vpack.c.b16 %v4796, %v4788
  %v7277 = vpack.c.b16 %v4797, %v4789
  %v7278 = vpack.c.b16 %v4798, %v4790
  %v7279 = vpack.c.b16 %v4799, %v4791
  %v7280 = vpack.c.b16 %v4800, %v4792
  %v7281 = vpack.c.b16 %v4801, %v4793
  %v7282 = vpack.c.b16 %v4802, %v4794
  %v7283 = vpack.c.b16 %v4803, %v4795
  %v7284 = vpack.c.b16 %v4812, %v4804
  %v7285 = vpack.c.b16 %v4813, %v4805
  %v7286 = vpack.c.b16 %v4814, %v4806
  %v7287 = vpack.c.b16 %v4815, %v4807
  %v7288 = vpack.c.b16 %v4816, %v4808
  %v7289 = vpack.c.b16 %v4817, %v4809
  %v7290 = vpack.c.b16 %v4818, %v4810
  %v7291 = vpack.c.b16 %v4819, %v4811
  %v7292 = vpack.c.b16 %v4828, %v4820
  %v7293 = vpack.c.b16 %v4829, %v4821
  %v7294 = vpack.c.b16 %v4830, %v4822
  %v7295 = vpack.c.b16 %v4831, %v4823
  %v7296 = vpack.c.b16 %v4832, %v4824
  %v7297 = vpack.c.b16 %v4833, %v4825
  %v7298 = vpack.c.b16 %v4834, %v4826
  %v7299 = vpack.c.b16 %v4835, %v4827
  %v7300 = vpack.c.b16 %v4844, %v4836
  %v7301 = vpack.c.b16 %v4845, %v4837
  %v7302 = vpack.c.b16 %v4846, %v4838
  %v7303 = vpack.c.b16 %v4847, %v4839
  %v7304 = vpack.c.b16 %v4848, %v4840
  %v7305 = vpack.c.b16 %v4849, %v4841
  %v7306 = vpack.c.b16 %v4850, %v4842
  %v7307 = vpack.c.b16 %v4851, %v4843
  %v7308 = vpack.c.b16 %v4860, %v4852
  %v7309 = vpack.c.b16 %v4861, %v4853
  %v7310 = vpack.c.b16 %v4862, %v4854
  %v7311 = vpack.c.b16 %v4863, %v4855
  %v7312 = vpack.c.b16 %v4864, %v4856
  %v7313 = vpack.c.b16 %v4865, %v4857
  %v7314 = vpack.c.b16 %v4866, %v4858
  %v7315 = vpack.c.b16 %v4867, %v4859
  %v7316 = vpack.c.b16 %v4876, %v4868
  %v7317 = vpack.c.b16 %v4877, %v4869
  %v7318 = vpack.c.b16 %v4878, %v4870
  %v7319 = vpack.c.b16 %v4879, %v4871
  %v7320 = vpack.c.b16 %v4880, %v4872
  %v7321 = vpack.c.b16 %v4881, %v4873
  %v7322 = vpack.c.b16 %v4882, %v4874
  %v7323 = vpack.c.b16 %v4883, %v4875
  %v7324 = vpack.c.b16 %v4892, %v4884
  %v7325 = vpack.c.b16 %v4893, %v4885
  %v7326 = vpack.c.b16 %v4894, %v4886
  %v7327 = vpack.c.b16 %v4895, %v4887
  %v7328 = vpack.c.b16 %v4896, %v4888
  %v7329 = vpack.c.b16 %v4897, %v4889
  %v7330 = vpack.c.b16 %v4898, %v4890
  %v7331 = vpack.c.b16 %v4899, %v4891
  %v7332 = vpack.c.b16 %v4908, %v4900
  %v7333 = vpack.c.b16 %v4909, %v4901
  %v7334 = vpack.c.b16 %v4910, %v4902
  %v7335 = vpack.c.b16 %v4911, %v4903
  %v7336 = vpack.c.b16 %v4912, %v4904
  %v7337 = vpack.c.b16 %v4913, %v4905
  %v7338 = vpack.c.b16 %v4914, %v4906
  %v7339 = vpack.c.b16 %v4915, %v4907
  %v7340 = vpack.c.b16 %v4924, %v4916
  %v7341 = vpack.c.b16 %v4925, %v4917
  %v7342 = vpack.c.b16 %v4926, %v4918
  %v7343 = vpack.c.b16 %v4927, %v4919
  %v7344 = vpack.c.b16 %v4928, %v4920
  %v7345 = vpack.c.b16 %v4929, %v4921
  %v7346 = vpack.c.b16 %v4930, %v4922
  %v7347 = vpack.c.b16 %v4931, %v4923
  %v7348 = vpack.c.b16 %v4940, %v4932
  %v7349 = vpack.c.b16 %v4941, %v4933
  %v7350 = vpack.c.b16 %v4942, %v4934
  %v7351 = vpack.c.b16 %v4943, %v4935
  %v7352 = vpack.c.b16 %v4944, %v4936
  %v7353 = vpack.c.b16 %v4945, %v4937
  %v7354 = vpack.c.b16 %v4946, %v4938
  %v7355 = vpack.c.b16 %v4947, %v4939
  %v7356 = vpack.c.b16 %v4956, %v4948
  %v7357 = vpack.c.b16 %v4957, %v4949
  %v7358 = vpack.c.b16 %v4958, %v4950
  %v7359 = vpack.c.b16 %v4959, %v4951
  %v7360 = vpack.c.b16 %v4960, %v4952
  %v7361 = vpack.c.b16 %v4961, %v4953
  %v7362 = vpack.c.b16 %v4962, %v4954
  %v7363 = vpack.c.b16 %v4963, %v4955
  %v7364 = vpack.c.b16 %v4972, %v4964
  %v7365 = vpack.c.b16 %v4973, %v4965
  %v7366 = vpack.c.b16 %v4974, %v4966
  %v7367 = vpack.c.b16 %v4975, %v4967
  %v7368 = vpack.c.b16 %v4976, %v4968
  %v7369 = vpack.c.b16 %v4977, %v4969
  %v7370 = vpack.c.b16 %v4978, %v4970
  %v7371 = vpack.c.b16 %v4979, %v4971
  %v7372 = vpack.c.b16 %v4988, %v4980
  %v7373 = vpack.c.b16 %v4989, %v4981
  %v7374 = vpack.c.b16 %v4990, %v4982
  %v7375 = vpack.c.b16 %v4991, %v4983
  %v7376 = vpack.c.b16 %v4992, %v4984
  %v7377 = vpack.c.b16 %v4993, %v4985
  %v7378 = vpack.c.b16 %v4994, %v4986
  %v7379 = vpack.c.b16 %v4995, %v4987
  %v7380 = vpack.c.b16 %v5004, %v4996
  %v7381 = vpack.c.b16 %v5005, %v4997
  %v7382 = vpack.c.b16 %v5006, %v4998
  %v7383 = vpack.c.b16 %v5007, %v4999
  %v7384 = vpack.c.b16 %v5008, %v5000
  %v7385 = vpack.c.b16 %v5009, %v5001
  %v7386 = vpack.c.b16 %v5010, %v5002
  %v7387 = vpack.c.b16 %v5011, %v5003
  %v7388 = vpack.c.b16 %v5020, %v5012
  %v7389 = vpack.c.b16 %v5021, %v5013
  %v7390 = vpack.c.b16 %v5022, %v5014
  %v7391 = vpack.c.b16 %v5023, %v5015
  %v7392 = vpack.c.b16 %v5024, %v5016
  %v7393 = vpack.c.b16 %v5025, %v5017
  %v7394 = vpack.c.b16 %v5026, %v5018
  %v7395 = vpack.c.b16 %v5027, %v5019
  %v7396 = vpack.c.b16 %v5036, %v5028
  %v7397 = vpack.c.b16 %v5037, %v5029
  %v7398 = vpack.c.b16 %v5038, %v5030
  %v7399 = vpack.c.b16 %v5039, %v5031
  %v7400 = vpack.c.b16 %v5040, %v5032
  %v7401 = vpack.c.b16 %v5041, %v5033
  %v7402 = vpack.c.b16 %v5042, %v5034
  %v7403 = vpack.c.b16 %v5043, %v5035
  %v7404 = vpack.c.b16 %v5052, %v5044
  %v7405 = vpack.c.b16 %v5053, %v5045
  %v7406 = vpack.c.b16 %v5054, %v5046
  %v7407 = vpack.c.b16 %v5055, %v5047
  %v7408 = vpack.c.b16 %v5056, %v5048
  %v7409 = vpack.c.b16 %v5057, %v5049
  %v7410 = vpack.c.b16 %v5058, %v5050
  %v7411 = vpack.c.b16 %v5059, %v5051
  %v7412 = vpack.c.b16 %v5068, %v5060
  %v7413 = vpack.c.b16 %v5069, %v5061
  %v7414 = vpack.c.b16 %v5070, %v5062
  %v7415 = vpack.c.b16 %v5071, %v5063
  %v7416 = vpack.c.b16 %v5072, %v5064
  %v7417 = vpack.c.b16 %v5073, %v5065
  %v7418 = vpack.c.b16 %v5074, %v5066
  %v7419 = vpack.c.b16 %v5075, %v5067
  %v7420 = vpack.c.b16 %v5084, %v5076
  %v7421 = vpack.c.b16 %v5085, %v5077
  %v7422 = vpack.c.b16 %v5086, %v5078
  %v7423 = vpack.c.b16 %v5087, %v5079
  %v7424 = vpack.c.b16 %v5088, %v5080
  %v7425 = vpack.c.b16 %v5089, %v5081
  %v7426 = vpack.c.b16 %v5090, %v5082
  %v7427 = vpack.c.b16 %v5091, %v5083
  %v7428 = vpack.c.b16 %v5100, %v5092
  %v7429 = vpack.c.b16 %v5101, %v5093
  %v7430 = vpack.c.b16 %v5102, %v5094
  %v7431 = vpack.c.b16 %v5103, %v5095
  %v7432 = vpack.c.b16 %v5104, %v5096
  %v7433 = vpack.c.b16 %v5105, %v5097
  %v7434 = vpack.c.b16 %v5106, %v5098
  %v7435 = vpack.c.b16 %v5107, %v5099
  %v7436 = vpack.c.b16 %v5116, %v5108
  %v7437 = vpack.c.b16 %v5117, %v5109
  %v7438 = vpack.c.b16 %v5118, %v5110
  %v7439 = vpack.c.b16 %v5119, %v5111
  %v7440 = vpack.c.b16 %v5120, %v5112
  %v7441 = vpack.c.b16 %v5121, %v5113
  %v7442 = vpack.c.b16 %v5122, %v5114
  %v7443 = vpack.c.b16 %v5123, %v5115
  %v7444 = vpack.c.b16 %v5132, %v5124
  %v7445 = vpack.c.b16 %v5133, %v5125
  %v7446 = vpack.c.b16 %v5134, %v5126
  %v7447 = vpack.c.b16 %v5135, %v5127
  %v7448 = vpack.c.b16 %v5136, %v5128
  %v7449 = vpack.c.b16 %v5137, %v5129
  %v7450 = vpack.c.b16 %v5138, %v5130
  %v7451 = vpack.c.b16 %v5139, %v5131
  %v7452 = vpack.c.b16 %v5148, %v5140
  %v7453 = vpack.c.b16 %v5149, %v5141
  %v7454 = vpack.c.b16 %v5150, %v5142
  %v7455 = vpack.c.b16 %v5151, %v5143
  %v7456 = vpack.c.b16 %v5152, %v5144
  %v7457 = vpack.c.b16 %v5153, %v5145
  %v7458 = vpack.c.b16 %v5154, %v5146
  %v7459 = vpack.c.b16 %v5155, %v5147
  %v7460 = vpack.c.b16 %v5164, %v5156
  %v7461 = vpack.c.b16 %v5165, %v5157
  %v7462 = vpack.c.b16 %v5166, %v5158
  %v7463 = vpack.c.b16 %v5167, %v5159
  %v7464 = vpack.c.b16 %v5168, %v5160
  %v7465 = vpack.c.b16 %v5169, %v5161
  %v7466 = vpack.c.b16 %v5170, %v5162
  %v7467 = vpack.c.b16 %v5171, %v5163
  %v7468 = vpack.c.b16 %v5180, %v5172
  %v7469 = vpack.c.b16 %v5181, %v5173
  %v7470 = vpack.c.b16 %v5182, %v5174
  %v7471 = vpack.c.b16 %v5183, %v5175
  %v7472 = vpack.c.b16 %v5184, %v5176
  %v7473 = vpack.c.b16 %v5185, %v5177
  %v7474 = vpack.c.b16 %v5186, %v5178
  %v7475 = vpack.c.b16 %v5187, %v5179
  %v7476 = vpack.c.b16 %v5196, %v5188
  %v7477 = vpack.c.b16 %v5197, %v5189
  %v7478 = vpack.c.b16 %v5198, %v5190
  %v7479 = vpack.c.b16 %v5199, %v5191
  %v7480 = vpack.c.b16 %v5200, %v5192
  %v7481 = vpack.c.b16 %v5201, %v5193
  %v7482 = vpack.c.b16 %v5202, %v5194
  %v7483 = vpack.c.b16 %v5203, %v5195
  %v7484 = vpack.c.b16 %v5212, %v5204
  %v7485 = vpack.c.b16 %v5213, %v5205
  %v7486 = vpack.c.b16 %v5214, %v5206
  %v7487 = vpack.c.b16 %v5215, %v5207
  %v7488 = vpack.c.b16 %v5216, %v5208
  %v7489 = vpack.c.b16 %v5217, %v5209
  %v7490 = vpack.c.b16 %v5218, %v5210
  %v7491 = vpack.c.b16 %v5219, %v5211
  %v7492 = vpack.c.b16 %v5228, %v5220
  %v7493 = vpack.c.b16 %v5229, %v5221
  %v7494 = vpack.c.b16 %v5230, %v5222
  %v7495 = vpack.c.b16 %v5231, %v5223
  %v7496 = vpack.c.b16 %v5232, %v5224
  %v7497 = vpack.c.b16 %v5233, %v5225
  %v7498 = vpack.c.b16 %v5234, %v5226
  %v7499 = vpack.c.b16 %v5235, %v5227
  %v7500 = vpack.c.b16 %v5244, %v5236
  %v7501 = vpack.c.b16 %v5245, %v5237
  %v7502 = vpack.c.b16 %v5246, %v5238
  %v7503 = vpack.c.b16 %v5247, %v5239
  %v7504 = vpack.c.b16 %v5248, %v5240
  %v7505 = vpack.c.b16 %v5249, %v5241
  %v7506 = vpack.c.b16 %v5250, %v5242
  %v7507 = vpack.c.b16 %v5251, %v5243
  %v7508 = vpack.c.b16 %v5260, %v5252
  %v7509 = vpack.c.b16 %v5261, %v5253
  %v7510 = vpack.c.b16 %v5262, %v5254
  %v7511 = vpack.c.b16 %v5263, %v5255
  %v7512 = vpack.c.b16 %v5264, %v5256
  %v7513 = vpack.c.b16 %v5265, %v5257
  %v7514 = vpack.c.b16 %v5266, %v5258
  %v7515 = vpack.c.b16 %v5267, %v5259
  %v7516 = vpack.c.b16 %v5276, %v5268
  %v7517 = vpack.c.b16 %v5277, %v5269
  %v7518 = vpack.c.b16 %v5278, %v5270
  %v7519 = vpack.c.b16 %v5279, %v5271
  %v7520 = vpack.c.b16 %v5280, %v5272
  %v7521 = vpack.c.b16 %v5281, %v5273
  %v7522 = vpack.c.b16 %v5282, %v5274
  %v7523 = vpack.c.b16 %v5283, %v5275
  %v7524 = vpack.c.b16 %v5292, %v5284
  %v7525 = vpack.c.b16 %v5293, %v5285
  %v7526 = vpack.c.b16 %v5294, %v5286
  %v7527 = vpack.c.b16 %v5295, %v5287
  %v7528 = vpack.c.b16 %v5296, %v5288
  %v7529 = vpack.c.b16 %v5297, %v5289
  %v7530 = vpack.c.b16 %v5298, %v5290
  %v7531 = vpack.c.b16 %v5299, %v5291
  %v7532 = vpack.c.b16 %v5308, %v5300
  %v7533 = vpack.c.b16 %v5309, %v5301
  %v7534 = vpack.c.b16 %v5310, %v5302
  %v7535 = vpack.c.b16 %v5311, %v5303
  %v7536 = vpack.c.b16 %v5312, %v5304
  %v7537 = vpack.c.b16 %v5313, %v5305
  %v7538 = vpack.c.b16 %v5314, %v5306
  %v7539 = vpack.c.b16 %v5315, %v5307
  %v7540 = vpack.c.b16 %v5324, %v5316
  %v7541 = vpack.c.b16 %v5325, %v5317
  %v7542 = vpack.c.b16 %v5326, %v5318
  %v7543 = vpack.c.b16 %v5327, %v5319
  %v7544 = vpack.c.b16 %v5328, %v5320
  %v7545 = vpack.c.b16 %v5329, %v5321
  %v7546 = vpack.c.b16 %v5330, %v5322
  %v7547 = vpack.c.b16 %v5331, %v5323
  %v7548 = vpack.c.b16 %v5340, %v5332
  %v7549 = vpack.c.b16 %v5341, %v5333
  %v7550 = vpack.c.b16 %v5342, %v5334
  %v7551 = vpack.c.b16 %v5343, %v5335
  %v7552 = vpack.c.b16 %v5344, %v5336
  %v7553 = vpack.c.b16 %v5345, %v5337
  %v7554 = vpack.c.b16 %v5346, %v5338
  %v7555 = vpack.c.b16 %v5347, %v5339
  %v7556 = vpack.c.b16 %v5356, %v5348
  %v7557 = vpack.c.b16 %v5357, %v5349
  %v7558 = vpack.c.b16 %v5358, %v5350
  %v7559 = vpack.c.b16 %v5359, %v5351
  %v7560 = vpack.c.b16 %v5360, %v5352
  %v7561 = vpack.c.b16 %v5361, %v5353
  %v7562 = vpack.c.b16 %v5362, %v5354
  %v7563 = vpack.c.b16 %v5363, %v5355
  %v7564 = vpack.c.b16 %v5372, %v5364
  %v7565 = vpack.c.b16 %v5373, %v5365
  %v7566 = vpack.c.b16 %v5374, %v5366
  %v7567 = vpack.c.b16 %v5375, %v5367
  %v7568 = vpack.c.b16 %v5376, %v5368
  %v7569 = vpack.c.b16 %v5377, %v5369
  %v7570 = vpack.c.b16 %v5378, %v5370
  %v7571 = vpack.c.b16 %v5379, %v5371
  %v7572 = vpack.c.b16 %v5388, %v5380
  %v7573 = vpack.c.b16 %v5389, %v5381
  %v7574 = vpack.c.b16 %v5390, %v5382
  %v7575 = vpack.c.b16 %v5391, %v5383
  %v7576 = vpack.c.b16 %v5392, %v5384
  %v7577 = vpack.c.b16 %v5393, %v5385
  %v7578 = vpack.c.b16 %v5394, %v5386
  %v7579 = vpack.c.b16 %v5395, %v5387
  %v7580 = vpack.c.b16 %v5404, %v5396
  %v7581 = vpack.c.b16 %v5405, %v5397
  %v7582 = vpack.c.b16 %v5406, %v5398
  %v7583 = vpack.c.b16 %v5407, %v5399
  %v7584 = vpack.c.b16 %v5408, %v5400
  %v7585 = vpack.c.b16 %v5409, %v5401
  %v7586 = vpack.c.b16 %v5410, %v5402
  %v7587 = vpack.c.b16 %v5411, %v5403
  %v7588 = vpack.c.b16 %v5420, %v5412
  %v7589 = vpack.c.b16 %v5421, %v5413
  %v7590 = vpack.c.b16 %v5422, %v5414
  %v7591 = vpack.c.b16 %v5423, %v5415
  %v7592 = vpack.c.b16 %v5424, %v5416
  %v7593 = vpack.c.b16 %v5425, %v5417
  %v7594 = vpack.c.b16 %v5426, %v5418
  %v7595 = vpack.c.b16 %v5427, %v5419
  %v7596 = vpack.c.b16 %v5436, %v5428
  %v7597 = vpack.c.b16 %v5437, %v5429
  %v7598 = vpack.c.b16 %v5438, %v5430
  %v7599 = vpack.c.b16 %v5439, %v5431
  %v7600 = vpack.c.b16 %v5440, %v5432
  %v7601 = vpack.c.b16 %v5441, %v5433
  %v7602 = vpack.c.b16 %v5442, %v5434
  %v7603 = vpack.c.b16 %v5443, %v5435
  %v7604 = vpack.c.b16 %v5452, %v5444
  %v7605 = vpack.c.b16 %v5453, %v5445
  %v7606 = vpack.c.b16 %v5454, %v5446
  %v7607 = vpack.c.b16 %v5455, %v5447
  %v7608 = vpack.c.b16 %v5456, %v5448
  %v7609 = vpack.c.b16 %v5457, %v5449
  %v7610 = vpack.c.b16 %v5458, %v5450
  %v7611 = vpack.c.b16 %v5459, %v5451
  %v7612 = vpack.c.b16 %v5468, %v5460
  %v7613 = vpack.c.b16 %v5469, %v5461
  %v7614 = vpack.c.b16 %v5470, %v5462
  %v7615 = vpack.c.b16 %v5471, %v5463
  %v7616 = vpack.c.b16 %v5472, %v5464
  %v7617 = vpack.c.b16 %v5473, %v5465
  %v7618 = vpack.c.b16 %v5474, %v5466
  %v7619 = vpack.c.b16 %v5475, %v5467
  %v7620 = vpack.c.b16 %v5484, %v5476
  %v7621 = vpack.c.b16 %v5485, %v5477
  %v7622 = vpack.c.b16 %v5486, %v5478
  %v7623 = vpack.c.b16 %v5487, %v5479
  %v7624 = vpack.c.b16 %v5488, %v5480
  %v7625 = vpack.c.b16 %v5489, %v5481
  %v7626 = vpack.c.b16 %v5490, %v5482
  %v7627 = vpack.c.b16 %v5491, %v5483
  %v7628 = vpack.c.b16 %v5500, %v5492
  %v7629 = vpack.c.b16 %v5501, %v5493
  %v7630 = vpack.c.b16 %v5502, %v5494
  %v7631 = vpack.c.b16 %v5503, %v5495
  %v7632 = vpack.c.b16 %v5504, %v5496
  %v7633 = vpack.c.b16 %v5505, %v5497
  %v7634 = vpack.c.b16 %v5506, %v5498
  %v7635 = vpack.c.b16 %v5507, %v5499
  %v7636 = vpack.c.b16 %v5516, %v5508
  %v7637 = vpack.c.b16 %v5517, %v5509
  %v7638 = vpack.c.b16 %v5518, %v5510
  %v7639 = vpack.c.b16 %v5519, %v5511
  %v7640 = vpack.c.b16 %v5520, %v5512
  %v7641 = vpack.c.b16 %v5521, %v5513
  %v7642 = vpack.c.b16 %v5522, %v5514
  %v7643 = vpack.c.b16 %v5523, %v5515
  %v7644 = vpack.c.b16 %v5532, %v5524
  %v7645 = vpack.c.b16 %v5533, %v5525
  %v7646 = vpack.c.b16 %v5534, %v5526
  %v7647 = vpack.c.b16 %v5535, %v5527
  %v7648 = vpack.c.b16 %v5536, %v5528
  %v7649 = vpack.c.b16 %v5537, %v5529
  %v7650 = vpack.c.b16 %v5538, %v5530
  %v7651 = vpack.c.b16 %v5539, %v5531
  %v7652 = vpack.c.b16 %v5548, %v5540
  %v7653 = vpack.c.b16 %v5549, %v5541
  %v7654 = vpack.c.b16 %v5550, %v5542
  %v7655 = vpack.c.b16 %v5551, %v5543
  %v7656 = vpack.c.b16 %v5552, %v5544
  %v7657 = vpack.c.b16 %v5553, %v5545
  %v7658 = vpack.c.b16 %v5554, %v5546
  %v7659 = vpack.c.b16 %v5555, %v5547
  %v7660 = vpack.c.b16 %v5564, %v5556
  %v7661 = vpack.c.b16 %v5565, %v5557
  %v7662 = vpack.c.b16 %v5566, %v5558
  %v7663 = vpack.c.b16 %v5567, %v5559
  %v7664 = vpack.c.b16 %v5568, %v5560
  %v7665 = vpack.c.b16 %v5569, %v5561
  %v7666 = vpack.c.b16 %v5570, %v5562
  %v7667 = vpack.c.b16 %v5571, %v5563
  %v7668 = vpack.c.b16 %v5580, %v5572
  %v7669 = vpack.c.b16 %v5581, %v5573
  %v7670 = vpack.c.b16 %v5582, %v5574
  %v7671 = vpack.c.b16 %v5583, %v5575
  %v7672 = vpack.c.b16 %v5584, %v5576
  %v7673 = vpack.c.b16 %v5585, %v5577
  %v7674 = vpack.c.b16 %v5586, %v5578
  %v7675 = vpack.c.b16 %v5587, %v5579
  %v7676 = vpack.c.b16 %v5596, %v5588
  %v7677 = vpack.c.b16 %v5597, %v5589
  %v7678 = vpack.c.b16 %v5598, %v5590
  %v7679 = vpack.c.b16 %v5599, %v5591
  %v7680 = vpack.c.b16 %v5600, %v5592
  %v7681 = vpack.c.b16 %v5601, %v5593
  %v7682 = vpack.c.b16 %v5602, %v5594
  %v7683 = vpack.c.b16 %v5603, %v5595
  %v7684 = vpack.c.b16 %v5612, %v5604
  %v7685 = vpack.c.b16 %v5613, %v5605
  %v7686 = vpack.c.b16 %v5614, %v5606
  %v7687 = vpack.c.b16 %v5615, %v5607
  %v7688 = vpack.c.b16 %v5616, %v5608
  %v7689 = vpack.c.b16 %v5617, %v5609
  %v7690 = vpack.c.b16 %v5618, %v5610
  %v7691 = vpack.c.b16 %v5619, %v5611
  %v7692 = vpack.c.b16 %v5628, %v5620
  %v7693 = vpack.c.b16 %v5629, %v5621
  %v7694 = vpack.c.b16 %v5630, %v5622
  %v7695 = vpack.c.b16 %v5631, %v5623
  %v7696 = vpack.c.b16 %v5632, %v5624
  %v7697 = vpack.c.b16 %v5633, %v5625
  %v7698 = vpack.c.b16 %v5634, %v5626
  %v7699 = vpack.c.b16 %v5635, %v5627
  %v7700 = vpack.c.b16 %v5644, %v5636
  %v7701 = vpack.c.b16 %v5645, %v5637
  %v7702 = vpack.c.b16 %v5646, %v5638
  %v7703 = vpack.c.b16 %v5647, %v5639
  %v7704 = vpack.c.b16 %v5648, %v5640
  %v7705 = vpack.c.b16 %v5649, %v5641
  %v7706 = vpack.c.b16 %v5650, %v5642
  %v7707 = vpack.c.b16 %v5651, %v5643
  %v7708 = vpack.c.b16 %v5660, %v5652
  %v7709 = vpack.c.b16 %v5661, %v5653
  %v7710 = vpack.c.b16 %v5662, %v5654
  %v7711 = vpack.c.b16 %v5663, %v5655
  %v7712 = vpack.c.b16 %v5664, %v5656
  %v7713 = vpack.c.b16 %v5665, %v5657
  %v7714 = vpack.c.b16 %v5666, %v5658
  %v7715 = vpack.c.b16 %v5667, %v5659
  %v7716 = vpack.c.b16 %v5676, %v5668
  %v7717 = vpack.c.b16 %v5677, %v5669
  %v7718 = vpack.c.b16 %v5678, %v5670
  %v7719 = vpack.c.b16 %v5679, %v5671
  %v7720 = vpack.c.b16 %v5680, %v5672
  %v7721 = vpack.c.b16 %v5681, %v5673
  %v7722 = vpack.c.b16 %v5682, %v5674
  %v7723 = vpack.c.b16 %v5683, %v5675
  %v7724 = vpack.c.b16 %v5692, %v5684
  %v7725 = vpack.c.b16 %v5693, %v5685
  %v7726 = vpack.c.b16 %v5694, %v5686
  %v7727 = vpack.c.b16 %v5695, %v5687
  %v7728 = vpack.c.b16 %v5696, %v5688
  %v7729 = vpack.c.b16 %v5697, %v5689
  %v7730 = vpack.c.b16 %v5698, %v5690
  %v7731 = vpack.c.b16 %v5699, %v5691
  %v7732 = vpack.c.b16 %v5708, %v5700
  %v7733 = vpack.c.b16 %v5709, %v5701
  %v7734 = vpack.c.b16 %v5710, %v5702
  %v7735 = vpack.c.b16 %v5711, %v5703
  %v7736 = vpack.c.b16 %v5712, %v5704
  %v7737 = vpack.c.b16 %v5713, %v5705
  %v7738 = vpack.c.b16 %v5714, %v5706
  %v7739 = vpack.c.b16 %v5715, %v5707
  %v7740 = vpack.c.b16 %v5724, %v5716
  %v7741 = vpack.c.b16 %v5725, %v5717
  %v7742 = vpack.c.b16 %v5726, %v5718
  %v7743 = vpack.c.b16 %v5727, %v5719
  %v7744 = vpack.c.b16 %v5728, %v5720
  %v7745 = vpack.c.b16 %v5729, %v5721
  %v7746 = vpack.c.b16 %v5730, %v5722
  %v7747 = vpack.c.b16 %v5731, %v5723
  %v7748 = vpack.c.b16 %v5740, %v5732
  %v7749 = vpack.c.b16 %v5741, %v5733
  %v7750 = vpack.c.b16 %v5742, %v5734
  %v7751 = vpack.c.b16 %v5743, %v5735
  %v7752 = vpack.c.b16 %v5744, %v5736
  %v7753 = vpack.c.b16 %v5745, %v5737
  %v7754 = vpack.c.b16 %v5746, %v5738
  %v7755 = vpack.c.b16 %v5747, %v5739
  %v7756 = vpack.c.b16 %v5756, %v5748
  %v7757 = vpack.c.b16 %v5757, %v5749
  %v7758 = vpack.c.b16 %v5758, %v5750
  %v7759 = vpack.c.b16 %v5759, %v5751
  %v7760 = vpack.c.b16 %v5760, %v5752
  %v7761 = vpack.c.b16 %v5761, %v5753
  %v7762 = vpack.c.b16 %v5762, %v5754
  %v7763 = vpack.c.b16 %v5763, %v5755
  %v7764 = vpack.c.b16 %v5772, %v5764
  %v7765 = vpack.c.b16 %v5773, %v5765
  %v7766 = vpack.c.b16 %v5774, %v5766
  %v7767 = vpack.c.b16 %v5775, %v5767
  %v7768 = vpack.c.b16 %v5776, %v5768
  %v7769 = vpack.c.b16 %v5777, %v5769
  %v7770 = vpack.c.b16 %v5778, %v5770
  %v7771 = vpack.c.b16 %v5779, %v5771
  %v7772 = vpack.c.b16 %v5788, %v5780
  %v7773 = vpack.c.b16 %v5789, %v5781
  %v7774 = vpack.c.b16 %v5790, %v5782
  %v7775 = vpack.c.b16 %v5791, %v5783
  %v7776 = vpack.c.b16 %v5792, %v5784
  %v7777 = vpack.c.b16 %v5793, %v5785
  %v7778 = vpack.c.b16 %v5794, %v5786
  %v7779 = vpack.c.b16 %v5795, %v5787
  %v7780 = vpack.c.b16 %v5804, %v5796
  %v7781 = vpack.c.b16 %v5805, %v5797
  %v7782 = vpack.c.b16 %v5806, %v5798
  %v7783 = vpack.c.b16 %v5807, %v5799
  %v7784 = vpack.c.b16 %v5808, %v5800
  %v7785 = vpack.c.b16 %v5809, %v5801
  %v7786 = vpack.c.b16 %v5810, %v5802
  %v7787 = vpack.c.b16 %v5811, %v5803
  %v7788 = vpack.c.b16 %v5820, %v5812
  %v7789 = vpack.c.b16 %v5821, %v5813
  %v7790 = vpack.c.b16 %v5822, %v5814
  %v7791 = vpack.c.b16 %v5823, %v5815
  %v7792 = vpack.c.b16 %v5824, %v5816
  %v7793 = vpack.c.b16 %v5825, %v5817
  %v7794 = vpack.c.b16 %v5826, %v5818
  %v7795 = vpack.c.b16 %v5827, %v5819
  %v7796 = vpack.c.b16 %v5836, %v5828
  %v7797 = vpack.c.b16 %v5837, %v5829
  %v7798 = vpack.c.b16 %v5838, %v5830
  %v7799 = vpack.c.b16 %v5839, %v5831
  %v7800 = vpack.c.b16 %v5840, %v5832
  %v7801 = vpack.c.b16 %v5841, %v5833
  %v7802 = vpack.c.b16 %v5842, %v5834
  %v7803 = vpack.c.b16 %v5843, %v5835
  %v7804 = vpack.c.b16 %v5852, %v5844
  %v7805 = vpack.c.b16 %v5853, %v5845
  %v7806 = vpack.c.b16 %v5854, %v5846
  %v7807 = vpack.c.b16 %v5855, %v5847
  %v7808 = vpack.c.b16 %v5856, %v5848
  %v7809 = vpack.c.b16 %v5857, %v5849
  %v7810 = vpack.c.b16 %v5858, %v5850
  %v7811 = vpack.c.b16 %v5859, %v5851
  %v7812 = vpack.c.b16 %v5868, %v5860
  %v7813 = vpack.c.b16 %v5869, %v5861
  %v7814 = vpack.c.b16 %v5870, %v5862
  %v7815 = vpack.c.b16 %v5871, %v5863
  %v7816 = vpack.c.b16 %v5872, %v5864
  %v7817 = vpack.c.b16 %v5873, %v5865
  %v7818 = vpack.c.b16 %v5874, %v5866
  %v7819 = vpack.c.b16 %v5875, %v5867
  %v7820 = vpack.c.b16 %v5884, %v5876
  %v7821 = vpack.c.b16 %v5885, %v5877
  %v7822 = vpack.c.b16 %v5886, %v5878
  %v7823 = vpack.c.b16 %v5887, %v5879
  %v7824 = vpack.c.b16 %v5888, %v5880
  %v7825 = vpack.c.b16 %v5889, %v5881
  %v7826 = vpack.c.b16 %v5890, %v5882
  %v7827 = vpack.c.b16 %v5891, %v5883
  %v7828 = vpack.c.b16 %v5900, %v5892
  %v7829 = vpack.c.b16 %v5901, %v5893
  %v7830 = vpack.c.b16 %v5902, %v5894
  %v7831 = vpack.c.b16 %v5903, %v5895
  %v7832 = vpack.c.b16 %v5904, %v5896
  %v7833 = vpack.c.b16 %v5905, %v5897
  %v7834 = vpack.c.b16 %v5906, %v5898
  %v7835 = vpack.c.b16 %v5907, %v5899
  %v7836 = vpack.c.b16 %v5916, %v5908
  %v7837 = vpack.c.b16 %v5917, %v5909
  %v7838 = vpack.c.b16 %v5918, %v5910
  %v7839 = vpack.c.b16 %v5919, %v5911
  %v7840 = vpack.c.b16 %v5920, %v5912
  %v7841 = vpack.c.b16 %v5921, %v5913
  %v7842 = vpack.c.b16 %v5922, %v5914
  %v7843 = vpack.c.b16 %v5923, %v5915
  %v7844 = vpack.c.b16 %v5932, %v5924
  %v7845 = vpack.c.b16 %v5933, %v5925
  %v7846 = vpack.c.b16 %v5934, %v5926
  %v7847 = vpack.c.b16 %v5935, %v5927
  %v7848 = vpack.c.b16 %v5936, %v5928
  %v7849 = vpack.c.b16 %v5937, %v5929
  %v7850 = vpack.c.b16 %v5938, %v5930
  %v7851 = vpack.c.b16 %v5939, %v5931
  %v7852 = vpack.c.b16 %v5948, %v5940
  %v7853 = vpack.c.b16 %v5949, %v5941
  %v7854 = vpack.c.b16 %v5950, %v5942
  %v7855 = vpack.c.b16 %v5951, %v5943
  %v7856 = vpack.c.b16 %v5952, %v5944
  %v7857 = vpack.c.b16 %v5953, %v5945
  %v7858 = vpack.c.b16 %v5954, %v5946
  %v7859 = vpack.c.b16 %v5955, %v5947
  %v7860 = vpack.c.b16 %v5964, %v5956
  %v7861 = vpack.c.b16 %v5965, %v5957
  %v7862 = vpack.c.b16 %v5966, %v5958
  %v7863 = vpack.c.b16 %v5967, %v5959
  %v7864 = vpack.c.b16 %v5968, %v5960
  %v7865 = vpack.c.b16 %v5969, %v5961
  %v7866 = vpack.c.b16 %v5970, %v5962
  %v7867 = vpack.c.b16 %v5971, %v5963
  %v7868 = vpack.c.b16 %v5980, %v5972
  %v7869 = vpack.c.b16 %v5981, %v5973
  %v7870 = vpack.c.b16 %v5982, %v5974
  %v7871 = vpack.c.b16 %v5983, %v5975
  %v7872 = vpack.c.b16 %v5984, %v5976
  %v7873 = vpack.c.b16 %v5985, %v5977
  %v7874 = vpack.c.b16 %v5986, %v5978
  %v7875 = vpack.c.b16 %v5987, %v5979
  %v7876 = vpack.c.b16 %v5996, %v5988
  %v7877 = vpack.c.b16 %v5997, %v5989
  %v7878 = vpack.c.b16 %v5998, %v5990
  %v7879 = vpack.c.b16 %v5999, %v5991
  %v7880 = vpack.c.b16 %v6000, %v5992
  %v7881 = vpack.c.b16 %v6001, %v5993
  %v7882 = vpack.c.b16 %v6002, %v5994
  %v7883 = vpack.c.b16 %v6003, %v5995
  %v7884 = vpack.c.b16 %v6012, %v6004
  %v7885 = vpack.c.b16 %v6013, %v6005
  %v7886 = vpack.c.b16 %v6014, %v6006
  %v7887 = vpack.c.b16 %v6015, %v6007
  %v7888 = vpack.c.b16 %v6016, %v6008
  %v7889 = vpack.c.b16 %v6017, %v6009
  %v7890 = vpack.c.b16 %v6018, %v6010
  %v7891 = vpack.c.b16 %v6019, %v6011
  %v7892 = vpack.c.b16 %v6028, %v6020
  %v7893 = vpack.c.b16 %v6029, %v6021
  %v7894 = vpack.c.b16 %v6030, %v6022
  %v7895 = vpack.c.b16 %v6031, %v6023
  %v7896 = vpack.c.b16 %v6032, %v6024
  %v7897 = vpack.c.b16 %v6033, %v6025
  %v7898 = vpack.c.b16 %v6034, %v6026
  %v7899 = vpack.c.b16 %v6035, %v6027
  %v7900 = vpack.c.b16 %v6044, %v6036
  %v7901 = vpack.c.b16 %v6045, %v6037
  %v7902 = vpack.c.b16 %v6046, %v6038
  %v7903 = vpack.c.b16 %v6047, %v6039
  %v7904 = vpack.c.b16 %v6048, %v6040
  %v7905 = vpack.c.b16 %v6049, %v6041
  %v7906 = vpack.c.b16 %v6050, %v6042
  %v7907 = vpack.c.b16 %v6051, %v6043
  %v7908 = vpack.c.b16 %v6060, %v6052
  %v7909 = vpack.c.b16 %v6061, %v6053
  %v7910 = vpack.c.b16 %v6062, %v6054
  %v7911 = vpack.c.b16 %v6063, %v6055
  %v7912 = vpack.c.b16 %v6064, %v6056
  %v7913 = vpack.c.b16 %v6065, %v6057
  %v7914 = vpack.c.b16 %v6066, %v6058
  %v7915 = vpack.c.b16 %v6067, %v6059
  %v7916 = vpack.c.b16 %v6076, %v6068
  %v7917 = vpack.c.b16 %v6077, %v6069
  %v7918 = vpack.c.b16 %v6078, %v6070
  %v7919 = vpack.c.b16 %v6079, %v6071
  %v7920 = vpack.c.b16 %v6080, %v6072
  %v7921 = vpack.c.b16 %v6081, %v6073
  %v7922 = vpack.c.b16 %v6082, %v6074
  %v7923 = vpack.c.b16 %v6083, %v6075
  %v7924 = vpack.c.b16 %v6092, %v6084
  %v7925 = vpack.c.b16 %v6093, %v6085
  %v7926 = vpack.c.b16 %v6094, %v6086
  %v7927 = vpack.c.b16 %v6095, %v6087
  %v7928 = vpack.c.b16 %v6096, %v6088
  %v7929 = vpack.c.b16 %v6097, %v6089
  %v7930 = vpack.c.b16 %v6098, %v6090
  %v7931 = vpack.c.b16 %v6099, %v6091
  %v7932 = vpack.c.b16 %v6108, %v6100
  %v7933 = vpack.c.b16 %v6109, %v6101
  %v7934 = vpack.c.b16 %v6110, %v6102
  %v7935 = vpack.c.b16 %v6111, %v6103
  %v7936 = vpack.c.b16 %v6112, %v6104
  %v7937 = vpack.c.b16 %v6113, %v6105
  %v7938 = vpack.c.b16 %v6114, %v6106
  %v7939 = vpack.c.b16 %v6115, %v6107
  %v7940 = vpack.c.b16 %v6124, %v6116
  %v7941 = vpack.c.b16 %v6125, %v6117
  %v7942 = vpack.c.b16 %v6126, %v6118
  %v7943 = vpack.c.b16 %v6127, %v6119
  %v7944 = vpack.c.b16 %v6128, %v6120
  %v7945 = vpack.c.b16 %v6129, %v6121
  %v7946 = vpack.c.b16 %v6130, %v6122
  %v7947 = vpack.c.b16 %v6131, %v6123
  %v7948 = vpack.c.b16 %v6140, %v6132
  %v7949 = vpack.c.b16 %v6141, %v6133
  %v7950 = vpack.c.b16 %v6142, %v6134
  %v7951 = vpack.c.b16 %v6143, %v6135
  %v7952 = vpack.c.b16 %v6144, %v6136
  %v7953 = vpack.c.b16 %v6145, %v6137
  %v7954 = vpack.c.b16 %v6146, %v6138
  %v7955 = vpack.c.b16 %v6147, %v6139
  %v7956 = vpack.c.b16 %v6156, %v6148
  %v7957 = vpack.c.b16 %v6157, %v6149
  %v7958 = vpack.c.b16 %v6158, %v6150
  %v7959 = vpack.c.b16 %v6159, %v6151
  %v7960 = vpack.c.b16 %v6160, %v6152
  %v7961 = vpack.c.b16 %v6161, %v6153
  %v7962 = vpack.c.b16 %v6162, %v6154
  %v7963 = vpack.c.b16 %v6163, %v6155
  %v7964 = vpack.c.b16 %v6172, %v6164
  %v7965 = vpack.c.b16 %v6173, %v6165
  %v7966 = vpack.c.b16 %v6174, %v6166
  %v7967 = vpack.c.b16 %v6175, %v6167
  %v7968 = vpack.c.b16 %v6176, %v6168
  %v7969 = vpack.c.b16 %v6177, %v6169
  %v7970 = vpack.c.b16 %v6178, %v6170
  %v7971 = vpack.c.b16 %v6179, %v6171
  %v7972 = vpack.c.b16 %v6188, %v6180
  %v7973 = vpack.c.b16 %v6189, %v6181
  %v7974 = vpack.c.b16 %v6190, %v6182
  %v7975 = vpack.c.b16 %v6191, %v6183
  %v7976 = vpack.c.b16 %v6192, %v6184
  %v7977 = vpack.c.b16 %v6193, %v6185
  %v7978 = vpack.c.b16 %v6194, %v6186
  %v7979 = vpack.c.b16 %v6195, %v6187
  %v7980 = vpack.c.b16 %v6204, %v6196
  %v7981 = vpack.c.b16 %v6205, %v6197
  %v7982 = vpack.c.b16 %v6206, %v6198
  %v7983 = vpack.c.b16 %v6207, %v6199
  %v7984 = vpack.c.b16 %v6208, %v6200
  %v7985 = vpack.c.b16 %v6209, %v6201
  %v7986 = vpack.c.b16 %v6210, %v6202
  %v7987 = vpack.c.b16 %v6211, %v6203
  %v7988 = vpack.c.b16 %v6220, %v6212
  %v7989 = vpack.c.b16 %v6221, %v6213
  %v7990 = vpack.c.b16 %v6222, %v6214
  %v7991 = vpack.c.b16 %v6223, %v6215
  %v7992 = vpack.c.b16 %v6224, %v6216
  %v7993 = vpack.c.b16 %v6225, %v6217
  %v7994 = vpack.c.b16 %v6226, %v6218
  %v7995 = vpack.c.b16 %v6227, %v6219
  %v7996 = vpack.c.b16 %v6236, %v6228
  %v7997 = vpack.c.b16 %v6237, %v6229
  %v7998 = vpack.c.b16 %v6238, %v6230
  %v7999 = vpack.c.b16 %v6239, %v6231
  %v8000 = vpack.c.b16 %v6240, %v6232
  %v8001 = vpack.c.b16 %v6241, %v6233
  %v8002 = vpack.c.b16 %v6242, %v6234
  %v8003 = vpack.c.b16 %v6243, %v6235
  %v8004 = vpack.c.b16 %v6252, %v6244
  %v8005 = vpack.c.b16 %v6253, %v6245
  %v8006 = vpack.c.b16 %v6254, %v6246
  %v8007 = vpack.c.b16 %v6255, %v6247
  %v8008 = vpack.c.b16 %v6256, %v6248
  %v8009 = vpack.c.b16 %v6257, %v6249
  %v8010 = vpack.c.b16 %v6258, %v6250
  %v8011 = vpack.c.b16 %v6259, %v6251
  %v8012 = vpack.c.b16 %v6268, %v6260
  %v8013 = vpack.c.b16 %v6269, %v6261
  %v8014 = vpack.c.b16 %v6270, %v6262
  %v8015 = vpack.c.b16 %v6271, %v6263
  %v8016 = vpack.c.b16 %v6272, %v6264
  %v8017 = vpack.c.b16 %v6273, %v6265
  %v8018 = vpack.c.b16 %v6274, %v6266
  %v8019 = vpack.c.b16 %v6275, %v6267
  %v8020 = vpack.c.b16 %v6284, %v6276
  %v8021 = vpack.c.b16 %v6285, %v6277
  %v8022 = vpack.c.b16 %v6286, %v6278
  %v8023 = vpack.c.b16 %v6287, %v6279
  %v8024 = vpack.c.b16 %v6288, %v6280
  %v8025 = vpack.c.b16 %v6289, %v6281
  %v8026 = vpack.c.b16 %v6290, %v6282
  %v8027 = vpack.c.b16 %v6291, %v6283
  %v8028 = vpack.c.b16 %v6300, %v6292
  %v8029 = vpack.c.b16 %v6301, %v6293
  %v8030 = vpack.c.b16 %v6302, %v6294
  %v8031 = vpack.c.b16 %v6303, %v6295
  %v8032 = vpack.c.b16 %v6304, %v6296
  %v8033 = vpack.c.b16 %v6305, %v6297
  %v8034 = vpack.c.b16 %v6306, %v6298
  %v8035 = vpack.c.b16 %v6307, %v6299
  %v8036 = vpack.c.b16 %v6316, %v6308
  %v8037 = vpack.c.b16 %v6317, %v6309
  %v8038 = vpack.c.b16 %v6318, %v6310
  %v8039 = vpack.c.b16 %v6319, %v6311
  %v8040 = vpack.c.b16 %v6320, %v6312
  %v8041 = vpack.c.b16 %v6321, %v6313
  %v8042 = vpack.c.b16 %v6322, %v6314
  %v8043 = vpack.c.b16 %v6323, %v6315
  %v8044 = vpack.c.b16 %v6332, %v6324
  %v8045 = vpack.c.b16 %v6333, %v6325
  %v8046 = vpack.c.b16 %v6334, %v6326
  %v8047 = vpack.c.b16 %v6335, %v6327
  %v8048 = vpack.c.b16 %v6336, %v6328
  %v8049 = vpack.c.b16 %v6337, %v6329
  %v8050 = vpack.c.b16 %v6338, %v6330
  %v8051 = vpack.c.b16 %v6339, %v6331
  %v8052 = vpack.c.b16 %v6348, %v6340
  %v8053 = vpack.c.b16 %v6349, %v6341
  %v8054 = vpack.c.b16 %v6350, %v6342
  %v8055 = vpack.c.b16 %v6351, %v6343
  %v8056 = vpack.c.b16 %v6352, %v6344
  %v8057 = vpack.c.b16 %v6353, %v6345
  %v8058 = vpack.c.b16 %v6354, %v6346
  %v8059 = vpack.c.b16 %v6355, %v6347
  %v8060 = vpack.c.b16 %v6364, %v6356
  %v8061 = vpack.c.b16 %v6365, %v6357
  %v8062 = vpack.c.b16 %v6366, %v6358
  %v8063 = vpack.c.b16 %v6367, %v6359
  %v8064 = vpack.c.b16 %v6368, %v6360
  %v8065 = vpack.c.b16 %v6369, %v6361
  %v8066 = vpack.c.b16 %v6370, %v6362
  %v8067 = vpack.c.b16 %v6371, %v6363
  %v8068 = vpack.c.b16 %v6380, %v6372
  %v8069 = vpack.c.b16 %v6381, %v6373
  %v8070 = vpack.c.b16 %v6382, %v6374
  %v8071 = vpack.c.b16 %v6383, %v6375
  %v8072 = vpack.c.b16 %v6384, %v6376
  %v8073 = vpack.c.b16 %v6385, %v6377
  %v8074 = vpack.c.b16 %v6386, %v6378
  %v8075 = vpack.c.b16 %v6387, %v6379
  %v8076 = vpack.c.b16 %v6396, %v6388
  %v8077 = vpack.c.b16 %v6397, %v6389
  %v8078 = vpack.c.b16 %v6398, %v6390
  %v8079 = vpack.c.b16 %v6399, %v6391
  %v8080 = vpack.c.b16 %v6400, %v6392
  %v8081 = vpack.c.b16 %v6401, %v6393
  %v8082 = vpack.c.b16 %v6402, %v6394
  %v8083 = vpack.c.b16 %v6403, %v6395
  %v8084 = vpack.c.b16 %v6412, %v6404
  %v8085 = vpack.c.b16 %v6413, %v6405
  %v8086 = vpack.c.b16 %v6414, %v6406
  %v8087 = vpack.c.b16 %v6415, %v6407
  %v8088 = vpack.c.b16 %v6416, %v6408
  %v8089 = vpack.c.b16 %v6417, %v6409
  %v8090 = vpack.c.b16 %v6418, %v6410
  %v8091 = vpack.c.b16 %v6419, %v6411
  %v8092 = vpack.c.b16 %v6428, %v6420
  %v8093 = vpack.c.b16 %v6429, %v6421
  %v8094 = vpack.c.b16 %v6430, %v6422
  %v8095 = vpack.c.b16 %v6431, %v6423
  %v8096 = vpack.c.b16 %v6432, %v6424
  %v8097 = vpack.c.b16 %v6433, %v6425
  %v8098 = vpack.c.b16 %v6434, %v6426
  %v8099 = vpack.c.b16 %v6435, %v6427
  %v8100 = vpack.c.b16 %v6444, %v6436
  %v8101 = vpack.c.b16 %v6445, %v6437
  %v8102 = vpack.c.b16 %v6446, %v6438
  %v8103 = vpack.c.b16 %v6447, %v6439
  %v8104 = vpack.c.b16 %v6448, %v6440
  %v8105 = vpack.c.b16 %v6449, %v6441
  %v8106 = vpack.c.b16 %v6450, %v6442
  %v8107 = vpack.c.b16 %v6451, %v6443
  %v8108 = vpack.c.b16 %v6460, %v6452
  %v8109 = vpack.c.b16 %v6461, %v6453
  %v8110 = vpack.c.b16 %v6462, %v6454
  %v8111 = vpack.c.b16 %v6463, %v6455
  %v8112 = vpack.c.b16 %v6464, %v6456
  %v8113 = vpack.c.b16 %v6465, %v6457
  %v8114 = vpack.c.b16 %v6466, %v6458
  %v8115 = vpack.c.b16 %v6467, %v6459
  %v8116 = vpack.c.b16 %v6476, %v6468
  %v8117 = vpack.c.b16 %v6477, %v6469
  %v8118 = vpack.c.b16 %v6478, %v6470
  %v8119 = vpack.c.b16 %v6479, %v6471
  %v8120 = vpack.c.b16 %v6480, %v6472
  %v8121 = vpack.c.b16 %v6481, %v6473
  %v8122 = vpack.c.b16 %v6482, %v6474
  %v8123 = vpack.c.b16 %v6483, %v6475
  %v8124 = vpack.c.b16 %v6492, %v6484
  %v8125 = vpack.c.b16 %v6493, %v6485
  %v8126 = vpack.c.b16 %v6494, %v6486
  %v8127 = vpack.c.b16 %v6495, %v6487
  %v8128 = vpack.c.b16 %v6496, %v6488
  %v8129 = vpack.c.b16 %v6497, %v6489
  %v8130 = vpack.c.b16 %v6498, %v6490
  %v8131 = vpack.c.b16 %v6499, %v6491
  %v8132 = vpack.c.b16 %v6508, %v6500
  %v8133 = vpack.c.b16 %v6509, %v6501
  %v8134 = vpack.c.b16 %v6510, %v6502
  %v8135 = vpack.c.b16 %v6511, %v6503
  %v8136 = vpack.c.b16 %v6512, %v6504
  %v8137 = vpack.c.b16 %v6513, %v6505
  %v8138 = vpack.c.b16 %v6514, %v6506
  %v8139 = vpack.c.b16 %v6515, %v6507
  %v8140 = vpack.c.b16 %v6524, %v6516
  %v8141 = vpack.c.b16 %v6525, %v6517
  %v8142 = vpack.c.b16 %v6526, %v6518
  %v8143 = vpack.c.b16 %v6527, %v6519
  %v8144 = vpack.c.b16 %v6528, %v6520
  %v8145 = vpack.c.b16 %v6529, %v6521
  %v8146 = vpack.c.b16 %v6530, %v6522
  %v8147 = vpack.c.b16 %v6531, %v6523
  %v8148 = vpack.c.b16 %v6540, %v6532
  %v8149 = vpack.c.b16 %v6541, %v6533
  %v8150 = vpack.c.b16 %v6542, %v6534
  %v8151 = vpack.c.b16 %v6543, %v6535
  %v8152 = vpack.c.b16 %v6544, %v6536
  %v8153 = vpack.c.b16 %v6545, %v6537
  %v8154 = vpack.c.b16 %v6546, %v6538
  %v8155 = vpack.c.b16 %v6547, %v6539
  %v8156 = vpack.c.b16 %v6556, %v6548
  %v8157 = vpack.c.b16 %v6557, %v6549
  %v8158 = vpack.c.b16 %v6558, %v6550
  %v8159 = vpack.c.b16 %v6559, %v6551
  %v8160 = vpack.c.b16 %v6560, %v6552
  %v8161 = vpack.c.b16 %v6561, %v6553
  %v8162 = vpack.c.b16 %v6562, %v6554
  %v8163 = vpack.c.b16 %v6563, %v6555
  %9764 = vmatprep.subr.bf16.mxu0 %v6565
  %9765 = vmatpush1.bf16.msra.mxu0 %v6564
  %9766 = vmatprep.subr.bf16.mxu0 %v6573
  %9767 = vmatpush1.bf16.msra.mxu0 %v6572
  %9768 = vmatprep.subr.bf16.mxu0 %v6581
  %9769 = vmatpush1.bf16.msra.mxu0 %v6580
  %9770 = vmatprep.subr.bf16.mxu0 %v6589
  %9771 = vmatpush1.bf16.msra.mxu0 %v6588
  %9772 = vmatprep.subr.bf16.mxu0 %v6597
  %9773 = vmatpush1.bf16.msra.mxu0 %v6596
  %9774 = vmatprep.subr.bf16.mxu0 %v6605
  %9775 = vmatpush1.bf16.msra.mxu0 %v6604
  %9776 = vmatprep.subr.bf16.mxu0 %v6613
  %9777 = vmatpush1.bf16.msra.mxu0 %v6612
  %9778 = vmatprep.subr.bf16.mxu0 %v6621
  %9779 = vmatpush1.bf16.msra.mxu0 %v6620
  %9780 = vmatprep.subr.bf16.mxu0 %v6629
  %9781 = vmatpush1.bf16.msra.mxu0 %v6628
  %9782 = vmatprep.subr.bf16.mxu0 %v6637
  %9783 = vmatpush1.bf16.msra.mxu0 %v6636
  %9784 = vmatprep.subr.bf16.mxu0 %v6645
  %9785 = vmatpush1.bf16.msra.mxu0 %v6644
  %9786 = vmatprep.subr.bf16.mxu0 %v6653
  %9787 = vmatpush1.bf16.msra.mxu0 %v6652
  %9788 = vmatprep.subr.bf16.mxu0 %v6661
  %9789 = vmatpush1.bf16.msra.mxu0 %v6660
  %9790 = vmatprep.subr.bf16.mxu0 %v6669
  %9791 = vmatpush1.bf16.msra.mxu0 %v6668
  %9792 = vmatprep.subr.bf16.mxu0 %v6677
  %9793 = vmatpush1.bf16.msra.mxu0 %v6676
  %9794 = vmatprep.subr.bf16.mxu0 %v6685
  %9795 = vmatpush1.bf16.msra.mxu0 %v6684
  %9796 = vmatprep.mubr.bf16.mxu0 %v1715
  %9797 = vmatmul.mubr.bf16.gmra.mrb[0].mxu0 %v1714
  %v9798 = vpop.f32.mrb[0].mxu0
  %v9799 = vadd.f32 %v1639, %v9798
  %v9800 = vpop.f32.mrb[0].mxu0
  %v9801 = vadd.f32 %v1643, %v9800
  %v9802 = vpop.f32.mrb[0].mxu0
  %v9803 = vpop.f32.mrb[0].mxu0
  %9804 = vdwg.mxu0
  %9805 = vmatprep.subr.bf16.mxu0 %v6693
  %9806 = vmatpush1.bf16.msra.mxu0 %v6692
  %9807 = vmatprep.subr.bf16.mxu0 %v6701
  %9808 = vmatpush1.bf16.msra.mxu0 %v6700
  %9809 = vmatprep.subr.bf16.mxu0 %v6709
  %9810 = vmatpush1.bf16.msra.mxu0 %v6708
  %9811 = vmatprep.subr.bf16.mxu0 %v6717
  %9812 = vmatpush1.bf16.msra.mxu0 %v6716
  %9813 = vmatprep.subr.bf16.mxu0 %v6725
  %9814 = vmatpush1.bf16.msra.mxu0 %v6724
  %9815 = vmatprep.subr.bf16.mxu0 %v6733
  %9816 = vmatpush1.bf16.msra.mxu0 %v6732
  %9817 = vmatprep.subr.bf16.mxu0 %v6741
  %9818 = vmatpush1.bf16.msra.mxu0 %v6740
  %9819 = vmatprep.subr.bf16.mxu0 %v6749
  %9820 = vmatpush1.bf16.msra.mxu0 %v6748
  %9821 = vmatprep.subr.bf16.mxu0 %v6757
  %9822 = vmatpush1.bf16.msra.mxu0 %v6756
  %9823 = vmatprep.subr.bf16.mxu0 %v6765
  %9824 = vmatpush1.bf16.msra.mxu0 %v6764
  %9825 = vmatprep.subr.bf16.mxu0 %v6773
  %9826 = vmatpush1.bf16.msra.mxu0 %v6772
  %9827 = vmatprep.subr.bf16.mxu0 %v6781
  %9828 = vmatpush1.bf16.msra.mxu0 %v6780
  %9829 = vmatprep.subr.bf16.mxu0 %v6789
  %9830 = vmatpush1.bf16.msra.mxu0 %v6788
  %9831 = vmatprep.subr.bf16.mxu0 %v6797
  %9832 = vmatpush1.bf16.msra.mxu0 %v6796
  %9833 = vmatprep.subr.bf16.mxu0 %v6805
  %9834 = vmatpush1.bf16.msra.mxu0 %v6804
  %9835 = vmatprep.subr.bf16.mxu0 %v6813
  %9836 = vmatpush1.bf16.msra.mxu0 %v6812
  %9837 = vmatprep.mubr.bf16.mxu0 %v1717
  %9838 = vmatmul.mubr.bf16.gmra.mrb[0].mxu0 %v1716
  %v9839 = vpop.f32.mrb[0].mxu0
  %v9840 = vadd.f32 %v9799, %v9839
  %v9841 = vpop.f32.mrb[0].mxu0
  %v9842 = vadd.f32 %v9801, %v9841
  %v9843 = vpop.f32.mrb[0].mxu0
  %v9844 = vpop.f32.mrb[0].mxu0
  %9845 = vdwg.mxu0
  %9846 = vmatprep.subr.bf16.mxu0 %v6821
  %9847 = vmatpush1.bf16.msra.mxu0 %v6820
  %9848 = vmatprep.subr.bf16.mxu0 %v6829
  %9849 = vmatpush1.bf16.msra.mxu0 %v6828
  %9850 = vmatprep.subr.bf16.mxu0 %v6837
  %9851 = vmatpush1.bf16.msra.mxu0 %v6836
  %9852 = vmatprep.subr.bf16.mxu0 %v6845
  %9853 = vmatpush1.bf16.msra.mxu0 %v6844
  %9854 = vmatprep.subr.bf16.mxu0 %v6853
  %9855 = vmatpush1.bf16.msra.mxu0 %v6852
  %9856 = vmatprep.subr.bf16.mxu0 %v6861
  %9857 = vmatpush1.bf16.msra.mxu0 %v6860
  %9858 = vmatprep.subr.bf16.mxu0 %v6869
  %9859 = vmatpush1.bf16.msra.mxu0 %v6868
  %9860 = vmatprep.subr.bf16.mxu0 %v6877
  %9861 = vmatpush1.bf16.msra.mxu0 %v6876
  %9862 = vmatprep.subr.bf16.mxu0 %v6885
  %9863 = vmatpush1.bf16.msra.mxu0 %v6884
  %9864 = vmatprep.subr.bf16.mxu0 %v6893
  %9865 = vmatpush1.bf16.msra.mxu0 %v6892
  %9866 = vmatprep.subr.bf16.mxu0 %v6901
  %9867 = vmatpush1.bf16.msra.mxu0 %v6900
  %9868 = vmatprep.subr.bf16.mxu0 %v6909
  %9869 = vmatpush1.bf16.msra.mxu0 %v6908
  %9870 = vmatprep.subr.bf16.mxu0 %v6917
  %9871 = vmatpush1.bf16.msra.mxu0 %v6916
  %9872 = vmatprep.subr.bf16.mxu0 %v6925
  %9873 = vmatpush1.bf16.msra.mxu0 %v6924
  %9874 = vmatprep.subr.bf16.mxu0 %v6933
  %9875 = vmatpush1.bf16.msra.mxu0 %v6932
  %9876 = vmatprep.subr.bf16.mxu0 %v6941
  %9877 = vmatpush1.bf16.msra.mxu0 %v6940
  %9878 = vmatprep.mubr.bf16.mxu0 %v1719
  %9879 = vmatmul.mubr.bf16.gmra.mrb[0].mxu0 %v1718
  %v9880 = vpop.f32.mrb[0].mxu0
  %v9881 = vadd.f32 %v9840, %v9880
  %v9882 = vpop.f32.mrb[0].mxu0
  %v9883 = vadd.f32 %v9842, %v9882
  %v9884 = vpop.f32.mrb[0].mxu0
  %v9885 = vpop.f32.mrb[0].mxu0
  %9886 = vdwg.mxu0
  %9887 = vmatprep.subr.bf16.mxu0 %v6949
  %9888 = vmatpush1.bf16.msra.mxu0 %v6948
  %9889 = vmatprep.subr.bf16.mxu0 %v6957
  %9890 = vmatpush1.bf16.msra.mxu0 %v6956
  %9891 = vmatprep.subr.bf16.mxu0 %v6965
  %9892 = vmatpush1.bf16.msra.mxu0 %v6964
  %9893 = vmatprep.subr.bf16.mxu0 %v6973
  %9894 = vmatpush1.bf16.msra.mxu0 %v6972
  %9895 = vmatprep.subr.bf16.mxu0 %v6981
  %9896 = vmatpush1.bf16.msra.mxu0 %v6980
  %9897 = vmatprep.subr.bf16.mxu0 %v6989
  %9898 = vmatpush1.bf16.msra.mxu0 %v6988
  %9899 = vmatprep.subr.bf16.mxu0 %v6997
  %9900 = vmatpush1.bf16.msra.mxu0 %v6996
  %9901 = vmatprep.subr.bf16.mxu0 %v7005
  %9902 = vmatpush1.bf16.msra.mxu0 %v7004
  %9903 = vmatprep.subr.bf16.mxu0 %v7013
  %9904 = vmatpush1.bf16.msra.mxu0 %v7012
  %9905 = vmatprep.subr.bf16.mxu0 %v7021
  %9906 = vmatpush1.bf16.msra.mxu0 %v7020
  %9907 = vmatprep.subr.bf16.mxu0 %v7029
  %9908 = vmatpush1.bf16.msra.mxu0 %v7028
  %9909 = vmatprep.subr.bf16.mxu0 %v7037
  %9910 = vmatpush1.bf16.msra.mxu0 %v7036
  %9911 = vmatprep.subr.bf16.mxu0 %v7045
  %9912 = vmatpush1.bf16.msra.mxu0 %v7044
  %9913 = vmatprep.subr.bf16.mxu0 %v7053
  %9914 = vmatpush1.bf16.msra.mxu0 %v7052
  %9915 = vmatprep.subr.bf16.mxu0 %v7061
  %9916 = vmatpush1.bf16.msra.mxu0 %v7060
  %9917 = vmatprep.subr.bf16.mxu0 %v7069
  %9918 = vmatpush1.bf16.msra.mxu0 %v7068
  %9919 = vmatprep.mubr.bf16.mxu0 %v1721
  %9920 = vmatmul.mubr.bf16.gmra.mrb[0].mxu0 %v1720
  %v9921 = vpop.f32.mrb[0].mxu0
  %v9922 = vadd.f32 %v9881, %v9921
  %v9923 = vpop.f32.mrb[0].mxu0
  %v9924 = vadd.f32 %v9883, %v9923
  %v9925 = vpop.f32.mrb[0].mxu0
  %v9926 = vpop.f32.mrb[0].mxu0
  %9927 = vdwg.mxu0
  %9928 = vmatprep.subr.bf16.mxu0 %v7077
  %9929 = vmatpush1.bf16.msra.mxu0 %v7076
  %9930 = vmatprep.subr.bf16.mxu0 %v7085
  %9931 = vmatpush1.bf16.msra.mxu0 %v7084
  %9932 = vmatprep.subr.bf16.mxu0 %v7093
  %9933 = vmatpush1.bf16.msra.mxu0 %v7092
  %9934 = vmatprep.subr.bf16.mxu0 %v7101
  %9935 = vmatpush1.bf16.msra.mxu0 %v7100
  %9936 = vmatprep.subr.bf16.mxu0 %v7109
  %9937 = vmatpush1.bf16.msra.mxu0 %v7108
  %9938 = vmatprep.subr.bf16.mxu0 %v7117
  %9939 = vmatpush1.bf16.msra.mxu0 %v7116
  %9940 = vmatprep.subr.bf16.mxu0 %v7125
  %9941 = vmatpush1.bf16.msra.mxu0 %v7124
  %9942 = vmatprep.subr.bf16.mxu0 %v7133
  %9943 = vmatpush1.bf16.msra.mxu0 %v7132
  %9944 = vmatprep.subr.bf16.mxu0 %v7141
  %9945 = vmatpush1.bf16.msra.mxu0 %v7140
  %9946 = vmatprep.subr.bf16.mxu0 %v7149
  %9947 = vmatpush1.bf16.msra.mxu0 %v7148
  %9948 = vmatprep.subr.bf16.mxu0 %v7157
  %9949 = vmatpush1.bf16.msra.mxu0 %v7156
  %9950 = vmatprep.subr.bf16.mxu0 %v7165
  %9951 = vmatpush1.bf16.msra.mxu0 %v7164
  %9952 = vmatprep.subr.bf16.mxu0 %v7173
  %9953 = vmatpush1.bf16.msra.mxu0 %v7172
  %9954 = vmatprep.subr.bf16.mxu0 %v7181
  %9955 = vmatpush1.bf16.msra.mxu0 %v7180
  %9956 = vmatprep.subr.bf16.mxu0 %v7189
  %9957 = vmatpush1.bf16.msra.mxu0 %v7188
  %9958 = vmatprep.subr.bf16.mxu0 %v7197
  %9959 = vmatpush1.bf16.msra.mxu0 %v7196
  %9960 = vmatprep.mubr.bf16.mxu0 %v1723
  %9961 = vmatmul.mubr.bf16.gmra.mrb[0].mxu0 %v1722
  %v9962 = vpop.f32.mrb[0].mxu0
  %v9963 = vadd.f32 %v9922, %v9962
  %v9964 = vpop.f32.mrb[0].mxu0
  %v9965 = vadd.f32 %v9924, %v9964
  %v9966 = vpop.f32.mrb[0].mxu0
  %v9967 = vpop.f32.mrb[0].mxu0
  %9968 = vdwg.mxu0
  %9969 = vmatprep.subr.bf16.mxu0 %v7205
  %9970 = vmatpush1.bf16.msra.mxu0 %v7204
  %9971 = vmatprep.subr.bf16.mxu0 %v7213
  %9972 = vmatpush1.bf16.msra.mxu0 %v7212
  %9973 = vmatprep.subr.bf16.mxu0 %v7221
  %9974 = vmatpush1.bf16.msra.mxu0 %v7220
  %9975 = vmatprep.subr.bf16.mxu0 %v7229
  %9976 = vmatpush1.bf16.msra.mxu0 %v7228
  %9977 = vmatprep.subr.bf16.mxu0 %v7237
  %9978 = vmatpush1.bf16.msra.mxu0 %v7236
  %9979 = vmatprep.subr.bf16.mxu0 %v7245
  %9980 = vmatpush1.bf16.msra.mxu0 %v7244
  %9981 = vmatprep.subr.bf16.mxu0 %v7253
  %9982 = vmatpush1.bf16.msra.mxu0 %v7252
  %9983 = vmatprep.subr.bf16.mxu0 %v7261
  %9984 = vmatpush1.bf16.msra.mxu0 %v7260
  %9985 = vmatprep.subr.bf16.mxu0 %v7269
  %9986 = vmatpush1.bf16.msra.mxu0 %v7268
  %9987 = vmatprep.subr.bf16.mxu0 %v7277
  %9988 = vmatpush1.bf16.msra.mxu0 %v7276
  %9989 = vmatprep.subr.bf16.mxu0 %v7285
  %9990 = vmatpush1.bf16.msra.mxu0 %v7284
  %9991 = vmatprep.subr.bf16.mxu0 %v7293
  %9992 = vmatpush1.bf16.msra.mxu0 %v7292
  %9993 = vmatprep.subr.bf16.mxu0 %v7301
  %9994 = vmatpush1.bf16.msra.mxu0 %v7300
  %9995 = vmatprep.subr.bf16.mxu0 %v7309
  %9996 = vmatpush1.bf16.msra.mxu0 %v7308
  %9997 = vmatprep.subr.bf16.mxu0 %v7317
  %9998 = vmatpush1.bf16.msra.mxu0 %v7316
  %9999 = vmatprep.subr.bf16.mxu0 %v7325
  %10000 = vmatpush1.bf16.msra.mxu0 %v7324
  %10001 = vmatprep.mubr.bf16.mxu0 %v1725
  %10002 = vmatmul.mubr.bf16.gmra.mrb[0].mxu0 %v1724
  %v10003 = vpop.f32.mrb[0].mxu0
  %v10004 = vadd.f32 %v9963, %v10003
  %v10005 = vpop.f32.mrb[0].mxu0
  %v10006 = vadd.f32 %v9965, %v10005
  %v10007 = vpop.f32.mrb[0].mxu0
  %v10008 = vpop.f32.mrb[0].mxu0
  %10009 = vdwg.mxu0
  %10010 = vmatprep.subr.bf16.mxu0 %v7333
  %10011 = vmatpush1.bf16.msra.mxu0 %v7332
  %10012 = vmatprep.subr.bf16.mxu0 %v7341
  %10013 = vmatpush1.bf16.msra.mxu0 %v7340
  %10014 = vmatprep.subr.bf16.mxu0 %v7349
  %10015 = vmatpush1.bf16.msra.mxu0 %v7348
  %10016 = vmatprep.subr.bf16.mxu0 %v7357
  %10017 = vmatpush1.bf16.msra.mxu0 %v7356
  %10018 = vmatprep.subr.bf16.mxu0 %v7365
  %10019 = vmatpush1.bf16.msra.mxu0 %v7364
  %10020 = vmatprep.subr.bf16.mxu0 %v7373
  %10021 = vmatpush1.bf16.msra.mxu0 %v7372
  %10022 = vmatprep.subr.bf16.mxu0 %v7381
  %10023 = vmatpush1.bf16.msra.mxu0 %v7380
  %10024 = vmatprep.subr.bf16.mxu0 %v7389
  %10025 = vmatpush1.bf16.msra.mxu0 %v7388
  %10026 = vmatprep.subr.bf16.mxu0 %v7397
  %10027 = vmatpush1.bf16.msra.mxu0 %v7396
  %10028 = vmatprep.subr.bf16.mxu0 %v7405
  %10029 = vmatpush1.bf16.msra.mxu0 %v7404
  %10030 = vmatprep.subr.bf16.mxu0 %v7413
  %10031 = vmatpush1.bf16.msra.mxu0 %v7412
  %10032 = vmatprep.subr.bf16.mxu0 %v7421
  %10033 = vmatpush1.bf16.msra.mxu0 %v7420
  %10034 = vmatprep.subr.bf16.mxu0 %v7429
  %10035 = vmatpush1.bf16.msra.mxu0 %v7428
  %10036 = vmatprep.subr.bf16.mxu0 %v7437
  %10037 = vmatpush1.bf16.msra.mxu0 %v7436
  %10038 = vmatprep.subr.bf16.mxu0 %v7445
  %10039 = vmatpush1.bf16.msra.mxu0 %v7444
  %10040 = vmatprep.subr.bf16.mxu0 %v7453
  %10041 = vmatpush1.bf16.msra.mxu0 %v7452
  %10042 = vmatprep.mubr.bf16.mxu0 %v1727
  %10043 = vmatmul.mubr.bf16.gmra.mrb[0].mxu0 %v1726
  %v10044 = vpop.f32.mrb[0].mxu0
  %v10045 = vadd.f32 %v10004, %v10044
  %v10046 = vpop.f32.mrb[0].mxu0
  %v10047 = vadd.f32 %v10006, %v10046
  %v10048 = vpop.f32.mrb[0].mxu0
  %v10049 = vpop.f32.mrb[0].mxu0
  %10050 = vdwg.mxu0
  %10051 = vmatprep.subr.bf16.mxu0 %v7461
  %10052 = vmatpush1.bf16.msra.mxu0 %v7460
  %10053 = vmatprep.subr.bf16.mxu0 %v7469
  %10054 = vmatpush1.bf16.msra.mxu0 %v7468
  %10055 = vmatprep.subr.bf16.mxu0 %v7477
  %10056 = vmatpush1.bf16.msra.mxu0 %v7476
  %10057 = vmatprep.subr.bf16.mxu0 %v7485
  %10058 = vmatpush1.bf16.msra.mxu0 %v7484
  %10059 = vmatprep.subr.bf16.mxu0 %v7493
  %10060 = vmatpush1.bf16.msra.mxu0 %v7492
  %10061 = vmatprep.subr.bf16.mxu0 %v7501
  %10062 = vmatpush1.bf16.msra.mxu0 %v7500
  %10063 = vmatprep.subr.bf16.mxu0 %v7509
  %10064 = vmatpush1.bf16.msra.mxu0 %v7508
  %10065 = vmatprep.subr.bf16.mxu0 %v7517
  %10066 = vmatpush1.bf16.msra.mxu0 %v7516
  %10067 = vmatprep.subr.bf16.mxu0 %v7525
  %10068 = vmatpush1.bf16.msra.mxu0 %v7524
  %10069 = vmatprep.subr.bf16.mxu0 %v7533
  %10070 = vmatpush1.bf16.msra.mxu0 %v7532
  %10071 = vmatprep.subr.bf16.mxu0 %v7541
  %10072 = vmatpush1.bf16.msra.mxu0 %v7540
  %10073 = vmatprep.subr.bf16.mxu0 %v7549
  %10074 = vmatpush1.bf16.msra.mxu0 %v7548
  %10075 = vmatprep.subr.bf16.mxu0 %v7557
  %10076 = vmatpush1.bf16.msra.mxu0 %v7556
  %10077 = vmatprep.subr.bf16.mxu0 %v7565
  %10078 = vmatpush1.bf16.msra.mxu0 %v7564
  %10079 = vmatprep.subr.bf16.mxu0 %v7573
  %10080 = vmatpush1.bf16.msra.mxu0 %v7572
  %10081 = vmatprep.subr.bf16.mxu0 %v7581
  %10082 = vmatpush1.bf16.msra.mxu0 %v7580
  %10083 = vmatprep.mubr.bf16.mxu0 %v1729
  %10084 = vmatmul.mubr.bf16.gmra.mrb[0].mxu0 %v1728
  %v10085 = vpop.f32.mrb[0].mxu0
  %v10086 = vadd.f32 %v10045, %v10085
  %v10087 = vpop.f32.mrb[0].mxu0
  %v10088 = vadd.f32 %v10047, %v10087
  %v10089 = vpop.f32.mrb[0].mxu0
  %v10090 = vpop.f32.mrb[0].mxu0
  %10091 = vdwg.mxu0
  %10092 = vmatprep.subr.bf16.mxu0 %v7589
  %10093 = vmatpush1.bf16.msra.mxu0 %v7588
  %10094 = vmatprep.subr.bf16.mxu0 %v7597
  %10095 = vmatpush1.bf16.msra.mxu0 %v7596
  %10096 = vmatprep.subr.bf16.mxu0 %v7605
  %10097 = vmatpush1.bf16.msra.mxu0 %v7604
  %10098 = vmatprep.subr.bf16.mxu0 %v7613
  %10099 = vmatpush1.bf16.msra.mxu0 %v7612
  %10100 = vmatprep.subr.bf16.mxu0 %v7621
  %10101 = vmatpush1.bf16.msra.mxu0 %v7620
  %10102 = vmatprep.subr.bf16.mxu0 %v7629
  %10103 = vmatpush1.bf16.msra.mxu0 %v7628
  %10104 = vmatprep.subr.bf16.mxu0 %v7637
  %10105 = vmatpush1.bf16.msra.mxu0 %v7636
  %10106 = vmatprep.subr.bf16.mxu0 %v7645
  %10107 = vmatpush1.bf16.msra.mxu0 %v7644
  %10108 = vmatprep.subr.bf16.mxu0 %v7653
  %10109 = vmatpush1.bf16.msra.mxu0 %v7652
  %10110 = vmatprep.subr.bf16.mxu0 %v7661
  %10111 = vmatpush1.bf16.msra.mxu0 %v7660
  %10112 = vmatprep.subr.bf16.mxu0 %v7669
  %10113 = vmatpush1.bf16.msra.mxu0 %v7668
  %10114 = vmatprep.subr.bf16.mxu0 %v7677
  %10115 = vmatpush1.bf16.msra.mxu0 %v7676
  %10116 = vmatprep.subr.bf16.mxu0 %v7685
  %10117 = vmatpush1.bf16.msra.mxu0 %v7684
  %10118 = vmatprep.subr.bf16.mxu0 %v7693
  %10119 = vmatpush1.bf16.msra.mxu0 %v7692
  %10120 = vmatprep.subr.bf16.mxu0 %v7701
  %10121 = vmatpush1.bf16.msra.mxu0 %v7700
  %10122 = vmatprep.subr.bf16.mxu0 %v7709
  %10123 = vmatpush1.bf16.msra.mxu0 %v7708
  %10124 = vmatprep.mubr.bf16.mxu0 %v1731
  %10125 = vmatmul.mubr.bf16.gmra.mrb[0].mxu0 %v1730
  %v10126 = vpop.f32.mrb[0].mxu0
  %v10127 = vadd.f32 %v10086, %v10126
  %v10128 = vpop.f32.mrb[0].mxu0
  %v10129 = vadd.f32 %v10088, %v10128
  %v10130 = vpop.f32.mrb[0].mxu0
  %v10131 = vpop.f32.mrb[0].mxu0
  %10132 = vdwg.mxu0
  %10133 = vmatprep.subr.bf16.mxu0 %v7717
  %10134 = vmatpush1.bf16.msra.mxu0 %v7716
  %10135 = vmatprep.subr.bf16.mxu0 %v7725
  %10136 = vmatpush1.bf16.msra.mxu0 %v7724
  %10137 = vmatprep.subr.bf16.mxu0 %v7733
  %10138 = vmatpush1.bf16.msra.mxu0 %v7732
  %10139 = vmatprep.subr.bf16.mxu0 %v7741
  %10140 = vmatpush1.bf16.msra.mxu0 %v7740
  %10141 = vmatprep.subr.bf16.mxu0 %v7749
  %10142 = vmatpush1.bf16.msra.mxu0 %v7748
  %10143 = vmatprep.subr.bf16.mxu0 %v7757
  %10144 = vmatpush1.bf16.msra.mxu0 %v7756
  %10145 = vmatprep.subr.bf16.mxu0 %v7765
  %10146 = vmatpush1.bf16.msra.mxu0 %v7764
  %10147 = vmatprep.subr.bf16.mxu0 %v7773
  %10148 = vmatpush1.bf16.msra.mxu0 %v7772
  %10149 = vmatprep.subr.bf16.mxu0 %v7781
  %10150 = vmatpush1.bf16.msra.mxu0 %v7780
  %10151 = vmatprep.subr.bf16.mxu0 %v7789
  %10152 = vmatpush1.bf16.msra.mxu0 %v7788
  %10153 = vmatprep.subr.bf16.mxu0 %v7797
  %10154 = vmatpush1.bf16.msra.mxu0 %v7796
  %10155 = vmatprep.subr.bf16.mxu0 %v7805
  %10156 = vmatpush1.bf16.msra.mxu0 %v7804
  %10157 = vmatprep.subr.bf16.mxu0 %v7813
  %10158 = vmatpush1.bf16.msra.mxu0 %v7812
  %10159 = vmatprep.subr.bf16.mxu0 %v7821
  %10160 = vmatpush1.bf16.msra.mxu0 %v7820
  %10161 = vmatprep.subr.bf16.mxu0 %v7829
  %10162 = vmatpush1.bf16.msra.mxu0 %v7828
  %10163 = vmatprep.subr.bf16.mxu0 %v7837
  %10164 = vmatpush1.bf16.msra.mxu0 %v7836
  %10165 = vmatprep.mubr.bf16.mxu0 %v1733
  %10166 = vmatmul.mubr.bf16.gmra.mrb[0].mxu0 %v1732
  %v10167 = vpop.f32.mrb[0].mxu0
  %v10168 = vadd.f32 %v10127, %v10167
  %v10169 = vpop.f32.mrb[0].mxu0
  %v10170 = vadd.f32 %v10129, %v10169
  %v10171 = vpop.f32.mrb[0].mxu0
  %v10172 = vpop.f32.mrb[0].mxu0
  %10173 = vdwg.mxu0
  %10174 = vmatprep.subr.bf16.mxu0 %v7845
  %10175 = vmatpush1.bf16.msra.mxu0 %v7844
  %10176 = vmatprep.subr.bf16.mxu0 %v7853
  %10177 = vmatpush1.bf16.msra.mxu0 %v7852
  %10178 = vmatprep.subr.bf16.mxu0 %v7861
  %10179 = vmatpush1.bf16.msra.mxu0 %v7860
  %10180 = vmatprep.subr.bf16.mxu0 %v7869
  %10181 = vmatpush1.bf16.msra.mxu0 %v7868
  %10182 = vmatprep.subr.bf16.mxu0 %v7877
  %10183 = vmatpush1.bf16.msra.mxu0 %v7876
  %10184 = vmatprep.subr.bf16.mxu0 %v7885
  %10185 = vmatpush1.bf16.msra.mxu0 %v7884
  %10186 = vmatprep.subr.bf16.mxu0 %v7893
  %10187 = vmatpush1.bf16.msra.mxu0 %v7892
  %10188 = vmatprep.subr.bf16.mxu0 %v7901
  %10189 = vmatpush1.bf16.msra.mxu0 %v7900
  %10190 = vmatprep.subr.bf16.mxu0 %v7909
  %10191 = vmatpush1.bf16.msra.mxu0 %v7908
  %10192 = vmatprep.subr.bf16.mxu0 %v7917
  %10193 = vmatpush1.bf16.msra.mxu0 %v7916
  %10194 = vmatprep.subr.bf16.mxu0 %v7925
  %10195 = vmatpush1.bf16.msra.mxu0 %v7924
  %10196 = vmatprep.subr.bf16.mxu0 %v7933
  %10197 = vmatpush1.bf16.msra.mxu0 %v7932
  %10198 = vmatprep.subr.bf16.mxu0 %v7941
  %10199 = vmatpush1.bf16.msra.mxu0 %v7940
  %10200 = vmatprep.subr.bf16.mxu0 %v7949
  %10201 = vmatpush1.bf16.msra.mxu0 %v7948
  %10202 = vmatprep.subr.bf16.mxu0 %v7957
  %10203 = vmatpush1.bf16.msra.mxu0 %v7956
  %10204 = vmatprep.subr.bf16.mxu0 %v7965
  %10205 = vmatpush1.bf16.msra.mxu0 %v7964
  %10206 = vmatprep.mubr.bf16.mxu0 %v1735
  %10207 = vmatmul.mubr.bf16.gmra.mrb[0].mxu0 %v1734
  %v10208 = vpop.f32.mrb[0].mxu0
  %v10209 = vadd.f32 %v10168, %v10208
  %v10210 = vpop.f32.mrb[0].mxu0
  %v10211 = vadd.f32 %v10170, %v10210
  %v10212 = vpop.f32.mrb[0].mxu0
  %v10213 = vpop.f32.mrb[0].mxu0
  %10214 = vdwg.mxu0
  %10215 = vmatprep.subr.bf16.mxu0 %v7973
  %10216 = vmatpush1.bf16.msra.mxu0 %v7972
  %10217 = vmatprep.subr.bf16.mxu0 %v7981
  %10218 = vmatpush1.bf16.msra.mxu0 %v7980
  %10219 = vmatprep.subr.bf16.mxu0 %v7989
  %10220 = vmatpush1.bf16.msra.mxu0 %v7988
  %10221 = vmatprep.subr.bf16.mxu0 %v7997
  %10222 = vmatpush1.bf16.msra.mxu0 %v7996
  %10223 = vmatprep.subr.bf16.mxu0 %v8005
  %10224 = vmatpush1.bf16.msra.mxu0 %v8004
  %10225 = vmatprep.subr.bf16.mxu0 %v8013
  %10226 = vmatpush1.bf16.msra.mxu0 %v8012
  %10227 = vmatprep.subr.bf16.mxu0 %v8021
  %10228 = vmatpush1.bf16.msra.mxu0 %v8020
  %10229 = vmatprep.subr.bf16.mxu0 %v8029
  %10230 = vmatpush1.bf16.msra.mxu0 %v8028
  %10231 = vmatprep.subr.bf16.mxu0 %v8037
  %10232 = vmatpush1.bf16.msra.mxu0 %v8036
  %10233 = vmatprep.subr.bf16.mxu0 %v8045
  %10234 = vmatpush1.bf16.msra.mxu0 %v8044
  %10235 = vmatprep.subr.bf16.mxu0 %v8053
  %10236 = vmatpush1.bf16.msra.mxu0 %v8052
  %10237 = vmatprep.subr.bf16.mxu0 %v8061
  %10238 = vmatpush1.bf16.msra.mxu0 %v8060
  %10239 = vmatprep.subr.bf16.mxu0 %v8069
  %10240 = vmatpush1.bf16.msra.mxu0 %v8068
  %10241 = vmatprep.subr.bf16.mxu0 %v8077
  %10242 = vmatpush1.bf16.msra.mxu0 %v8076
  %10243 = vmatprep.subr.bf16.mxu0 %v8085
  %10244 = vmatpush1.bf16.msra.mxu0 %v8084
  %10245 = vmatprep.subr.bf16.mxu0 %v8093
  %10246 = vmatpush1.bf16.msra.mxu0 %v8092
  %10247 = vmatprep.mubr.bf16.mxu0 %v1737
  %10248 = vmatmul.mubr.bf16.gmra.mrb[0].mxu0 %v1736
  %v10249 = vpop.f32.mrb[0].mxu0
  %v10250 = vadd.f32 %v10209, %v10249
  %v10251 = vpop.f32.mrb[0].mxu0
  %v10252 = vadd.f32 %v10211, %v10251
  %v10253 = vpop.f32.mrb[0].mxu0
  %v10254 = vpop.f32.mrb[0].mxu0
  %10255 = vdwg.mxu0
  %10256 = vmatprep.subr.bf16.mxu0 %v8101
  %10257 = vmatpush1.bf16.msra.mxu0 %v8100
  %10258 = vmatprep.subr.bf16.mxu0 %v8109
  %10259 = vmatpush1.bf16.msra.mxu0 %v8108
  %10260 = vmatprep.subr.bf16.mxu0 %v8117
  %10261 = vmatpush1.bf16.msra.mxu0 %v8116
  %10262 = vmatprep.subr.bf16.mxu0 %v8125
  %10263 = vmatpush1.bf16.msra.mxu0 %v8124
  %10264 = vmatprep.subr.bf16.mxu0 %v8133
  %10265 = vmatpush1.bf16.msra.mxu0 %v8132
  %10266 = vmatprep.subr.bf16.mxu0 %v8141
  %10267 = vmatpush1.bf16.msra.mxu0 %v8140
  %10268 = vmatprep.subr.bf16.mxu0 %v8149
  %10269 = vmatpush1.bf16.msra.mxu0 %v8148
  %10270 = vmatprep.subr.bf16.mxu0 %v8157
  %10271 = vmatpush1.bf16.msra.mxu0 %v8156
  %10272 = vmatprep.subr.bf16.mxu0 0
  %10273 = vmatpush1.bf16.msra.mxu0 0
  %10274 = vmatprep.subr.bf16.mxu0 0
  %10275 = vmatpush1.bf16.msra.mxu0 0
  %10276 = vmatprep.subr.bf16.mxu0 0
  %10277 = vmatpush1.bf16.msra.mxu0 0
  %10278 = vmatprep.subr.bf16.mxu0 0
  %10279 = vmatpush1.bf16.msra.mxu0 0
  %10280 = vmatprep.subr.bf16.mxu0 0
  %10281 = vmatpush1.bf16.msra.mxu0 0
  %10282 = vmatprep.subr.bf16.mxu0 0
  %10283 = vmatpush1.bf16.msra.mxu0 0
  %10284 = vmatprep.subr.bf16.mxu0 0
  %10285 = vmatpush1.bf16.msra.mxu0 0
  %10286 = vmatprep.subr.bf16.mxu0 0
  %10287 = vmatpush1.bf16.msra.mxu0 0
  %10288 = vmatprep.mubr.bf16.mxu0 0
  %10289 = vmatmul.mubr.bf16.gmra.mrb[0].mxu0 %v1738
  %v10290 = vpop.f32.mrb[0].mxu0
  %v10291 = vadd.f32 %v10250, %v10290
  %v10292 = vpop.f32.mrb[0].mxu0
  %v10293 = vadd.f32 %v10252, %v10292
  %v10294 = vpop.f32.mrb[0].mxu0
  %v10295 = vpop.f32.mrb[0].mxu0
  %10296 = vdwg.mxu0
  %10297 = vmatprep.subr.bf16.mxu0 %v6567
  %10298 = vmatpush1.bf16.msra.mxu0 %v6566
  %10299 = vmatprep.subr.bf16.mxu0 %v6575
  %10300 = vmatpush1.bf16.msra.mxu0 %v6574
  %10301 = vmatprep.subr.bf16.mxu0 %v6583
  %10302 = vmatpush1.bf16.msra.mxu0 %v6582
  %10303 = vmatprep.subr.bf16.mxu0 %v6591
  %10304 = vmatpush1.bf16.msra.mxu0 %v6590
  %10305 = vmatprep.subr.bf16.mxu0 %v6599
  %10306 = vmatpush1.bf16.msra.mxu0 %v6598
  %10307 = vmatprep.subr.bf16.mxu0 %v6607
  %10308 = vmatpush1.bf16.msra.mxu0 %v6606
  %10309 = vmatprep.subr.bf16.mxu0 %v6615
  %10310 = vmatpush1.bf16.msra.mxu0 %v6614
  %10311 = vmatprep.subr.bf16.mxu0 %v6623
  %10312 = vmatpush1.bf16.msra.mxu0 %v6622
  %10313 = vmatprep.subr.bf16.mxu0 %v6631
  %10314 = vmatpush1.bf16.msra.mxu0 %v6630
  %10315 = vmatprep.subr.bf16.mxu0 %v6639
  %10316 = vmatpush1.bf16.msra.mxu0 %v6638
  %10317 = vmatprep.subr.bf16.mxu0 %v6647
  %10318 = vmatpush1.bf16.msra.mxu0 %v6646
  %10319 = vmatprep.subr.bf16.mxu0 %v6655
  %10320 = vmatpush1.bf16.msra.mxu0 %v6654
  %10321 = vmatprep.subr.bf16.mxu0 %v6663
  %10322 = vmatpush1.bf16.msra.mxu0 %v6662
  %10323 = vmatprep.subr.bf16.mxu0 %v6671
  %10324 = vmatpush1.bf16.msra.mxu0 %v6670
  %10325 = vmatprep.subr.bf16.mxu0 %v6679
  %10326 = vmatpush1.bf16.msra.mxu0 %v6678
  %10327 = vmatprep.subr.bf16.mxu0 %v6687
  %10328 = vmatpush1.bf16.msra.mxu0 %v6686
  %10329 = vmatprep.mubr.bf16.mxu0 %v1715
  %10330 = vmatmul.mubr.bf16.gmra.mrb[0].mxu0 %v1714
  %v10331 = vpop.f32.mrb[0].mxu0
  %v10332 = vadd.f32 %v1647, %v10331
  %v10333 = vpop.f32.mrb[0].mxu0
  %v10334 = vadd.f32 %v1651, %v10333
  %v10335 = vpop.f32.mrb[0].mxu0
  %v10336 = vpop.f32.mrb[0].mxu0
  %10337 = vdwg.mxu0
  %10338 = vmatprep.subr.bf16.mxu0 %v6695
  %10339 = vmatpush1.bf16.msra.mxu0 %v6694
  %10340 = vmatprep.subr.bf16.mxu0 %v6703
  %10341 = vmatpush1.bf16.msra.mxu0 %v6702
  %10342 = vmatprep.subr.bf16.mxu0 %v6711
  %10343 = vmatpush1.bf16.msra.mxu0 %v6710
  %10344 = vmatprep.subr.bf16.mxu0 %v6719
  %10345 = vmatpush1.bf16.msra.mxu0 %v6718
  %10346 = vmatprep.subr.bf16.mxu0 %v6727
  %10347 = vmatpush1.bf16.msra.mxu0 %v6726
  %10348 = vmatprep.subr.bf16.mxu0 %v6735
  %10349 = vmatpush1.bf16.msra.mxu0 %v6734
  %10350 = vmatprep.subr.bf16.mxu0 %v6743
  %10351 = vmatpush1.bf16.msra.mxu0 %v6742
  %10352 = vmatprep.subr.bf16.mxu0 %v6751
  %10353 = vmatpush1.bf16.msra.mxu0 %v6750
  %10354 = vmatprep.subr.bf16.mxu0 %v6759
  %10355 = vmatpush1.bf16.msra.mxu0 %v6758
  %10356 = vmatprep.subr.bf16.mxu0 %v6767
  %10357 = vmatpush1.bf16.msra.mxu0 %v6766
  %10358 = vmatprep.subr.bf16.mxu0 %v6775
  %10359 = vmatpush1.bf16.msra.mxu0 %v6774
  %10360 = vmatprep.subr.bf16.mxu0 %v6783
  %10361 = vmatpush1.bf16.msra.mxu0 %v6782
  %10362 = vmatprep.subr.bf16.mxu0 %v6791
  %10363 = vmatpush1.bf16.msra.mxu0 %v6790
  %10364 = vmatprep.subr.bf16.mxu0 %v6799
  %10365 = vmatpush1.bf16.msra.mxu0 %v6798
  %10366 = vmatprep.subr.bf16.mxu0 %v6807
  %10367 = vmatpush1.bf16.msra.mxu0 %v6806
  %10368 = vmatprep.subr.bf16.mxu0 %v6815
  %10369 = vmatpush1.bf16.msra.mxu0 %v6814
  %10370 = vmatprep.mubr.bf16.mxu0 %v1717
  %10371 = vmatmul.mubr.bf16.gmra.mrb[0].mxu0 %v1716
  %v10372 = vpop.f32.mrb[0].mxu0
  %v10373 = vadd.f32 %v10332, %v10372
  %v10374 = vpop.f32.mrb[0].mxu0
  %v10375 = vadd.f32 %v10334, %v10374
  %v10376 = vpop.f32.mrb[0].mxu0
  %v10377 = vpop.f32.mrb[0].mxu0
  %10378 = vdwg.mxu0
  %10379 = vmatprep.subr.bf16.mxu0 %v6823
  %10380 = vmatpush1.bf16.msra.mxu0 %v6822
  %10381 = vmatprep.subr.bf16.mxu0 %v6831
  %10382 = vmatpush1.bf16.msra.mxu0 %v6830
  %10383 = vmatprep.subr.bf16.mxu0 %v6839
  %10384 = vmatpush1.bf16.msra.mxu0 %v6838
  %10385 = vmatprep.subr.bf16.mxu0 %v6847
  %10386 = vmatpush1.bf16.msra.mxu0 %v6846
  %10387 = vmatprep.subr.bf16.mxu0 %v6855
  %10388 = vmatpush1.bf16.msra.mxu0 %v6854
  %10389 = vmatprep.subr.bf16.mxu0 %v6863
  %10390 = vmatpush1.bf16.msra.mxu0 %v6862
  %10391 = vmatprep.subr.bf16.mxu0 %v6871
  %10392 = vmatpush1.bf16.msra.mxu0 %v6870
  %10393 = vmatprep.subr.bf16.mxu0 %v6879
  %10394 = vmatpush1.bf16.msra.mxu0 %v6878
  %10395 = vmatprep.subr.bf16.mxu0 %v6887
  %10396 = vmatpush1.bf16.msra.mxu0 %v6886
  %10397 = vmatprep.subr.bf16.mxu0 %v6895
  %10398 = vmatpush1.bf16.msra.mxu0 %v6894
  %10399 = vmatprep.subr.bf16.mxu0 %v6903
  %10400 = vmatpush1.bf16.msra.mxu0 %v6902
  %10401 = vmatprep.subr.bf16.mxu0 %v6911
  %10402 = vmatpush1.bf16.msra.mxu0 %v6910
  %10403 = vmatprep.subr.bf16.mxu0 %v6919
  %10404 = vmatpush1.bf16.msra.mxu0 %v6918
  %10405 = vmatprep.subr.bf16.mxu0 %v6927
  %10406 = vmatpush1.bf16.msra.mxu0 %v6926
  %10407 = vmatprep.subr.bf16.mxu0 %v6935
  %10408 = vmatpush1.bf16.msra.mxu0 %v6934
  %10409 = vmatprep.subr.bf16.mxu0 %v6943
  %10410 = vmatpush1.bf16.msra.mxu0 %v6942
  %10411 = vmatprep.mubr.bf16.mxu0 %v1719
  %10412 = vmatmul.mubr.bf16.gmra.mrb[0].mxu0 %v1718
  %v10413 = vpop.f32.mrb[0].mxu0
  %v10414 = vadd.f32 %v10373, %v10413
  %v10415 = vpop.f32.mrb[0].mxu0
  %v10416 = vadd.f32 %v10375, %v10415
  %v10417 = vpop.f32.mrb[0].mxu0
  %v10418 = vpop.f32.mrb[0].mxu0
  %10419 = vdwg.mxu0
  %10420 = vmatprep.subr.bf16.mxu0 %v6951
  %10421 = vmatpush1.bf16.msra.mxu0 %v6950
  %10422 = vmatprep.subr.bf16.mxu0 %v6959
  %10423 = vmatpush1.bf16.msra.mxu0 %v6958
  %10424 = vmatprep.subr.bf16.mxu0 %v6967
  %10425 = vmatpush1.bf16.msra.mxu0 %v6966
  %10426 = vmatprep.subr.bf16.mxu0 %v6975
  %10427 = vmatpush1.bf16.msra.mxu0 %v6974
  %10428 = vmatprep.subr.bf16.mxu0 %v6983
  %10429 = vmatpush1.bf16.msra.mxu0 %v6982
  %10430 = vmatprep.subr.bf16.mxu0 %v6991
  %10431 = vmatpush1.bf16.msra.mxu0 %v6990
  %10432 = vmatprep.subr.bf16.mxu0 %v6999
  %10433 = vmatpush1.bf16.msra.mxu0 %v6998
  %10434 = vmatprep.subr.bf16.mxu0 %v7007
  %10435 = vmatpush1.bf16.msra.mxu0 %v7006
  %10436 = vmatprep.subr.bf16.mxu0 %v7015
  %10437 = vmatpush1.bf16.msra.mxu0 %v7014
  %10438 = vmatprep.subr.bf16.mxu0 %v7023
  %10439 = vmatpush1.bf16.msra.mxu0 %v7022
  %10440 = vmatprep.subr.bf16.mxu0 %v7031
  %10441 = vmatpush1.bf16.msra.mxu0 %v7030
  %10442 = vmatprep.subr.bf16.mxu0 %v7039
  %10443 = vmatpush1.bf16.msra.mxu0 %v7038
  %10444 = vmatprep.subr.bf16.mxu0 %v7047
  %10445 = vmatpush1.bf16.msra.mxu0 %v7046
  %10446 = vmatprep.subr.bf16.mxu0 %v7055
  %10447 = vmatpush1.bf16.msra.mxu0 %v7054
  %10448 = vmatprep.subr.bf16.mxu0 %v7063
  %10449 = vmatpush1.bf16.msra.mxu0 %v7062
  %10450 = vmatprep.subr.bf16.mxu0 %v7071
  %10451 = vmatpush1.bf16.msra.mxu0 %v7070
  %10452 = vmatprep.mubr.bf16.mxu0 %v1721
  %10453 = vmatmul.mubr.bf16.gmra.mrb[0].mxu0 %v1720
  %v10454 = vpop.f32.mrb[0].mxu0
  %v10455 = vadd.f32 %v10414, %v10454
  %v10456 = vpop.f32.mrb[0].mxu0
  %v10457 = vadd.f32 %v10416, %v10456
  %v10458 = vpop.f32.mrb[0].mxu0
  %v10459 = vpop.f32.mrb[0].mxu0
  %10460 = vdwg.mxu0
  %10461 = vmatprep.subr.bf16.mxu0 %v7079
  %10462 = vmatpush1.bf16.msra.mxu0 %v7078
  %10463 = vmatprep.subr.bf16.mxu0 %v7087
  %10464 = vmatpush1.bf16.msra.mxu0 %v7086
  %10465 = vmatprep.subr.bf16.mxu0 %v7095
  %10466 = vmatpush1.bf16.msra.mxu0 %v7094
  %10467 = vmatprep.subr.bf16.mxu0 %v7103
  %10468 = vmatpush1.bf16.msra.mxu0 %v7102
  %10469 = vmatprep.subr.bf16.mxu0 %v7111
  %10470 = vmatpush1.bf16.msra.mxu0 %v7110
  %10471 = vmatprep.subr.bf16.mxu0 %v7119
  %10472 = vmatpush1.bf16.msra.mxu0 %v7118
  %10473 = vmatprep.subr.bf16.mxu0 %v7127
  %10474 = vmatpush1.bf16.msra.mxu0 %v7126
  %10475 = vmatprep.subr.bf16.mxu0 %v7135
  %10476 = vmatpush1.bf16.msra.mxu0 %v7134
  %10477 = vmatprep.subr.bf16.mxu0 %v7143
  %10478 = vmatpush1.bf16.msra.mxu0 %v7142
  %10479 = vmatprep.subr.bf16.mxu0 %v7151
  %10480 = vmatpush1.bf16.msra.mxu0 %v7150
  %10481 = vmatprep.subr.bf16.mxu0 %v7159
  %10482 = vmatpush1.bf16.msra.mxu0 %v7158
  %10483 = vmatprep.subr.bf16.mxu0 %v7167
  %10484 = vmatpush1.bf16.msra.mxu0 %v7166
  %10485 = vmatprep.subr.bf16.mxu0 %v7175
  %10486 = vmatpush1.bf16.msra.mxu0 %v7174
  %10487 = vmatprep.subr.bf16.mxu0 %v7183
  %10488 = vmatpush1.bf16.msra.mxu0 %v7182
  %10489 = vmatprep.subr.bf16.mxu0 %v7191
  %10490 = vmatpush1.bf16.msra.mxu0 %v7190
  %10491 = vmatprep.subr.bf16.mxu0 %v7199
  %10492 = vmatpush1.bf16.msra.mxu0 %v7198
  %10493 = vmatprep.mubr.bf16.mxu0 %v1723
  %10494 = vmatmul.mubr.bf16.gmra.mrb[0].mxu0 %v1722
  %v10495 = vpop.f32.mrb[0].mxu0
  %v10496 = vadd.f32 %v10455, %v10495
  %v10497 = vpop.f32.mrb[0].mxu0
  %v10498 = vadd.f32 %v10457, %v10497
  %v10499 = vpop.f32.mrb[0].mxu0
  %v10500 = vpop.f32.mrb[0].mxu0
  %10501 = vdwg.mxu0
  %10502 = vmatprep.subr.bf16.mxu0 %v7207
  %10503 = vmatpush1.bf16.msra.mxu0 %v7206
  %10504 = vmatprep.subr.bf16.mxu0 %v7215
  %10505 = vmatpush1.bf16.msra.mxu0 %v7214
  %10506 = vmatprep.subr.bf16.mxu0 %v7223
  %10507 = vmatpush1.bf16.msra.mxu0 %v7222
  %10508 = vmatprep.subr.bf16.mxu0 %v7231
  %10509 = vmatpush1.bf16.msra.mxu0 %v7230
  %10510 = vmatprep.subr.bf16.mxu0 %v7239
  %10511 = vmatpush1.bf16.msra.mxu0 %v7238
  %10512 = vmatprep.subr.bf16.mxu0 %v7247
  %10513 = vmatpush1.bf16.msra.mxu0 %v7246
  %10514 = vmatprep.subr.bf16.mxu0 %v7255
  %10515 = vmatpush1.bf16.msra.mxu0 %v7254
  %10516 = vmatprep.subr.bf16.mxu0 %v7263
  %10517 = vmatpush1.bf16.msra.mxu0 %v7262
  %10518 = vmatprep.subr.bf16.mxu0 %v7271
  %10519 = vmatpush1.bf16.msra.mxu0 %v7270
  %10520 = vmatprep.subr.bf16.mxu0 %v7279
  %10521 = vmatpush1.bf16.msra.mxu0 %v7278
  %10522 = vmatprep.subr.bf16.mxu0 %v7287
  %10523 = vmatpush1.bf16.msra.mxu0 %v7286
  %10524 = vmatprep.subr.bf16.mxu0 %v7295
  %10525 = vmatpush1.bf16.msra.mxu0 %v7294
  %10526 = vmatprep.subr.bf16.mxu0 %v7303
  %10527 = vmatpush1.bf16.msra.mxu0 %v7302
  %10528 = vmatprep.subr.bf16.mxu0 %v7311
  %10529 = vmatpush1.bf16.msra.mxu0 %v7310
  %10530 = vmatprep.subr.bf16.mxu0 %v7319
  %10531 = vmatpush1.bf16.msra.mxu0 %v7318
  %10532 = vmatprep.subr.bf16.mxu0 %v7327
  %10533 = vmatpush1.bf16.msra.mxu0 %v7326
  %10534 = vmatprep.mubr.bf16.mxu0 %v1725
  %10535 = vmatmul.mubr.bf16.gmra.mrb[0].mxu0 %v1724
  %v10536 = vpop.f32.mrb[0].mxu0
  %v10537 = vadd.f32 %v10496, %v10536
  %v10538 = vpop.f32.mrb[0].mxu0
  %v10539 = vadd.f32 %v10498, %v10538
  %v10540 = vpop.f32.mrb[0].mxu0
  %v10541 = vpop.f32.mrb[0].mxu0
  %10542 = vdwg.mxu0
  %10543 = vmatprep.subr.bf16.mxu0 %v7335
  %10544 = vmatpush1.bf16.msra.mxu0 %v7334
  %10545 = vmatprep.subr.bf16.mxu0 %v7343
  %10546 = vmatpush1.bf16.msra.mxu0 %v7342
  %10547 = vmatprep.subr.bf16.mxu0 %v7351
  %10548 = vmatpush1.bf16.msra.mxu0 %v7350
  %10549 = vmatprep.subr.bf16.mxu0 %v7359
  %10550 = vmatpush1.bf16.msra.mxu0 %v7358
  %10551 = vmatprep.subr.bf16.mxu0 %v7367
  %10552 = vmatpush1.bf16.msra.mxu0 %v7366
  %10553 = vmatprep.subr.bf16.mxu0 %v7375
  %10554 = vmatpush1.bf16.msra.mxu0 %v7374
  %10555 = vmatprep.subr.bf16.mxu0 %v7383
  %10556 = vmatpush1.bf16.msra.mxu0 %v7382
  %10557 = vmatprep.subr.bf16.mxu0 %v7391
  %10558 = vmatpush1.bf16.msra.mxu0 %v7390
  %10559 = vmatprep.subr.bf16.mxu0 %v7399
  %10560 = vmatpush1.bf16.msra.mxu0 %v7398
  %10561 = vmatprep.subr.bf16.mxu0 %v7407
  %10562 = vmatpush1.bf16.msra.mxu0 %v7406
  %10563 = vmatprep.subr.bf16.mxu0 %v7415
  %10564 = vmatpush1.bf16.msra.mxu0 %v7414
  %10565 = vmatprep.subr.bf16.mxu0 %v7423
  %10566 = vmatpush1.bf16.msra.mxu0 %v7422
  %10567 = vmatprep.subr.bf16.mxu0 %v7431
  %10568 = vmatpush1.bf16.msra.mxu0 %v7430
  %10569 = vmatprep.subr.bf16.mxu0 %v7439
  %10570 = vmatpush1.bf16.msra.mxu0 %v7438
  %10571 = vmatprep.subr.bf16.mxu0 %v7447
  %10572 = vmatpush1.bf16.msra.mxu0 %v7446
  %10573 = vmatprep.subr.bf16.mxu0 %v7455
  %10574 = vmatpush1.bf16.msra.mxu0 %v7454
  %10575 = vmatprep.mubr.bf16.mxu0 %v1727
  %10576 = vmatmul.mubr.bf16.gmra.mrb[0].mxu0 %v1726
  %v10577 = vpop.f32.mrb[0].mxu0
  %v10578 = vadd.f32 %v10537, %v10577
  %v10579 = vpop.f32.mrb[0].mxu0
  %v10580 = vadd.f32 %v10539, %v10579
  %v10581 = vpop.f32.mrb[0].mxu0
  %v10582 = vpop.f32.mrb[0].mxu0
  %10583 = vdwg.mxu0
  %10584 = vmatprep.subr.bf16.mxu0 %v7463
  %10585 = vmatpush1.bf16.msra.mxu0 %v7462
  %10586 = vmatprep.subr.bf16.mxu0 %v7471
  %10587 = vmatpush1.bf16.msra.mxu0 %v7470
  %10588 = vmatprep.subr.bf16.mxu0 %v7479
  %10589 = vmatpush1.bf16.msra.mxu0 %v7478
  %10590 = vmatprep.subr.bf16.mxu0 %v7487
  %10591 = vmatpush1.bf16.msra.mxu0 %v7486
  %10592 = vmatprep.subr.bf16.mxu0 %v7495
  %10593 = vmatpush1.bf16.msra.mxu0 %v7494
  %10594 = vmatprep.subr.bf16.mxu0 %v7503
  %10595 = vmatpush1.bf16.msra.mxu0 %v7502
  %10596 = vmatprep.subr.bf16.mxu0 %v7511
  %10597 = vmatpush1.bf16.msra.mxu0 %v7510
  %10598 = vmatprep.subr.bf16.mxu0 %v7519
  %10599 = vmatpush1.bf16.msra.mxu0 %v7518
  %10600 = vmatprep.subr.bf16.mxu0 %v7527
  %10601 = vmatpush1.bf16.msra.mxu0 %v7526
  %10602 = vmatprep.subr.bf16.mxu0 %v7535
  %10603 = vmatpush1.bf16.msra.mxu0 %v7534
  %10604 = vmatprep.subr.bf16.mxu0 %v7543
  %10605 = vmatpush1.bf16.msra.mxu0 %v7542
  %10606 = vmatprep.subr.bf16.mxu0 %v7551
  %10607 = vmatpush1.bf16.msra.mxu0 %v7550
  %10608 = vmatprep.subr.bf16.mxu0 %v7559
  %10609 = vmatpush1.bf16.msra.mxu0 %v7558
  %10610 = vmatprep.subr.bf16.mxu0 %v7567
  %10611 = vmatpush1.bf16.msra.mxu0 %v7566
  %10612 = vmatprep.subr.bf16.mxu0 %v7575
  %10613 = vmatpush1.bf16.msra.mxu0 %v7574
  %10614 = vmatprep.subr.bf16.mxu0 %v7583
  %10615 = vmatpush1.bf16.msra.mxu0 %v7582
  %10616 = vmatprep.mubr.bf16.mxu0 %v1729
  %10617 = vmatmul.mubr.bf16.gmra.mrb[0].mxu0 %v1728
  %v10618 = vpop.f32.mrb[0].mxu0
  %v10619 = vadd.f32 %v10578, %v10618
  %v10620 = vpop.f32.mrb[0].mxu0
  %v10621 = vadd.f32 %v10580, %v10620
  %v10622 = vpop.f32.mrb[0].mxu0
  %v10623 = vpop.f32.mrb[0].mxu0
  %10624 = vdwg.mxu0
  %10625 = vmatprep.subr.bf16.mxu0 %v7591
  %10626 = vmatpush1.bf16.msra.mxu0 %v7590
  %10627 = vmatprep.subr.bf16.mxu0 %v7599
  %10628 = vmatpush1.bf16.msra.mxu0 %v7598
  %10629 = vmatprep.subr.bf16.mxu0 %v7607
  %10630 = vmatpush1.bf16.msra.mxu0 %v7606
  %10631 = vmatprep.subr.bf16.mxu0 %v7615
  %10632 = vmatpush1.bf16.msra.mxu0 %v7614
  %10633 = vmatprep.subr.bf16.mxu0 %v7623
  %10634 = vmatpush1.bf16.msra.mxu0 %v7622
  %10635 = vmatprep.subr.bf16.mxu0 %v7631
  %10636 = vmatpush1.bf16.msra.mxu0 %v7630
  %10637 = vmatprep.subr.bf16.mxu0 %v7639
  %10638 = vmatpush1.bf16.msra.mxu0 %v7638
  %10639 = vmatprep.subr.bf16.mxu0 %v7647
  %10640 = vmatpush1.bf16.msra.mxu0 %v7646
  %10641 = vmatprep.subr.bf16.mxu0 %v7655
  %10642 = vmatpush1.bf16.msra.mxu0 %v7654
  %10643 = vmatprep.subr.bf16.mxu0 %v7663
  %10644 = vmatpush1.bf16.msra.mxu0 %v7662
  %10645 = vmatprep.subr.bf16.mxu0 %v7671
  %10646 = vmatpush1.bf16.msra.mxu0 %v7670
  %10647 = vmatprep.subr.bf16.mxu0 %v7679
  %10648 = vmatpush1.bf16.msra.mxu0 %v7678
  %10649 = vmatprep.subr.bf16.mxu0 %v7687
  %10650 = vmatpush1.bf16.msra.mxu0 %v7686
  %10651 = vmatprep.subr.bf16.mxu0 %v7695
  %10652 = vmatpush1.bf16.msra.mxu0 %v7694
  %10653 = vmatprep.subr.bf16.mxu0 %v7703
  %10654 = vmatpush1.bf16.msra.mxu0 %v7702
  %10655 = vmatprep.subr.bf16.mxu0 %v7711
  %10656 = vmatpush1.bf16.msra.mxu0 %v7710
  %10657 = vmatprep.mubr.bf16.mxu0 %v1731
  %10658 = vmatmul.mubr.bf16.gmra.mrb[0].mxu0 %v1730
  %v10659 = vpop.f32.mrb[0].mxu0
  %v10660 = vadd.f32 %v10619, %v10659
  %v10661 = vpop.f32.mrb[0].mxu0
  %v10662 = vadd.f32 %v10621, %v10661
  %v10663 = vpop.f32.mrb[0].mxu0
  %v10664 = vpop.f32.mrb[0].mxu0
  %10665 = vdwg.mxu0
  %10666 = vmatprep.subr.bf16.mxu0 %v7719
  %10667 = vmatpush1.bf16.msra.mxu0 %v7718
  %10668 = vmatprep.subr.bf16.mxu0 %v7727
  %10669 = vmatpush1.bf16.msra.mxu0 %v7726
  %10670 = vmatprep.subr.bf16.mxu0 %v7735
  %10671 = vmatpush1.bf16.msra.mxu0 %v7734
  %10672 = vmatprep.subr.bf16.mxu0 %v7743
  %10673 = vmatpush1.bf16.msra.mxu0 %v7742
  %10674 = vmatprep.subr.bf16.mxu0 %v7751
  %10675 = vmatpush1.bf16.msra.mxu0 %v7750
  %10676 = vmatprep.subr.bf16.mxu0 %v7759
  %10677 = vmatpush1.bf16.msra.mxu0 %v7758
  %10678 = vmatprep.subr.bf16.mxu0 %v7767
  %10679 = vmatpush1.bf16.msra.mxu0 %v7766
  %10680 = vmatprep.subr.bf16.mxu0 %v7775
  %10681 = vmatpush1.bf16.msra.mxu0 %v7774
  %10682 = vmatprep.subr.bf16.mxu0 %v7783
  %10683 = vmatpush1.bf16.msra.mxu0 %v7782
  %10684 = vmatprep.subr.bf16.mxu0 %v7791
  %10685 = vmatpush1.bf16.msra.mxu0 %v7790
  %10686 = vmatprep.subr.bf16.mxu0 %v7799
  %10687 = vmatpush1.bf16.msra.mxu0 %v7798
  %10688 = vmatprep.subr.bf16.mxu0 %v7807
  %10689 = vmatpush1.bf16.msra.mxu0 %v7806
  %10690 = vmatprep.subr.bf16.mxu0 %v7815
  %10691 = vmatpush1.bf16.msra.mxu0 %v7814
  %10692 = vmatprep.subr.bf16.mxu0 %v7823
  %10693 = vmatpush1.bf16.msra.mxu0 %v7822
  %10694 = vmatprep.subr.bf16.mxu0 %v7831
  %10695 = vmatpush1.bf16.msra.mxu0 %v7830
  %10696 = vmatprep.subr.bf16.mxu0 %v7839
  %10697 = vmatpush1.bf16.msra.mxu0 %v7838
  %10698 = vmatprep.mubr.bf16.mxu0 %v1733
  %10699 = vmatmul.mubr.bf16.gmra.mrb[0].mxu0 %v1732
  %v10700 = vpop.f32.mrb[0].mxu0
  %v10701 = vadd.f32 %v10660, %v10700
  %v10702 = vpop.f32.mrb[0].mxu0
  %v10703 = vadd.f32 %v10662, %v10702
  %v10704 = vpop.f32.mrb[0].mxu0
  %v10705 = vpop.f32.mrb[0].mxu0
  %10706 = vdwg.mxu0
  %10707 = vmatprep.subr.bf16.mxu0 %v7847
  %10708 = vmatpush1.bf16.msra.mxu0 %v7846
  %10709 = vmatprep.subr.bf16.mxu0 %v7855
  %10710 = vmatpush1.bf16.msra.mxu0 %v7854
  %10711 = vmatprep.subr.bf16.mxu0 %v7863
  %10712 = vmatpush1.bf16.msra.mxu0 %v7862
  %10713 = vmatprep.subr.bf16.mxu0 %v7871
  %10714 = vmatpush1.bf16.msra.mxu0 %v7870
  %10715 = vmatprep.subr.bf16.mxu0 %v7879
  %10716 = vmatpush1.bf16.msra.mxu0 %v7878
  %10717 = vmatprep.subr.bf16.mxu0 %v7887
  %10718 = vmatpush1.bf16.msra.mxu0 %v7886
  %10719 = vmatprep.subr.bf16.mxu0 %v7895
  %10720 = vmatpush1.bf16.msra.mxu0 %v7894
  %10721 = vmatprep.subr.bf16.mxu0 %v7903
  %10722 = vmatpush1.bf16.msra.mxu0 %v7902
  %10723 = vmatprep.subr.bf16.mxu0 %v7911
  %10724 = vmatpush1.bf16.msra.mxu0 %v7910
  %10725 = vmatprep.subr.bf16.mxu0 %v7919
  %10726 = vmatpush1.bf16.msra.mxu0 %v7918
  %10727 = vmatprep.subr.bf16.mxu0 %v7927
  %10728 = vmatpush1.bf16.msra.mxu0 %v7926
  %10729 = vmatprep.subr.bf16.mxu0 %v7935
  %10730 = vmatpush1.bf16.msra.mxu0 %v7934
  %10731 = vmatprep.subr.bf16.mxu0 %v7943
  %10732 = vmatpush1.bf16.msra.mxu0 %v7942
  %10733 = vmatprep.subr.bf16.mxu0 %v7951
  %10734 = vmatpush1.bf16.msra.mxu0 %v7950
  %10735 = vmatprep.subr.bf16.mxu0 %v7959
  %10736 = vmatpush1.bf16.msra.mxu0 %v7958
  %10737 = vmatprep.subr.bf16.mxu0 %v7967
  %10738 = vmatpush1.bf16.msra.mxu0 %v7966
  %10739 = vmatprep.mubr.bf16.mxu0 %v1735
  %10740 = vmatmul.mubr.bf16.gmra.mrb[0].mxu0 %v1734
  %v10741 = vpop.f32.mrb[0].mxu0
  %v10742 = vadd.f32 %v10701, %v10741
  %v10743 = vpop.f32.mrb[0].mxu0
  %v10744 = vadd.f32 %v10703, %v10743
  %v10745 = vpop.f32.mrb[0].mxu0
  %v10746 = vpop.f32.mrb[0].mxu0
  %10747 = vdwg.mxu0
  %10748 = vmatprep.subr.bf16.mxu0 %v7975
  %10749 = vmatpush1.bf16.msra.mxu0 %v7974
  %10750 = vmatprep.subr.bf16.mxu0 %v7983
  %10751 = vmatpush1.bf16.msra.mxu0 %v7982
  %10752 = vmatprep.subr.bf16.mxu0 %v7991
  %10753 = vmatpush1.bf16.msra.mxu0 %v7990
  %10754 = vmatprep.subr.bf16.mxu0 %v7999
  %10755 = vmatpush1.bf16.msra.mxu0 %v7998
  %10756 = vmatprep.subr.bf16.mxu0 %v8007
  %10757 = vmatpush1.bf16.msra.mxu0 %v8006
  %10758 = vmatprep.subr.bf16.mxu0 %v8015
  %10759 = vmatpush1.bf16.msra.mxu0 %v8014
  %10760 = vmatprep.subr.bf16.mxu0 %v8023
  %10761 = vmatpush1.bf16.msra.mxu0 %v8022
  %10762 = vmatprep.subr.bf16.mxu0 %v8031
  %10763 = vmatpush1.bf16.msra.mxu0 %v8030
  %10764 = vmatprep.subr.bf16.mxu0 %v8039
  %10765 = vmatpush1.bf16.msra.mxu0 %v8038
  %10766 = vmatprep.subr.bf16.mxu0 %v8047
  %10767 = vmatpush1.bf16.msra.mxu0 %v8046
  %10768 = vmatprep.subr.bf16.mxu0 %v8055
  %10769 = vmatpush1.bf16.msra.mxu0 %v8054
  %10770 = vmatprep.subr.bf16.mxu0 %v8063
  %10771 = vmatpush1.bf16.msra.mxu0 %v8062
  %10772 = vmatprep.subr.bf16.mxu0 %v8071
  %10773 = vmatpush1.bf16.msra.mxu0 %v8070
  %10774 = vmatprep.subr.bf16.mxu0 %v8079
  %10775 = vmatpush1.bf16.msra.mxu0 %v8078
  %10776 = vmatprep.subr.bf16.mxu0 %v8087
  %10777 = vmatpush1.bf16.msra.mxu0 %v8086
  %10778 = vmatprep.subr.bf16.mxu0 %v8095
  %10779 = vmatpush1.bf16.msra.mxu0 %v8094
  %10780 = vmatprep.mubr.bf16.mxu0 %v1737
  %10781 = vmatmul.mubr.bf16.gmra.mrb[0].mxu0 %v1736
  %v10782 = vpop.f32.mrb[0].mxu0
  %v10783 = vadd.f32 %v10742, %v10782
  %v10784 = vpop.f32.mrb[0].mxu0
  %v10785 = vadd.f32 %v10744, %v10784
  %v10786 = vpop.f32.mrb[0].mxu0
  %v10787 = vpop.f32.mrb[0].mxu0
  %10788 = vdwg.mxu0
  %10789 = vmatprep.subr.bf16.mxu0 %v8103
  %10790 = vmatpush1.bf16.msra.mxu0 %v8102
  %10791 = vmatprep.subr.bf16.mxu0 %v8111
  %10792 = vmatpush1.bf16.msra.mxu0 %v8110
  %10793 = vmatprep.subr.bf16.mxu0 %v8119
  %10794 = vmatpush1.bf16.msra.mxu0 %v8118
  %10795 = vmatprep.subr.bf16.mxu0 %v8127
  %10796 = vmatpush1.bf16.msra.mxu0 %v8126
  %10797 = vmatprep.subr.bf16.mxu0 %v8135
  %10798 = vmatpush1.bf16.msra.mxu0 %v8134
  %10799 = vmatprep.subr.bf16.mxu0 %v8143
  %10800 = vmatpush1.bf16.msra.mxu0 %v8142
  %10801 = vmatprep.subr.bf16.mxu0 %v8151
  %10802 = vmatpush1.bf16.msra.mxu0 %v8150
  %10803 = vmatprep.subr.bf16.mxu0 %v8159
  %10804 = vmatpush1.bf16.msra.mxu0 %v8158
  %10805 = vmatprep.subr.bf16.mxu0 0
  %10806 = vmatpush1.bf16.msra.mxu0 0
  %10807 = vmatprep.subr.bf16.mxu0 0
  %10808 = vmatpush1.bf16.msra.mxu0 0
  %10809 = vmatprep.subr.bf16.mxu0 0
  %10810 = vmatpush1.bf16.msra.mxu0 0
  %10811 = vmatprep.subr.bf16.mxu0 0
  %10812 = vmatpush1.bf16.msra.mxu0 0
  %10813 = vmatprep.subr.bf16.mxu0 0
  %10814 = vmatpush1.bf16.msra.mxu0 0
  %10815 = vmatprep.subr.bf16.mxu0 0
  %10816 = vmatpush1.bf16.msra.mxu0 0
  %10817 = vmatprep.subr.bf16.mxu0 0
  %10818 = vmatpush1.bf16.msra.mxu0 0
  %10819 = vmatprep.subr.bf16.mxu0 0
  %10820 = vmatpush1.bf16.msra.mxu0 0
  %10821 = vmatprep.mubr.bf16.mxu0 0
  %10822 = vmatmul.mubr.bf16.gmra.mrb[0].mxu0 %v1738
  %v10823 = vpop.f32.mrb[0].mxu0
  %v10824 = vadd.f32 %v10783, %v10823
  %v10825 = vpop.f32.mrb[0].mxu0
  %v10826 = vadd.f32 %v10785, %v10825
  %v10827 = vpop.f32.mrb[0].mxu0
  %v10828 = vpop.f32.mrb[0].mxu0
  %10829 = vdwg.mxu0
  %10830 = vmatprep.subr.bf16.mxu0 %v6569
  %10831 = vmatpush1.bf16.msra.mxu0 %v6568
  %10832 = vmatprep.subr.bf16.mxu0 %v6577
  %10833 = vmatpush1.bf16.msra.mxu0 %v6576
  %10834 = vmatprep.subr.bf16.mxu0 %v6585
  %10835 = vmatpush1.bf16.msra.mxu0 %v6584
  %10836 = vmatprep.subr.bf16.mxu0 %v6593
  %10837 = vmatpush1.bf16.msra.mxu0 %v6592
  %10838 = vmatprep.subr.bf16.mxu0 %v6601
  %10839 = vmatpush1.bf16.msra.mxu0 %v6600
  %10840 = vmatprep.subr.bf16.mxu0 %v6609
  %10841 = vmatpush1.bf16.msra.mxu0 %v6608
  %10842 = vmatprep.subr.bf16.mxu0 %v6617
  %10843 = vmatpush1.bf16.msra.mxu0 %v6616
  %10844 = vmatprep.subr.bf16.mxu0 %v6625
  %10845 = vmatpush1.bf16.msra.mxu0 %v6624
  %10846 = vmatprep.subr.bf16.mxu0 %v6633
  %10847 = vmatpush1.bf16.msra.mxu0 %v6632
  %10848 = vmatprep.subr.bf16.mxu0 %v6641
  %10849 = vmatpush1.bf16.msra.mxu0 %v6640
  %10850 = vmatprep.subr.bf16.mxu0 %v6649
  %10851 = vmatpush1.bf16.msra.mxu0 %v6648
  %10852 = vmatprep.subr.bf16.mxu0 %v6657
  %10853 = vmatpush1.bf16.msra.mxu0 %v6656
  %10854 = vmatprep.subr.bf16.mxu0 %v6665
  %10855 = vmatpush1.bf16.msra.mxu0 %v6664
  %10856 = vmatprep.subr.bf16.mxu0 %v6673
  %10857 = vmatpush1.bf16.msra.mxu0 %v6672
  %10858 = vmatprep.subr.bf16.mxu0 %v6681
  %10859 = vmatpush1.bf16.msra.mxu0 %v6680
  %10860 = vmatprep.subr.bf16.mxu0 %v6689
  %10861 = vmatpush1.bf16.msra.mxu0 %v6688
  %10862 = vmatprep.mubr.bf16.mxu0 %v1715
  %10863 = vmatmul.mubr.bf16.gmra.mrb[0].mxu0 %v1714
  %v10864 = vpop.f32.mrb[0].mxu0
  %v10865 = vadd.f32 %v1655, %v10864
  %v10866 = vpop.f32.mrb[0].mxu0
  %v10867 = vadd.f32 %v1659, %v10866
  %v10868 = vpop.f32.mrb[0].mxu0
  %v10869 = vpop.f32.mrb[0].mxu0
  %10870 = vdwg.mxu0
  %10871 = vmatprep.subr.bf16.mxu0 %v6697
  %10872 = vmatpush1.bf16.msra.mxu0 %v6696
  %10873 = vmatprep.subr.bf16.mxu0 %v6705
  %10874 = vmatpush1.bf16.msra.mxu0 %v6704
  %10875 = vmatprep.subr.bf16.mxu0 %v6713
  %10876 = vmatpush1.bf16.msra.mxu0 %v6712
  %10877 = vmatprep.subr.bf16.mxu0 %v6721
  %10878 = vmatpush1.bf16.msra.mxu0 %v6720
  %10879 = vmatprep.subr.bf16.mxu0 %v6729
  %10880 = vmatpush1.bf16.msra.mxu0 %v6728
  %10881 = vmatprep.subr.bf16.mxu0 %v6737
  %10882 = vmatpush1.bf16.msra.mxu0 %v6736
  %10883 = vmatprep.subr.bf16.mxu0 %v6745
  %10884 = vmatpush1.bf16.msra.mxu0 %v6744
  %10885 = vmatprep.subr.bf16.mxu0 %v6753
  %10886 = vmatpush1.bf16.msra.mxu0 %v6752
  %10887 = vmatprep.subr.bf16.mxu0 %v6761
  %10888 = vmatpush1.bf16.msra.mxu0 %v6760
  %10889 = vmatprep.subr.bf16.mxu0 %v6769
  %10890 = vmatpush1.bf16.msra.mxu0 %v6768
  %10891 = vmatprep.subr.bf16.mxu0 %v6777
  %10892 = vmatpush1.bf16.msra.mxu0 %v6776
  %10893 = vmatprep.subr.bf16.mxu0 %v6785
  %10894 = vmatpush1.bf16.msra.mxu0 %v6784
  %10895 = vmatprep.subr.bf16.mxu0 %v6793
  %10896 = vmatpush1.bf16.msra.mxu0 %v6792
  %10897 = vmatprep.subr.bf16.mxu0 %v6801
  %10898 = vmatpush1.bf16.msra.mxu0 %v6800
  %10899 = vmatprep.subr.bf16.mxu0 %v6809
  %10900 = vmatpush1.bf16.msra.mxu0 %v6808
  %10901 = vmatprep.subr.bf16.mxu0 %v6817
  %10902 = vmatpush1.bf16.msra.mxu0 %v6816
  %10903 = vmatprep.mubr.bf16.mxu0 %v1717
  %10904 = vmatmul.mubr.bf16.gmra.mrb[0].mxu0 %v1716
  %v10905 = vpop.f32.mrb[0].mxu0
  %v10906 = vadd.f32 %v10865, %v10905
  %v10907 = vpop.f32.mrb[0].mxu0
  %v10908 = vadd.f32 %v10867, %v10907
  %v10909 = vpop.f32.mrb[0].mxu0
  %v10910 = vpop.f32.mrb[0].mxu0
  %10911 = vdwg.mxu0
  %10912 = vmatprep.subr.bf16.mxu0 %v6825
  %10913 = vmatpush1.bf16.msra.mxu0 %v6824
  %10914 = vmatprep.subr.bf16.mxu0 %v6833
  %10915 = vmatpush1.bf16.msra.mxu0 %v6832
  %10916 = vmatprep.subr.bf16.mxu0 %v6841
  %10917 = vmatpush1.bf16.msra.mxu0 %v6840
  %10918 = vmatprep.subr.bf16.mxu0 %v6849
  %10919 = vmatpush1.bf16.msra.mxu0 %v6848
  %10920 = vmatprep.subr.bf16.mxu0 %v6857
  %10921 = vmatpush1.bf16.msra.mxu0 %v6856
  %10922 = vmatprep.subr.bf16.mxu0 %v6865
  %10923 = vmatpush1.bf16.msra.mxu0 %v6864
  %10924 = vmatprep.subr.bf16.mxu0 %v6873
  %10925 = vmatpush1.bf16.msra.mxu0 %v6872
  %10926 = vmatprep.subr.bf16.mxu0 %v6881
  %10927 = vmatpush1.bf16.msra.mxu0 %v6880
  %10928 = vmatprep.subr.bf16.mxu0 %v6889
  %10929 = vmatpush1.bf16.msra.mxu0 %v6888
  %10930 = vmatprep.subr.bf16.mxu0 %v6897
  %10931 = vmatpush1.bf16.msra.mxu0 %v6896
  %10932 = vmatprep.subr.bf16.mxu0 %v6905
  %10933 = vmatpush1.bf16.msra.mxu0 %v6904
  %10934 = vmatprep.subr.bf16.mxu0 %v6913
  %10935 = vmatpush1.bf16.msra.mxu0 %v6912
  %10936 = vmatprep.subr.bf16.mxu0 %v6921
  %10937 = vmatpush1.bf16.msra.mxu0 %v6920
  %10938 = vmatprep.subr.bf16.mxu0 %v6929
  %10939 = vmatpush1.bf16.msra.mxu0 %v6928
  %10940 = vmatprep.subr.bf16.mxu0 %v6937
  %10941 = vmatpush1.bf16.msra.mxu0 %v6936
  %10942 = vmatprep.subr.bf16.mxu0 %v6945
  %10943 = vmatpush1.bf16.msra.mxu0 %v6944
  %10944 = vmatprep.mubr.bf16.mxu0 %v1719
  %10945 = vmatmul.mubr.bf16.gmra.mrb[0].mxu0 %v1718
  %v10946 = vpop.f32.mrb[0].mxu0
  %v10947 = vadd.f32 %v10906, %v10946
  %v10948 = vpop.f32.mrb[0].mxu0
  %v10949 = vadd.f32 %v10908, %v10948
  %v10950 = vpop.f32.mrb[0].mxu0
  %v10951 = vpop.f32.mrb[0].mxu0
  %10952 = vdwg.mxu0
  %10953 = vmatprep.subr.bf16.mxu0 %v6953
  %10954 = vmatpush1.bf16.msra.mxu0 %v6952
  %10955 = vmatprep.subr.bf16.mxu0 %v6961
  %10956 = vmatpush1.bf16.msra.mxu0 %v6960
  %10957 = vmatprep.subr.bf16.mxu0 %v6969
  %10958 = vmatpush1.bf16.msra.mxu0 %v6968
  %10959 = vmatprep.subr.bf16.mxu0 %v6977
  %10960 = vmatpush1.bf16.msra.mxu0 %v6976
  %10961 = vmatprep.subr.bf16.mxu0 %v6985
  %10962 = vmatpush1.bf16.msra.mxu0 %v6984
  %10963 = vmatprep.subr.bf16.mxu0 %v6993
  %10964 = vmatpush1.bf16.msra.mxu0 %v6992
  %10965 = vmatprep.subr.bf16.mxu0 %v7001
  %10966 = vmatpush1.bf16.msra.mxu0 %v7000
  %10967 = vmatprep.subr.bf16.mxu0 %v7009
  %10968 = vmatpush1.bf16.msra.mxu0 %v7008
  %10969 = vmatprep.subr.bf16.mxu0 %v7017
  %10970 = vmatpush1.bf16.msra.mxu0 %v7016
  %10971 = vmatprep.subr.bf16.mxu0 %v7025
  %10972 = vmatpush1.bf16.msra.mxu0 %v7024
  %10973 = vmatprep.subr.bf16.mxu0 %v7033
  %10974 = vmatpush1.bf16.msra.mxu0 %v7032
  %10975 = vmatprep.subr.bf16.mxu0 %v7041
  %10976 = vmatpush1.bf16.msra.mxu0 %v7040
  %10977 = vmatprep.subr.bf16.mxu0 %v7049
  %10978 = vmatpush1.bf16.msra.mxu0 %v7048
  %10979 = vmatprep.subr.bf16.mxu0 %v7057
  %10980 = vmatpush1.bf16.msra.mxu0 %v7056
  %10981 = vmatprep.subr.bf16.mxu0 %v7065
  %10982 = vmatpush1.bf16.msra.mxu0 %v7064
  %10983 = vmatprep.subr.bf16.mxu0 %v7073
  %10984 = vmatpush1.bf16.msra.mxu0 %v7072
  %10985 = vmatprep.mubr.bf16.mxu0 %v1721
  %10986 = vmatmul.mubr.bf16.gmra.mrb[0].mxu0 %v1720
  %v10987 = vpop.f32.mrb[0].mxu0
  %v10988 = vadd.f32 %v10947, %v10987
  %v10989 = vpop.f32.mrb[0].mxu0
  %v10990 = vadd.f32 %v10949, %v10989
  %v10991 = vpop.f32.mrb[0].mxu0
  %v10992 = vpop.f32.mrb[0].mxu0
  %10993 = vdwg.mxu0
  %10994 = vmatprep.subr.bf16.mxu0 %v7081
  %10995 = vmatpush1.bf16.msra.mxu0 %v7080
  %10996 = vmatprep.subr.bf16.mxu0 %v7089
  %10997 = vmatpush1.bf16.msra.mxu0 %v7088
  %10998 = vmatprep.subr.bf16.mxu0 %v7097
  %10999 = vmatpush1.bf16.msra.mxu0 %v7096
  %11000 = vmatprep.subr.bf16.mxu0 %v7105
  %11001 = vmatpush1.bf16.msra.mxu0 %v7104
  %11002 = vmatprep.subr.bf16.mxu0 %v7113
  %11003 = vmatpush1.bf16.msra.mxu0 %v7112
  %11004 = vmatprep.subr.bf16.mxu0 %v7121
  %11005 = vmatpush1.bf16.msra.mxu0 %v7120
  %11006 = vmatprep.subr.bf16.mxu0 %v7129
  %11007 = vmatpush1.bf16.msra.mxu0 %v7128
  %11008 = vmatprep.subr.bf16.mxu0 %v7137
  %11009 = vmatpush1.bf16.msra.mxu0 %v7136
  %11010 = vmatprep.subr.bf16.mxu0 %v7145
  %11011 = vmatpush1.bf16.msra.mxu0 %v7144
  %11012 = vmatprep.subr.bf16.mxu0 %v7153
  %11013 = vmatpush1.bf16.msra.mxu0 %v7152
  %11014 = vmatprep.subr.bf16.mxu0 %v7161
  %11015 = vmatpush1.bf16.msra.mxu0 %v7160
  %11016 = vmatprep.subr.bf16.mxu0 %v7169
  %11017 = vmatpush1.bf16.msra.mxu0 %v7168
  %11018 = vmatprep.subr.bf16.mxu0 %v7177
  %11019 = vmatpush1.bf16.msra.mxu0 %v7176
  %11020 = vmatprep.subr.bf16.mxu0 %v7185
  %11021 = vmatpush1.bf16.msra.mxu0 %v7184
  %11022 = vmatprep.subr.bf16.mxu0 %v7193
  %11023 = vmatpush1.bf16.msra.mxu0 %v7192
  %11024 = vmatprep.subr.bf16.mxu0 %v7201
  %11025 = vmatpush1.bf16.msra.mxu0 %v7200
  %11026 = vmatprep.mubr.bf16.mxu0 %v1723
  %11027 = vmatmul.mubr.bf16.gmra.mrb[0].mxu0 %v1722
  %v11028 = vpop.f32.mrb[0].mxu0
  %v11029 = vadd.f32 %v10988, %v11028
  %v11030 = vpop.f32.mrb[0].mxu0
  %v11031 = vadd.f32 %v10990, %v11030
  %v11032 = vpop.f32.mrb[0].mxu0
  %v11033 = vpop.f32.mrb[0].mxu0
  %11034 = vdwg.mxu0
  %11035 = vmatprep.subr.bf16.mxu0 %v7209
  %11036 = vmatpush1.bf16.msra.mxu0 %v7208
  %11037 = vmatprep.subr.bf16.mxu0 %v7217
  %11038 = vmatpush1.bf16.msra.mxu0 %v7216
  %11039 = vmatprep.subr.bf16.mxu0 %v7225
  %11040 = vmatpush1.bf16.msra.mxu0 %v7224
  %11041 = vmatprep.subr.bf16.mxu0 %v7233
  %11042 = vmatpush1.bf16.msra.mxu0 %v7232
  %11043 = vmatprep.subr.bf16.mxu0 %v7241
  %11044 = vmatpush1.bf16.msra.mxu0 %v7240
  %11045 = vmatprep.subr.bf16.mxu0 %v7249
  %11046 = vmatpush1.bf16.msra.mxu0 %v7248
  %11047 = vmatprep.subr.bf16.mxu0 %v7257
  %11048 = vmatpush1.bf16.msra.mxu0 %v7256
  %11049 = vmatprep.subr.bf16.mxu0 %v7265
  %11050 = vmatpush1.bf16.msra.mxu0 %v7264
  %11051 = vmatprep.subr.bf16.mxu0 %v7273
  %11052 = vmatpush1.bf16.msra.mxu0 %v7272
  %11053 = vmatprep.subr.bf16.mxu0 %v7281
  %11054 = vmatpush1.bf16.msra.mxu0 %v7280
  %11055 = vmatprep.subr.bf16.mxu0 %v7289
  %11056 = vmatpush1.bf16.msra.mxu0 %v7288
  %11057 = vmatprep.subr.bf16.mxu0 %v7297
  %11058 = vmatpush1.bf16.msra.mxu0 %v7296
  %11059 = vmatprep.subr.bf16.mxu0 %v7305
  %11060 = vmatpush1.bf16.msra.mxu0 %v7304
  %11061 = vmatprep.subr.bf16.mxu0 %v7313
  %11062 = vmatpush1.bf16.msra.mxu0 %v7312
  %11063 = vmatprep.subr.bf16.mxu0 %v7321
  %11064 = vmatpush1.bf16.msra.mxu0 %v7320
  %11065 = vmatprep.subr.bf16.mxu0 %v7329
  %11066 = vmatpush1.bf16.msra.mxu0 %v7328
  %11067 = vmatprep.mubr.bf16.mxu0 %v1725
  %11068 = vmatmul.mubr.bf16.gmra.mrb[0].mxu0 %v1724
  %v11069 = vpop.f32.mrb[0].mxu0
  %v11070 = vadd.f32 %v11029, %v11069
  %v11071 = vpop.f32.mrb[0].mxu0
  %v11072 = vadd.f32 %v11031, %v11071
  %v11073 = vpop.f32.mrb[0].mxu0
  %v11074 = vpop.f32.mrb[0].mxu0
  %11075 = vdwg.mxu0
  %11076 = vmatprep.subr.bf16.mxu0 %v7337
  %11077 = vmatpush1.bf16.msra.mxu0 %v7336
  %11078 = vmatprep.subr.bf16.mxu0 %v7345
  %11079 = vmatpush1.bf16.msra.mxu0 %v7344
  %11080 = vmatprep.subr.bf16.mxu0 %v7353
  %11081 = vmatpush1.bf16.msra.mxu0 %v7352
  %11082 = vmatprep.subr.bf16.mxu0 %v7361
  %11083 = vmatpush1.bf16.msra.mxu0 %v7360
  %11084 = vmatprep.subr.bf16.mxu0 %v7369
  %11085 = vmatpush1.bf16.msra.mxu0 %v7368
  %11086 = vmatprep.subr.bf16.mxu0 %v7377
  %11087 = vmatpush1.bf16.msra.mxu0 %v7376
  %11088 = vmatprep.subr.bf16.mxu0 %v7385
  %11089 = vmatpush1.bf16.msra.mxu0 %v7384
  %11090 = vmatprep.subr.bf16.mxu0 %v7393
  %11091 = vmatpush1.bf16.msra.mxu0 %v7392
  %11092 = vmatprep.subr.bf16.mxu0 %v7401
  %11093 = vmatpush1.bf16.msra.mxu0 %v7400
  %11094 = vmatprep.subr.bf16.mxu0 %v7409
  %11095 = vmatpush1.bf16.msra.mxu0 %v7408
  %11096 = vmatprep.subr.bf16.mxu0 %v7417
  %11097 = vmatpush1.bf16.msra.mxu0 %v7416
  %11098 = vmatprep.subr.bf16.mxu0 %v7425
  %11099 = vmatpush1.bf16.msra.mxu0 %v7424
  %11100 = vmatprep.subr.bf16.mxu0 %v7433
  %11101 = vmatpush1.bf16.msra.mxu0 %v7432
  %11102 = vmatprep.subr.bf16.mxu0 %v7441
  %11103 = vmatpush1.bf16.msra.mxu0 %v7440
  %11104 = vmatprep.subr.bf16.mxu0 %v7449
  %11105 = vmatpush1.bf16.msra.mxu0 %v7448
  %11106 = vmatprep.subr.bf16.mxu0 %v7457
  %11107 = vmatpush1.bf16.msra.mxu0 %v7456
  %11108 = vmatprep.mubr.bf16.mxu0 %v1727
  %11109 = vmatmul.mubr.bf16.gmra.mrb[0].mxu0 %v1726
  %v11110 = vpop.f32.mrb[0].mxu0
  %v11111 = vadd.f32 %v11070, %v11110
  %v11112 = vpop.f32.mrb[0].mxu0
  %v11113 = vadd.f32 %v11072, %v11112
  %v11114 = vpop.f32.mrb[0].mxu0
  %v11115 = vpop.f32.mrb[0].mxu0
  %11116 = vdwg.mxu0
  %11117 = vmatprep.subr.bf16.mxu0 %v7465
  %11118 = vmatpush1.bf16.msra.mxu0 %v7464
  %11119 = vmatprep.subr.bf16.mxu0 %v7473
  %11120 = vmatpush1.bf16.msra.mxu0 %v7472
  %11121 = vmatprep.subr.bf16.mxu0 %v7481
  %11122 = vmatpush1.bf16.msra.mxu0 %v7480
  %11123 = vmatprep.subr.bf16.mxu0 %v7489
  %11124 = vmatpush1.bf16.msra.mxu0 %v7488
  %11125 = vmatprep.subr.bf16.mxu0 %v7497
  %11126 = vmatpush1.bf16.msra.mxu0 %v7496
  %11127 = vmatprep.subr.bf16.mxu0 %v7505
  %11128 = vmatpush1.bf16.msra.mxu0 %v7504
  %11129 = vmatprep.subr.bf16.mxu0 %v7513
  %11130 = vmatpush1.bf16.msra.mxu0 %v7512
  %11131 = vmatprep.subr.bf16.mxu0 %v7521
  %11132 = vmatpush1.bf16.msra.mxu0 %v7520
  %11133 = vmatprep.subr.bf16.mxu0 %v7529
  %11134 = vmatpush1.bf16.msra.mxu0 %v7528
  %11135 = vmatprep.subr.bf16.mxu0 %v7537
  %11136 = vmatpush1.bf16.msra.mxu0 %v7536
  %11137 = vmatprep.subr.bf16.mxu0 %v7545
  %11138 = vmatpush1.bf16.msra.mxu0 %v7544
  %11139 = vmatprep.subr.bf16.mxu0 %v7553
  %11140 = vmatpush1.bf16.msra.mxu0 %v7552
  %11141 = vmatprep.subr.bf16.mxu0 %v7561
  %11142 = vmatpush1.bf16.msra.mxu0 %v7560
  %11143 = vmatprep.subr.bf16.mxu0 %v7569
  %11144 = vmatpush1.bf16.msra.mxu0 %v7568
  %11145 = vmatprep.subr.bf16.mxu0 %v7577
  %11146 = vmatpush1.bf16.msra.mxu0 %v7576
  %11147 = vmatprep.subr.bf16.mxu0 %v7585
  %11148 = vmatpush1.bf16.msra.mxu0 %v7584
  %11149 = vmatprep.mubr.bf16.mxu0 %v1729
  %11150 = vmatmul.mubr.bf16.gmra.mrb[0].mxu0 %v1728
  %v11151 = vpop.f32.mrb[0].mxu0
  %v11152 = vadd.f32 %v11111, %v11151
  %v11153 = vpop.f32.mrb[0].mxu0
  %v11154 = vadd.f32 %v11113, %v11153
  %v11155 = vpop.f32.mrb[0].mxu0
  %v11156 = vpop.f32.mrb[0].mxu0
  %11157 = vdwg.mxu0
  %11158 = vmatprep.subr.bf16.mxu0 %v7593
  %11159 = vmatpush1.bf16.msra.mxu0 %v7592
  %11160 = vmatprep.subr.bf16.mxu0 %v7601
  %11161 = vmatpush1.bf16.msra.mxu0 %v7600
  %11162 = vmatprep.subr.bf16.mxu0 %v7609
  %11163 = vmatpush1.bf16.msra.mxu0 %v7608
  %11164 = vmatprep.subr.bf16.mxu0 %v7617
  %11165 = vmatpush1.bf16.msra.mxu0 %v7616
  %11166 = vmatprep.subr.bf16.mxu0 %v7625
  %11167 = vmatpush1.bf16.msra.mxu0 %v7624
  %11168 = vmatprep.subr.bf16.mxu0 %v7633
  %11169 = vmatpush1.bf16.msra.mxu0 %v7632
  %11170 = vmatprep.subr.bf16.mxu0 %v7641
  %11171 = vmatpush1.bf16.msra.mxu0 %v7640
  %11172 = vmatprep.subr.bf16.mxu0 %v7649
  %11173 = vmatpush1.bf16.msra.mxu0 %v7648
  %11174 = vmatprep.subr.bf16.mxu0 %v7657
  %11175 = vmatpush1.bf16.msra.mxu0 %v7656
  %11176 = vmatprep.subr.bf16.mxu0 %v7665
  %11177 = vmatpush1.bf16.msra.mxu0 %v7664
  %11178 = vmatprep.subr.bf16.mxu0 %v7673
  %11179 = vmatpush1.bf16.msra.mxu0 %v7672
  %11180 = vmatprep.subr.bf16.mxu0 %v7681
  %11181 = vmatpush1.bf16.msra.mxu0 %v7680
  %11182 = vmatprep.subr.bf16.mxu0 %v7689
  %11183 = vmatpush1.bf16.msra.mxu0 %v7688
  %11184 = vmatprep.subr.bf16.mxu0 %v7697
  %11185 = vmatpush1.bf16.msra.mxu0 %v7696
  %11186 = vmatprep.subr.bf16.mxu0 %v7705
  %11187 = vmatpush1.bf16.msra.mxu0 %v7704
  %11188 = vmatprep.subr.bf16.mxu0 %v7713
  %11189 = vmatpush1.bf16.msra.mxu0 %v7712
  %11190 = vmatprep.mubr.bf16.mxu0 %v1731
  %11191 = vmatmul.mubr.bf16.gmra.mrb[0].mxu0 %v1730
  %v11192 = vpop.f32.mrb[0].mxu0
  %v11193 = vadd.f32 %v11152, %v11192
  %v11194 = vpop.f32.mrb[0].mxu0
  %v11195 = vadd.f32 %v11154, %v11194
  %v11196 = vpop.f32.mrb[0].mxu0
  %v11197 = vpop.f32.mrb[0].mxu0
  %11198 = vdwg.mxu0
  %11199 = vmatprep.subr.bf16.mxu0 %v7721
  %11200 = vmatpush1.bf16.msra.mxu0 %v7720
  %11201 = vmatprep.subr.bf16.mxu0 %v7729
  %11202 = vmatpush1.bf16.msra.mxu0 %v7728
  %11203 = vmatprep.subr.bf16.mxu0 %v7737
  %11204 = vmatpush1.bf16.msra.mxu0 %v7736
  %11205 = vmatprep.subr.bf16.mxu0 %v7745
  %11206 = vmatpush1.bf16.msra.mxu0 %v7744
  %11207 = vmatprep.subr.bf16.mxu0 %v7753
  %11208 = vmatpush1.bf16.msra.mxu0 %v7752
  %11209 = vmatprep.subr.bf16.mxu0 %v7761
  %11210 = vmatpush1.bf16.msra.mxu0 %v7760
  %11211 = vmatprep.subr.bf16.mxu0 %v7769
  %11212 = vmatpush1.bf16.msra.mxu0 %v7768
  %11213 = vmatprep.subr.bf16.mxu0 %v7777
  %11214 = vmatpush1.bf16.msra.mxu0 %v7776
  %11215 = vmatprep.subr.bf16.mxu0 %v7785
  %11216 = vmatpush1.bf16.msra.mxu0 %v7784
  %11217 = vmatprep.subr.bf16.mxu0 %v7793
  %11218 = vmatpush1.bf16.msra.mxu0 %v7792
  %11219 = vmatprep.subr.bf16.mxu0 %v7801
  %11220 = vmatpush1.bf16.msra.mxu0 %v7800
  %11221 = vmatprep.subr.bf16.mxu0 %v7809
  %11222 = vmatpush1.bf16.msra.mxu0 %v7808
  %11223 = vmatprep.subr.bf16.mxu0 %v7817
  %11224 = vmatpush1.bf16.msra.mxu0 %v7816
  %11225 = vmatprep.subr.bf16.mxu0 %v7825
  %11226 = vmatpush1.bf16.msra.mxu0 %v7824
  %11227 = vmatprep.subr.bf16.mxu0 %v7833
  %11228 = vmatpush1.bf16.msra.mxu0 %v7832
  %11229 = vmatprep.subr.bf16.mxu0 %v7841
  %11230 = vmatpush1.bf16.msra.mxu0 %v7840
  %11231 = vmatprep.mubr.bf16.mxu0 %v1733
  %11232 = vmatmul.mubr.bf16.gmra.mrb[0].mxu0 %v1732
  %v11233 = vpop.f32.mrb[0].mxu0
  %v11234 = vadd.f32 %v11193, %v11233
  %v11235 = vpop.f32.mrb[0].mxu0
  %v11236 = vadd.f32 %v11195, %v11235
  %v11237 = vpop.f32.mrb[0].mxu0
  %v11238 = vpop.f32.mrb[0].mxu0
  %11239 = vdwg.mxu0
  %11240 = vmatprep.subr.bf16.mxu0 %v7849
  %11241 = vmatpush1.bf16.msra.mxu0 %v7848
  %11242 = vmatprep.subr.bf16.mxu0 %v7857
  %11243 = vmatpush1.bf16.msra.mxu0 %v7856
  %11244 = vmatprep.subr.bf16.mxu0 %v7865
  %11245 = vmatpush1.bf16.msra.mxu0 %v7864
  %11246 = vmatprep.subr.bf16.mxu0 %v7873
  %11247 = vmatpush1.bf16.msra.mxu0 %v7872
  %11248 = vmatprep.subr.bf16.mxu0 %v7881
  %11249 = vmatpush1.bf16.msra.mxu0 %v7880
  %11250 = vmatprep.subr.bf16.mxu0 %v7889
  %11251 = vmatpush1.bf16.msra.mxu0 %v7888
  %11252 = vmatprep.subr.bf16.mxu0 %v7897
  %11253 = vmatpush1.bf16.msra.mxu0 %v7896
  %11254 = vmatprep.subr.bf16.mxu0 %v7905
  %11255 = vmatpush1.bf16.msra.mxu0 %v7904
  %11256 = vmatprep.subr.bf16.mxu0 %v7913
  %11257 = vmatpush1.bf16.msra.mxu0 %v7912
  %11258 = vmatprep.subr.bf16.mxu0 %v7921
  %11259 = vmatpush1.bf16.msra.mxu0 %v7920
  %11260 = vmatprep.subr.bf16.mxu0 %v7929
  %11261 = vmatpush1.bf16.msra.mxu0 %v7928
  %11262 = vmatprep.subr.bf16.mxu0 %v7937
  %11263 = vmatpush1.bf16.msra.mxu0 %v7936
  %11264 = vmatprep.subr.bf16.mxu0 %v7945
  %11265 = vmatpush1.bf16.msra.mxu0 %v7944
  %11266 = vmatprep.subr.bf16.mxu0 %v7953
  %11267 = vmatpush1.bf16.msra.mxu0 %v7952
  %11268 = vmatprep.subr.bf16.mxu0 %v7961
  %11269 = vmatpush1.bf16.msra.mxu0 %v7960
  %11270 = vmatprep.subr.bf16.mxu0 %v7969
  %11271 = vmatpush1.bf16.msra.mxu0 %v7968
  %11272 = vmatprep.mubr.bf16.mxu0 %v1735
  %11273 = vmatmul.mubr.bf16.gmra.mrb[0].mxu0 %v1734
  %v11274 = vpop.f32.mrb[0].mxu0
  %v11275 = vadd.f32 %v11234, %v11274
  %v11276 = vpop.f32.mrb[0].mxu0
  %v11277 = vadd.f32 %v11236, %v11276
  %v11278 = vpop.f32.mrb[0].mxu0
  %v11279 = vpop.f32.mrb[0].mxu0
  %11280 = vdwg.mxu0
  %11281 = vmatprep.subr.bf16.mxu0 %v7977
  %11282 = vmatpush1.bf16.msra.mxu0 %v7976
  %11283 = vmatprep.subr.bf16.mxu0 %v7985
  %11284 = vmatpush1.bf16.msra.mxu0 %v7984
  %11285 = vmatprep.subr.bf16.mxu0 %v7993
  %11286 = vmatpush1.bf16.msra.mxu0 %v7992
  %11287 = vmatprep.subr.bf16.mxu0 %v8001
  %11288 = vmatpush1.bf16.msra.mxu0 %v8000
  %11289 = vmatprep.subr.bf16.mxu0 %v8009
  %11290 = vmatpush1.bf16.msra.mxu0 %v8008
  %11291 = vmatprep.subr.bf16.mxu0 %v8017
  %11292 = vmatpush1.bf16.msra.mxu0 %v8016
  %11293 = vmatprep.subr.bf16.mxu0 %v8025
  %11294 = vmatpush1.bf16.msra.mxu0 %v8024
  %11295 = vmatprep.subr.bf16.mxu0 %v8033
  %11296 = vmatpush1.bf16.msra.mxu0 %v8032
  %11297 = vmatprep.subr.bf16.mxu0 %v8041
  %11298 = vmatpush1.bf16.msra.mxu0 %v8040
  %11299 = vmatprep.subr.bf16.mxu0 %v8049
  %11300 = vmatpush1.bf16.msra.mxu0 %v8048
  %11301 = vmatprep.subr.bf16.mxu0 %v8057
  %11302 = vmatpush1.bf16.msra.mxu0 %v8056
  %11303 = vmatprep.subr.bf16.mxu0 %v8065
  %11304 = vmatpush1.bf16.msra.mxu0 %v8064
  %11305 = vmatprep.subr.bf16.mxu0 %v8073
  %11306 = vmatpush1.bf16.msra.mxu0 %v8072
  %11307 = vmatprep.subr.bf16.mxu0 %v8081
  %11308 = vmatpush1.bf16.msra.mxu0 %v8080
  %11309 = vmatprep.subr.bf16.mxu0 %v8089
  %11310 = vmatpush1.bf16.msra.mxu0 %v8088
  %11311 = vmatprep.subr.bf16.mxu0 %v8097
  %11312 = vmatpush1.bf16.msra.mxu0 %v8096
  %11313 = vmatprep.mubr.bf16.mxu0 %v1737
  %11314 = vmatmul.mubr.bf16.gmra.mrb[0].mxu0 %v1736
  %v11315 = vpop.f32.mrb[0].mxu0
  %v11316 = vadd.f32 %v11275, %v11315
  %v11317 = vpop.f32.mrb[0].mxu0
  %v11318 = vadd.f32 %v11277, %v11317
  %v11319 = vpop.f32.mrb[0].mxu0
  %v11320 = vpop.f32.mrb[0].mxu0
  %11321 = vdwg.mxu0
  %11322 = vmatprep.subr.bf16.mxu0 %v8105
  %11323 = vmatpush1.bf16.msra.mxu0 %v8104
  %11324 = vmatprep.subr.bf16.mxu0 %v8113
  %11325 = vmatpush1.bf16.msra.mxu0 %v8112
  %11326 = vmatprep.subr.bf16.mxu0 %v8121
  %11327 = vmatpush1.bf16.msra.mxu0 %v8120
  %11328 = vmatprep.subr.bf16.mxu0 %v8129
  %11329 = vmatpush1.bf16.msra.mxu0 %v8128
  %11330 = vmatprep.subr.bf16.mxu0 %v8137
  %11331 = vmatpush1.bf16.msra.mxu0 %v8136
  %11332 = vmatprep.subr.bf16.mxu0 %v8145
  %11333 = vmatpush1.bf16.msra.mxu0 %v8144
  %11334 = vmatprep.subr.bf16.mxu0 %v8153
  %11335 = vmatpush1.bf16.msra.mxu0 %v8152
  %11336 = vmatprep.subr.bf16.mxu0 %v8161
  %11337 = vmatpush1.bf16.msra.mxu0 %v8160
  %11338 = vmatprep.subr.bf16.mxu0 0
  %11339 = vmatpush1.bf16.msra.mxu0 0
  %11340 = vmatprep.subr.bf16.mxu0 0
  %11341 = vmatpush1.bf16.msra.mxu0 0
  %11342 = vmatprep.subr.bf16.mxu0 0
  %11343 = vmatpush1.bf16.msra.mxu0 0
  %11344 = vmatprep.subr.bf16.mxu0 0
  %11345 = vmatpush1.bf16.msra.mxu0 0
  %11346 = vmatprep.subr.bf16.mxu0 0
  %11347 = vmatpush1.bf16.msra.mxu0 0
  %11348 = vmatprep.subr.bf16.mxu0 0
  %11349 = vmatpush1.bf16.msra.mxu0 0
  %11350 = vmatprep.subr.bf16.mxu0 0
  %11351 = vmatpush1.bf16.msra.mxu0 0
  %11352 = vmatprep.subr.bf16.mxu0 0
  %11353 = vmatpush1.bf16.msra.mxu0 0
  %11354 = vmatprep.mubr.bf16.mxu0 0
  %11355 = vmatmul.mubr.bf16.gmra.mrb[0].mxu0 %v1738
  %v11356 = vpop.f32.mrb[0].mxu0
  %v11357 = vadd.f32 %v11316, %v11356
  %v11358 = vpop.f32.mrb[0].mxu0
  %v11359 = vadd.f32 %v11318, %v11358
  %v11360 = vpop.f32.mrb[0].mxu0
  %v11361 = vpop.f32.mrb[0].mxu0
  %11362 = vdwg.mxu0
  %11363 = vmatprep.subr.bf16.mxu0 %v6571
  %11364 = vmatpush1.bf16.msra.mxu0 %v6570
  %11365 = vmatprep.subr.bf16.mxu0 %v6579
  %11366 = vmatpush1.bf16.msra.mxu0 %v6578
  %11367 = vmatprep.subr.bf16.mxu0 %v6587
  %11368 = vmatpush1.bf16.msra.mxu0 %v6586
  %11369 = vmatprep.subr.bf16.mxu0 %v6595
  %11370 = vmatpush1.bf16.msra.mxu0 %v6594
  %11371 = vmatprep.subr.bf16.mxu0 %v6603
  %11372 = vmatpush1.bf16.msra.mxu0 %v6602
  %11373 = vmatprep.subr.bf16.mxu0 %v6611
  %11374 = vmatpush1.bf16.msra.mxu0 %v6610
  %11375 = vmatprep.subr.bf16.mxu0 %v6619
  %11376 = vmatpush1.bf16.msra.mxu0 %v6618
  %11377 = vmatprep.subr.bf16.mxu0 %v6627
  %11378 = vmatpush1.bf16.msra.mxu0 %v6626
  %11379 = vmatprep.subr.bf16.mxu0 %v6635
  %11380 = vmatpush1.bf16.msra.mxu0 %v6634
  %11381 = vmatprep.subr.bf16.mxu0 %v6643
  %11382 = vmatpush1.bf16.msra.mxu0 %v6642
  %11383 = vmatprep.subr.bf16.mxu0 %v6651
  %11384 = vmatpush1.bf16.msra.mxu0 %v6650
  %11385 = vmatprep.subr.bf16.mxu0 %v6659
  %11386 = vmatpush1.bf16.msra.mxu0 %v6658
  %11387 = vmatprep.subr.bf16.mxu0 %v6667
  %11388 = vmatpush1.bf16.msra.mxu0 %v6666
  %11389 = vmatprep.subr.bf16.mxu0 %v6675
  %11390 = vmatpush1.bf16.msra.mxu0 %v6674
  %11391 = vmatprep.subr.bf16.mxu0 %v6683
  %11392 = vmatpush1.bf16.msra.mxu0 %v6682
  %11393 = vmatprep.subr.bf16.mxu0 %v6691
  %11394 = vmatpush1.bf16.msra.mxu0 %v6690
  %11395 = vmatprep.mubr.bf16.mxu0 %v1715
  %11396 = vmatmul.mubr.bf16.gmra.mrb[0].mxu0 %v1714
  %v11397 = vpop.f32.mrb[0].mxu0
  %v11398 = vadd.f32 %v1663, %v11397
  %v11399 = vpop.f32.mrb[0].mxu0
  %v11400 = vadd.f32 %v1667, %v11399
  %v11401 = vpop.f32.mrb[0].mxu0
  %v11402 = vpop.f32.mrb[0].mxu0
  %11403 = vdwg.mxu0
  %11404 = vmatprep.subr.bf16.mxu0 %v6699
  %11405 = vmatpush1.bf16.msra.mxu0 %v6698
  %11406 = vmatprep.subr.bf16.mxu0 %v6707
  %11407 = vmatpush1.bf16.msra.mxu0 %v6706
  %11408 = vmatprep.subr.bf16.mxu0 %v6715
  %11409 = vmatpush1.bf16.msra.mxu0 %v6714
  %11410 = vmatprep.subr.bf16.mxu0 %v6723
  %11411 = vmatpush1.bf16.msra.mxu0 %v6722
  %11412 = vmatprep.subr.bf16.mxu0 %v6731
  %11413 = vmatpush1.bf16.msra.mxu0 %v6730
  %11414 = vmatprep.subr.bf16.mxu0 %v6739
  %11415 = vmatpush1.bf16.msra.mxu0 %v6738
  %11416 = vmatprep.subr.bf16.mxu0 %v6747
  %11417 = vmatpush1.bf16.msra.mxu0 %v6746
  %11418 = vmatprep.subr.bf16.mxu0 %v6755
  %11419 = vmatpush1.bf16.msra.mxu0 %v6754
  %11420 = vmatprep.subr.bf16.mxu0 %v6763
  %11421 = vmatpush1.bf16.msra.mxu0 %v6762
  %11422 = vmatprep.subr.bf16.mxu0 %v6771
  %11423 = vmatpush1.bf16.msra.mxu0 %v6770
  %11424 = vmatprep.subr.bf16.mxu0 %v6779
  %11425 = vmatpush1.bf16.msra.mxu0 %v6778
  %11426 = vmatprep.subr.bf16.mxu0 %v6787
  %11427 = vmatpush1.bf16.msra.mxu0 %v6786
  %11428 = vmatprep.subr.bf16.mxu0 %v6795
  %11429 = vmatpush1.bf16.msra.mxu0 %v6794
  %11430 = vmatprep.subr.bf16.mxu0 %v6803
  %11431 = vmatpush1.bf16.msra.mxu0 %v6802
  %11432 = vmatprep.subr.bf16.mxu0 %v6811
  %11433 = vmatpush1.bf16.msra.mxu0 %v6810
  %11434 = vmatprep.subr.bf16.mxu0 %v6819
  %11435 = vmatpush1.bf16.msra.mxu0 %v6818
  %11436 = vmatprep.mubr.bf16.mxu0 %v1717
  %11437 = vmatmul.mubr.bf16.gmra.mrb[0].mxu0 %v1716
  %v11438 = vpop.f32.mrb[0].mxu0
  %v11439 = vadd.f32 %v11398, %v11438
  %v11440 = vpop.f32.mrb[0].mxu0
  %v11441 = vadd.f32 %v11400, %v11440
  %v11442 = vpop.f32.mrb[0].mxu0
  %v11443 = vpop.f32.mrb[0].mxu0
  %11444 = vdwg.mxu0
  %11445 = vmatprep.subr.bf16.mxu0 %v6827
  %11446 = vmatpush1.bf16.msra.mxu0 %v6826
  %11447 = vmatprep.subr.bf16.mxu0 %v6835
  %11448 = vmatpush1.bf16.msra.mxu0 %v6834
  %11449 = vmatprep.subr.bf16.mxu0 %v6843
  %11450 = vmatpush1.bf16.msra.mxu0 %v6842
  %11451 = vmatprep.subr.bf16.mxu0 %v6851
  %11452 = vmatpush1.bf16.msra.mxu0 %v6850
  %11453 = vmatprep.subr.bf16.mxu0 %v6859
  %11454 = vmatpush1.bf16.msra.mxu0 %v6858
  %11455 = vmatprep.subr.bf16.mxu0 %v6867
  %11456 = vmatpush1.bf16.msra.mxu0 %v6866
  %11457 = vmatprep.subr.bf16.mxu0 %v6875
  %11458 = vmatpush1.bf16.msra.mxu0 %v6874
  %11459 = vmatprep.subr.bf16.mxu0 %v6883
  %11460 = vmatpush1.bf16.msra.mxu0 %v6882
  %11461 = vmatprep.subr.bf16.mxu0 %v6891
  %11462 = vmatpush1.bf16.msra.mxu0 %v6890
  %11463 = vmatprep.subr.bf16.mxu0 %v6899
  %11464 = vmatpush1.bf16.msra.mxu0 %v6898
  %11465 = vmatprep.subr.bf16.mxu0 %v6907
  %11466 = vmatpush1.bf16.msra.mxu0 %v6906
  %11467 = vmatprep.subr.bf16.mxu0 %v6915
  %11468 = vmatpush1.bf16.msra.mxu0 %v6914
  %11469 = vmatprep.subr.bf16.mxu0 %v6923
  %11470 = vmatpush1.bf16.msra.mxu0 %v6922
  %11471 = vmatprep.subr.bf16.mxu0 %v6931
  %11472 = vmatpush1.bf16.msra.mxu0 %v6930
  %11473 = vmatprep.subr.bf16.mxu0 %v6939
  %11474 = vmatpush1.bf16.msra.mxu0 %v6938
  %11475 = vmatprep.subr.bf16.mxu0 %v6947
  %11476 = vmatpush1.bf16.msra.mxu0 %v6946
  %11477 = vmatprep.mubr.bf16.mxu0 %v1719
  %11478 = vmatmul.mubr.bf16.gmra.mrb[0].mxu0 %v1718
  %v11479 = vpop.f32.mrb[0].mxu0
  %v11480 = vadd.f32 %v11439, %v11479
  %v11481 = vpop.f32.mrb[0].mxu0
  %v11482 = vadd.f32 %v11441, %v11481
  %v11483 = vpop.f32.mrb[0].mxu0
  %v11484 = vpop.f32.mrb[0].mxu0
  %11485 = vdwg.mxu0
  %11486 = vmatprep.subr.bf16.mxu0 %v6955
  %11487 = vmatpush1.bf16.msra.mxu0 %v6954
  %11488 = vmatprep.subr.bf16.mxu0 %v6963
  %11489 = vmatpush1.bf16.msra.mxu0 %v6962
  %11490 = vmatprep.subr.bf16.mxu0 %v6971
  %11491 = vmatpush1.bf16.msra.mxu0 %v6970
  %11492 = vmatprep.subr.bf16.mxu0 %v6979
  %11493 = vmatpush1.bf16.msra.mxu0 %v6978
  %11494 = vmatprep.subr.bf16.mxu0 %v6987
  %11495 = vmatpush1.bf16.msra.mxu0 %v6986
  %11496 = vmatprep.subr.bf16.mxu0 %v6995
  %11497 = vmatpush1.bf16.msra.mxu0 %v6994
  %11498 = vmatprep.subr.bf16.mxu0 %v7003
  %11499 = vmatpush1.bf16.msra.mxu0 %v7002
  %11500 = vmatprep.subr.bf16.mxu0 %v7011
  %11501 = vmatpush1.bf16.msra.mxu0 %v7010
  %11502 = vmatprep.subr.bf16.mxu0 %v7019
  %11503 = vmatpush1.bf16.msra.mxu0 %v7018
  %11504 = vmatprep.subr.bf16.mxu0 %v7027
  %11505 = vmatpush1.bf16.msra.mxu0 %v7026
  %11506 = vmatprep.subr.bf16.mxu0 %v7035
  %11507 = vmatpush1.bf16.msra.mxu0 %v7034
  %11508 = vmatprep.subr.bf16.mxu0 %v7043
  %11509 = vmatpush1.bf16.msra.mxu0 %v7042
  %11510 = vmatprep.subr.bf16.mxu0 %v7051
  %11511 = vmatpush1.bf16.msra.mxu0 %v7050
  %11512 = vmatprep.subr.bf16.mxu0 %v7059
  %11513 = vmatpush1.bf16.msra.mxu0 %v7058
  %11514 = vmatprep.subr.bf16.mxu0 %v7067
  %11515 = vmatpush1.bf16.msra.mxu0 %v7066
  %11516 = vmatprep.subr.bf16.mxu0 %v7075
  %11517 = vmatpush1.bf16.msra.mxu0 %v7074
  %11518 = vmatprep.mubr.bf16.mxu0 %v1721
  %11519 = vmatmul.mubr.bf16.gmra.mrb[0].mxu0 %v1720
  %v11520 = vpop.f32.mrb[0].mxu0
  %v11521 = vadd.f32 %v11480, %v11520
  %v11522 = vpop.f32.mrb[0].mxu0
  %v11523 = vadd.f32 %v11482, %v11522
  %v11524 = vpop.f32.mrb[0].mxu0
  %v11525 = vpop.f32.mrb[0].mxu0
  %11526 = vdwg.mxu0
  %11527 = vmatprep.subr.bf16.mxu0 %v7083
  %11528 = vmatpush1.bf16.msra.mxu0 %v7082
  %11529 = vmatprep.subr.bf16.mxu0 %v7091
  %11530 = vmatpush1.bf16.msra.mxu0 %v7090
  %11531 = vmatprep.subr.bf16.mxu0 %v7099
  %11532 = vmatpush1.bf16.msra.mxu0 %v7098
  %11533 = vmatprep.subr.bf16.mxu0 %v7107
  %11534 = vmatpush1.bf16.msra.mxu0 %v7106
  %11535 = vmatprep.subr.bf16.mxu0 %v7115
  %11536 = vmatpush1.bf16.msra.mxu0 %v7114
  %11537 = vmatprep.subr.bf16.mxu0 %v7123
  %11538 = vmatpush1.bf16.msra.mxu0 %v7122
  %11539 = vmatprep.subr.bf16.mxu0 %v7131
  %11540 = vmatpush1.bf16.msra.mxu0 %v7130
  %11541 = vmatprep.subr.bf16.mxu0 %v7139
  %11542 = vmatpush1.bf16.msra.mxu0 %v7138
  %11543 = vmatprep.subr.bf16.mxu0 %v7147
  %11544 = vmatpush1.bf16.msra.mxu0 %v7146
  %11545 = vmatprep.subr.bf16.mxu0 %v7155
  %11546 = vmatpush1.bf16.msra.mxu0 %v7154
  %11547 = vmatprep.subr.bf16.mxu0 %v7163
  %11548 = vmatpush1.bf16.msra.mxu0 %v7162
  %11549 = vmatprep.subr.bf16.mxu0 %v7171
  %11550 = vmatpush1.bf16.msra.mxu0 %v7170
  %11551 = vmatprep.subr.bf16.mxu0 %v7179
  %11552 = vmatpush1.bf16.msra.mxu0 %v7178
  %11553 = vmatprep.subr.bf16.mxu0 %v7187
  %11554 = vmatpush1.bf16.msra.mxu0 %v7186
  %11555 = vmatprep.subr.bf16.mxu0 %v7195
  %11556 = vmatpush1.bf16.msra.mxu0 %v7194
  %11557 = vmatprep.subr.bf16.mxu0 %v7203
  %11558 = vmatpush1.bf16.msra.mxu0 %v7202
  %11559 = vmatprep.mubr.bf16.mxu0 %v1723
  %11560 = vmatmul.mubr.bf16.gmra.mrb[0].mxu0 %v1722
  %v11561 = vpop.f32.mrb[0].mxu0
  %v11562 = vadd.f32 %v11521, %v11561
  %v11563 = vpop.f32.mrb[0].mxu0
  %v11564 = vadd.f32 %v11523, %v11563
  %v11565 = vpop.f32.mrb[0].mxu0
  %v11566 = vpop.f32.mrb[0].mxu0
  %11567 = vdwg.mxu0
  %11568 = vmatprep.subr.bf16.mxu0 %v7211
  %11569 = vmatpush1.bf16.msra.mxu0 %v7210
  %11570 = vmatprep.subr.bf16.mxu0 %v7219
  %11571 = vmatpush1.bf16.msra.mxu0 %v7218
  %11572 = vmatprep.subr.bf16.mxu0 %v7227
  %11573 = vmatpush1.bf16.msra.mxu0 %v7226
  %11574 = vmatprep.subr.bf16.mxu0 %v7235
  %11575 = vmatpush1.bf16.msra.mxu0 %v7234
  %11576 = vmatprep.subr.bf16.mxu0 %v7243
  %11577 = vmatpush1.bf16.msra.mxu0 %v7242
  %11578 = vmatprep.subr.bf16.mxu0 %v7251
  %11579 = vmatpush1.bf16.msra.mxu0 %v7250
  %11580 = vmatprep.subr.bf16.mxu0 %v7259
  %11581 = vmatpush1.bf16.msra.mxu0 %v7258
  %11582 = vmatprep.subr.bf16.mxu0 %v7267
  %11583 = vmatpush1.bf16.msra.mxu0 %v7266
  %11584 = vmatprep.subr.bf16.mxu0 %v7275
  %11585 = vmatpush1.bf16.msra.mxu0 %v7274
  %11586 = vmatprep.subr.bf16.mxu0 %v7283
  %11587 = vmatpush1.bf16.msra.mxu0 %v7282
  %11588 = vmatprep.subr.bf16.mxu0 %v7291
  %11589 = vmatpush1.bf16.msra.mxu0 %v7290
  %11590 = vmatprep.subr.bf16.mxu0 %v7299
  %11591 = vmatpush1.bf16.msra.mxu0 %v7298
  %11592 = vmatprep.subr.bf16.mxu0 %v7307
  %11593 = vmatpush1.bf16.msra.mxu0 %v7306
  %11594 = vmatprep.subr.bf16.mxu0 %v7315
  %11595 = vmatpush1.bf16.msra.mxu0 %v7314
  %11596 = vmatprep.subr.bf16.mxu0 %v7323
  %11597 = vmatpush1.bf16.msra.mxu0 %v7322
  %11598 = vmatprep.subr.bf16.mxu0 %v7331
  %11599 = vmatpush1.bf16.msra.mxu0 %v7330
  %11600 = vmatprep.mubr.bf16.mxu0 %v1725
  %11601 = vmatmul.mubr.bf16.gmra.mrb[0].mxu0 %v1724
  %v11602 = vpop.f32.mrb[0].mxu0
  %v11603 = vadd.f32 %v11562, %v11602
  %v11604 = vpop.f32.mrb[0].mxu0
  %v11605 = vadd.f32 %v11564, %v11604
  %v11606 = vpop.f32.mrb[0].mxu0
  %v11607 = vpop.f32.mrb[0].mxu0
  %11608 = vdwg.mxu0
  %11609 = vmatprep.subr.bf16.mxu0 %v7339
  %11610 = vmatpush1.bf16.msra.mxu0 %v7338
  %11611 = vmatprep.subr.bf16.mxu0 %v7347
  %11612 = vmatpush1.bf16.msra.mxu0 %v7346
  %11613 = vmatprep.subr.bf16.mxu0 %v7355
  %11614 = vmatpush1.bf16.msra.mxu0 %v7354
  %11615 = vmatprep.subr.bf16.mxu0 %v7363
  %11616 = vmatpush1.bf16.msra.mxu0 %v7362
  %11617 = vmatprep.subr.bf16.mxu0 %v7371
  %11618 = vmatpush1.bf16.msra.mxu0 %v7370
  %11619 = vmatprep.subr.bf16.mxu0 %v7379
  %11620 = vmatpush1.bf16.msra.mxu0 %v7378
  %11621 = vmatprep.subr.bf16.mxu0 %v7387
  %11622 = vmatpush1.bf16.msra.mxu0 %v7386
  %11623 = vmatprep.subr.bf16.mxu0 %v7395
  %11624 = vmatpush1.bf16.msra.mxu0 %v7394
  %11625 = vmatprep.subr.bf16.mxu0 %v7403
  %11626 = vmatpush1.bf16.msra.mxu0 %v7402
  %11627 = vmatprep.subr.bf16.mxu0 %v7411
  %11628 = vmatpush1.bf16.msra.mxu0 %v7410
  %11629 = vmatprep.subr.bf16.mxu0 %v7419
  %11630 = vmatpush1.bf16.msra.mxu0 %v7418
  %11631 = vmatprep.subr.bf16.mxu0 %v7427
  %11632 = vmatpush1.bf16.msra.mxu0 %v7426
  %11633 = vmatprep.subr.bf16.mxu0 %v7435
  %11634 = vmatpush1.bf16.msra.mxu0 %v7434
  %11635 = vmatprep.subr.bf16.mxu0 %v7443
  %11636 = vmatpush1.bf16.msra.mxu0 %v7442
  %11637 = vmatprep.subr.bf16.mxu0 %v7451
  %11638 = vmatpush1.bf16.msra.mxu0 %v7450
  %11639 = vmatprep.subr.bf16.mxu0 %v7459
  %11640 = vmatpush1.bf16.msra.mxu0 %v7458
  %11641 = vmatprep.mubr.bf16.mxu0 %v1727
  %11642 = vmatmul.mubr.bf16.gmra.mrb[0].mxu0 %v1726
  %v11643 = vpop.f32.mrb[0].mxu0
  %v11644 = vadd.f32 %v11603, %v11643
  %v11645 = vpop.f32.mrb[0].mxu0
  %v11646 = vadd.f32 %v11605, %v11645
  %v11647 = vpop.f32.mrb[0].mxu0
  %v11648 = vpop.f32.mrb[0].mxu0
  %11649 = vdwg.mxu0
  %11650 = vmatprep.subr.bf16.mxu0 %v7467
  %11651 = vmatpush1.bf16.msra.mxu0 %v7466
  %11652 = vmatprep.subr.bf16.mxu0 %v7475
  %11653 = vmatpush1.bf16.msra.mxu0 %v7474
  %11654 = vmatprep.subr.bf16.mxu0 %v7483
  %11655 = vmatpush1.bf16.msra.mxu0 %v7482
  %11656 = vmatprep.subr.bf16.mxu0 %v7491
  %11657 = vmatpush1.bf16.msra.mxu0 %v7490
  %11658 = vmatprep.subr.bf16.mxu0 %v7499
  %11659 = vmatpush1.bf16.msra.mxu0 %v7498
  %11660 = vmatprep.subr.bf16.mxu0 %v7507
  %11661 = vmatpush1.bf16.msra.mxu0 %v7506
  %11662 = vmatprep.subr.bf16.mxu0 %v7515
  %11663 = vmatpush1.bf16.msra.mxu0 %v7514
  %11664 = vmatprep.subr.bf16.mxu0 %v7523
  %11665 = vmatpush1.bf16.msra.mxu0 %v7522
  %11666 = vmatprep.subr.bf16.mxu0 %v7531
  %11667 = vmatpush1.bf16.msra.mxu0 %v7530
  %11668 = vmatprep.subr.bf16.mxu0 %v7539
  %11669 = vmatpush1.bf16.msra.mxu0 %v7538
  %11670 = vmatprep.subr.bf16.mxu0 %v7547
  %11671 = vmatpush1.bf16.msra.mxu0 %v7546
  %11672 = vmatprep.subr.bf16.mxu0 %v7555
  %11673 = vmatpush1.bf16.msra.mxu0 %v7554
  %11674 = vmatprep.subr.bf16.mxu0 %v7563
  %11675 = vmatpush1.bf16.msra.mxu0 %v7562
  %11676 = vmatprep.subr.bf16.mxu0 %v7571
  %11677 = vmatpush1.bf16.msra.mxu0 %v7570
  %11678 = vmatprep.subr.bf16.mxu0 %v7579
  %11679 = vmatpush1.bf16.msra.mxu0 %v7578
  %11680 = vmatprep.subr.bf16.mxu0 %v7587
  %11681 = vmatpush1.bf16.msra.mxu0 %v7586
  %11682 = vmatprep.mubr.bf16.mxu0 %v1729
  %11683 = vmatmul.mubr.bf16.gmra.mrb[0].mxu0 %v1728
  %v11684 = vpop.f32.mrb[0].mxu0
  %v11685 = vadd.f32 %v11644, %v11684
  %v11686 = vpop.f32.mrb[0].mxu0
  %v11687 = vadd.f32 %v11646, %v11686
  %v11688 = vpop.f32.mrb[0].mxu0
  %v11689 = vpop.f32.mrb[0].mxu0
  %11690 = vdwg.mxu0
  %11691 = vmatprep.subr.bf16.mxu0 %v7595
  %11692 = vmatpush1.bf16.msra.mxu0 %v7594
  %11693 = vmatprep.subr.bf16.mxu0 %v7603
  %11694 = vmatpush1.bf16.msra.mxu0 %v7602
  %11695 = vmatprep.subr.bf16.mxu0 %v7611
  %11696 = vmatpush1.bf16.msra.mxu0 %v7610
  %11697 = vmatprep.subr.bf16.mxu0 %v7619
  %11698 = vmatpush1.bf16.msra.mxu0 %v7618
  %11699 = vmatprep.subr.bf16.mxu0 %v7627
  %11700 = vmatpush1.bf16.msra.mxu0 %v7626
  %11701 = vmatprep.subr.bf16.mxu0 %v7635
  %11702 = vmatpush1.bf16.msra.mxu0 %v7634
  %11703 = vmatprep.subr.bf16.mxu0 %v7643
  %11704 = vmatpush1.bf16.msra.mxu0 %v7642
  %11705 = vmatprep.subr.bf16.mxu0 %v7651
  %11706 = vmatpush1.bf16.msra.mxu0 %v7650
  %11707 = vmatprep.subr.bf16.mxu0 %v7659
  %11708 = vmatpush1.bf16.msra.mxu0 %v7658
  %11709 = vmatprep.subr.bf16.mxu0 %v7667
  %11710 = vmatpush1.bf16.msra.mxu0 %v7666
  %11711 = vmatprep.subr.bf16.mxu0 %v7675
  %11712 = vmatpush1.bf16.msra.mxu0 %v7674
  %11713 = vmatprep.subr.bf16.mxu0 %v7683
  %11714 = vmatpush1.bf16.msra.mxu0 %v7682
  %11715 = vmatprep.subr.bf16.mxu0 %v7691
  %11716 = vmatpush1.bf16.msra.mxu0 %v7690
  %11717 = vmatprep.subr.bf16.mxu0 %v7699
  %11718 = vmatpush1.bf16.msra.mxu0 %v7698
  %11719 = vmatprep.subr.bf16.mxu0 %v7707
  %11720 = vmatpush1.bf16.msra.mxu0 %v7706
  %11721 = vmatprep.subr.bf16.mxu0 %v7715
  %11722 = vmatpush1.bf16.msra.mxu0 %v7714
  %11723 = vmatprep.mubr.bf16.mxu0 %v1731
  %11724 = vmatmul.mubr.bf16.gmra.mrb[0].mxu0 %v1730
  %v11725 = vpop.f32.mrb[0].mxu0
  %v11726 = vadd.f32 %v11685, %v11725
  %v11727 = vpop.f32.mrb[0].mxu0
  %v11728 = vadd.f32 %v11687, %v11727
  %v11729 = vpop.f32.mrb[0].mxu0
  %v11730 = vpop.f32.mrb[0].mxu0
  %11731 = vdwg.mxu0
  %11732 = vmatprep.subr.bf16.mxu0 %v7723
  %11733 = vmatpush1.bf16.msra.mxu0 %v7722
  %11734 = vmatprep.subr.bf16.mxu0 %v7731
  %11735 = vmatpush1.bf16.msra.mxu0 %v7730
  %11736 = vmatprep.subr.bf16.mxu0 %v7739
  %11737 = vmatpush1.bf16.msra.mxu0 %v7738
  %11738 = vmatprep.subr.bf16.mxu0 %v7747
  %11739 = vmatpush1.bf16.msra.mxu0 %v7746
  %11740 = vmatprep.subr.bf16.mxu0 %v7755
  %11741 = vmatpush1.bf16.msra.mxu0 %v7754
  %11742 = vmatprep.subr.bf16.mxu0 %v7763
  %11743 = vmatpush1.bf16.msra.mxu0 %v7762
  %11744 = vmatprep.subr.bf16.mxu0 %v7771
  %11745 = vmatpush1.bf16.msra.mxu0 %v7770
  %11746 = vmatprep.subr.bf16.mxu0 %v7779
  %11747 = vmatpush1.bf16.msra.mxu0 %v7778
  %11748 = vmatprep.subr.bf16.mxu0 %v7787
  %11749 = vmatpush1.bf16.msra.mxu0 %v7786
  %11750 = vmatprep.subr.bf16.mxu0 %v7795
  %11751 = vmatpush1.bf16.msra.mxu0 %v7794
  %11752 = vmatprep.subr.bf16.mxu0 %v7803
  %11753 = vmatpush1.bf16.msra.mxu0 %v7802
  %11754 = vmatprep.subr.bf16.mxu0 %v7811
  %11755 = vmatpush1.bf16.msra.mxu0 %v7810
  %11756 = vmatprep.subr.bf16.mxu0 %v7819
  %11757 = vmatpush1.bf16.msra.mxu0 %v7818
  %11758 = vmatprep.subr.bf16.mxu0 %v7827
  %11759 = vmatpush1.bf16.msra.mxu0 %v7826
  %11760 = vmatprep.subr.bf16.mxu0 %v7835
  %11761 = vmatpush1.bf16.msra.mxu0 %v7834
  %11762 = vmatprep.subr.bf16.mxu0 %v7843
  %11763 = vmatpush1.bf16.msra.mxu0 %v7842
  %11764 = vmatprep.mubr.bf16.mxu0 %v1733
  %11765 = vmatmul.mubr.bf16.gmra.mrb[0].mxu0 %v1732
  %v11766 = vpop.f32.mrb[0].mxu0
  %v11767 = vadd.f32 %v11726, %v11766
  %v11768 = vpop.f32.mrb[0].mxu0
  %v11769 = vadd.f32 %v11728, %v11768
  %v11770 = vpop.f32.mrb[0].mxu0
  %v11771 = vpop.f32.mrb[0].mxu0
  %11772 = vdwg.mxu0
  %11773 = vmatprep.subr.bf16.mxu0 %v7851
  %11774 = vmatpush1.bf16.msra.mxu0 %v7850
  %11775 = vmatprep.subr.bf16.mxu0 %v7859
  %11776 = vmatpush1.bf16.msra.mxu0 %v7858
  %11777 = vmatprep.subr.bf16.mxu0 %v7867
  %11778 = vmatpush1.bf16.msra.mxu0 %v7866
  %11779 = vmatprep.subr.bf16.mxu0 %v7875
  %11780 = vmatpush1.bf16.msra.mxu0 %v7874
  %11781 = vmatprep.subr.bf16.mxu0 %v7883
  %11782 = vmatpush1.bf16.msra.mxu0 %v7882
  %11783 = vmatprep.subr.bf16.mxu0 %v7891
  %11784 = vmatpush1.bf16.msra.mxu0 %v7890
  %11785 = vmatprep.subr.bf16.mxu0 %v7899
  %11786 = vmatpush1.bf16.msra.mxu0 %v7898
  %11787 = vmatprep.subr.bf16.mxu0 %v7907
  %11788 = vmatpush1.bf16.msra.mxu0 %v7906
  %11789 = vmatprep.subr.bf16.mxu0 %v7915
  %11790 = vmatpush1.bf16.msra.mxu0 %v7914
  %11791 = vmatprep.subr.bf16.mxu0 %v7923
  %11792 = vmatpush1.bf16.msra.mxu0 %v7922
  %11793 = vmatprep.subr.bf16.mxu0 %v7931
  %11794 = vmatpush1.bf16.msra.mxu0 %v7930
  %11795 = vmatprep.subr.bf16.mxu0 %v7939
  %11796 = vmatpush1.bf16.msra.mxu0 %v7938
  %11797 = vmatprep.subr.bf16.mxu0 %v7947
  %11798 = vmatpush1.bf16.msra.mxu0 %v7946
  %11799 = vmatprep.subr.bf16.mxu0 %v7955
  %11800 = vmatpush1.bf16.msra.mxu0 %v7954
  %11801 = vmatprep.subr.bf16.mxu0 %v7963
  %11802 = vmatpush1.bf16.msra.mxu0 %v7962
  %11803 = vmatprep.subr.bf16.mxu0 %v7971
  %11804 = vmatpush1.bf16.msra.mxu0 %v7970
  %11805 = vmatprep.mubr.bf16.mxu0 %v1735
  %11806 = vmatmul.mubr.bf16.gmra.mrb[0].mxu0 %v1734
  %v11807 = vpop.f32.mrb[0].mxu0
  %v11808 = vadd.f32 %v11767, %v11807
  %v11809 = vpop.f32.mrb[0].mxu0
  %v11810 = vadd.f32 %v11769, %v11809
  %v11811 = vpop.f32.mrb[0].mxu0
  %v11812 = vpop.f32.mrb[0].mxu0
  %11813 = vdwg.mxu0
  %11814 = vmatprep.subr.bf16.mxu0 %v7979
  %11815 = vmatpush1.bf16.msra.mxu0 %v7978
  %11816 = vmatprep.subr.bf16.mxu0 %v7987
  %11817 = vmatpush1.bf16.msra.mxu0 %v7986
  %11818 = vmatprep.subr.bf16.mxu0 %v7995
  %11819 = vmatpush1.bf16.msra.mxu0 %v7994
  %11820 = vmatprep.subr.bf16.mxu0 %v8003
  %11821 = vmatpush1.bf16.msra.mxu0 %v8002
  %11822 = vmatprep.subr.bf16.mxu0 %v8011
  %11823 = vmatpush1.bf16.msra.mxu0 %v8010
  %11824 = vmatprep.subr.bf16.mxu0 %v8019
  %11825 = vmatpush1.bf16.msra.mxu0 %v8018
  %11826 = vmatprep.subr.bf16.mxu0 %v8027
  %11827 = vmatpush1.bf16.msra.mxu0 %v8026
  %11828 = vmatprep.subr.bf16.mxu0 %v8035
  %11829 = vmatpush1.bf16.msra.mxu0 %v8034
  %11830 = vmatprep.subr.bf16.mxu0 %v8043
  %11831 = vmatpush1.bf16.msra.mxu0 %v8042
  %11832 = vmatprep.subr.bf16.mxu0 %v8051
  %11833 = vmatpush1.bf16.msra.mxu0 %v8050
  %11834 = vmatprep.subr.bf16.mxu0 %v8059
  %11835 = vmatpush1.bf16.msra.mxu0 %v8058
  %11836 = vmatprep.subr.bf16.mxu0 %v8067
  %11837 = vmatpush1.bf16.msra.mxu0 %v8066
  %11838 = vmatprep.subr.bf16.mxu0 %v8075
  %11839 = vmatpush1.bf16.msra.mxu0 %v8074
  %11840 = vmatprep.subr.bf16.mxu0 %v8083
  %11841 = vmatpush1.bf16.msra.mxu0 %v8082
  %11842 = vmatprep.subr.bf16.mxu0 %v8091
  %11843 = vmatpush1.bf16.msra.mxu0 %v8090
  %11844 = vmatprep.subr.bf16.mxu0 %v8099
  %11845 = vmatpush1.bf16.msra.mxu0 %v8098
  %11846 = vmatprep.mubr.bf16.mxu0 %v1737
  %11847 = vmatmul.mubr.bf16.gmra.mrb[0].mxu0 %v1736
  %v11848 = vpop.f32.mrb[0].mxu0
  %v11849 = vadd.f32 %v11808, %v11848
  %v11850 = vpop.f32.mrb[0].mxu0
  %v11851 = vadd.f32 %v11810, %v11850
  %v11852 = vpop.f32.mrb[0].mxu0
  %v11853 = vpop.f32.mrb[0].mxu0
  %11854 = vdwg.mxu0
  %11855 = vmatprep.subr.bf16.mxu0 %v8107
  %11856 = vmatpush1.bf16.msra.mxu0 %v8106
  %11857 = vmatprep.subr.bf16.mxu0 %v8115
  %11858 = vmatpush1.bf16.msra.mxu0 %v8114
  %11859 = vmatprep.subr.bf16.mxu0 %v8123
  %11860 = vmatpush1.bf16.msra.mxu0 %v8122
  %11861 = vmatprep.subr.bf16.mxu0 %v8131
  %11862 = vmatpush1.bf16.msra.mxu0 %v8130
  %11863 = vmatprep.subr.bf16.mxu0 %v8139
  %11864 = vmatpush1.bf16.msra.mxu0 %v8138
  %11865 = vmatprep.subr.bf16.mxu0 %v8147
  %11866 = vmatpush1.bf16.msra.mxu0 %v8146
  %11867 = vmatprep.subr.bf16.mxu0 %v8155
  %11868 = vmatpush1.bf16.msra.mxu0 %v8154
  %11869 = vmatprep.subr.bf16.mxu0 %v8163
  %11870 = vmatpush1.bf16.msra.mxu0 %v8162
  %11871 = vmatprep.subr.bf16.mxu0 0
  %11872 = vmatpush1.bf16.msra.mxu0 0
  %11873 = vmatprep.subr.bf16.mxu0 0
  %11874 = vmatpush1.bf16.msra.mxu0 0
  %11875 = vmatprep.subr.bf16.mxu0 0
  %11876 = vmatpush1.bf16.msra.mxu0 0
  %11877 = vmatprep.subr.bf16.mxu0 0
  %11878 = vmatpush1.bf16.msra.mxu0 0
  %11879 = vmatprep.subr.bf16.mxu0 0
  %11880 = vmatpush1.bf16.msra.mxu0 0
  %11881 = vmatprep.subr.bf16.mxu0 0
  %11882 = vmatpush1.bf16.msra.mxu0 0
  %11883 = vmatprep.subr.bf16.mxu0 0
  %11884 = vmatpush1.bf16.msra.mxu0 0
  %11885 = vmatprep.subr.bf16.mxu0 0
  %11886 = vmatpush1.bf16.msra.mxu0 0
  %11887 = vmatprep.mubr.bf16.mxu0 0
  %11888 = vmatmul.mubr.bf16.gmra.mrb[0].mxu0 %v1738
  %v11889 = vpop.f32.mrb[0].mxu0
  %v11890 = vadd.f32 %v11849, %v11889
  %v11891 = vpop.f32.mrb[0].mxu0
  %v11892 = vadd.f32 %v11851, %v11891
  %v11893 = vpop.f32.mrb[0].mxu0
  %v11894 = vpop.f32.mrb[0].mxu0
  %11895 = vdwg.mxu0
  %v11896 = vmax.f32 %v10291, 0.0
  %v11897 = vmax.f32 %v10293, 0.0
  %v11898 = vmax.f32 %v10824, 0.0
  %v11899 = vmax.f32 %v10826, 0.0
  %v11900 = vmax.f32 %v11357, 0.0
  %v11901 = vmax.f32 %v11359, 0.0
  %v11902 = vmax.f32 %v11890, 0.0
  %v11903 = vmax.f32 %v11892, 0.0
  %v11904 = vpack.c.bf16 %v11896, %v11896
  %v11905 = vpack.c.bf16 %v11897, %v11897
  %v11906 = vpack.c.bf16 %v11898, %v11898
  %v11907 = vpack.c.bf16 %v11899, %v11899
  %v11908 = vpack.c.bf16 %v11900, %v11900
  %v11909 = vpack.c.bf16 %v11901, %v11901
  %v11910 = vpack.c.bf16 %v11902, %v11902
  %v11911 = vpack.c.bf16 %v11903, %v11903
  %v11912 = vld [vmem:[%s3] sm:$0xf]
  %v11913 = vld [vmem:[%s3 + $0x4] sm:$0xf]
  %v11914 = vld [vmem:[%s3 + $0x8] sm:$0xf]
  %v11915 = vld [vmem:[%s3 + $0xc] sm:$0xf]
  %v11916 = vld [vmem:[%s3 + $0x10] sm:$0xf]
  %v11917 = vld [vmem:[%s3 + $0x14] sm:$0xf]
  %v11918 = vld [vmem:[%s3 + $0x18] sm:$0xf]
  %v11919 = vld [vmem:[%s3 + $0x1c] sm:$0xf]
  %v11920 = vld [vmem:[%s3 + $0x20] sm:$0xf]
  %v11921 = vld [vmem:[%s3 + $0x24] sm:$0xf]
  %v11922 = vld [vmem:[%s3 + $0x28] sm:$0xf]
  %v11923 = vld [vmem:[%s3 + $0x2c] sm:$0xf]
  %v11924 = vld [vmem:[%s3 + $0x30] sm:$0xf]
  %v11925 = vld [vmem:[%s3 + $0x34] sm:$0xf]
  %v11926 = vld [vmem:[%s3 + $0x38] sm:$0xf]
  %v11927 = vld [vmem:[%s3 + $0x3c] sm:$0xf]
  %v11928 = vld [vmem:[%s3 + $0x40] sm:$0xf]
  %v11929 = vld [vmem:[%s3 + $0x44] sm:$0xf]
  %v11930 = vld [vmem:[%s3 + $0x48] sm:$0xf]
  %v11931 = vld [vmem:[%s3 + $0x4c] sm:$0xf]
  %v11932 = vld [vmem:[%s3 + $0x50] sm:$0xf]
  %v11933 = vld [vmem:[%s3 + $0x54] sm:$0xf]
  %v11934 = vld [vmem:[%s3 + $0x58] sm:$0xf]
  %v11935 = vld [vmem:[%s3 + $0x5c] sm:$0xf]
  %v11936 = vld [vmem:[%s3 + $0x60] sm:$0xf]
  %v11937 = vld [vmem:[%s3 + $0x64] sm:$0xf]
  %v11938 = vld [vmem:[%s3 + $0x68] sm:$0xf]
  %v11939 = vld [vmem:[%s3 + $0x6c] sm:$0xf]
  %v11940 = vld [vmem:[%s3 + $0x70] sm:$0xf]
  %v11941 = vld [vmem:[%s3 + $0x74] sm:$0xf]
  %v11942 = vld [vmem:[%s3 + $0x78] sm:$0xf]
  %v11943 = vld [vmem:[%s3 + $0x7c] sm:$0xf]
  %v11944 = vld [vmem:[%s3 + $0x80] sm:$0xf]
  %v11945 = vld [vmem:[%s3 + $0x84] sm:$0xf]
  %v11946 = vld [vmem:[%s3 + $0x88] sm:$0xf]
  %v11947 = vld [vmem:[%s3 + $0x8c] sm:$0xf]
  %v11948 = vld [vmem:[%s3 + $0x90] sm:$0xf]
  %v11949 = vld [vmem:[%s3 + $0x94] sm:$0xf]
  %v11950 = vld [vmem:[%s3 + $0x98] sm:$0xf]
  %v11951 = vld [vmem:[%s3 + $0x9c] sm:$0xf]
  %v11952 = vld [vmem:[%s3 + $0xa0] sm:$0xf]
  %v11953 = vld [vmem:[%s3 + $0xa4] sm:$0xf]
  %v11954 = vld [vmem:[%s3 + $0xa8] sm:$0xf]
  %v11955 = vld [vmem:[%s3 + $0xac] sm:$0xf]
  %v11956 = vld [vmem:[%s3 + $0xb0] sm:$0xf]
  %v11957 = vld [vmem:[%s3 + $0xb4] sm:$0xf]
  %v11958 = vld [vmem:[%s3 + $0xb8] sm:$0xf]
  %v11959 = vld [vmem:[%s3 + $0xbc] sm:$0xf]
  %v11960 = vld [vmem:[%s3 + $0xc0] sm:$0xf]
  %v11961 = vld [vmem:[%s3 + $0xc4] sm:$0xf]
  %v11962 = vld [vmem:[%s3 + $0xc8] sm:$0xf]
  %v11963 = vld [vmem:[%s3 + $0xcc] sm:$0xf]
  %v11964 = vld [vmem:[%s3 + $0xd0] sm:$0xf]
  %v11965 = vld [vmem:[%s3 + $0xd4] sm:$0xf]
  %v11966 = vld [vmem:[%s3 + $0xd8] sm:$0xf]
  %v11967 = vld [vmem:[%s3 + $0xdc] sm:$0xf]
  %v11968 = vld [vmem:[%s3 + $0xe0] sm:$0xf]
  %v11969 = vld [vmem:[%s3 + $0xe4] sm:$0xf]
  %v11970 = vld [vmem:[%s3 + $0xe8] sm:$0xf]
  %v11971 = vld [vmem:[%s3 + $0xec] sm:$0xf]
  %v11972 = vld [vmem:[%s3 + $0xf0] sm:$0xf]
  %v11973 = vld [vmem:[%s3 + $0xf4] sm:$0xf]
  %v11974 = vld [vmem:[%s3 + $0xf8] sm:$0xf]
  %v11975 = vld [vmem:[%s3 + $0xfc] sm:$0xf]
  %v11976 = vld [vmem:[%s3 + $0x100] sm:$0xf]
  %v11977 = vld [vmem:[%s3 + $0x104] sm:$0xf]
  %v11978 = vld [vmem:[%s3 + $0x108] sm:$0xf]
  %v11979 = vld [vmem:[%s3 + $0x10c] sm:$0xf]
  %v11980 = vld [vmem:[%s3 + $0x110] sm:$0xf]
  %v11981 = vld [vmem:[%s3 + $0x114] sm:$0xf]
  %v11982 = vld [vmem:[%s3 + $0x118] sm:$0xf]
  %v11983 = vld [vmem:[%s3 + $0x11c] sm:$0xf]
  %v11984 = vld [vmem:[%s3 + $0x120] sm:$0xf]
  %v11985 = vld [vmem:[%s3 + $0x124] sm:$0xf]
  %v11986 = vld [vmem:[%s3 + $0x128] sm:$0xf]
  %v11987 = vld [vmem:[%s3 + $0x12c] sm:$0xf]
  %v11988 = vld [vmem:[%s3 + $0x130] sm:$0xf]
  %v11989 = vld [vmem:[%s3 + $0x134] sm:$0xf]
  %v11990 = vld [vmem:[%s3 + $0x138] sm:$0xf]
  %v11991 = vld [vmem:[%s3 + $0x13c] sm:$0xf]
  %v11992 = vld [vmem:[%s3 + $0x140] sm:$0xf]
  %v11993 = vld [vmem:[%s3 + $0x144] sm:$0xf]
  %v11994 = vld [vmem:[%s3 + $0x148] sm:$0xf]
  %v11995 = vld [vmem:[%s3 + $0x14c] sm:$0xf]
  %v11996 = vld [vmem:[%s3 + $0x150] sm:$0xf]
  %v11997 = vld [vmem:[%s3 + $0x154] sm:$0xf]
  %v11998 = vld [vmem:[%s3 + $0x158] sm:$0xf]
  %v11999 = vld [vmem:[%s3 + $0x15c] sm:$0xf]
  %v12000 = vld [vmem:[%s3 + $0x160] sm:$0xf]
  %v12001 = vld [vmem:[%s3 + $0x164] sm:$0xf]
  %v12002 = vld [vmem:[%s3 + $0x168] sm:$0xf]
  %v12003 = vld [vmem:[%s3 + $0x16c] sm:$0xf]
  %v12004 = vld [vmem:[%s3 + $0x170] sm:$0xf]
  %v12005 = vld [vmem:[%s3 + $0x174] sm:$0xf]
  %v12006 = vld [vmem:[%s3 + $0x178] sm:$0xf]
  %v12007 = vld [vmem:[%s3 + $0x17c] sm:$0xf]
  %v12008 = vld [vmem:[%s3 + $0x180] sm:$0xf]
  %v12009 = vld [vmem:[%s3 + $0x184] sm:$0xf]
  %v12010 = vld [vmem:[%s3 + $0x188] sm:$0xf]
  %v12011 = vld [vmem:[%s3 + $0x18c] sm:$0xf]
  %v12012 = vld [vmem:[%s3 + $0x190] sm:$0xf]
  %v12013 = vld [vmem:[%s3 + $0x194] sm:$0xf]
  %v12014 = vld [vmem:[%s3 + $0x198] sm:$0xf]
  %v12015 = vld [vmem:[%s3 + $0x19c] sm:$0xf]
  %v12016 = vld [vmem:[%s3 + $0x1a0] sm:$0xf]
  %v12017 = vld [vmem:[%s3 + $0x1a4] sm:$0xf]
  %v12018 = vld [vmem:[%s3 + $0x1a8] sm:$0xf]
  %v12019 = vld [vmem:[%s3 + $0x1ac] sm:$0xf]
  %v12020 = vld [vmem:[%s3 + $0x1b0] sm:$0xf]
  %v12021 = vld [vmem:[%s3 + $0x1b4] sm:$0xf]
  %v12022 = vld [vmem:[%s3 + $0x1b8] sm:$0xf]
  %v12023 = vld [vmem:[%s3 + $0x1bc] sm:$0xf]
  %v12024 = vld [vmem:[%s3 + $0x1c0] sm:$0xf]
  %v12025 = vld [vmem:[%s3 + $0x1c4] sm:$0xf]
  %v12026 = vld [vmem:[%s3 + $0x1c8] sm:$0xf]
  %v12027 = vld [vmem:[%s3 + $0x1cc] sm:$0xf]
  %v12028 = vld [vmem:[%s3 + $0x1d0] sm:$0xf]
  %v12029 = vld [vmem:[%s3 + $0x1d4] sm:$0xf]
  %v12030 = vld [vmem:[%s3 + $0x1d8] sm:$0xf]
  %v12031 = vld [vmem:[%s3 + $0x1dc] sm:$0xf]
  %v12032 = vld [vmem:[%s3 + $0x1e0] sm:$0xf]
  %v12033 = vld [vmem:[%s3 + $0x1e4] sm:$0xf]
  %v12034 = vld [vmem:[%s3 + $0x1e8] sm:$0xf]
  %v12035 = vld [vmem:[%s3 + $0x1ec] sm:$0xf]
  %v12036 = vld [vmem:[%s3 + $0x1f0] sm:$0xf]
  %v12037 = vld [vmem:[%s3 + $0x1f4] sm:$0xf]
  %v12038 = vld [vmem:[%s3 + $0x1f8] sm:$0xf]
  %v12039 = vld [vmem:[%s3 + $0x1fc] sm:$0xf]
  %v12040 = vld [vmem:[%s4] sm:$0x1]
  %v12042 = vlaneseq
  %v12043 = vshrl.u32 %v12042, 7
  %v12044 = vsub.s32 0, %v12043
  %v12045 = vrot.slane %v12040, %v12044
  %v12175 = vunpack.c.l.b16 %v11912
  %v12176 = vunpack.c.l.b16 %v11913
  %v12177 = vunpack.c.l.b16 %v11914
  %v12178 = vunpack.c.l.b16 %v11915
  %v12179 = vunpack.c.l.b16 %v11916
  %v12180 = vunpack.c.l.b16 %v11917
  %v12181 = vunpack.c.l.b16 %v11918
  %v12182 = vunpack.c.l.b16 %v11919
  %v12183 = vunpack.c.l.b16 %v11920
  %v12184 = vunpack.c.l.b16 %v11921
  %v12185 = vunpack.c.l.b16 %v11922
  %v12186 = vunpack.c.l.b16 %v11923
  %v12187 = vunpack.c.l.b16 %v11924
  %v12188 = vunpack.c.l.b16 %v11925
  %v12189 = vunpack.c.l.b16 %v11926
  %v12190 = vunpack.c.l.b16 %v11927
  %v12191 = vunpack.c.l.b16 %v11928
  %v12192 = vunpack.c.l.b16 %v11929
  %v12193 = vunpack.c.l.b16 %v11930
  %v12194 = vunpack.c.l.b16 %v11931
  %v12195 = vunpack.c.l.b16 %v11932
  %v12196 = vunpack.c.l.b16 %v11933
  %v12197 = vunpack.c.l.b16 %v11934
  %v12198 = vunpack.c.l.b16 %v11935
  %v12199 = vunpack.c.l.b16 %v11936
  %v12200 = vunpack.c.l.b16 %v11937
  %v12201 = vunpack.c.l.b16 %v11938
  %v12202 = vunpack.c.l.b16 %v11939
  %v12203 = vunpack.c.l.b16 %v11940
  %v12204 = vunpack.c.l.b16 %v11941
  %v12205 = vunpack.c.l.b16 %v11942
  %v12206 = vunpack.c.l.b16 %v11943
  %v12207 = vunpack.c.l.b16 %v11944
  %v12208 = vunpack.c.l.b16 %v11945
  %v12209 = vunpack.c.l.b16 %v11946
  %v12210 = vunpack.c.l.b16 %v11947
  %v12211 = vunpack.c.l.b16 %v11948
  %v12212 = vunpack.c.l.b16 %v11949
  %v12213 = vunpack.c.l.b16 %v11950
  %v12214 = vunpack.c.l.b16 %v11951
  %v12215 = vunpack.c.l.b16 %v11952
  %v12216 = vunpack.c.l.b16 %v11953
  %v12217 = vunpack.c.l.b16 %v11954
  %v12218 = vunpack.c.l.b16 %v11955
  %v12219 = vunpack.c.l.b16 %v11956
  %v12220 = vunpack.c.l.b16 %v11957
  %v12221 = vunpack.c.l.b16 %v11958
  %v12222 = vunpack.c.l.b16 %v11959
  %v12223 = vunpack.c.l.b16 %v11960
  %v12224 = vunpack.c.l.b16 %v11961
  %v12225 = vunpack.c.l.b16 %v11962
  %v12226 = vunpack.c.l.b16 %v11963
  %v12227 = vunpack.c.l.b16 %v11964
  %v12228 = vunpack.c.l.b16 %v11965
  %v12229 = vunpack.c.l.b16 %v11966
  %v12230 = vunpack.c.l.b16 %v11967
  %v12231 = vunpack.c.l.b16 %v11968
  %v12232 = vunpack.c.l.b16 %v11969
  %v12233 = vunpack.c.l.b16 %v11970
  %v12234 = vunpack.c.l.b16 %v11971
  %v12235 = vunpack.c.l.b16 %v11972
  %v12236 = vunpack.c.l.b16 %v11973
  %v12237 = vunpack.c.l.b16 %v11974
  %v12238 = vunpack.c.l.b16 %v11975
  %v12239 = vunpack.c.l.b16 %v11976
  %v12240 = vunpack.c.l.b16 %v11977
  %v12241 = vunpack.c.l.b16 %v11978
  %v12242 = vunpack.c.l.b16 %v11979
  %v12243 = vunpack.c.l.b16 %v11980
  %v12244 = vunpack.c.l.b16 %v11981
  %v12245 = vunpack.c.l.b16 %v11982
  %v12246 = vunpack.c.l.b16 %v11983
  %v12247 = vunpack.c.l.b16 %v11984
  %v12248 = vunpack.c.l.b16 %v11985
  %v12249 = vunpack.c.l.b16 %v11986
  %v12250 = vunpack.c.l.b16 %v11987
  %v12251 = vunpack.c.l.b16 %v11988
  %v12252 = vunpack.c.l.b16 %v11989
  %v12253 = vunpack.c.l.b16 %v11990
  %v12254 = vunpack.c.l.b16 %v11991
  %v12255 = vunpack.c.l.b16 %v11992
  %v12256 = vunpack.c.l.b16 %v11993
  %v12257 = vunpack.c.l.b16 %v11994
  %v12258 = vunpack.c.l.b16 %v11995
  %v12259 = vunpack.c.l.b16 %v11996
  %v12260 = vunpack.c.l.b16 %v11997
  %v12261 = vunpack.c.l.b16 %v11998
  %v12262 = vunpack.c.l.b16 %v11999
  %v12263 = vunpack.c.l.b16 %v12000
  %v12264 = vunpack.c.l.b16 %v12001
  %v12265 = vunpack.c.l.b16 %v12002
  %v12266 = vunpack.c.l.b16 %v12003
  %v12267 = vunpack.c.l.b16 %v12004
  %v12268 = vunpack.c.l.b16 %v12005
  %v12269 = vunpack.c.l.b16 %v12006
  %v12270 = vunpack.c.l.b16 %v12007
  %v12271 = vunpack.c.l.b16 %v12008
  %v12272 = vunpack.c.l.b16 %v12009
  %v12273 = vunpack.c.l.b16 %v12010
  %v12274 = vunpack.c.l.b16 %v12011
  %v12275 = vunpack.c.l.b16 %v12012
  %v12276 = vunpack.c.l.b16 %v12013
  %v12277 = vunpack.c.l.b16 %v12014
  %v12278 = vunpack.c.l.b16 %v12015
  %v12279 = vunpack.c.l.b16 %v12016
  %v12280 = vunpack.c.l.b16 %v12017
  %v12281 = vunpack.c.l.b16 %v12018
  %v12282 = vunpack.c.l.b16 %v12019
  %v12283 = vunpack.c.l.b16 %v12020
  %v12284 = vunpack.c.l.b16 %v12021
  %v12285 = vunpack.c.l.b16 %v12022
  %v12286 = vunpack.c.l.b16 %v12023
  %v12287 = vunpack.c.l.b16 %v12024
  %v12288 = vunpack.c.l.b16 %v12025
  %v12289 = vunpack.c.l.b16 %v12026
  %v12290 = vunpack.c.l.b16 %v12027
  %v12291 = vunpack.c.l.b16 %v12028
  %v12292 = vunpack.c.l.b16 %v12029
  %v12293 = vunpack.c.l.b16 %v12030
  %v12294 = vunpack.c.l.b16 %v12031
  %v12295 = vunpack.c.l.b16 %v12032
  %v12296 = vunpack.c.l.b16 %v12033
  %v12297 = vunpack.c.l.b16 %v12034
  %v12298 = vunpack.c.l.b16 %v12035
  %v12299 = vunpack.c.l.b16 %v12036
  %v12300 = vunpack.c.l.b16 %v12037
  %v12301 = vunpack.c.l.b16 %v12038
  %v12302 = vunpack.c.l.b16 %v12039
  %v12303 = vpack.c.b16 %v12176, %v12175
  %v12304 = vpack.c.b16 %v12178, %v12177
  %v12305 = vpack.c.b16 %v12180, %v12179
  %v12306 = vpack.c.b16 %v12182, %v12181
  %v12307 = vpack.c.b16 %v12184, %v12183
  %v12308 = vpack.c.b16 %v12186, %v12185
  %v12309 = vpack.c.b16 %v12188, %v12187
  %v12310 = vpack.c.b16 %v12190, %v12189
  %v12311 = vpack.c.b16 %v12192, %v12191
  %v12312 = vpack.c.b16 %v12194, %v12193
  %v12313 = vpack.c.b16 %v12196, %v12195
  %v12314 = vpack.c.b16 %v12198, %v12197
  %v12315 = vpack.c.b16 %v12200, %v12199
  %v12316 = vpack.c.b16 %v12202, %v12201
  %v12317 = vpack.c.b16 %v12204, %v12203
  %v12318 = vpack.c.b16 %v12206, %v12205
  %v12319 = vpack.c.b16 %v12208, %v12207
  %v12320 = vpack.c.b16 %v12210, %v12209
  %v12321 = vpack.c.b16 %v12212, %v12211
  %v12322 = vpack.c.b16 %v12214, %v12213
  %v12323 = vpack.c.b16 %v12216, %v12215
  %v12324 = vpack.c.b16 %v12218, %v12217
  %v12325 = vpack.c.b16 %v12220, %v12219
  %v12326 = vpack.c.b16 %v12222, %v12221
  %v12327 = vpack.c.b16 %v12224, %v12223
  %v12328 = vpack.c.b16 %v12226, %v12225
  %v12329 = vpack.c.b16 %v12228, %v12227
  %v12330 = vpack.c.b16 %v12230, %v12229
  %v12331 = vpack.c.b16 %v12232, %v12231
  %v12332 = vpack.c.b16 %v12234, %v12233
  %v12333 = vpack.c.b16 %v12236, %v12235
  %v12334 = vpack.c.b16 %v12238, %v12237
  %v12335 = vpack.c.b16 %v12240, %v12239
  %v12336 = vpack.c.b16 %v12242, %v12241
  %v12337 = vpack.c.b16 %v12244, %v12243
  %v12338 = vpack.c.b16 %v12246, %v12245
  %v12339 = vpack.c.b16 %v12248, %v12247
  %v12340 = vpack.c.b16 %v12250, %v12249
  %v12341 = vpack.c.b16 %v12252, %v12251
  %v12342 = vpack.c.b16 %v12254, %v12253
  %v12343 = vpack.c.b16 %v12256, %v12255
  %v12344 = vpack.c.b16 %v12258, %v12257
  %v12345 = vpack.c.b16 %v12260, %v12259
  %v12346 = vpack.c.b16 %v12262, %v12261
  %v12347 = vpack.c.b16 %v12264, %v12263
  %v12348 = vpack.c.b16 %v12266, %v12265
  %v12349 = vpack.c.b16 %v12268, %v12267
  %v12350 = vpack.c.b16 %v12270, %v12269
  %v12351 = vpack.c.b16 %v12272, %v12271
  %v12352 = vpack.c.b16 %v12274, %v12273
  %v12353 = vpack.c.b16 %v12276, %v12275
  %v12354 = vpack.c.b16 %v12278, %v12277
  %v12355 = vpack.c.b16 %v12280, %v12279
  %v12356 = vpack.c.b16 %v12282, %v12281
  %v12357 = vpack.c.b16 %v12284, %v12283
  %v12358 = vpack.c.b16 %v12286, %v12285
  %v12359 = vpack.c.b16 %v12288, %v12287
  %v12360 = vpack.c.b16 %v12290, %v12289
  %v12361 = vpack.c.b16 %v12292, %v12291
  %v12362 = vpack.c.b16 %v12294, %v12293
  %v12363 = vpack.c.b16 %v12296, %v12295
  %v12364 = vpack.c.b16 %v12298, %v12297
  %v12365 = vpack.c.b16 %v12300, %v12299
  %v12366 = vpack.c.b16 %v12302, %v12301
  %12431 = vmatprep.subr.bf16.mxu0 0
  %12432 = vmatpush1.bf16.msra.mxu0 %v12303
  %12433 = vmatprep.subr.bf16.mxu0 0
  %12434 = vmatpush1.bf16.msra.mxu0 %v12304
  %12435 = vmatprep.subr.bf16.mxu0 0
  %12436 = vmatpush1.bf16.msra.mxu0 %v12305
  %12437 = vmatprep.subr.bf16.mxu0 0
  %12438 = vmatpush1.bf16.msra.mxu0 %v12306
  %12439 = vmatprep.subr.bf16.mxu0 0
  %12440 = vmatpush1.bf16.msra.mxu0 %v12307
  %12441 = vmatprep.subr.bf16.mxu0 0
  %12442 = vmatpush1.bf16.msra.mxu0 %v12308
  %12443 = vmatprep.subr.bf16.mxu0 0
  %12444 = vmatpush1.bf16.msra.mxu0 %v12309
  %12445 = vmatprep.subr.bf16.mxu0 0
  %12446 = vmatpush1.bf16.msra.mxu0 %v12310
  %12447 = vmatprep.subr.bf16.mxu0 0
  %12448 = vmatpush1.bf16.msra.mxu0 %v12311
  %12449 = vmatprep.subr.bf16.mxu0 0
  %12450 = vmatpush1.bf16.msra.mxu0 %v12312
  %12451 = vmatprep.subr.bf16.mxu0 0
  %12452 = vmatpush1.bf16.msra.mxu0 %v12313
  %12453 = vmatprep.subr.bf16.mxu0 0
  %12454 = vmatpush1.bf16.msra.mxu0 %v12314
  %12455 = vmatprep.subr.bf16.mxu0 0
  %12456 = vmatpush1.bf16.msra.mxu0 %v12315
  %12457 = vmatprep.subr.bf16.mxu0 0
  %12458 = vmatpush1.bf16.msra.mxu0 %v12316
  %12459 = vmatprep.subr.bf16.mxu0 0
  %12460 = vmatpush1.bf16.msra.mxu0 %v12317
  %12461 = vmatprep.subr.bf16.mxu0 0
  %12462 = vmatpush1.bf16.msra.mxu0 %v12318
  %12463 = vmatprep.mubr.bf16.mxu0 %v11905
  %12464 = vmatmul.mubr.bf16.gmra.mrb[0].mxu0 %v11904
  %v12465 = vpop.f32.mrb[0].mxu0
  %v12466 = vadd.f32 %v12045, %v12465
  %v12467 = vpop.f32.mrb[0].mxu0
  %v12468 = vpop.f32.mrb[0].mxu0
  %v12469 = vpop.f32.mrb[0].mxu0
  %12470 = vdwg.mxu0
  %12471 = vmatprep.subr.bf16.mxu0 0
  %12472 = vmatpush1.bf16.msra.mxu0 %v12319
  %12473 = vmatprep.subr.bf16.mxu0 0
  %12474 = vmatpush1.bf16.msra.mxu0 %v12320
  %12475 = vmatprep.subr.bf16.mxu0 0
  %12476 = vmatpush1.bf16.msra.mxu0 %v12321
  %12477 = vmatprep.subr.bf16.mxu0 0
  %12478 = vmatpush1.bf16.msra.mxu0 %v12322
  %12479 = vmatprep.subr.bf16.mxu0 0
  %12480 = vmatpush1.bf16.msra.mxu0 %v12323
  %12481 = vmatprep.subr.bf16.mxu0 0
  %12482 = vmatpush1.bf16.msra.mxu0 %v12324
  %12483 = vmatprep.subr.bf16.mxu0 0
  %12484 = vmatpush1.bf16.msra.mxu0 %v12325
  %12485 = vmatprep.subr.bf16.mxu0 0
  %12486 = vmatpush1.bf16.msra.mxu0 %v12326
  %12487 = vmatprep.subr.bf16.mxu0 0
  %12488 = vmatpush1.bf16.msra.mxu0 %v12327
  %12489 = vmatprep.subr.bf16.mxu0 0
  %12490 = vmatpush1.bf16.msra.mxu0 %v12328
  %12491 = vmatprep.subr.bf16.mxu0 0
  %12492 = vmatpush1.bf16.msra.mxu0 %v12329
  %12493 = vmatprep.subr.bf16.mxu0 0
  %12494 = vmatpush1.bf16.msra.mxu0 %v12330
  %12495 = vmatprep.subr.bf16.mxu0 0
  %12496 = vmatpush1.bf16.msra.mxu0 %v12331
  %12497 = vmatprep.subr.bf16.mxu0 0
  %12498 = vmatpush1.bf16.msra.mxu0 %v12332
  %12499 = vmatprep.subr.bf16.mxu0 0
  %12500 = vmatpush1.bf16.msra.mxu0 %v12333
  %12501 = vmatprep.subr.bf16.mxu0 0
  %12502 = vmatpush1.bf16.msra.mxu0 %v12334
  %12503 = vmatprep.mubr.bf16.mxu0 %v11907
  %12504 = vmatmul.mubr.bf16.gmra.mrb[0].mxu0 %v11906
  %v12505 = vpop.f32.mrb[0].mxu0
  %v12506 = vadd.f32 %v12466, %v12505
  %v12507 = vpop.f32.mrb[0].mxu0
  %v12508 = vpop.f32.mrb[0].mxu0
  %v12509 = vpop.f32.mrb[0].mxu0
  %12510 = vdwg.mxu0
  %12511 = vmatprep.subr.bf16.mxu0 0
  %12512 = vmatpush1.bf16.msra.mxu0 %v12335
  %12513 = vmatprep.subr.bf16.mxu0 0
  %12514 = vmatpush1.bf16.msra.mxu0 %v12336
  %12515 = vmatprep.subr.bf16.mxu0 0
  %12516 = vmatpush1.bf16.msra.mxu0 %v12337
  %12517 = vmatprep.subr.bf16.mxu0 0
  %12518 = vmatpush1.bf16.msra.mxu0 %v12338
  %12519 = vmatprep.subr.bf16.mxu0 0
  %12520 = vmatpush1.bf16.msra.mxu0 %v12339
  %12521 = vmatprep.subr.bf16.mxu0 0
  %12522 = vmatpush1.bf16.msra.mxu0 %v12340
  %12523 = vmatprep.subr.bf16.mxu0 0
  %12524 = vmatpush1.bf16.msra.mxu0 %v12341
  %12525 = vmatprep.subr.bf16.mxu0 0
  %12526 = vmatpush1.bf16.msra.mxu0 %v12342
  %12527 = vmatprep.subr.bf16.mxu0 0
  %12528 = vmatpush1.bf16.msra.mxu0 %v12343
  %12529 = vmatprep.subr.bf16.mxu0 0
  %12530 = vmatpush1.bf16.msra.mxu0 %v12344
  %12531 = vmatprep.subr.bf16.mxu0 0
  %12532 = vmatpush1.bf16.msra.mxu0 %v12345
  %12533 = vmatprep.subr.bf16.mxu0 0
  %12534 = vmatpush1.bf16.msra.mxu0 %v12346
  %12535 = vmatprep.subr.bf16.mxu0 0
  %12536 = vmatpush1.bf16.msra.mxu0 %v12347
  %12537 = vmatprep.subr.bf16.mxu0 0
  %12538 = vmatpush1.bf16.msra.mxu0 %v12348
  %12539 = vmatprep.subr.bf16.mxu0 0
  %12540 = vmatpush1.bf16.msra.mxu0 %v12349
  %12541 = vmatprep.subr.bf16.mxu0 0
  %12542 = vmatpush1.bf16.msra.mxu0 %v12350
  %12543 = vmatprep.mubr.bf16.mxu0 %v11909
  %12544 = vmatmul.mubr.bf16.gmra.mrb[0].mxu0 %v11908
  %v12545 = vpop.f32.mrb[0].mxu0
  %v12546 = vadd.f32 %v12506, %v12545
  %v12547 = vpop.f32.mrb[0].mxu0
  %v12548 = vpop.f32.mrb[0].mxu0
  %v12549 = vpop.f32.mrb[0].mxu0
  %12550 = vdwg.mxu0
  %12551 = vmatprep.subr.bf16.mxu0 0
  %12552 = vmatpush1.bf16.msra.mxu0 %v12351
  %12553 = vmatprep.subr.bf16.mxu0 0
  %12554 = vmatpush1.bf16.msra.mxu0 %v12352
  %12555 = vmatprep.subr.bf16.mxu0 0
  %12556 = vmatpush1.bf16.msra.mxu0 %v12353
  %12557 = vmatprep.subr.bf16.mxu0 0
  %12558 = vmatpush1.bf16.msra.mxu0 %v12354
  %12559 = vmatprep.subr.bf16.mxu0 0
  %12560 = vmatpush1.bf16.msra.mxu0 %v12355
  %12561 = vmatprep.subr.bf16.mxu0 0
  %12562 = vmatpush1.bf16.msra.mxu0 %v12356
  %12563 = vmatprep.subr.bf16.mxu0 0
  %12564 = vmatpush1.bf16.msra.mxu0 %v12357
  %12565 = vmatprep.subr.bf16.mxu0 0
  %12566 = vmatpush1.bf16.msra.mxu0 %v12358
  %12567 = vmatprep.subr.bf16.mxu0 0
  %12568 = vmatpush1.bf16.msra.mxu0 %v12359
  %12569 = vmatprep.subr.bf16.mxu0 0
  %12570 = vmatpush1.bf16.msra.mxu0 %v12360
  %12571 = vmatprep.subr.bf16.mxu0 0
  %12572 = vmatpush1.bf16.msra.mxu0 %v12361
  %12573 = vmatprep.subr.bf16.mxu0 0
  %12574 = vmatpush1.bf16.msra.mxu0 %v12362
  %12575 = vmatprep.subr.bf16.mxu0 0
  %12576 = vmatpush1.bf16.msra.mxu0 %v12363
  %12577 = vmatprep.subr.bf16.mxu0 0
  %12578 = vmatpush1.bf16.msra.mxu0 %v12364
  %12579 = vmatprep.subr.bf16.mxu0 0
  %12580 = vmatpush1.bf16.msra.mxu0 %v12365
  %12581 = vmatprep.subr.bf16.mxu0 0
  %12582 = vmatpush1.bf16.msra.mxu0 %v12366
  %12583 = vmatprep.mubr.bf16.mxu0 %v11911
  %12584 = vmatmul.mubr.bf16.gmra.mrb[0].mxu0 %v11910
  %v12585 = vpop.f32.mrb[0].mxu0
  %v12586 = vadd.f32 %v12546, %v12585
  %v12587 = vpop.f32.mrb[0].mxu0
  %v12588 = vpop.f32.mrb[0].mxu0
  %v12589 = vpop.f32.mrb[0].mxu0
  %12590 = vdwg.mxu0
  %v12591 = vlaneseq
  %v12592 = vand.u32 %v12591, 127
  %vm12593 = vcmp.lt.s32.totalorder %v12592, 6
  %v12594 = vsel %vm12593, %v12586, 0.0
  %12595 = vadd.xlane.f32.xlu0 %v12594
  %v12596 = vpop.xlane.xlu0 %12595
  %v12597 = vmul.f32 %v12596, 0.16666667
  %vm12598 = vcmp.eq.s32.totalorder %v12592, 6
  %v12599 = vsel %vm12598, %v12586, 0.0
  %12600 = vadd.xlane.f32.xlu0 %v12599
  %v12601 = vpop.xlane.xlu0 %12600
  %v12602 = vadd.f32 %v12586, %v12601
  %v12603 = vsub.f32 %v12602, %v12597
  %v12604 = vsel %vm12593, %v12603, 0.0
  %12605 = vst [vmem:[%s5] sm:$0xff] %v12604
  // Predicated region
  $region22: #{dqn_forward.7} parent=0 // pred_check
    _
  $region23: #{dqn_forward.7} parent=0 // pred_check_branch
    %12607 = sbr.rel (0) target = $region25
  $region24: #{dqn_forward.7} parent=0 // pred_region
    _
  $region25: #{dqn_forward.7} parent=0 // pred_fallthru
    _
  // Predicated region
  $region26: #{dqn_forward.7} parent=0 // pred_check
    _
  $region27: #{dqn_forward.7} parent=0 // pred_check_branch
    %12609 = sbr.rel (0) target = $region29
  $region28: #{dqn_forward.7} parent=0 // pred_region
    _
  $region29: #{dqn_forward.7} parent=0 // pred_fallthru
    _

</llo_original>
